<compile_context>
chip_gen: v5e
topology: v5e:2x2
jax: 0.10.0
libtpu: 0.0.40
codegen_flags: <defaults>
</compile_context>

<pallas_src>
import functools

import jax
import jax.numpy as jnp
from jax.experimental import pallas as pl
from jax.experimental.pallas import tpu as pltpu


# ----------------------------------------------------------------------------
# Config
# ----------------------------------------------------------------------------
ACT_DTYPE = jnp.bfloat16          # backbone activations / matmul operands
VMEM_LIMIT = 32 * 1024 * 1024     # explicit scoped-VMEM limit (safe on v5e/v6e/v7x)

N_CLASSES = 10
VOCAB_SIZE = 50
EMB_SIZE = 32                     # nn.Embedding / align dim
BASE_W = 8                        # ResNet base width (scaled down from 64)
PAD_C = 128                       # lane-dense channel padding
IMG_C_PAD = 16                    # input images padded from 3 channels
IN_FEATURES = BASE_W * 8 * 4      # 256 = flatten(avgpool) features


# ----------------------------------------------------------------------------
# Pallas kernels
# ----------------------------------------------------------------------------
def _mm_bias_kernel(x_ref, w_ref, b_ref, o_ref, *, relu):
    """o = act(x @ w + b); bf16 operands, f32 accumulate, f32 epilogue."""
    y = jnp.dot(x_ref[...], w_ref[...], preferred_element_type=jnp.float32)
    y = y + b_ref[...]
    if relu:
        y = jnp.maximum(y, 0.0)
    o_ref[...] = y.astype(o_ref.dtype)


def _c3_ds_res_kernel(x3_ref, w3_ref, b3_ref, xd_ref, wd_ref, bd_ref, o_ref):
    """Fused bottleneck tail: relu( (x3 @ w3 + b3) + (x_ds @ w_ds + b_ds) )."""
    y = jnp.dot(x3_ref[...], w3_ref[...], preferred_element_type=jnp.float32)
    y = y + b3_ref[...]
    y = y + jnp.dot(xd_ref[...], wd_ref[...], preferred_element_type=jnp.float32)
    y = y + bd_ref[...]
    o_ref[...] = jnp.maximum(y, 0.0).astype(o_ref.dtype)


def _c3_ident_res_kernel(x3_ref, w3_ref, b3_ref, id_ref, o_ref):
    """Fused bottleneck tail (identity shortcut): relu(x3 @ w3 + b3 + ident)."""
    y = jnp.dot(x3_ref[...], w3_ref[...], preferred_element_type=jnp.float32)
    y = y + b3_ref[...]
    y = y + id_ref[...].astype(jnp.float32)
    o_ref[...] = jnp.maximum(y, 0.0).astype(o_ref.dtype)


def _joint_head_kernel(lf_ref, rf_ref,
                       wla_ref, bla_ref, wra_ref, bra_ref,
                       wlac_ref, blac_ref, wrac_ref, brac_ref,
                       wlc_ref, blc_ref, wrc_ref, brc_ref,
                       embT_ref,
                       logits_ref, lemb_ref, remb_ref, lsim_ref, rsim_ref):
    """Whole classification/alignment head fused into one kernel (bf16 MXU)."""
    f32 = jnp.float32
    lf = lf_ref[...]
    rf = rf_ref[...]

    lemb = jnp.dot(lf, wla_ref[...], preferred_element_type=f32) + bla_ref[...]
    remb = jnp.dot(rf, wra_ref[...], preferred_element_type=f32) + bra_ref[...]
    lemb_b = lemb.astype(jnp.bfloat16)
    remb_b = remb.astype(jnp.bfloat16)

    llog = (jnp.dot(lf, wlc_ref[...], preferred_element_type=f32) + blc_ref[...]
            + jnp.dot(lemb_b, wlac_ref[...], preferred_element_type=f32)
            + blac_ref[...]) * 0.5
    rlog = (jnp.dot(rf, wrc_ref[...], preferred_element_type=f32) + brc_ref[...]
            + jnp.dot(remb_b, wrac_ref[...], preferred_element_type=f32)
            + brac_ref[...]) * 0.5

    logits_ref[...] = (llog + rlog) * 0.5
    lemb_ref[...] = lemb
    remb_ref[...] = remb
    # F.linear(emb, to_emb.weight) == emb @ to_emb.weight.T ; embT pre-transposed [E,V]
    lsim_ref[...] = jnp.dot(lemb_b, embT_ref[...], preferred_element_type=f32)
    rsim_ref[...] = jnp.dot(remb_b, embT_ref[...], preferred_element_type=f32)


# ----------------------------------------------------------------------------
# Pallas wrappers (M-tiled, parallel grid, explicit VMEM limit)
# ----------------------------------------------------------------------------
def _pick_tm(M):
    for tm in (512, 256, 128):
        if M > tm and M % tm == 0:
            return tm
    return M


def _mosaic_params(semantics=("parallel",)):
    return pltpu.CompilerParams(dimension_semantics=semantics,
                                vmem_limit_bytes=VMEM_LIMIT)


def matmul_bias_act(x, w, b, relu=False, out_dtype=ACT_DTYPE):
    M, K = x.shape
    N = w.shape[1]
    tm = _pick_tm(M)
    return pl.pallas_call(
        functools.partial(_mm_bias_kernel, relu=relu),
        out_shape=jax.ShapeDtypeStruct((M, N), out_dtype),
        grid=(M // tm,),
        in_specs=[pl.BlockSpec((tm, K), lambda i: (i, 0)),
                  pl.BlockSpec((K, N), lambda i: (0, 0)),
                  pl.BlockSpec((1, N), lambda i: (0, 0))],
        out_specs=pl.BlockSpec((tm, N), lambda i: (i, 0)),
        compiler_params=_mosaic_params(),
    )(x, w, b)


def residual_tail_ds(x3, w3, b3, xd, wd, bd):
    M, K3 = x3.shape
    N = w3.shape[1]
    Kd = xd.shape[1]
    tm = _pick_tm(M)
    return pl.pallas_call(
        _c3_ds_res_kernel,
        out_shape=jax.ShapeDtypeStruct((M, N), ACT_DTYPE),
        grid=(M // tm,),
        in_specs=[pl.BlockSpec((tm, K3), lambda i: (i, 0)),
                  pl.BlockSpec((K3, N), lambda i: (0, 0)),
                  pl.BlockSpec((1, N), lambda i: (0, 0)),
                  pl.BlockSpec((tm, Kd), lambda i: (i, 0)),
                  pl.BlockSpec((Kd, N), lambda i: (0, 0)),
                  pl.BlockSpec((1, N), lambda i: (0, 0))],
        out_specs=pl.BlockSpec((tm, N), lambda i: (i, 0)),
        compiler_params=_mosaic_params(),
    )(x3, w3, b3, xd, wd, bd)


def residual_tail_ident(x3, w3, b3, ident):
    M, K3 = x3.shape
    N = w3.shape[1]
    tm = _pick_tm(M)
    return pl.pallas_call(
        _c3_ident_res_kernel,
        out_shape=jax.ShapeDtypeStruct((M, N), ACT_DTYPE),
        grid=(M // tm,),
        in_specs=[pl.BlockSpec((tm, K3), lambda i: (i, 0)),
                  pl.BlockSpec((K3, N), lambda i: (0, 0)),
                  pl.BlockSpec((1, N), lambda i: (0, 0)),
                  pl.BlockSpec((tm, N), lambda i: (i, 0))],
        out_specs=pl.BlockSpec((tm, N), lambda i: (i, 0)),
        compiler_params=_mosaic_params(),
    )(x3, w3, b3, ident)


# ----------------------------------------------------------------------------
# Glue: im2col (bf16, JAX), conv = Pallas matmul, trivial pools in XLA
# ----------------------------------------------------------------------------
def _im2col(x, kh, kw, stride, pad):
    """x: [B,H,W,C] NHWC -> cols [B*Ho*Wo, kh*kw*C] with (tap, C) ordering."""
    B, H, W, C = x.shape
    if pad > 0:
        x = jnp.pad(x, ((0, 0), (pad, pad), (pad, pad), (0, 0)))
    Ho = (H + 2 * pad - kh) // stride + 1
    Wo = (W + 2 * pad - kw) // stride + 1
    patches = []
    for i in range(kh):
        for j in range(kw):
            patches.append(x[:, i:i + stride * Ho:stride,
                             j:j + stride * Wo:stride, :])
    cols = jnp.stack(patches, axis=3)                       # [B,Ho,Wo,kh*kw,C]
    return cols.reshape(B * Ho * Wo, kh * kw * C), (B, Ho, Wo)


def conv_bn(x, wb, kh, kw, stride, pad, relu):
    """Conv (im2col + Pallas matmul) with frozen BN folded into (w, b)."""
    w, b = wb
    if kh == 1 and kw == 1:
        if stride != 1:
            x = x[:, ::stride, ::stride, :]
        B, Ho, Wo, C = x.shape
        cols = x.reshape(B * Ho * Wo, C)
    else:
        cols, (B, Ho, Wo) = _im2col(x, kh, kw, stride, pad)
    y = matmul_bias_act(cols, w, b, relu=relu)
    return y.reshape(B, Ho, Wo, w.shape[1])


def maxpool_3x3_s2(x):
    """3x3/2/pad1 maxpool via chained maxima (fuses in XLA; pad ignored)."""
    B, H, W, C = x.shape
    k, s, pad = 3, 2, 1
    Ho = (H + 2 * pad - k) // s + 1
    Wo = (W + 2 * pad - k) // s + 1
    xp = jnp.pad(x, ((0, 0), (pad, pad), (pad, pad), (0, 0)),
                 constant_values=-jnp.inf)
    out = None
    for i in range(k):
        for j in range(k):
            v = xp[:, i:i + s * Ho:s, j:j + s * Wo:s, :]
            out = v if out is None else jnp.maximum(out, v)
    return out


def bottleneck(x, blk, stride):
    out = conv_bn(x, blk['c1'], 1, 1, 1, 0, relu=True)
    out = conv_bn(out, blk['c2'], 3, 3, stride, 1, relu=True)
    B, Ho, Wo, C2 = out.shape
    x3 = out.reshape(B * Ho * Wo, C2)
    w3, b3 = blk['c3']
    if 'ds' in blk:
        xi = x[:, ::stride, ::stride, :] if stride != 1 else x
        xd = xi.reshape(B * Ho * Wo, xi.shape[-1])
        wd, bd = blk['ds']
        y = residual_tail_ds(x3, w3, b3, xd, wd, bd)
    else:
        ident = x.reshape(B * Ho * Wo, x.shape[-1])
        y = residual_tail_ident(x3, w3, b3, ident)
    return y.reshape(B, Ho, Wo, w3.shape[1])


# ----------------------------------------------------------------------------
# Parameter construction (deterministic, synthetic, lane-dense padded)
# ----------------------------------------------------------------------------
def _rup(n, m):
    return ((n + m - 1) // m) * m


def _make_conv_bn(key, kh, kw, cin_real, cin_pad, cout_real, cout_pad):
    k1, k2, k3 = jax.random.split(key, 3)
    w = jax.random.normal(k1, (kh, kw, cin_real, cout_real), jnp.float32)
    w = w * (1.0 / float(kh * kw * cin_real) ** 0.5)
    gamma = 1.0 + 0.1 * jax.random.normal(k2, (cout_real,), jnp.float32)
    beta = 0.1 * jax.random.normal(k3, (cout_real,), jnp.float32)
    mean = jnp.zeros((cout_real,), jnp.float32)
    var = jnp.ones((cout_real,), jnp.float32)
    scale = gamma / jnp.sqrt(var + 1e-5)          # fold frozen BN (eval mode)
    w_f = w * scale                               # [kh,kw,cin_real,cout_real]
    b_f = beta - mean * scale                     # [cout_real]
    # Embed into lane-dense padded shapes; padded rows/cols are zero so the
    # padded channels carry exact zeros through the whole network.
    W = jnp.zeros((kh, kw, cin_pad, cout_pad), jnp.float32)
    W = W.at[:, :, :cin_real, :cout_real].set(w_f)
    b = jnp.zeros((cout_pad,), jnp.float32).at[:cout_real].set(b_f)
    return (W.reshape(kh * kw * cin_pad, cout_pad).astype(ACT_DTYPE),
            b.reshape(1, cout_pad))


def init_params(key):
    keys = iter(jax.random.split(key, 64))
    p = {}
    p['conv1'] = _make_conv_bn(next(keys), 7, 7, 3, IMG_C_PAD, BASE_W, PAD_C)

    def make_block(cin_real, cin_pad, planes, stride):
        planes_pad = _rup(planes, PAD_C)
        cout_real = planes * 4
        cout_pad = _rup(cout_real, PAD_C)
        blk = {'c1': _make_conv_bn(next(keys), 1, 1, cin_real, cin_pad,
                                   planes, planes_pad),
               'c2': _make_conv_bn(next(keys), 3, 3, planes, planes_pad,
                                   planes, planes_pad),
               'c3': _make_conv_bn(next(keys), 1, 1, planes, planes_pad,
                                   cout_real, cout_pad)}
        if stride != 1 or cin_real != cout_real:
            blk['ds'] = _make_conv_bn(next(keys), 1, 1, cin_real, cin_pad,
                                      cout_real, cout_pad)
        return blk, cout_real, cout_pad

    p['layer1'], cr, cp = make_block(BASE_W, PAD_C, BASE_W, 1)       # 8  -> 32
    p['layer2'], cr, cp = make_block(cr, cp, BASE_W * 2, 2)          # 32 -> 64
    p['layer3'], cr, cp = make_block(cr, cp, BASE_W * 4, 2)          # 64 -> 128
    p['layer4'], cr, cp = make_block(cr, cp, BASE_W * 8, 2)          # 128-> 256
    assert cr == IN_FEATURES and cp == IN_FEATURES

    def lin(cin, cout):   # nn.Linear stored as [in, out] (already transposed)
        w = jax.random.normal(next(keys), (cin, cout), jnp.float32)
        w = w * (1.0 / float(cin) ** 0.5)
        b = 0.1 * jax.random.normal(next(keys), (1, cout), jnp.float32)
        return w.astype(ACT_DTYPE), b

    p['left_align'] = lin(IN_FEATURES, EMB_SIZE)
    p['right_align'] = lin(IN_FEATURES, EMB_SIZE)
    p['left_align_classifier'] = lin(EMB_SIZE, N_CLASSES)
    p['right_align_classifier'] = lin(EMB_SIZE, N_CLASSES)
    p['left_classifier'] = lin(IN_FEATURES, N_CLASSES)
    p['right_classifier'] = lin(IN_FEATURES, N_CLASSES)

    emb_w = jax.random.normal(next(keys), (VOCAB_SIZE, EMB_SIZE), jnp.float32)
    emb_w = emb_w.at[0].set(0.0)                  # padding_idx=0
    p['to_emb_wT'] = emb_w.T.astype(ACT_DTYPE)    # [EMB, VOCAB]
    return p


# ----------------------------------------------------------------------------
# Forward pass
# ----------------------------------------------------------------------------
def backbone_features(p, x):
    x = conv_bn(x, p['conv1'], 7, 7, 2, 3, relu=True)
    x = maxpool_3x3_s2(x)
    x = bottleneck(x, p['layer1'], 1)
    x = bottleneck(x, p['layer2'], 2)
    x = bottleneck(x, p['layer3'], 2)
    x = bottleneck(x, p['layer4'], 2)
    # Global average pool (H = W = 1 at these shapes, so this is exact).
    return jnp.mean(x.astype(jnp.float32), axis=(1, 2))     # [2B, IN_FEATURES]


def joint_head(p, lf, rf):
    B = lf.shape[0]
    args = [lf, rf,
            p['left_align'][0], p['left_align'][1],
            p['right_align'][0], p['right_align'][1],
            p['left_align_classifier'][0], p['left_align_classifier'][1],
            p['right_align_classifier'][0], p['right_align_classifier'][1],
            p['left_classifier'][0], p['left_classifier'][1],
            p['right_classifier'][0], p['right_classifier'][1],
            p['to_emb_wT']]
    in_specs = [pl.BlockSpec(a.shape, lambda i: (0, 0)) for a in args]
    out_shapes = (jax.ShapeDtypeStruct((B, N_CLASSES), jnp.float32),
                  jax.ShapeDtypeStruct((B, EMB_SIZE), jnp.float32),
                  jax.ShapeDtypeStruct((B, EMB_SIZE), jnp.float32),
                  jax.ShapeDtypeStruct((B, VOCAB_SIZE), jnp.float32),
                  jax.ShapeDtypeStruct((B, VOCAB_SIZE), jnp.float32))
    out_specs = tuple(pl.BlockSpec(s.shape, lambda i: (0, 0)) for s in out_shapes)
    logits, lemb, remb, lsim, rsim = pl.pallas_call(
        _joint_head_kernel,
        out_shape=out_shapes,
        grid=(1,),
        in_specs=in_specs,
        out_specs=out_specs,
        compiler_params=_mosaic_params(("arbitrary",)),
    )(*args)
    return {'logits': logits, 'left_emb': lemb, 'right_emb': remb,
            'left_sim': lsim, 'right_sim': rsim}


@jax.jit
def forward(p, left_image, right_image):
    B = left_image.shape[0]
    # One backbone pass for both images (halves dispatches, doubles M).
    x = jnp.concatenate([left_image, right_image], axis=0)   # [2B,3,H,W] NCHW
    x = jnp.transpose(x, (0, 2, 3, 1))                        # NCHW -> NHWC
    x = jnp.pad(x, ((0, 0), (0, 0), (0, 0), (0, IMG_C_PAD - x.shape[-1])))
    x = x.astype(ACT_DTYPE)
    feats = backbone_features(p, x)                           # [2B, 256] f32
    lf = feats[:B].astype(ACT_DTYPE)
    rf = feats[B:].astype(ACT_DTYPE)
    return joint_head(p, lf, rf)


# ----------------------------------------------------------------------------
if __name__ == "__main__":
    key = jax.random.PRNGKey(0)
    k_par, k_l, k_r = jax.random.split(key, 3)
    params = init_params(k_par)

    # PyTorch-style NCHW inputs
    left = jax.random.normal(k_l, (2, 3, 32, 32), jnp.float32)
    right = jax.random.normal(k_r, (2, 3, 32, 32), jnp.float32)

    out = forward(params, left, right)
    out = jax.block_until_ready(out)

    assert out['logits'].shape == (2, N_CLASSES)
    assert out['left_emb'].shape == (2, EMB_SIZE)
    assert out['right_emb'].shape == (2, EMB_SIZE)
    assert out['left_sim'].shape == (2, VOCAB_SIZE)
    assert out['right_sim'].shape == (2, VOCAB_SIZE)
    print("KERNEL_OK")
</pallas_src>

<mosaic_0001>
module attributes {stable_mosaic.version = 11 : i64} {
  func.func @_mm_bias_kernel(%arg0: i32, %arg1: memref<512x784xbf16, #tpu.memory_space<vmem>>, %arg2: memref<784x128xbf16, #tpu.memory_space<vmem>>, %arg3: memref<1x128xf32, #tpu.memory_space<vmem>>, %arg4: memref<512x128xbf16, #tpu.memory_space<vmem>>) attributes {dimension_semantics = [#tpu.dimension_semantics<parallel>], iteration_bounds = array<i64: 2>, scalar_prefetch = 0 : i64, scratch_operands = 0 : i64, tpu.core_type = #tpu.core_type<tc>, window_params = [{transform_indices = @transform_0, window_bounds = array<i64: 512, 784>}, {pipeline_mode = #tpu.pipeline_mode<synchronous>, transform_indices = @transform_1, window_bounds = array<i64: 784, 128>}, {pipeline_mode = #tpu.pipeline_mode<synchronous>, transform_indices = @transform_2, window_bounds = array<i64: 1, 128>}, {transform_indices = @transform_3, window_bounds = array<i64: 512, 128>}]} {
    %c0 = arith.constant 0 : index
    %c0_0 = arith.constant 0 : index
    %0 = vector.load %arg1[%c0, %c0_0] : memref<512x784xbf16, #tpu.memory_space<vmem>>, vector<512x784xbf16>
    %c0_1 = arith.constant 0 : index
    %c0_2 = arith.constant 0 : index
    %1 = vector.load %arg2[%c0_1, %c0_2] : memref<784x128xbf16, #tpu.memory_space<vmem>>, vector<784x128xbf16>
    %cst = arith.constant dense<0.000000e+00> : vector<512x128xf32>
    %2 = tpu.matmul %0, %1, %cst {dimension_numbers = #tpu.dot_dimension_numbers<[1], [0], [0], [1], [0, 0, 1, 1], [], []>} : vector<512x784xbf16>, vector<784x128xbf16>, vector<512x128xf32> -> vector<512x128xf32>
    %c0_3 = arith.constant 0 : index
    %c0_4 = arith.constant 0 : index
    %3 = vector.load %arg3[%c0_3, %c0_4] : memref<1x128xf32, #tpu.memory_space<vmem>>, vector<1x128xf32>
    %4 = vector.broadcast %3 : vector<1x128xf32> to vector<512x128xf32>
    %5 = arith.addf %2, %4 : vector<512x128xf32>
    %cst_5 = arith.constant 0.000000e+00 : f32
    %6 = vector.broadcast %cst_5 : f32 to vector<512x128xf32>
    %7 = arith.maximumf %5, %6 : vector<512x128xf32>
    %8 = arith.truncf %7 : vector<512x128xf32> to vector<512x128xbf16>
    %c0_6 = arith.constant 0 : index
    %c0_7 = arith.constant 0 : index
    %9 = vector.load %arg4[%c0_6, %c0_7] : memref<512x128xbf16, #tpu.memory_space<vmem>>, vector<512x128xbf16>
    tpu.vector_store %arg4[%c0_6, %c0_7], %8 {strides = array<i32>} : memref<512x128xbf16, #tpu.memory_space<vmem>>, vector<512x128xbf16>,
    return
  }
  func.func @transform_0(%arg0: i32) -> (i32, i32) {
    %c0_i32 = arith.constant 0 : i32
    %c0_i32_0 = arith.constant 0 : i32
    return %arg0, %c0_i32 : i32, i32
  }
  func.func @transform_1(%arg0: i32) -> (i32, i32) {
    %c0_i32 = arith.constant 0 : i32
    %c0_i32_0 = arith.constant 0 : i32
    %c0_i32_1 = arith.constant 0 : i32
    return %c0_i32, %c0_i32_0 : i32, i32
  }
  func.func @transform_2(%arg0: i32) -> (i32, i32) {
    %c0_i32 = arith.constant 0 : i32
    %c0_i32_0 = arith.constant 0 : i32
    %c0_i32_1 = arith.constant 0 : i32
    return %c0_i32, %c0_i32_0 : i32, i32
  }
  func.func @transform_3(%arg0: i32) -> (i32, i32) {
    %c0_i32 = arith.constant 0 : i32
    %c0_i32_0 = arith.constant 0 : i32
    return %arg0, %c0_i32 : i32, i32
  }
}

module attributes {stable_mosaic.version = 11 : i64} {
  func.func @_mm_bias_kernel(%arg0: i32, %arg1: memref<128x128xbf16, #tpu.memory_space<vmem>>, %arg2: memref<128x128xbf16, #tpu.memory_space<vmem>>, %arg3: memref<1x128xf32, #tpu.memory_space<vmem>>, %arg4: memref<128x128xbf16, #tpu.memory_space<vmem>>) attributes {dimension_semantics = [#tpu.dimension_semantics<parallel>], iteration_bounds = array<i64: 2>, scalar_prefetch = 0 : i64, scratch_operands = 0 : i64, tpu.core_type = #tpu.core_type<tc>, window_params = [{transform_indices = @transform_0, window_bounds = array<i64: 128, 128>}, {pipeline_mode = #tpu.pipeline_mode<synchronous>, transform_indices = @transform_1, window_bounds = array<i64: 128, 128>}, {pipeline_mode = #tpu.pipeline_mode<synchronous>, transform_indices = @transform_2, window_bounds = array<i64: 1, 128>}, {transform_indices = @transform_3, window_bounds = array<i64: 128, 128>}]} {
    %c0 = arith.constant 0 : index
    %c0_0 = arith.constant 0 : index
    %0 = vector.load %arg1[%c0, %c0_0] : memref<128x128xbf16, #tpu.memory_space<vmem>>, vector<128x128xbf16>
    %c0_1 = arith.constant 0 : index
    %c0_2 = arith.constant 0 : index
    %1 = vector.load %arg2[%c0_1, %c0_2] : memref<128x128xbf16, #tpu.memory_space<vmem>>, vector<128x128xbf16>
    %cst = arith.constant dense<0.000000e+00> : vector<128x128xf32>
    %2 = tpu.matmul %0, %1, %cst {dimension_numbers = #tpu.dot_dimension_numbers<[1], [0], [0], [1], [0, 0, 1, 1], [], []>} : vector<128x128xbf16>, vector<128x128xbf16>, vector<128x128xf32> -> vector<128x128xf32>
    %c0_3 = arith.constant 0 : index
    %c0_4 = arith.constant 0 : index
    %3 = vector.load %arg3[%c0_3, %c0_4] : memref<1x128xf32, #tpu.memory_space<vmem>>, vector<1x128xf32>
    %4 = vector.broadcast %3 : vector<1x128xf32> to vector<128x128xf32>
    %5 = arith.addf %2, %4 : vector<128x128xf32>
    %cst_5 = arith.constant 0.000000e+00 : f32
    %6 = vector.broadcast %cst_5 : f32 to vector<128x128xf32>
    %7 = arith.maximumf %5, %6 : vector<128x128xf32>
    %8 = arith.truncf %7 : vector<128x128xf32> to vector<128x128xbf16>
    %c0_6 = arith.constant 0 : index
    %c0_7 = arith.constant 0 : index
    %9 = vector.load %arg4[%c0_6, %c0_7] : memref<128x128xbf16, #tpu.memory_space<vmem>>, vector<128x128xbf16>
    tpu.vector_store %arg4[%c0_6, %c0_7], %8 {strides = array<i32>} : memref<128x128xbf16, #tpu.memory_space<vmem>>, vector<128x128xbf16>,
    return
  }
  func.func @transform_0(%arg0: i32) -> (i32, i32) {
    %c0_i32 = arith.constant 0 : i32
    %c0_i32_0 = arith.constant 0 : i32
    return %arg0, %c0_i32 : i32, i32
  }
  func.func @transform_1(%arg0: i32) -> (i32, i32) {
    %c0_i32 = arith.constant 0 : i32
    %c0_i32_0 = arith.constant 0 : i32
    %c0_i32_1 = arith.constant 0 : i32
    return %c0_i32, %c0_i32_0 : i32, i32
  }
  func.func @transform_2(%arg0: i32) -> (i32, i32) {
    %c0_i32 = arith.constant 0 : i32
    %c0_i32_0 = arith.constant 0 : i32
    %c0_i32_1 = arith.constant 0 : i32
    return %c0_i32, %c0_i32_0 : i32, i32
  }
  func.func @transform_3(%arg0: i32) -> (i32, i32) {
    %c0_i32 = arith.constant 0 : i32
    %c0_i32_0 = arith.constant 0 : i32
    return %arg0, %c0_i32 : i32, i32
  }
}

module attributes {stable_mosaic.version = 11 : i64} {
  func.func @_mm_bias_kernel(%arg0: i32, %arg1: memref<128x1152xbf16, #tpu.memory_space<vmem>>, %arg2: memref<1152x128xbf16, #tpu.memory_space<vmem>>, %arg3: memref<1x128xf32, #tpu.memory_space<vmem>>, %arg4: memref<128x128xbf16, #tpu.memory_space<vmem>>) attributes {dimension_semantics = [#tpu.dimension_semantics<parallel>], iteration_bounds = array<i64: 2>, scalar_prefetch = 0 : i64, scratch_operands = 0 : i64, tpu.core_type = #tpu.core_type<tc>, window_params = [{transform_indices = @transform_0, window_bounds = array<i64: 128, 1152>}, {pipeline_mode = #tpu.pipeline_mode<synchronous>, transform_indices = @transform_1, window_bounds = array<i64: 1152, 128>}, {pipeline_mode = #tpu.pipeline_mode<synchronous>, transform_indices = @transform_2, window_bounds = array<i64: 1, 128>}, {transform_indices = @transform_3, window_bounds = array<i64: 128, 128>}]} {
    %c0 = arith.constant 0 : index
    %c0_0 = arith.constant 0 : index
    %0 = vector.load %arg1[%c0, %c0_0] : memref<128x1152xbf16, #tpu.memory_space<vmem>>, vector<128x1152xbf16>
    %c0_1 = arith.constant 0 : index
    %c0_2 = arith.constant 0 : index
    %1 = vector.load %arg2[%c0_1, %c0_2] : memref<1152x128xbf16, #tpu.memory_space<vmem>>, vector<1152x128xbf16>
    %cst = arith.constant dense<0.000000e+00> : vector<128x128xf32>
    %2 = tpu.matmul %0, %1, %cst {dimension_numbers = #tpu.dot_dimension_numbers<[1], [0], [0], [1], [0, 0, 1, 1], [], []>} : vector<128x1152xbf16>, vector<1152x128xbf16>, vector<128x128xf32> -> vector<128x128xf32>
    %c0_3 = arith.constant 0 : index
    %c0_4 = arith.constant 0 : index
    %3 = vector.load %arg3[%c0_3, %c0_4] : memref<1x128xf32, #tpu.memory_space<vmem>>, vector<1x128xf32>
    %4 = vector.broadcast %3 : vector<1x128xf32> to vector<128x128xf32>
    %5 = arith.addf %2, %4 : vector<128x128xf32>
    %cst_5 = arith.constant 0.000000e+00 : f32
    %6 = vector.broadcast %cst_5 : f32 to vector<128x128xf32>
    %7 = arith.maximumf %5, %6 : vector<128x128xf32>
    %8 = arith.truncf %7 : vector<128x128xf32> to vector<128x128xbf16>
    %c0_6 = arith.constant 0 : index
    %c0_7 = arith.constant 0 : index
    %9 = vector.load %arg4[%c0_6, %c0_7] : memref<128x128xbf16, #tpu.memory_space<vmem>>, vector<128x128xbf16>
    tpu.vector_store %arg4[%c0_6, %c0_7], %8 {strides = array<i32>} : memref<128x128xbf16, #tpu.memory_space<vmem>>, vector<128x128xbf16>,
    return
  }
  func.func @transform_0(%arg0: i32) -> (i32, i32) {
    %c0_i32 = arith.constant 0 : i32
    %c0_i32_0 = arith.constant 0 : i32
    return %arg0, %c0_i32 : i32, i32
  }
  func.func @transform_1(%arg0: i32) -> (i32, i32) {
    %c0_i32 = arith.constant 0 : i32
    %c0_i32_0 = arith.constant 0 : i32
    %c0_i32_1 = arith.constant 0 : i32
    return %c0_i32, %c0_i32_0 : i32, i32
  }
  func.func @transform_2(%arg0: i32) -> (i32, i32) {
    %c0_i32 = arith.constant 0 : i32
    %c0_i32_0 = arith.constant 0 : i32
    %c0_i32_1 = arith.constant 0 : i32
    return %c0_i32, %c0_i32_0 : i32, i32
  }
  func.func @transform_3(%arg0: i32) -> (i32, i32) {
    %c0_i32 = arith.constant 0 : i32
    %c0_i32_0 = arith.constant 0 : i32
    return %arg0, %c0_i32 : i32, i32
  }
}

module attributes {stable_mosaic.version = 11 : i64} {
  func.func @_c3_ds_res_kernel(%arg0: i32, %arg1: memref<128x128xbf16, #tpu.memory_space<vmem>>, %arg2: memref<128x128xbf16, #tpu.memory_space<vmem>>, %arg3: memref<1x128xf32, #tpu.memory_space<vmem>>, %arg4: memref<128x128xbf16, #tpu.memory_space<vmem>>, %arg5: memref<128x128xbf16, #tpu.memory_space<vmem>>, %arg6: memref<1x128xf32, #tpu.memory_space<vmem>>, %arg7: memref<128x128xbf16, #tpu.memory_space<vmem>>) attributes {dimension_semantics = [#tpu.dimension_semantics<parallel>], iteration_bounds = array<i64: 2>, scalar_prefetch = 0 : i64, scratch_operands = 0 : i64, tpu.core_type = #tpu.core_type<tc>, window_params = [{transform_indices = @transform_0, window_bounds = array<i64: 128, 128>}, {pipeline_mode = #tpu.pipeline_mode<synchronous>, transform_indices = @transform_1, window_bounds = array<i64: 128, 128>}, {pipeline_mode = #tpu.pipeline_mode<synchronous>, transform_indices = @transform_2, window_bounds = array<i64: 1, 128>}, {transform_indices = @transform_3, window_bounds = array<i64: 128, 128>}, {pipeline_mode = #tpu.pipeline_mode<synchronous>, transform_indices = @transform_4, window_bounds = array<i64: 128, 128>}, {pipeline_mode = #tpu.pipeline_mode<synchronous>, transform_indices = @transform_5, window_bounds = array<i64: 1, 128>}, {transform_indices = @transform_6, window_bounds = array<i64: 128, 128>}]} {
    %c0 = arith.constant 0 : index
    %c0_0 = arith.constant 0 : index
    %0 = vector.load %arg1[%c0, %c0_0] : memref<128x128xbf16, #tpu.memory_space<vmem>>, vector<128x128xbf16>
    %c0_1 = arith.constant 0 : index
    %c0_2 = arith.constant 0 : index
    %1 = vector.load %arg2[%c0_1, %c0_2] : memref<128x128xbf16, #tpu.memory_space<vmem>>, vector<128x128xbf16>
    %cst = arith.constant dense<0.000000e+00> : vector<128x128xf32>
    %2 = tpu.matmul %0, %1, %cst {dimension_numbers = #tpu.dot_dimension_numbers<[1], [0], [0], [1], [0, 0, 1, 1], [], []>} : vector<128x128xbf16>, vector<128x128xbf16>, vector<128x128xf32> -> vector<128x128xf32>
    %c0_3 = arith.constant 0 : index
    %c0_4 = arith.constant 0 : index
    %3 = vector.load %arg3[%c0_3, %c0_4] : memref<1x128xf32, #tpu.memory_space<vmem>>, vector<1x128xf32>
    %4 = vector.broadcast %3 : vector<1x128xf32> to vector<128x128xf32>
    %5 = arith.addf %2, %4 : vector<128x128xf32>
    %c0_5 = arith.constant 0 : index
    %c0_6 = arith.constant 0 : index
    %6 = vector.load %arg4[%c0_5, %c0_6] : memref<128x128xbf16, #tpu.memory_space<vmem>>, vector<128x128xbf16>
    %c0_7 = arith.constant 0 : index
    %c0_8 = arith.constant 0 : index
    %7 = vector.load %arg5[%c0_7, %c0_8] : memref<128x128xbf16, #tpu.memory_space<vmem>>, vector<128x128xbf16>
    %cst_9 = arith.constant dense<0.000000e+00> : vector<128x128xf32>
    %8 = tpu.matmul %6, %7, %cst_9 {dimension_numbers = #tpu.dot_dimension_numbers<[1], [0], [0], [1], [0, 0, 1, 1], [], []>} : vector<128x128xbf16>, vector<128x128xbf16>, vector<128x128xf32> -> vector<128x128xf32>
    %9 = arith.addf %5, %8 : vector<128x128xf32>
    %c0_10 = arith.constant 0 : index
    %c0_11 = arith.constant 0 : index
    %10 = vector.load %arg6[%c0_10, %c0_11] : memref<1x128xf32, #tpu.memory_space<vmem>>, vector<1x128xf32>
    %11 = vector.broadcast %10 : vector<1x128xf32> to vector<128x128xf32>
    %12 = arith.addf %9, %11 : vector<128x128xf32>
    %cst_12 = arith.constant 0.000000e+00 : f32
    %13 = vector.broadcast %cst_12 : f32 to vector<128x128xf32>
    %14 = arith.maximumf %12, %13 : vector<128x128xf32>
    %15 = arith.truncf %14 : vector<128x128xf32> to vector<128x128xbf16>
    %c0_13 = arith.constant 0 : index
    %c0_14 = arith.constant 0 : index
    %16 = vector.load %arg7[%c0_13, %c0_14] : memref<128x128xbf16, #tpu.memory_space<vmem>>, vector<128x128xbf16>
    tpu.vector_store %arg7[%c0_13, %c0_14], %15 {strides = array<i32>} : memref<128x128xbf16, #tpu.memory_space<vmem>>, vector<128x128xbf16>,
    return
  }
  func.func @transform_0(%arg0: i32) -> (i32, i32) {
    %c0_i32 = arith.constant 0 : i32
    %c0_i32_0 = arith.constant 0 : i32
    return %arg0, %c0_i32 : i32, i32
  }
  func.func @transform_1(%arg0: i32) -> (i32, i32) {
    %c0_i32 = arith.constant 0 : i32
    %c0_i32_0 = arith.constant 0 : i32
    %c0_i32_1 = arith.constant 0 : i32
    return %c0_i32, %c0_i32_0 : i32, i32
  }
  func.func @transform_2(%arg0: i32) -> (i32, i32) {
    %c0_i32 = arith.constant 0 : i32
    %c0_i32_0 = arith.constant 0 : i32
    %c0_i32_1 = arith.constant 0 : i32
    return %c0_i32, %c0_i32_0 : i32, i32
  }
  func.func @transform_3(%arg0: i32) -> (i32, i32) {
    %c0_i32 = arith.constant 0 : i32
    %c0_i32_0 = arith.constant 0 : i32
    return %arg0, %c0_i32 : i32, i32
  }
  func.func @transform_4(%arg0: i32) -> (i32, i32) {
    %c0_i32 = arith.constant 0 : i32
    %c0_i32_0 = arith.constant 0 : i32
    %c0_i32_1 = arith.constant 0 : i32
    return %c0_i32, %c0_i32_0 : i32, i32
  }
  func.func @transform_5(%arg0: i32) -> (i32, i32) {
    %c0_i32 = arith.constant 0 : i32
    %c0_i32_0 = arith.constant 0 : i32
    %c0_i32_1 = arith.constant 0 : i32
    return %c0_i32, %c0_i32_0 : i32, i32
  }
  func.func @transform_6(%arg0: i32) -> (i32, i32) {
    %c0_i32 = arith.constant 0 : i32
    %c0_i32_0 = arith.constant 0 : i32
    return %arg0, %c0_i32 : i32, i32
  }
}

module attributes {stable_mosaic.version = 11 : i64} {
  func.func @_mm_bias_kernel(%arg0: i32, %arg1: memref<64x1152xbf16, #tpu.memory_space<vmem>>, %arg2: memref<1152x128xbf16, #tpu.memory_space<vmem>>, %arg3: memref<1x128xf32, #tpu.memory_space<vmem>>, %arg4: memref<64x128xbf16, #tpu.memory_space<vmem>>) attributes {dimension_semantics = [#tpu.dimension_semantics<parallel>], iteration_bounds = array<i64: 1>, scalar_prefetch = 0 : i64, scratch_operands = 0 : i64, tpu.core_type = #tpu.core_type<tc>, window_params = [{transform_indices = @transform_0, window_bounds = array<i64: 64, 1152>}, {pipeline_mode = #tpu.pipeline_mode<synchronous>, transform_indices = @transform_1, window_bounds = array<i64: 1152, 128>}, {pipeline_mode = #tpu.pipeline_mode<synchronous>, transform_indices = @transform_2, window_bounds = array<i64: 1, 128>}, {transform_indices = @transform_3, window_bounds = array<i64: 64, 128>}]} {
    %c0 = arith.constant 0 : index
    %c0_0 = arith.constant 0 : index
    %0 = vector.load %arg1[%c0, %c0_0] : memref<64x1152xbf16, #tpu.memory_space<vmem>>, vector<64x1152xbf16>
    %c0_1 = arith.constant 0 : index
    %c0_2 = arith.constant 0 : index
    %1 = vector.load %arg2[%c0_1, %c0_2] : memref<1152x128xbf16, #tpu.memory_space<vmem>>, vector<1152x128xbf16>
    %cst = arith.constant dense<0.000000e+00> : vector<64x128xf32>
    %2 = tpu.matmul %0, %1, %cst {dimension_numbers = #tpu.dot_dimension_numbers<[1], [0], [0], [1], [0, 0, 1, 1], [], []>} : vector<64x1152xbf16>, vector<1152x128xbf16>, vector<64x128xf32> -> vector<64x128xf32>
    %c0_3 = arith.constant 0 : index
    %c0_4 = arith.constant 0 : index
    %3 = vector.load %arg3[%c0_3, %c0_4] : memref<1x128xf32, #tpu.memory_space<vmem>>, vector<1x128xf32>
    %4 = vector.broadcast %3 : vector<1x128xf32> to vector<64x128xf32>
    %5 = arith.addf %2, %4 : vector<64x128xf32>
    %cst_5 = arith.constant 0.000000e+00 : f32
    %6 = vector.broadcast %cst_5 : f32 to vector<64x128xf32>
    %7 = arith.maximumf %5, %6 : vector<64x128xf32>
    %8 = arith.truncf %7 : vector<64x128xf32> to vector<64x128xbf16>
    %c0_6 = arith.constant 0 : index
    %c0_7 = arith.constant 0 : index
    %9 = vector.load %arg4[%c0_6, %c0_7] : memref<64x128xbf16, #tpu.memory_space<vmem>>, vector<64x128xbf16>
    tpu.vector_store %arg4[%c0_6, %c0_7], %8 {strides = array<i32>} : memref<64x128xbf16, #tpu.memory_space<vmem>>, vector<64x128xbf16>,
    return
  }
  func.func @transform_0(%arg0: i32) -> (i32, i32) {
    %c0_i32 = arith.constant 0 : i32
    %c0_i32_0 = arith.constant 0 : i32
    return %arg0, %c0_i32 : i32, i32
  }
  func.func @transform_1(%arg0: i32) -> (i32, i32) {
    %c0_i32 = arith.constant 0 : i32
    %c0_i32_0 = arith.constant 0 : i32
    %c0_i32_1 = arith.constant 0 : i32
    return %c0_i32, %c0_i32_0 : i32, i32
  }
  func.func @transform_2(%arg0: i32) -> (i32, i32) {
    %c0_i32 = arith.constant 0 : i32
    %c0_i32_0 = arith.constant 0 : i32
    %c0_i32_1 = arith.constant 0 : i32
    return %c0_i32, %c0_i32_0 : i32, i32
  }
  func.func @transform_3(%arg0: i32) -> (i32, i32) {
    %c0_i32 = arith.constant 0 : i32
    %c0_i32_0 = arith.constant 0 : i32
    return %arg0, %c0_i32 : i32, i32
  }
}

module attributes {stable_mosaic.version = 11 : i64} {
  func.func @_c3_ds_res_kernel(%arg0: i32, %arg1: memref<64x128xbf16, #tpu.memory_space<vmem>>, %arg2: memref<128x128xbf16, #tpu.memory_space<vmem>>, %arg3: memref<1x128xf32, #tpu.memory_space<vmem>>, %arg4: memref<64x128xbf16, #tpu.memory_space<vmem>>, %arg5: memref<128x128xbf16, #tpu.memory_space<vmem>>, %arg6: memref<1x128xf32, #tpu.memory_space<vmem>>, %arg7: memref<64x128xbf16, #tpu.memory_space<vmem>>) attributes {dimension_semantics = [#tpu.dimension_semantics<parallel>], iteration_bounds = array<i64: 1>, scalar_prefetch = 0 : i64, scratch_operands = 0 : i64, tpu.core_type = #tpu.core_type<tc>, window_params = [{transform_indices = @transform_0, window_bounds = array<i64: 64, 128>}, {pipeline_mode = #tpu.pipeline_mode<synchronous>, transform_indices = @transform_1, window_bounds = array<i64: 128, 128>}, {pipeline_mode = #tpu.pipeline_mode<synchronous>, transform_indices = @transform_2, window_bounds = array<i64: 1, 128>}, {transform_indices = @transform_3, window_bounds = array<i64: 64, 128>}, {pipeline_mode = #tpu.pipeline_mode<synchronous>, transform_indices = @transform_4, window_bounds = array<i64: 128, 128>}, {pipeline_mode = #tpu.pipeline_mode<synchronous>, transform_indices = @transform_5, window_bounds = array<i64: 1, 128>}, {transform_indices = @transform_6, window_bounds = array<i64: 64, 128>}]} {
    %c0 = arith.constant 0 : index
    %c0_0 = arith.constant 0 : index
    %0 = vector.load %arg1[%c0, %c0_0] : memref<64x128xbf16, #tpu.memory_space<vmem>>, vector<64x128xbf16>
    %c0_1 = arith.constant 0 : index
    %c0_2 = arith.constant 0 : index
    %1 = vector.load %arg2[%c0_1, %c0_2] : memref<128x128xbf16, #tpu.memory_space<vmem>>, vector<128x128xbf16>
    %cst = arith.constant dense<0.000000e+00> : vector<64x128xf32>
    %2 = tpu.matmul %0, %1, %cst {dimension_numbers = #tpu.dot_dimension_numbers<[1], [0], [0], [1], [0, 0, 1, 1], [], []>} : vector<64x128xbf16>, vector<128x128xbf16>, vector<64x128xf32> -> vector<64x128xf32>
    %c0_3 = arith.constant 0 : index
    %c0_4 = arith.constant 0 : index
    %3 = vector.load %arg3[%c0_3, %c0_4] : memref<1x128xf32, #tpu.memory_space<vmem>>, vector<1x128xf32>
    %4 = vector.broadcast %3 : vector<1x128xf32> to vector<64x128xf32>
    %5 = arith.addf %2, %4 : vector<64x128xf32>
    %c0_5 = arith.constant 0 : index
    %c0_6 = arith.constant 0 : index
    %6 = vector.load %arg4[%c0_5, %c0_6] : memref<64x128xbf16, #tpu.memory_space<vmem>>, vector<64x128xbf16>
    %c0_7 = arith.constant 0 : index
    %c0_8 = arith.constant 0 : index
    %7 = vector.load %arg5[%c0_7, %c0_8] : memref<128x128xbf16, #tpu.memory_space<vmem>>, vector<128x128xbf16>
    %cst_9 = arith.constant dense<0.000000e+00> : vector<64x128xf32>
    %8 = tpu.matmul %6, %7, %cst_9 {dimension_numbers = #tpu.dot_dimension_numbers<[1], [0], [0], [1], [0, 0, 1, 1], [], []>} : vector<64x128xbf16>, vector<128x128xbf16>, vector<64x128xf32> -> vector<64x128xf32>
    %9 = arith.addf %5, %8 : vector<64x128xf32>
    %c0_10 = arith.constant 0 : index
    %c0_11 = arith.constant 0 : index
    %10 = vector.load %arg6[%c0_10, %c0_11] : memref<1x128xf32, #tpu.memory_space<vmem>>, vector<1x128xf32>
    %11 = vector.broadcast %10 : vector<1x128xf32> to vector<64x128xf32>
    %12 = arith.addf %9, %11 : vector<64x128xf32>
    %cst_12 = arith.constant 0.000000e+00 : f32
    %13 = vector.broadcast %cst_12 : f32 to vector<64x128xf32>
    %14 = arith.maximumf %12, %13 : vector<64x128xf32>
    %15 = arith.truncf %14 : vector<64x128xf32> to vector<64x128xbf16>
    %c0_13 = arith.constant 0 : index
    %c0_14 = arith.constant 0 : index
    %16 = vector.load %arg7[%c0_13, %c0_14] : memref<64x128xbf16, #tpu.memory_space<vmem>>, vector<64x128xbf16>
    tpu.vector_store %arg7[%c0_13, %c0_14], %15 {strides = array<i32>} : memref<64x128xbf16, #tpu.memory_space<vmem>>, vector<64x128xbf16>,
    return
  }
  func.func @transform_0(%arg0: i32) -> (i32, i32) {
    %c0_i32 = arith.constant 0 : i32
    %c0_i32_0 = arith.constant 0 : i32
    return %arg0, %c0_i32 : i32, i32
  }
  func.func @transform_1(%arg0: i32) -> (i32, i32) {
    %c0_i32 = arith.constant 0 : i32
    %c0_i32_0 = arith.constant 0 : i32
    %c0_i32_1 = arith.constant 0 : i32
    return %c0_i32, %c0_i32_0 : i32, i32
  }
  func.func @transform_2(%arg0: i32) -> (i32, i32) {
    %c0_i32 = arith.constant 0 : i32
    %c0_i32_0 = arith.constant 0 : i32
    %c0_i32_1 = arith.constant 0 : i32
    return %c0_i32, %c0_i32_0 : i32, i32
  }
  func.func @transform_3(%arg0: i32) -> (i32, i32) {
    %c0_i32 = arith.constant 0 : i32
    %c0_i32_0 = arith.constant 0 : i32
    return %arg0, %c0_i32 : i32, i32
  }
  func.func @transform_4(%arg0: i32) -> (i32, i32) {
    %c0_i32 = arith.constant 0 : i32
    %c0_i32_0 = arith.constant 0 : i32
    %c0_i32_1 = arith.constant 0 : i32
    return %c0_i32, %c0_i32_0 : i32, i32
  }
  func.func @transform_5(%arg0: i32) -> (i32, i32) {
    %c0_i32 = arith.constant 0 : i32
    %c0_i32_0 = arith.constant 0 : i32
    %c0_i32_1 = arith.constant 0 : i32
    return %c0_i32, %c0_i32_0 : i32, i32
  }
  func.func @transform_6(%arg0: i32) -> (i32, i32) {
    %c0_i32 = arith.constant 0 : i32
    %c0_i32_0 = arith.constant 0 : i32
    return %arg0, %c0_i32 : i32, i32
  }
}

module attributes {stable_mosaic.version = 11 : i64} {
  func.func @_mm_bias_kernel(%arg0: i32, %arg1: memref<64x128xbf16, #tpu.memory_space<vmem>>, %arg2: memref<128x128xbf16, #tpu.memory_space<vmem>>, %arg3: memref<1x128xf32, #tpu.memory_space<vmem>>, %arg4: memref<64x128xbf16, #tpu.memory_space<vmem>>) attributes {dimension_semantics = [#tpu.dimension_semantics<parallel>], iteration_bounds = array<i64: 1>, scalar_prefetch = 0 : i64, scratch_operands = 0 : i64, tpu.core_type = #tpu.core_type<tc>, window_params = [{transform_indices = @transform_0, window_bounds = array<i64: 64, 128>}, {pipeline_mode = #tpu.pipeline_mode<synchronous>, transform_indices = @transform_1, window_bounds = array<i64: 128, 128>}, {pipeline_mode = #tpu.pipeline_mode<synchronous>, transform_indices = @transform_2, window_bounds = array<i64: 1, 128>}, {transform_indices = @transform_3, window_bounds = array<i64: 64, 128>}]} {
    %c0 = arith.constant 0 : index
    %c0_0 = arith.constant 0 : index
    %0 = vector.load %arg1[%c0, %c0_0] : memref<64x128xbf16, #tpu.memory_space<vmem>>, vector<64x128xbf16>
    %c0_1 = arith.constant 0 : index
    %c0_2 = arith.constant 0 : index
    %1 = vector.load %arg2[%c0_1, %c0_2] : memref<128x128xbf16, #tpu.memory_space<vmem>>, vector<128x128xbf16>
    %cst = arith.constant dense<0.000000e+00> : vector<64x128xf32>
    %2 = tpu.matmul %0, %1, %cst {dimension_numbers = #tpu.dot_dimension_numbers<[1], [0], [0], [1], [0, 0, 1, 1], [], []>} : vector<64x128xbf16>, vector<128x128xbf16>, vector<64x128xf32> -> vector<64x128xf32>
    %c0_3 = arith.constant 0 : index
    %c0_4 = arith.constant 0 : index
    %3 = vector.load %arg3[%c0_3, %c0_4] : memref<1x128xf32, #tpu.memory_space<vmem>>, vector<1x128xf32>
    %4 = vector.broadcast %3 : vector<1x128xf32> to vector<64x128xf32>
    %5 = arith.addf %2, %4 : vector<64x128xf32>
    %cst_5 = arith.constant 0.000000e+00 : f32
    %6 = vector.broadcast %cst_5 : f32 to vector<64x128xf32>
    %7 = arith.maximumf %5, %6 : vector<64x128xf32>
    %8 = arith.truncf %7 : vector<64x128xf32> to vector<64x128xbf16>
    %c0_6 = arith.constant 0 : index
    %c0_7 = arith.constant 0 : index
    %9 = vector.load %arg4[%c0_6, %c0_7] : memref<64x128xbf16, #tpu.memory_space<vmem>>, vector<64x128xbf16>
    tpu.vector_store %arg4[%c0_6, %c0_7], %8 {strides = array<i32>} : memref<64x128xbf16, #tpu.memory_space<vmem>>, vector<64x128xbf16>,
    return
  }
  func.func @transform_0(%arg0: i32) -> (i32, i32) {
    %c0_i32 = arith.constant 0 : i32
    %c0_i32_0 = arith.constant 0 : i32
    return %arg0, %c0_i32 : i32, i32
  }
  func.func @transform_1(%arg0: i32) -> (i32, i32) {
    %c0_i32 = arith.constant 0 : i32
    %c0_i32_0 = arith.constant 0 : i32
    %c0_i32_1 = arith.constant 0 : i32
    return %c0_i32, %c0_i32_0 : i32, i32
  }
  func.func @transform_2(%arg0: i32) -> (i32, i32) {
    %c0_i32 = arith.constant 0 : i32
    %c0_i32_0 = arith.constant 0 : i32
    %c0_i32_1 = arith.constant 0 : i32
    return %c0_i32, %c0_i32_0 : i32, i32
  }
  func.func @transform_3(%arg0: i32) -> (i32, i32) {
    %c0_i32 = arith.constant 0 : i32
    %c0_i32_0 = arith.constant 0 : i32
    return %arg0, %c0_i32 : i32, i32
  }
}

module attributes {stable_mosaic.version = 11 : i64} {
  func.func @_c3_ds_res_kernel(%arg0: i32, %arg1: memref<16x128xbf16, #tpu.memory_space<vmem>>, %arg2: memref<128x128xbf16, #tpu.memory_space<vmem>>, %arg3: memref<1x128xf32, #tpu.memory_space<vmem>>, %arg4: memref<16x128xbf16, #tpu.memory_space<vmem>>, %arg5: memref<128x128xbf16, #tpu.memory_space<vmem>>, %arg6: memref<1x128xf32, #tpu.memory_space<vmem>>, %arg7: memref<16x128xbf16, #tpu.memory_space<vmem>>) attributes {dimension_semantics = [#tpu.dimension_semantics<parallel>], iteration_bounds = array<i64: 1>, scalar_prefetch = 0 : i64, scratch_operands = 0 : i64, tpu.core_type = #tpu.core_type<tc>, window_params = [{transform_indices = @transform_0, window_bounds = array<i64: 16, 128>}, {pipeline_mode = #tpu.pipeline_mode<synchronous>, transform_indices = @transform_1, window_bounds = array<i64: 128, 128>}, {pipeline_mode = #tpu.pipeline_mode<synchronous>, transform_indices = @transform_2, window_bounds = array<i64: 1, 128>}, {transform_indices = @transform_3, window_bounds = array<i64: 16, 128>}, {pipeline_mode = #tpu.pipeline_mode<synchronous>, transform_indices = @transform_4, window_bounds = array<i64: 128, 128>}, {pipeline_mode = #tpu.pipeline_mode<synchronous>, transform_indices = @transform_5, window_bounds = array<i64: 1, 128>}, {transform_indices = @transform_6, window_bounds = array<i64: 16, 128>}]} {
    %c0 = arith.constant 0 : index
    %c0_0 = arith.constant 0 : index
    %0 = vector.load %arg1[%c0, %c0_0] : memref<16x128xbf16, #tpu.memory_space<vmem>>, vector<16x128xbf16>
    %c0_1 = arith.constant 0 : index
    %c0_2 = arith.constant 0 : index
    %1 = vector.load %arg2[%c0_1, %c0_2] : memref<128x128xbf16, #tpu.memory_space<vmem>>, vector<128x128xbf16>
    %cst = arith.constant dense<0.000000e+00> : vector<16x128xf32>
    %2 = tpu.matmul %0, %1, %cst {dimension_numbers = #tpu.dot_dimension_numbers<[1], [0], [0], [1], [0, 0, 1, 1], [], []>} : vector<16x128xbf16>, vector<128x128xbf16>, vector<16x128xf32> -> vector<16x128xf32>
    %c0_3 = arith.constant 0 : index
    %c0_4 = arith.constant 0 : index
    %3 = vector.load %arg3[%c0_3, %c0_4] : memref<1x128xf32, #tpu.memory_space<vmem>>, vector<1x128xf32>
    %4 = vector.broadcast %3 : vector<1x128xf32> to vector<16x128xf32>
    %5 = arith.addf %2, %4 : vector<16x128xf32>
    %c0_5 = arith.constant 0 : index
    %c0_6 = arith.constant 0 : index
    %6 = vector.load %arg4[%c0_5, %c0_6] : memref<16x128xbf16, #tpu.memory_space<vmem>>, vector<16x128xbf16>
    %c0_7 = arith.constant 0 : index
    %c0_8 = arith.constant 0 : index
    %7 = vector.load %arg5[%c0_7, %c0_8] : memref<128x128xbf16, #tpu.memory_space<vmem>>, vector<128x128xbf16>
    %cst_9 = arith.constant dense<0.000000e+00> : vector<16x128xf32>
    %8 = tpu.matmul %6, %7, %cst_9 {dimension_numbers = #tpu.dot_dimension_numbers<[1], [0], [0], [1], [0, 0, 1, 1], [], []>} : vector<16x128xbf16>, vector<128x128xbf16>, vector<16x128xf32> -> vector<16x128xf32>
    %9 = arith.addf %5, %8 : vector<16x128xf32>
    %c0_10 = arith.constant 0 : index
    %c0_11 = arith.constant 0 : index
    %10 = vector.load %arg6[%c0_10, %c0_11] : memref<1x128xf32, #tpu.memory_space<vmem>>, vector<1x128xf32>
    %11 = vector.broadcast %10 : vector<1x128xf32> to vector<16x128xf32>
    %12 = arith.addf %9, %11 : vector<16x128xf32>
    %cst_12 = arith.constant 0.000000e+00 : f32
    %13 = vector.broadcast %cst_12 : f32 to vector<16x128xf32>
    %14 = arith.maximumf %12, %13 : vector<16x128xf32>
    %15 = arith.truncf %14 : vector<16x128xf32> to vector<16x128xbf16>
    %c0_13 = arith.constant 0 : index
    %c0_14 = arith.constant 0 : index
    %16 = vector.load %arg7[%c0_13, %c0_14] : memref<16x128xbf16, #tpu.memory_space<vmem>>, vector<16x128xbf16>
    tpu.vector_store %arg7[%c0_13, %c0_14], %15 {strides = array<i32>} : memref<16x128xbf16, #tpu.memory_space<vmem>>, vector<16x128xbf16>,
    return
  }
  func.func @transform_0(%arg0: i32) -> (i32, i32) {
    %c0_i32 = arith.constant 0 : i32
    %c0_i32_0 = arith.constant 0 : i32
    return %arg0, %c0_i32 : i32, i32
  }
  func.func @transform_1(%arg0: i32) -> (i32, i32) {
    %c0_i32 = arith.constant 0 : i32
    %c0_i32_0 = arith.constant 0 : i32
    %c0_i32_1 = arith.constant 0 : i32
    return %c0_i32, %c0_i32_0 : i32, i32
  }
  func.func @transform_2(%arg0: i32) -> (i32, i32) {
    %c0_i32 = arith.constant 0 : i32
    %c0_i32_0 = arith.constant 0 : i32
    %c0_i32_1 = arith.constant 0 : i32
    return %c0_i32, %c0_i32_0 : i32, i32
  }
  func.func @transform_3(%arg0: i32) -> (i32, i32) {
    %c0_i32 = arith.constant 0 : i32
    %c0_i32_0 = arith.constant 0 : i32
    return %arg0, %c0_i32 : i32, i32
  }
  func.func @transform_4(%arg0: i32) -> (i32, i32) {
    %c0_i32 = arith.constant 0 : i32
    %c0_i32_0 = arith.constant 0 : i32
    %c0_i32_1 = arith.constant 0 : i32
    return %c0_i32, %c0_i32_0 : i32, i32
  }
  func.func @transform_5(%arg0: i32) -> (i32, i32) {
    %c0_i32 = arith.constant 0 : i32
    %c0_i32_0 = arith.constant 0 : i32
    %c0_i32_1 = arith.constant 0 : i32
    return %c0_i32, %c0_i32_0 : i32, i32
  }
  func.func @transform_6(%arg0: i32) -> (i32, i32) {
    %c0_i32 = arith.constant 0 : i32
    %c0_i32_0 = arith.constant 0 : i32
    return %arg0, %c0_i32 : i32, i32
  }
}

module attributes {stable_mosaic.version = 11 : i64} {
  func.func @_mm_bias_kernel(%arg0: i32, %arg1: memref<16x128xbf16, #tpu.memory_space<vmem>>, %arg2: memref<128x128xbf16, #tpu.memory_space<vmem>>, %arg3: memref<1x128xf32, #tpu.memory_space<vmem>>, %arg4: memref<16x128xbf16, #tpu.memory_space<vmem>>) attributes {dimension_semantics = [#tpu.dimension_semantics<parallel>], iteration_bounds = array<i64: 1>, scalar_prefetch = 0 : i64, scratch_operands = 0 : i64, tpu.core_type = #tpu.core_type<tc>, window_params = [{transform_indices = @transform_0, window_bounds = array<i64: 16, 128>}, {pipeline_mode = #tpu.pipeline_mode<synchronous>, transform_indices = @transform_1, window_bounds = array<i64: 128, 128>}, {pipeline_mode = #tpu.pipeline_mode<synchronous>, transform_indices = @transform_2, window_bounds = array<i64: 1, 128>}, {transform_indices = @transform_3, window_bounds = array<i64: 16, 128>}]} {
    %c0 = arith.constant 0 : index
    %c0_0 = arith.constant 0 : index
    %0 = vector.load %arg1[%c0, %c0_0] : memref<16x128xbf16, #tpu.memory_space<vmem>>, vector<16x128xbf16>
    %c0_1 = arith.constant 0 : index
    %c0_2 = arith.constant 0 : index
    %1 = vector.load %arg2[%c0_1, %c0_2] : memref<128x128xbf16, #tpu.memory_space<vmem>>, vector<128x128xbf16>
    %cst = arith.constant dense<0.000000e+00> : vector<16x128xf32>
    %2 = tpu.matmul %0, %1, %cst {dimension_numbers = #tpu.dot_dimension_numbers<[1], [0], [0], [1], [0, 0, 1, 1], [], []>} : vector<16x128xbf16>, vector<128x128xbf16>, vector<16x128xf32> -> vector<16x128xf32>
    %c0_3 = arith.constant 0 : index
    %c0_4 = arith.constant 0 : index
    %3 = vector.load %arg3[%c0_3, %c0_4] : memref<1x128xf32, #tpu.memory_space<vmem>>, vector<1x128xf32>
    %4 = vector.broadcast %3 : vector<1x128xf32> to vector<16x128xf32>
    %5 = arith.addf %2, %4 : vector<16x128xf32>
    %cst_5 = arith.constant 0.000000e+00 : f32
    %6 = vector.broadcast %cst_5 : f32 to vector<16x128xf32>
    %7 = arith.maximumf %5, %6 : vector<16x128xf32>
    %8 = arith.truncf %7 : vector<16x128xf32> to vector<16x128xbf16>
    %c0_6 = arith.constant 0 : index
    %c0_7 = arith.constant 0 : index
    %9 = vector.load %arg4[%c0_6, %c0_7] : memref<16x128xbf16, #tpu.memory_space<vmem>>, vector<16x128xbf16>
    tpu.vector_store %arg4[%c0_6, %c0_7], %8 {strides = array<i32>} : memref<16x128xbf16, #tpu.memory_space<vmem>>, vector<16x128xbf16>,
    return
  }
  func.func @transform_0(%arg0: i32) -> (i32, i32) {
    %c0_i32 = arith.constant 0 : i32
    %c0_i32_0 = arith.constant 0 : i32
    return %arg0, %c0_i32 : i32, i32
  }
  func.func @transform_1(%arg0: i32) -> (i32, i32) {
    %c0_i32 = arith.constant 0 : i32
    %c0_i32_0 = arith.constant 0 : i32
    %c0_i32_1 = arith.constant 0 : i32
    return %c0_i32, %c0_i32_0 : i32, i32
  }
  func.func @transform_2(%arg0: i32) -> (i32, i32) {
    %c0_i32 = arith.constant 0 : i32
    %c0_i32_0 = arith.constant 0 : i32
    %c0_i32_1 = arith.constant 0 : i32
    return %c0_i32, %c0_i32_0 : i32, i32
  }
  func.func @transform_3(%arg0: i32) -> (i32, i32) {
    %c0_i32 = arith.constant 0 : i32
    %c0_i32_0 = arith.constant 0 : i32
    return %arg0, %c0_i32 : i32, i32
  }
}

module attributes {stable_mosaic.version = 11 : i64} {
  func.func @_mm_bias_kernel(%arg0: i32, %arg1: memref<16x1152xbf16, #tpu.memory_space<vmem>>, %arg2: memref<1152x128xbf16, #tpu.memory_space<vmem>>, %arg3: memref<1x128xf32, #tpu.memory_space<vmem>>, %arg4: memref<16x128xbf16, #tpu.memory_space<vmem>>) attributes {dimension_semantics = [#tpu.dimension_semantics<parallel>], iteration_bounds = array<i64: 1>, scalar_prefetch = 0 : i64, scratch_operands = 0 : i64, tpu.core_type = #tpu.core_type<tc>, window_params = [{transform_indices = @transform_0, window_bounds = array<i64: 16, 1152>}, {pipeline_mode = #tpu.pipeline_mode<synchronous>, transform_indices = @transform_1, window_bounds = array<i64: 1152, 128>}, {pipeline_mode = #tpu.pipeline_mode<synchronous>, transform_indices = @transform_2, window_bounds = array<i64: 1, 128>}, {transform_indices = @transform_3, window_bounds = array<i64: 16, 128>}]} {
    %c0 = arith.constant 0 : index
    %c0_0 = arith.constant 0 : index
    %0 = vector.load %arg1[%c0, %c0_0] : memref<16x1152xbf16, #tpu.memory_space<vmem>>, vector<16x1152xbf16>
    %c0_1 = arith.constant 0 : index
    %c0_2 = arith.constant 0 : index
    %1 = vector.load %arg2[%c0_1, %c0_2] : memref<1152x128xbf16, #tpu.memory_space<vmem>>, vector<1152x128xbf16>
    %cst = arith.constant dense<0.000000e+00> : vector<16x128xf32>
    %2 = tpu.matmul %0, %1, %cst {dimension_numbers = #tpu.dot_dimension_numbers<[1], [0], [0], [1], [0, 0, 1, 1], [], []>} : vector<16x1152xbf16>, vector<1152x128xbf16>, vector<16x128xf32> -> vector<16x128xf32>
    %c0_3 = arith.constant 0 : index
    %c0_4 = arith.constant 0 : index
    %3 = vector.load %arg3[%c0_3, %c0_4] : memref<1x128xf32, #tpu.memory_space<vmem>>, vector<1x128xf32>
    %4 = vector.broadcast %3 : vector<1x128xf32> to vector<16x128xf32>
    %5 = arith.addf %2, %4 : vector<16x128xf32>
    %cst_5 = arith.constant 0.000000e+00 : f32
    %6 = vector.broadcast %cst_5 : f32 to vector<16x128xf32>
    %7 = arith.maximumf %5, %6 : vector<16x128xf32>
    %8 = arith.truncf %7 : vector<16x128xf32> to vector<16x128xbf16>
    %c0_6 = arith.constant 0 : index
    %c0_7 = arith.constant 0 : index
    %9 = vector.load %arg4[%c0_6, %c0_7] : memref<16x128xbf16, #tpu.memory_space<vmem>>, vector<16x128xbf16>
    tpu.vector_store %arg4[%c0_6, %c0_7], %8 {strides = array<i32>} : memref<16x128xbf16, #tpu.memory_space<vmem>>, vector<16x128xbf16>,
    return
  }
  func.func @transform_0(%arg0: i32) -> (i32, i32) {
    %c0_i32 = arith.constant 0 : i32
    %c0_i32_0 = arith.constant 0 : i32
    return %arg0, %c0_i32 : i32, i32
  }
  func.func @transform_1(%arg0: i32) -> (i32, i32) {
    %c0_i32 = arith.constant 0 : i32
    %c0_i32_0 = arith.constant 0 : i32
    %c0_i32_1 = arith.constant 0 : i32
    return %c0_i32, %c0_i32_0 : i32, i32
  }
  func.func @transform_2(%arg0: i32) -> (i32, i32) {
    %c0_i32 = arith.constant 0 : i32
    %c0_i32_0 = arith.constant 0 : i32
    %c0_i32_1 = arith.constant 0 : i32
    return %c0_i32, %c0_i32_0 : i32, i32
  }
  func.func @transform_3(%arg0: i32) -> (i32, i32) {
    %c0_i32 = arith.constant 0 : i32
    %c0_i32_0 = arith.constant 0 : i32
    return %arg0, %c0_i32 : i32, i32
  }
}

module attributes {stable_mosaic.version = 11 : i64} {
  func.func @_mm_bias_kernel(%arg0: i32, %arg1: memref<4x1152xbf16, #tpu.memory_space<vmem>>, %arg2: memref<1152x128xbf16, #tpu.memory_space<vmem>>, %arg3: memref<1x128xf32, #tpu.memory_space<vmem>>, %arg4: memref<4x128xbf16, #tpu.memory_space<vmem>>) attributes {dimension_semantics = [#tpu.dimension_semantics<parallel>], iteration_bounds = array<i64: 1>, scalar_prefetch = 0 : i64, scratch_operands = 0 : i64, tpu.core_type = #tpu.core_type<tc>, window_params = [{transform_indices = @transform_0, window_bounds = array<i64: 4, 1152>}, {pipeline_mode = #tpu.pipeline_mode<synchronous>, transform_indices = @transform_1, window_bounds = array<i64: 1152, 128>}, {pipeline_mode = #tpu.pipeline_mode<synchronous>, transform_indices = @transform_2, window_bounds = array<i64: 1, 128>}, {transform_indices = @transform_3, window_bounds = array<i64: 4, 128>}]} {
    %c0 = arith.constant 0 : index
    %c0_0 = arith.constant 0 : index
    %0 = vector.load %arg1[%c0, %c0_0] : memref<4x1152xbf16, #tpu.memory_space<vmem>>, vector<4x1152xbf16>
    %c0_1 = arith.constant 0 : index
    %c0_2 = arith.constant 0 : index
    %1 = vector.load %arg2[%c0_1, %c0_2] : memref<1152x128xbf16, #tpu.memory_space<vmem>>, vector<1152x128xbf16>
    %cst = arith.constant dense<0.000000e+00> : vector<4x128xf32>
    %2 = tpu.matmul %0, %1, %cst {dimension_numbers = #tpu.dot_dimension_numbers<[1], [0], [0], [1], [0, 0, 1, 1], [], []>} : vector<4x1152xbf16>, vector<1152x128xbf16>, vector<4x128xf32> -> vector<4x128xf32>
    %c0_3 = arith.constant 0 : index
    %c0_4 = arith.constant 0 : index
    %3 = vector.load %arg3[%c0_3, %c0_4] : memref<1x128xf32, #tpu.memory_space<vmem>>, vector<1x128xf32>
    %4 = vector.broadcast %3 : vector<1x128xf32> to vector<4x128xf32>
    %5 = arith.addf %2, %4 : vector<4x128xf32>
    %cst_5 = arith.constant 0.000000e+00 : f32
    %6 = vector.broadcast %cst_5 : f32 to vector<4x128xf32>
    %7 = arith.maximumf %5, %6 : vector<4x128xf32>
    %8 = arith.truncf %7 : vector<4x128xf32> to vector<4x128xbf16>
    %c0_6 = arith.constant 0 : index
    %c0_7 = arith.constant 0 : index
    %9 = vector.load %arg4[%c0_6, %c0_7] : memref<4x128xbf16, #tpu.memory_space<vmem>>, vector<4x128xbf16>
    tpu.vector_store %arg4[%c0_6, %c0_7], %8 {strides = array<i32>} : memref<4x128xbf16, #tpu.memory_space<vmem>>, vector<4x128xbf16>,
    return
  }
  func.func @transform_0(%arg0: i32) -> (i32, i32) {
    %c0_i32 = arith.constant 0 : i32
    %c0_i32_0 = arith.constant 0 : i32
    return %arg0, %c0_i32 : i32, i32
  }
  func.func @transform_1(%arg0: i32) -> (i32, i32) {
    %c0_i32 = arith.constant 0 : i32
    %c0_i32_0 = arith.constant 0 : i32
    %c0_i32_1 = arith.constant 0 : i32
    return %c0_i32, %c0_i32_0 : i32, i32
  }
  func.func @transform_2(%arg0: i32) -> (i32, i32) {
    %c0_i32 = arith.constant 0 : i32
    %c0_i32_0 = arith.constant 0 : i32
    %c0_i32_1 = arith.constant 0 : i32
    return %c0_i32, %c0_i32_0 : i32, i32
  }
  func.func @transform_3(%arg0: i32) -> (i32, i32) {
    %c0_i32 = arith.constant 0 : i32
    %c0_i32_0 = arith.constant 0 : i32
    return %arg0, %c0_i32 : i32, i32
  }
}

module attributes {stable_mosaic.version = 11 : i64} {
  func.func @_c3_ds_res_kernel(%arg0: i32, %arg1: memref<4x128xbf16, #tpu.memory_space<vmem>>, %arg2: memref<128x256xbf16, #tpu.memory_space<vmem>>, %arg3: memref<1x256xf32, #tpu.memory_space<vmem>>, %arg4: memref<4x128xbf16, #tpu.memory_space<vmem>>, %arg5: memref<128x256xbf16, #tpu.memory_space<vmem>>, %arg6: memref<1x256xf32, #tpu.memory_space<vmem>>, %arg7: memref<4x256xbf16, #tpu.memory_space<vmem>>) attributes {dimension_semantics = [#tpu.dimension_semantics<parallel>], iteration_bounds = array<i64: 1>, scalar_prefetch = 0 : i64, scratch_operands = 0 : i64, tpu.core_type = #tpu.core_type<tc>, window_params = [{transform_indices = @transform_0, window_bounds = array<i64: 4, 128>}, {pipeline_mode = #tpu.pipeline_mode<synchronous>, transform_indices = @transform_1, window_bounds = array<i64: 128, 256>}, {pipeline_mode = #tpu.pipeline_mode<synchronous>, transform_indices = @transform_2, window_bounds = array<i64: 1, 256>}, {transform_indices = @transform_3, window_bounds = array<i64: 4, 128>}, {pipeline_mode = #tpu.pipeline_mode<synchronous>, transform_indices = @transform_4, window_bounds = array<i64: 128, 256>}, {pipeline_mode = #tpu.pipeline_mode<synchronous>, transform_indices = @transform_5, window_bounds = array<i64: 1, 256>}, {transform_indices = @transform_6, window_bounds = array<i64: 4, 256>}]} {
    %c0 = arith.constant 0 : index
    %c0_0 = arith.constant 0 : index
    %0 = vector.load %arg1[%c0, %c0_0] : memref<4x128xbf16, #tpu.memory_space<vmem>>, vector<4x128xbf16>
    %c0_1 = arith.constant 0 : index
    %c0_2 = arith.constant 0 : index
    %1 = vector.load %arg2[%c0_1, %c0_2] : memref<128x256xbf16, #tpu.memory_space<vmem>>, vector<128x256xbf16>
    %cst = arith.constant dense<0.000000e+00> : vector<4x256xf32>
    %2 = tpu.matmul %0, %1, %cst {dimension_numbers = #tpu.dot_dimension_numbers<[1], [0], [0], [1], [0, 0, 1, 1], [], []>} : vector<4x128xbf16>, vector<128x256xbf16>, vector<4x256xf32> -> vector<4x256xf32>
    %c0_3 = arith.constant 0 : index
    %c0_4 = arith.constant 0 : index
    %3 = vector.load %arg3[%c0_3, %c0_4] : memref<1x256xf32, #tpu.memory_space<vmem>>, vector<1x256xf32>
    %4 = vector.broadcast %3 : vector<1x256xf32> to vector<4x256xf32>
    %5 = arith.addf %2, %4 : vector<4x256xf32>
    %c0_5 = arith.constant 0 : index
    %c0_6 = arith.constant 0 : index
    %6 = vector.load %arg4[%c0_5, %c0_6] : memref<4x128xbf16, #tpu.memory_space<vmem>>, vector<4x128xbf16>
    %c0_7 = arith.constant 0 : index
    %c0_8 = arith.constant 0 : index
    %7 = vector.load %arg5[%c0_7, %c0_8] : memref<128x256xbf16, #tpu.memory_space<vmem>>, vector<128x256xbf16>
    %cst_9 = arith.constant dense<0.000000e+00> : vector<4x256xf32>
    %8 = tpu.matmul %6, %7, %cst_9 {dimension_numbers = #tpu.dot_dimension_numbers<[1], [0], [0], [1], [0, 0, 1, 1], [], []>} : vector<4x128xbf16>, vector<128x256xbf16>, vector<4x256xf32> -> vector<4x256xf32>
    %9 = arith.addf %5, %8 : vector<4x256xf32>
    %c0_10 = arith.constant 0 : index
    %c0_11 = arith.constant 0 : index
    %10 = vector.load %arg6[%c0_10, %c0_11] : memref<1x256xf32, #tpu.memory_space<vmem>>, vector<1x256xf32>
    %11 = vector.broadcast %10 : vector<1x256xf32> to vector<4x256xf32>
    %12 = arith.addf %9, %11 : vector<4x256xf32>
    %cst_12 = arith.constant 0.000000e+00 : f32
    %13 = vector.broadcast %cst_12 : f32 to vector<4x256xf32>
    %14 = arith.maximumf %12, %13 : vector<4x256xf32>
    %15 = arith.truncf %14 : vector<4x256xf32> to vector<4x256xbf16>
    %c0_13 = arith.constant 0 : index
    %c0_14 = arith.constant 0 : index
    %16 = vector.load %arg7[%c0_13, %c0_14] : memref<4x256xbf16, #tpu.memory_space<vmem>>, vector<4x256xbf16>
    tpu.vector_store %arg7[%c0_13, %c0_14], %15 {strides = array<i32>} : memref<4x256xbf16, #tpu.memory_space<vmem>>, vector<4x256xbf16>,
    return
  }
  func.func @transform_0(%arg0: i32) -> (i32, i32) {
    %c0_i32 = arith.constant 0 : i32
    %c0_i32_0 = arith.constant 0 : i32
    return %arg0, %c0_i32 : i32, i32
  }
  func.func @transform_1(%arg0: i32) -> (i32, i32) {
    %c0_i32 = arith.constant 0 : i32
    %c0_i32_0 = arith.constant 0 : i32
    %c0_i32_1 = arith.constant 0 : i32
    return %c0_i32, %c0_i32_0 : i32, i32
  }
  func.func @transform_2(%arg0: i32) -> (i32, i32) {
    %c0_i32 = arith.constant 0 : i32
    %c0_i32_0 = arith.constant 0 : i32
    %c0_i32_1 = arith.constant 0 : i32
    return %c0_i32, %c0_i32_0 : i32, i32
  }
  func.func @transform_3(%arg0: i32) -> (i32, i32) {
    %c0_i32 = arith.constant 0 : i32
    %c0_i32_0 = arith.constant 0 : i32
    return %arg0, %c0_i32 : i32, i32
  }
  func.func @transform_4(%arg0: i32) -> (i32, i32) {
    %c0_i32 = arith.constant 0 : i32
    %c0_i32_0 = arith.constant 0 : i32
    %c0_i32_1 = arith.constant 0 : i32
    return %c0_i32, %c0_i32_0 : i32, i32
  }
  func.func @transform_5(%arg0: i32) -> (i32, i32) {
    %c0_i32 = arith.constant 0 : i32
    %c0_i32_0 = arith.constant 0 : i32
    %c0_i32_1 = arith.constant 0 : i32
    return %c0_i32, %c0_i32_0 : i32, i32
  }
  func.func @transform_6(%arg0: i32) -> (i32, i32) {
    %c0_i32 = arith.constant 0 : i32
    %c0_i32_0 = arith.constant 0 : i32
    return %arg0, %c0_i32 : i32, i32
  }
}

module attributes {stable_mosaic.version = 11 : i64} {
  func.func @_joint_head_kernel(%arg0: i32, %arg1: memref<2x256xbf16, #tpu.memory_space<vmem>>, %arg2: memref<2x256xbf16, #tpu.memory_space<vmem>>, %arg3: memref<256x32xbf16, #tpu.memory_space<vmem>>, %arg4: memref<1x32xf32, #tpu.memory_space<vmem>>, %arg5: memref<256x32xbf16, #tpu.memory_space<vmem>>, %arg6: memref<1x32xf32, #tpu.memory_space<vmem>>, %arg7: memref<32x10xbf16, #tpu.memory_space<vmem>>, %arg8: memref<1x10xf32, #tpu.memory_space<vmem>>, %arg9: memref<32x10xbf16, #tpu.memory_space<vmem>>, %arg10: memref<1x10xf32, #tpu.memory_space<vmem>>, %arg11: memref<256x10xbf16, #tpu.memory_space<vmem>>, %arg12: memref<1x10xf32, #tpu.memory_space<vmem>>, %arg13: memref<256x10xbf16, #tpu.memory_space<vmem>>, %arg14: memref<1x10xf32, #tpu.memory_space<vmem>>, %arg15: memref<32x50xbf16, #tpu.memory_space<vmem>>, %arg16: memref<2x10xf32, #tpu.memory_space<vmem>>, %arg17: memref<2x32xf32, #tpu.memory_space<vmem>>, %arg18: memref<2x32xf32, #tpu.memory_space<vmem>>, %arg19: memref<2x50xf32, #tpu.memory_space<vmem>>, %arg20: memref<2x50xf32, #tpu.memory_space<vmem>>) attributes {dimension_semantics = [#tpu.dimension_semantics<arbitrary>], iteration_bounds = array<i64: 1>, scalar_prefetch = 0 : i64, scratch_operands = 0 : i64, tpu.core_type = #tpu.core_type<tc>, window_params = [{pipeline_mode = #tpu.pipeline_mode<synchronous>, transform_indices = @transform_0, window_bounds = array<i64: 2, 256>}, {pipeline_mode = #tpu.pipeline_mode<synchronous>, transform_indices = @transform_1, window_bounds = array<i64: 2, 256>}, {pipeline_mode = #tpu.pipeline_mode<synchronous>, transform_indices = @transform_2, window_bounds = array<i64: 256, 32>}, {pipeline_mode = #tpu.pipeline_mode<synchronous>, transform_indices = @transform_3, window_bounds = array<i64: 1, 32>}, {pipeline_mode = #tpu.pipeline_mode<synchronous>, transform_indices = @transform_4, window_bounds = array<i64: 256, 32>}, {pipeline_mode = #tpu.pipeline_mode<synchronous>, transform_indices = @transform_5, window_bounds = array<i64: 1, 32>}, {pipeline_mode = #tpu.pipeline_mode<synchronous>, transform_indices = @transform_6, window_bounds = array<i64: 32, 10>}, {pipeline_mode = #tpu.pipeline_mode<synchronous>, transform_indices = @transform_7, window_bounds = array<i64: 1, 10>}, {pipeline_mode = #tpu.pipeline_mode<synchronous>, transform_indices = @transform_8, window_bounds = array<i64: 32, 10>}, {pipeline_mode = #tpu.pipeline_mode<synchronous>, transform_indices = @transform_9, window_bounds = array<i64: 1, 10>}, {pipeline_mode = #tpu.pipeline_mode<synchronous>, transform_indices = @transform_10, window_bounds = array<i64: 256, 10>}, {pipeline_mode = #tpu.pipeline_mode<synchronous>, transform_indices = @transform_11, window_bounds = array<i64: 1, 10>}, {pipeline_mode = #tpu.pipeline_mode<synchronous>, transform_indices = @transform_12, window_bounds = array<i64: 256, 10>}, {pipeline_mode = #tpu.pipeline_mode<synchronous>, transform_indices = @transform_13, window_bounds = array<i64: 1, 10>}, {pipeline_mode = #tpu.pipeline_mode<synchronous>, transform_indices = @transform_14, window_bounds = array<i64: 32, 50>}, {pipeline_mode = #tpu.pipeline_mode<synchronous>, transform_indices = @transform_15, window_bounds = array<i64: 2, 10>}, {pipeline_mode = #tpu.pipeline_mode<synchronous>, transform_indices = @transform_16, window_bounds = array<i64: 2, 32>}, {pipeline_mode = #tpu.pipeline_mode<synchronous>, transform_indices = @transform_17, window_bounds = array<i64: 2, 32>}, {pipeline_mode = #tpu.pipeline_mode<synchronous>, transform_indices = @transform_18, window_bounds = array<i64: 2, 50>}, {pipeline_mode = #tpu.pipeline_mode<synchronous>, transform_indices = @transform_19, window_bounds = array<i64: 2, 50>}]} {
    %c0 = arith.constant 0 : index
    %c0_0 = arith.constant 0 : index
    %0 = vector.load %arg1[%c0, %c0_0] : memref<2x256xbf16, #tpu.memory_space<vmem>>, vector<2x256xbf16>
    %c0_1 = arith.constant 0 : index
    %c0_2 = arith.constant 0 : index
    %1 = vector.load %arg2[%c0_1, %c0_2] : memref<2x256xbf16, #tpu.memory_space<vmem>>, vector<2x256xbf16>
    %c0_3 = arith.constant 0 : index
    %c0_4 = arith.constant 0 : index
    %2 = vector.load %arg3[%c0_3, %c0_4] : memref<256x32xbf16, #tpu.memory_space<vmem>>, vector<256x32xbf16>
    %cst = arith.constant dense<0.000000e+00> : vector<2x32xf32>
    %3 = tpu.matmul %0, %2, %cst {dimension_numbers = #tpu.dot_dimension_numbers<[1], [0], [0], [1], [0, 0, 1, 1], [], []>} : vector<2x256xbf16>, vector<256x32xbf16>, vector<2x32xf32> -> vector<2x32xf32>
    %c0_5 = arith.constant 0 : index
    %c0_6 = arith.constant 0 : index
    %4 = vector.load %arg4[%c0_5, %c0_6] : memref<1x32xf32, #tpu.memory_space<vmem>>, vector<1x32xf32>
    %5 = vector.broadcast %4 : vector<1x32xf32> to vector<2x32xf32>
    %6 = arith.addf %3, %5 : vector<2x32xf32>
    %c0_7 = arith.constant 0 : index
    %c0_8 = arith.constant 0 : index
    %7 = vector.load %arg5[%c0_7, %c0_8] : memref<256x32xbf16, #tpu.memory_space<vmem>>, vector<256x32xbf16>
    %cst_9 = arith.constant dense<0.000000e+00> : vector<2x32xf32>
    %8 = tpu.matmul %1, %7, %cst_9 {dimension_numbers = #tpu.dot_dimension_numbers<[1], [0], [0], [1], [0, 0, 1, 1], [], []>} : vector<2x256xbf16>, vector<256x32xbf16>, vector<2x32xf32> -> vector<2x32xf32>
    %c0_10 = arith.constant 0 : index
    %c0_11 = arith.constant 0 : index
    %9 = vector.load %arg6[%c0_10, %c0_11] : memref<1x32xf32, #tpu.memory_space<vmem>>, vector<1x32xf32>
    %10 = vector.broadcast %9 : vector<1x32xf32> to vector<2x32xf32>
    %11 = arith.addf %8, %10 : vector<2x32xf32>
    %12 = arith.truncf %6 : vector<2x32xf32> to vector<2x32xbf16>
    %13 = arith.truncf %11 : vector<2x32xf32> to vector<2x32xbf16>
    %c0_12 = arith.constant 0 : index
    %c0_13 = arith.constant 0 : index
    %14 = vector.load %arg11[%c0_12, %c0_13] : memref<256x10xbf16, #tpu.memory_space<vmem>>, vector<256x10xbf16>
    %cst_14 = arith.constant dense<0.000000e+00> : vector<2x10xf32>
    %15 = tpu.matmul %0, %14, %cst_14 {dimension_numbers = #tpu.dot_dimension_numbers<[1], [0], [0], [1], [0, 0, 1, 1], [], []>} : vector<2x256xbf16>, vector<256x10xbf16>, vector<2x10xf32> -> vector<2x10xf32>
    %c0_15 = arith.constant 0 : index
    %c0_16 = arith.constant 0 : index
    %16 = vector.load %arg12[%c0_15, %c0_16] : memref<1x10xf32, #tpu.memory_space<vmem>>, vector<1x10xf32>
    %17 = vector.broadcast %16 : vector<1x10xf32> to vector<2x10xf32>
    %18 = arith.addf %15, %17 : vector<2x10xf32>
    %c0_17 = arith.constant 0 : index
    %c0_18 = arith.constant 0 : index
    %19 = vector.load %arg7[%c0_17, %c0_18] : memref<32x10xbf16, #tpu.memory_space<vmem>>, vector<32x10xbf16>
    %cst_19 = arith.constant dense<0.000000e+00> : vector<2x10xf32>
    %20 = tpu.matmul %12, %19, %cst_19 {dimension_numbers = #tpu.dot_dimension_numbers<[1], [0], [0], [1], [0, 0, 1, 1], [], []>} : vector<2x32xbf16>, vector<32x10xbf16>, vector<2x10xf32> -> vector<2x10xf32>
    %21 = arith.addf %18, %20 : vector<2x10xf32>
    %c0_20 = arith.constant 0 : index
    %c0_21 = arith.constant 0 : index
    %22 = vector.load %arg8[%c0_20, %c0_21] : memref<1x10xf32, #tpu.memory_space<vmem>>, vector<1x10xf32>
    %23 = vector.broadcast %22 : vector<1x10xf32> to vector<2x10xf32>
    %24 = arith.addf %21, %23 : vector<2x10xf32>
    %cst_22 = arith.constant 5.000000e-01 : f32
    %25 = vector.broadcast %cst_22 : f32 to vector<2x10xf32>
    %26 = arith.mulf %24, %25 : vector<2x10xf32>
    %c0_23 = arith.constant 0 : index
    %c0_24 = arith.constant 0 : index
    %27 = vector.load %arg13[%c0_23, %c0_24] : memref<256x10xbf16, #tpu.memory_space<vmem>>, vector<256x10xbf16>
    %cst_25 = arith.constant dense<0.000000e+00> : vector<2x10xf32>
    %28 = tpu.matmul %1, %27, %cst_25 {dimension_numbers = #tpu.dot_dimension_numbers<[1], [0], [0], [1], [0, 0, 1, 1], [], []>} : vector<2x256xbf16>, vector<256x10xbf16>, vector<2x10xf32> -> vector<2x10xf32>
    %c0_26 = arith.constant 0 : index
    %c0_27 = arith.constant 0 : index
    %29 = vector.load %arg14[%c0_26, %c0_27] : memref<1x10xf32, #tpu.memory_space<vmem>>, vector<1x10xf32>
    %30 = vector.broadcast %29 : vector<1x10xf32> to vector<2x10xf32>
    %31 = arith.addf %28, %30 : vector<2x10xf32>
    %c0_28 = arith.constant 0 : index
    %c0_29 = arith.constant 0 : index
    %32 = vector.load %arg9[%c0_28, %c0_29] : memref<32x10xbf16, #tpu.memory_space<vmem>>, vector<32x10xbf16>
    %cst_30 = arith.constant dense<0.000000e+00> : vector<2x10xf32>
    %33 = tpu.matmul %13, %32, %cst_30 {dimension_numbers = #tpu.dot_dimension_numbers<[1], [0], [0], [1], [0, 0, 1, 1], [], []>} : vector<2x32xbf16>, vector<32x10xbf16>, vector<2x10xf32> -> vector<2x10xf32>
    %34 = arith.addf %31, %33 : vector<2x10xf32>
    %c0_31 = arith.constant 0 : index
    %c0_32 = arith.constant 0 : index
    %35 = vector.load %arg10[%c0_31, %c0_32] : memref<1x10xf32, #tpu.memory_space<vmem>>, vector<1x10xf32>
    %36 = vector.broadcast %35 : vector<1x10xf32> to vector<2x10xf32>
    %37 = arith.addf %34, %36 : vector<2x10xf32>
    %cst_33 = arith.constant 5.000000e-01 : f32
    %38 = vector.broadcast %cst_33 : f32 to vector<2x10xf32>
    %39 = arith.mulf %37, %38 : vector<2x10xf32>
    %40 = arith.addf %26, %39 : vector<2x10xf32>
    %cst_34 = arith.constant 5.000000e-01 : f32
    %41 = vector.broadcast %cst_34 : f32 to vector<2x10xf32>
    %42 = arith.mulf %40, %41 : vector<2x10xf32>
    %c0_35 = arith.constant 0 : index
    %c0_36 = arith.constant 0 : index
    %43 = vector.load %arg16[%c0_35, %c0_36] : memref<2x10xf32, #tpu.memory_space<vmem>>, vector<2x10xf32>
    tpu.vector_store %arg16[%c0_35, %c0_36], %42 {strides = array<i32>} : memref<2x10xf32, #tpu.memory_space<vmem>>, vector<2x10xf32>,
    %c0_37 = arith.constant 0 : index
    %c0_38 = arith.constant 0 : index
    %44 = vector.load %arg17[%c0_37, %c0_38] : memref<2x32xf32, #tpu.memory_space<vmem>>, vector<2x32xf32>
    tpu.vector_store %arg17[%c0_37, %c0_38], %6 {strides = array<i32>} : memref<2x32xf32, #tpu.memory_space<vmem>>, vector<2x32xf32>,
    %c0_39 = arith.constant 0 : index
    %c0_40 = arith.constant 0 : index
    %45 = vector.load %arg18[%c0_39, %c0_40] : memref<2x32xf32, #tpu.memory_space<vmem>>, vector<2x32xf32>
    tpu.vector_store %arg18[%c0_39, %c0_40], %11 {strides = array<i32>} : memref<2x32xf32, #tpu.memory_space<vmem>>, vector<2x32xf32>,
    %c0_41 = arith.constant 0 : index
    %c0_42 = arith.constant 0 : index
    %46 = vector.load %arg15[%c0_41, %c0_42] : memref<32x50xbf16, #tpu.memory_space<vmem>>, vector<32x50xbf16>
    %cst_43 = arith.constant dense<0.000000e+00> : vector<2x50xf32>
    %47 = tpu.matmul %12, %46, %cst_43 {dimension_numbers = #tpu.dot_dimension_numbers<[1], [0], [0], [1], [0, 0, 1, 1], [], []>} : vector<2x32xbf16>, vector<32x50xbf16>, vector<2x50xf32> -> vector<2x50xf32>
    %c0_44 = arith.constant 0 : index
    %c0_45 = arith.constant 0 : index
    %48 = vector.load %arg19[%c0_44, %c0_45] : memref<2x50xf32, #tpu.memory_space<vmem>>, vector<2x50xf32>
    tpu.vector_store %arg19[%c0_44, %c0_45], %47 {strides = array<i32>} : memref<2x50xf32, #tpu.memory_space<vmem>>, vector<2x50xf32>,
    %c0_46 = arith.constant 0 : index
    %c0_47 = arith.constant 0 : index
    %49 = vector.load %arg15[%c0_46, %c0_47] : memref<32x50xbf16, #tpu.memory_space<vmem>>, vector<32x50xbf16>
    %cst_48 = arith.constant dense<0.000000e+00> : vector<2x50xf32>
    %50 = tpu.matmul %13, %49, %cst_48 {dimension_numbers = #tpu.dot_dimension_numbers<[1], [0], [0], [1], [0, 0, 1, 1], [], []>} : vector<2x32xbf16>, vector<32x50xbf16>, vector<2x50xf32> -> vector<2x50xf32>
    %c0_49 = arith.constant 0 : index
    %c0_50 = arith.constant 0 : index
    %51 = vector.load %arg20[%c0_49, %c0_50] : memref<2x50xf32, #tpu.memory_space<vmem>>, vector<2x50xf32>
    tpu.vector_store %arg20[%c0_49, %c0_50], %50 {strides = array<i32>} : memref<2x50xf32, #tpu.memory_space<vmem>>, vector<2x50xf32>,
    return
  }
  func.func @transform_0(%arg0: i32) -> (i32, i32) {
    %c0_i32 = arith.constant 0 : i32
    %c0_i32_0 = arith.constant 0 : i32
    %c0_i32_1 = arith.constant 0 : i32
    return %c0_i32, %c0_i32_0 : i32, i32
  }
  func.func @transform_1(%arg0: i32) -> (i32, i32) {
    %c0_i32 = arith.constant 0 : i32
    %c0_i32_0 = arith.constant 0 : i32
    %c0_i32_1 = arith.constant 0 : i32
    return %c0_i32, %c0_i32_0 : i32, i32
  }
  func.func @transform_2(%arg0: i32) -> (i32, i32) {
    %c0_i32 = arith.constant 0 : i32
    %c0_i32_0 = arith.constant 0 : i32
    %c0_i32_1 = arith.constant 0 : i32
    return %c0_i32, %c0_i32_0 : i32, i32
  }
  func.func @transform_3(%arg0: i32) -> (i32, i32) {
    %c0_i32 = arith.constant 0 : i32
    %c0_i32_0 = arith.constant 0 : i32
    %c0_i32_1 = arith.constant 0 : i32
    return %c0_i32, %c0_i32_0 : i32, i32
  }
  func.func @transform_4(%arg0: i32) -> (i32, i32) {
    %c0_i32 = arith.constant 0 : i32
    %c0_i32_0 = arith.constant 0 : i32
    %c0_i32_1 = arith.constant 0 : i32
    return %c0_i32, %c0_i32_0 : i32, i32
  }
  func.func @transform_5(%arg0: i32) -> (i32, i32) {
    %c0_i32 = arith.constant 0 : i32
    %c0_i32_0 = arith.constant 0 : i32
    %c0_i32_1 = arith.constant 0 : i32
    return %c0_i32, %c0_i32_0 : i32, i32
  }
  func.func @transform_6(%arg0: i32) -> (i32, i32) {
    %c0_i32 = arith.constant 0 : i32
    %c0_i32_0 = arith.constant 0 : i32
    %c0_i32_1 = arith.constant 0 : i32
    return %c0_i32, %c0_i32_0 : i32, i32
  }
  func.func @transform_7(%arg0: i32) -> (i32, i32) {
    %c0_i32 = arith.constant 0 : i32
    %c0_i32_0 = arith.constant 0 : i32
    %c0_i32_1 = arith.constant 0 : i32
    return %c0_i32, %c0_i32_0 : i32, i32
  }
  func.func @transform_8(%arg0: i32) -> (i32, i32) {
    %c0_i32 = arith.constant 0 : i32
    %c0_i32_0 = arith.constant 0 : i32
    %c0_i32_1 = arith.constant 0 : i32
    return %c0_i32, %c0_i32_0 : i32, i32
  }
  func.func @transform_9(%arg0: i32) -> (i32, i32) {
    %c0_i32 = arith.constant 0 : i32
    %c0_i32_0 = arith.constant 0 : i32
    %c0_i32_1 = arith.constant 0 : i32
    return %c0_i32, %c0_i32_0 : i32, i32
  }
  func.func @transform_10(%arg0: i32) -> (i32, i32) {
    %c0_i32 = arith.constant 0 : i32
    %c0_i32_0 = arith.constant 0 : i32
    %c0_i32_1 = arith.constant 0 : i32
    return %c0_i32, %c0_i32_0 : i32, i32
  }
  func.func @transform_11(%arg0: i32) -> (i32, i32) {
    %c0_i32 = arith.constant 0 : i32
    %c0_i32_0 = arith.constant 0 : i32
    %c0_i32_1 = arith.constant 0 : i32
    return %c0_i32, %c0_i32_0 : i32, i32
  }
  func.func @transform_12(%arg0: i32) -> (i32, i32) {
    %c0_i32 = arith.constant 0 : i32
    %c0_i32_0 = arith.constant 0 : i32
    %c0_i32_1 = arith.constant 0 : i32
    return %c0_i32, %c0_i32_0 : i32, i32
  }
  func.func @transform_13(%arg0: i32) -> (i32, i32) {
    %c0_i32 = arith.constant 0 : i32
    %c0_i32_0 = arith.constant 0 : i32
    %c0_i32_1 = arith.constant 0 : i32
    return %c0_i32, %c0_i32_0 : i32, i32
  }
  func.func @transform_14(%arg0: i32) -> (i32, i32) {
    %c0_i32 = arith.constant 0 : i32
    %c0_i32_0 = arith.constant 0 : i32
    %c0_i32_1 = arith.constant 0 : i32
    return %c0_i32, %c0_i32_0 : i32, i32
  }
  func.func @transform_15(%arg0: i32) -> (i32, i32) {
    %c0_i32 = arith.constant 0 : i32
    %c0_i32_0 = arith.constant 0 : i32
    %c0_i32_1 = arith.constant 0 : i32
    return %c0_i32, %c0_i32_0 : i32, i32
  }
  func.func @transform_16(%arg0: i32) -> (i32, i32) {
    %c0_i32 = arith.constant 0 : i32
    %c0_i32_0 = arith.constant 0 : i32
    %c0_i32_1 = arith.constant 0 : i32
    return %c0_i32, %c0_i32_0 : i32, i32
  }
  func.func @transform_17(%arg0: i32) -> (i32, i32) {
    %c0_i32 = arith.constant 0 : i32
    %c0_i32_0 = arith.constant 0 : i32
    %c0_i32_1 = arith.constant 0 : i32
    return %c0_i32, %c0_i32_0 : i32, i32
  }
  func.func @transform_18(%arg0: i32) -> (i32, i32) {
    %c0_i32 = arith.constant 0 : i32
    %c0_i32_0 = arith.constant 0 : i32
    %c0_i32_1 = arith.constant 0 : i32
    return %c0_i32, %c0_i32_0 : i32, i32
  }
  func.func @transform_19(%arg0: i32) -> (i32, i32) {
    %c0_i32 = arith.constant 0 : i32
    %c0_i32_0 = arith.constant 0 : i32
    %c0_i32_1 = arith.constant 0 : i32
    return %c0_i32, %c0_i32_0 : i32, i32
  }
}

</mosaic_0001>

<llo_original>
// kernel: forward.15
$region0: #{forward.15}
  #allocation0 [shape = 'u32[]', space=smem, size = 0x4, offset = 0x4, fixed_abs, tag = 'smem constant byte address 0x4 - core index']
  #allocation1 [shape = 'u32[72,128]{1,0:T(1,128)}', space=vmem, size = 0x9000, scoped, tag = 'internal scratch']
  %s0 = inlined_call_operand.vmem [shape: bf16[256,128], index: 0, kind: input, shape index: {}]
  %s1 = inlined_call_operand.vmem [shape: bf16[128,128], index: 1, kind: input, shape index: {}]
  %s2 = inlined_call_operand.vmem [shape: f32[1,128], index: 2, kind: input, shape index: {}]
  %s3 = inlined_call_operand.vmem [shape: bf16[256,128], index: 3, kind: output, shape index: {}]
  %s4 = sld [smem:[#allocation0]]
  $region45: #{forward.15} parent=0
    _
  %s6 = ssub.s32 1, %s4
  %s7 = scalar_select 0, %s6, %s4
  loop: start=0, step=1, limit=4
  $region2: #{forward.15} parent=0 // loop_pre_header
    _
  $region3: #{forward.15} parent=0 // loop_header
    %s9 = sphi 0, %s13
    %p10 = scmp.ge.s32.totalorder %s9, 4
    %s19 = sphi 0, %s21
    %s22 = sphi 0, %s19
    %s23 = sphi 0, %s22
    %s39 = sphi 0, %s23
    %s43 = sphi 0, %s43
    %s45 = sphi 0, %s43
    %s46 = sphi 0, %s45
    %s60 = sphi 0, %s46
    %s64 = sphi 0, %s64
    %s66 = sphi 0, %s64
    %s67 = sphi 0, %s66
    %s81 = sphi 0, %s67
    %s87 = sphi 0, %s89
    %s90 = sphi 0, %s87
    %s91 = sphi 0, %s90
    %s107 = sphi 0, %s91
  $region4: #{forward.15} parent=0 // loop_header_branch
    %12 = sbr.rel (%p10) target = $region8
  $region5: #{forward.15} parent=0 // loop_body
    %s14 = ssub.s32 %s9, 1
    %s15 = ssub.s32 %s9, 2
    %s16 = sadd.s32 %s9, 1
    %s17 = ssub.s32 %s9, %s16
    %p18 = scmp.eq.s32.totalorder %s17, 0
    %s20 = sadd.s32 %s19, 1
    %s21 = scalar_select %p18, %s19, %s20
    %p24 = pneg %p18
    %p25 = scmp.eq.s32.totalorder %s9, 1
    %p26 = por %p24, %p25
    %p27 = scmp.ne.s32.totalorder %s19, %s22
    %p28 = scmp.eq.s32.totalorder %s9, 0
    %p29 = por %p27, %p28
    %p30 = scmp.ne.s32.totalorder %s19, %s22
    %p31 = scmp.eq.s32.totalorder %s14, 1
    %p32 = por %p30, %p31
    %p33 = scmp.ne.s32.totalorder %s22, %s23
    %p34 = scmp.eq.s32.totalorder %s14, 0
    %p35 = por %p33, %p34
    %p36 = scmp.ne.s32.totalorder %s22, %s23
    %p37 = scmp.eq.s32.totalorder %s15, 1
    %p38 = por %p36, %p37
    %p40 = scmp.ne.s32.totalorder %s23, %s39
    %p41 = scmp.eq.s32.totalorder %s15, 0
    %p42 = por %p40, %p41
    %s44 = sadd.s32 %s43, 1
    %p47 = scmp.eq.s32.totalorder %s9, 1
    %p48 = scmp.ne.s32.totalorder %s43, %s45
    %p49 = scmp.eq.s32.totalorder %s9, 0
    %p50 = por %p48, %p49
    %p51 = scmp.ne.s32.totalorder %s43, %s45
    %p52 = scmp.eq.s32.totalorder %s14, 1
    %p53 = por %p51, %p52
    %p54 = scmp.ne.s32.totalorder %s45, %s46
    %p55 = scmp.eq.s32.totalorder %s14, 0
    %p56 = por %p54, %p55
    %p57 = scmp.ne.s32.totalorder %s45, %s46
    %p58 = scmp.eq.s32.totalorder %s15, 1
    %p59 = por %p57, %p58
    %p61 = scmp.ne.s32.totalorder %s46, %s60
    %p62 = scmp.eq.s32.totalorder %s15, 0
    %p63 = por %p61, %p62
    %s65 = sadd.s32 %s64, 1
    %p68 = scmp.eq.s32.totalorder %s9, 1
    %p69 = scmp.ne.s32.totalorder %s64, %s66
    %p70 = scmp.eq.s32.totalorder %s9, 0
    %p71 = por %p69, %p70
    %p72 = scmp.ne.s32.totalorder %s64, %s66
    %p73 = scmp.eq.s32.totalorder %s14, 1
    %p74 = por %p72, %p73
    %p75 = scmp.ne.s32.totalorder %s66, %s67
    %p76 = scmp.eq.s32.totalorder %s14, 0
    %p77 = por %p75, %p76
    %p78 = scmp.ne.s32.totalorder %s66, %s67
    %p79 = scmp.eq.s32.totalorder %s15, 1
    %p80 = por %p78, %p79
    %p82 = scmp.ne.s32.totalorder %s67, %s81
    %p83 = scmp.eq.s32.totalorder %s15, 0
    %p84 = por %p82, %p83
    %s85 = ssub.s32 %s9, %s16
    %p86 = scmp.eq.s32.totalorder %s85, 0
    %s88 = sadd.s32 %s87, 1
    %s89 = scalar_select %p86, %s87, %s88
    %p92 = pneg %p86
    %p93 = scmp.eq.s32.totalorder %s9, 1
    %p94 = por %p92, %p93
    %p95 = scmp.ne.s32.totalorder %s87, %s90
    %p96 = scmp.eq.s32.totalorder %s9, 0
    %p97 = por %p95, %p96
    %p98 = scmp.ne.s32.totalorder %s87, %s90
    %p99 = scmp.eq.s32.totalorder %s14, 1
    %p100 = por %p98, %p99
    %p101 = scmp.ne.s32.totalorder %s90, %s91
    %p102 = scmp.eq.s32.totalorder %s14, 0
    %p103 = por %p101, %p102
    %p104 = scmp.ne.s32.totalorder %s90, %s91
    %p105 = scmp.eq.s32.totalorder %s15, 1
    %p106 = por %p104, %p105
    %p108 = scmp.ne.s32.totalorder %s91, %s107
    %p109 = scmp.eq.s32.totalorder %s15, 0
    %p110 = por %p108, %p109
    %p111 = scmp.le.s32.totalorder 1, %s9
    %p112 = scmp.lt.s32.totalorder %s9, 3
    %p113 = pnand %p111, %p112
    %p114 = pneg %p113
    // Predicated region
    $region9: #{forward.15} parent=5 // pred_check
      _
    $region10: #{forward.15} parent=5 // pred_check_branch
      %116 = sbr.rel (%p113) target = $region12
    $region11: #{forward.15} parent=5 // pred_region
      %s117 = ssub.s32 %s9, 1
      // Predicated region
      $region13: #{forward.15} parent=11 // pred_check
        %p118 = pneg %p56
      $region14: #{forward.15} parent=11 // pred_check_branch
        %120 = sbr.rel (%p118) target = $region16
      $region15: #{forward.15} parent=11 // pred_region
        _
      $region16: #{forward.15} parent=11 // pred_fallthru
        _
      // Predicated region
      $region17: #{forward.15} parent=11 // pred_check
        %p121 = pneg %p77
      $region18: #{forward.15} parent=11 // pred_check_branch
        %123 = sbr.rel (%p121) target = $region20
      $region19: #{forward.15} parent=11 // pred_region
        _
      $region20: #{forward.15} parent=11 // pred_fallthru
        _
    $region12: #{forward.15} parent=5 // pred_fallthru
      _
    %p124 = scmp.lt.s32.totalorder %s9, 2
    // Predicated region
    $region21: #{forward.15} parent=5 // pred_check
      %p125 = pneg %p124
    $region22: #{forward.15} parent=5 // pred_check_branch
      %127 = sbr.rel (%p125) target = $region24
    $region23: #{forward.15} parent=5 // pred_region
      // Predicated region
      $region25: #{forward.15} parent=23 // pred_check
        %p128 = pneg %p29
      $region26: #{forward.15} parent=23 // pred_check_branch
        %130 = sbr.rel (%p128) target = $region28
      $region27: #{forward.15} parent=23 // pred_region
        %s131 = smul.u32 16, %s9
        %p132 = scmp.lt.s32.totalorder %s131, 31
        %s133 = scalar_select %p132, %s131, 31
        %s134 = smul.addr %s133, 4
        %s135 = scalar_lea.vmem %s0, %s134
        %s136 = smul.u32 16, %s9
      $region28: #{forward.15} parent=23 // pred_fallthru
        _
    $region24: #{forward.15} parent=5 // pred_fallthru
      _
    %p137 = scmp.le.s32.totalorder 1, %s9
    %p138 = scmp.lt.s32.totalorder %s9, 3
    %p139 = pnand %p137, %p138
    %p140 = pneg %p139
    // Predicated region
    $region29: #{forward.15} parent=5 // pred_check
      _
    $region30: #{forward.15} parent=5 // pred_check_branch
      %142 = sbr.rel (%p139) target = $region32
    $region31: #{forward.15} parent=5 // pred_region
      %s143 = ssub.s32 %s9, 1
      %s144 = smul.u32 16, %s14
      %p145 = scmp.lt.s32.totalorder %s144, 31
      %s146 = scalar_select %p145, %s144, 31
      %s147 = smul.addr %s146, 4
      %s148 = scalar_lea.vmem %s0, %s147
      %p149 = pneg %p35
      %p150 = pneg %p32
      %p151 = pneg %p56
      %p152 = pneg %p53
      %p153 = pneg %p77
      %p154 = pneg %p74
      %p155 = pneg %p103
      %p156 = pneg %p100
      %s157 = smul.u32 16, %s14
      %p158 = scmp.lt.s32.totalorder %s157, 31
      %s159 = scalar_select %p158, %s157, 31
      %s160 = smul.addr %s159, 4
      %s161 = scalar_lea.vmem %s3, %s160
      %s162 = smul.u32 16, %s14
      %p163 = scmp.lt.s32.totalorder %s162, 31
      %s164 = scalar_select %p163, %s162, 31
      %s165 = smul.addr %s164, 4
      %s166 = scalar_lea.vmem %s0, %s165
      %s167 = smul.u32 16, %s14
      %s168 = smul.u32 16, %s14
      %p169 = scmp.lt.s32.totalorder %s168, 31
      %s170 = scalar_select %p169, %s168, 31
      %s171 = smul.addr %s170, 4
      %s172 = scalar_lea.vmem %s3, %s171
      %s173 = smul.u32 16, %s14
      %v174 = vld [vmem:[%s166] sm:$0xf]
      %v175 = vld [vmem:[%s166 + $0x4] sm:$0xf]
      %v176 = vld [vmem:[%s166 + $0x8] sm:$0xf]
      %v177 = vld [vmem:[%s166 + $0xc] sm:$0xf]
      %v178 = vld [vmem:[%s166 + $0x10] sm:$0xf]
      %v179 = vld [vmem:[%s166 + $0x14] sm:$0xf]
      %v180 = vld [vmem:[%s166 + $0x18] sm:$0xf]
      %v181 = vld [vmem:[%s166 + $0x1c] sm:$0xf]
      %v182 = vld [vmem:[%s166 + $0x20] sm:$0xf]
      %v183 = vld [vmem:[%s166 + $0x24] sm:$0xf]
      %v184 = vld [vmem:[%s166 + $0x28] sm:$0xf]
      %v185 = vld [vmem:[%s166 + $0x2c] sm:$0xf]
      %v186 = vld [vmem:[%s166 + $0x30] sm:$0xf]
      %v187 = vld [vmem:[%s166 + $0x34] sm:$0xf]
      %v188 = vld [vmem:[%s166 + $0x38] sm:$0xf]
      %v189 = vld [vmem:[%s166 + $0x3c] sm:$0xf]
      %v190 = vld [vmem:[%s1] sm:$0xf]
      %v191 = vld [vmem:[%s1 + $0x4] sm:$0xf]
      %v192 = vld [vmem:[%s1 + $0x8] sm:$0xf]
      %v193 = vld [vmem:[%s1 + $0xc] sm:$0xf]
      %v194 = vld [vmem:[%s1 + $0x10] sm:$0xf]
      %v195 = vld [vmem:[%s1 + $0x14] sm:$0xf]
      %v196 = vld [vmem:[%s1 + $0x18] sm:$0xf]
      %v197 = vld [vmem:[%s1 + $0x1c] sm:$0xf]
      %v198 = vld [vmem:[%s1 + $0x20] sm:$0xf]
      %v199 = vld [vmem:[%s1 + $0x24] sm:$0xf]
      %v200 = vld [vmem:[%s1 + $0x28] sm:$0xf]
      %v201 = vld [vmem:[%s1 + $0x2c] sm:$0xf]
      %v202 = vld [vmem:[%s1 + $0x30] sm:$0xf]
      %v203 = vld [vmem:[%s1 + $0x34] sm:$0xf]
      %v204 = vld [vmem:[%s1 + $0x38] sm:$0xf]
      %v205 = vld [vmem:[%s1 + $0x3c] sm:$0xf]
      %v206 = vld [vmem:[%s2] sm:$0x1]
      %v208 = vperm.slane %v206, 0
      %v226 = vunpack.c.l.b16 %v174
      %v227 = vunpack.c.l.b16 %v175
      %v228 = vunpack.c.l.b16 %v176
      %v229 = vunpack.c.l.b16 %v177
      %v230 = vunpack.c.l.b16 %v178
      %v231 = vunpack.c.l.b16 %v179
      %v232 = vunpack.c.l.b16 %v180
      %v233 = vunpack.c.l.b16 %v181
      %v234 = vunpack.c.l.b16 %v182
      %v235 = vunpack.c.l.b16 %v183
      %v236 = vunpack.c.l.b16 %v184
      %v237 = vunpack.c.l.b16 %v185
      %v238 = vunpack.c.l.b16 %v186
      %v239 = vunpack.c.l.b16 %v187
      %v240 = vunpack.c.l.b16 %v188
      %v241 = vunpack.c.l.b16 %v189
      %v242 = vpack.c.b16 %v227, %v226
      %v243 = vpack.c.b16 %v229, %v228
      %v244 = vpack.c.b16 %v231, %v230
      %v245 = vpack.c.b16 %v233, %v232
      %v246 = vpack.c.b16 %v235, %v234
      %v247 = vpack.c.b16 %v237, %v236
      %v248 = vpack.c.b16 %v239, %v238
      %v249 = vpack.c.b16 %v241, %v240
      %v274 = vunpack.c.l.b16 %v190
      %v275 = vunpack.c.l.b16 %v191
      %v276 = vunpack.c.l.b16 %v192
      %v277 = vunpack.c.l.b16 %v193
      %v278 = vunpack.c.l.b16 %v194
      %v279 = vunpack.c.l.b16 %v195
      %v280 = vunpack.c.l.b16 %v196
      %v281 = vunpack.c.l.b16 %v197
      %v282 = vunpack.c.l.b16 %v198
      %v283 = vunpack.c.l.b16 %v199
      %v284 = vunpack.c.l.b16 %v200
      %v285 = vunpack.c.l.b16 %v201
      %v286 = vunpack.c.l.b16 %v202
      %v287 = vunpack.c.l.b16 %v203
      %v288 = vunpack.c.l.b16 %v204
      %v289 = vunpack.c.l.b16 %v205
      %v290 = vpack.c.b16 %v275, %v274
      %v291 = vpack.c.b16 %v277, %v276
      %v292 = vpack.c.b16 %v279, %v278
      %v293 = vpack.c.b16 %v281, %v280
      %v294 = vpack.c.b16 %v283, %v282
      %v295 = vpack.c.b16 %v285, %v284
      %v296 = vpack.c.b16 %v287, %v286
      %v297 = vpack.c.b16 %v289, %v288
      %306 = vmatpush.bf16.msra.mxu0 %v297
      %307 = vmatpush.bf16.msra.mxu0 %v296
      %308 = vmatpush.bf16.msra.mxu0 %v295
      %309 = vmatpush.bf16.msra.mxu0 %v294
      %310 = vmatpush.bf16.msra.mxu0 %v293
      %311 = vmatpush.bf16.msra.mxu0 %v292
      %312 = vmatpush.bf16.msra.mxu0 %v291
      %313 = vmatpush.bf16.msra.mxu0 %v290
      %314 = vmatmul.bf16.gmra.mxu0 %v242
      %v315 = vpop.f32.mrf.mxu0
      %v316 = vadd.f32 %v208, %v315
      %v317 = vpop.f32.mrf.mxu0
      %v318 = vadd.f32 %v208, %v317
      %319 = vmatmul.bf16.gmra.mxu0 %v243
      %v320 = vpop.f32.mrf.mxu0
      %v321 = vadd.f32 %v208, %v320
      %v322 = vpop.f32.mrf.mxu0
      %v323 = vadd.f32 %v208, %v322
      %324 = vmatmul.bf16.gmra.mxu0 %v244
      %v325 = vpop.f32.mrf.mxu0
      %v326 = vadd.f32 %v208, %v325
      %v327 = vpop.f32.mrf.mxu0
      %v328 = vadd.f32 %v208, %v327
      %329 = vmatmul.bf16.gmra.mxu0 %v245
      %v330 = vpop.f32.mrf.mxu0
      %v331 = vadd.f32 %v208, %v330
      %v332 = vpop.f32.mrf.mxu0
      %v333 = vadd.f32 %v208, %v332
      %334 = vmatmul.bf16.gmra.mxu0 %v246
      %v335 = vpop.f32.mrf.mxu0
      %v336 = vadd.f32 %v208, %v335
      %v337 = vpop.f32.mrf.mxu0
      %v338 = vadd.f32 %v208, %v337
      %339 = vmatmul.bf16.gmra.mxu0 %v247
      %v340 = vpop.f32.mrf.mxu0
      %v341 = vadd.f32 %v208, %v340
      %v342 = vpop.f32.mrf.mxu0
      %v343 = vadd.f32 %v208, %v342
      %344 = vmatmul.bf16.gmra.mxu0 %v248
      %v345 = vpop.f32.mrf.mxu0
      %v346 = vadd.f32 %v208, %v345
      %v347 = vpop.f32.mrf.mxu0
      %v348 = vadd.f32 %v208, %v347
      %349 = vmatmul.bf16.gmra.mxu0 %v249
      %v350 = vpop.f32.mrf.mxu0
      %v351 = vadd.f32 %v208, %v350
      %v352 = vpop.f32.mrf.mxu0
      %v353 = vadd.f32 %v208, %v352
      %354 = vdwg.mxu0
      %v355 = vmax.f32 %v316, 0.0
      %v356 = vmax.f32 %v318, 0.0
      %v357 = vmax.f32 %v321, 0.0
      %v358 = vmax.f32 %v323, 0.0
      %v359 = vmax.f32 %v326, 0.0
      %v360 = vmax.f32 %v328, 0.0
      %v361 = vmax.f32 %v331, 0.0
      %v362 = vmax.f32 %v333, 0.0
      %v363 = vmax.f32 %v336, 0.0
      %v364 = vmax.f32 %v338, 0.0
      %v365 = vmax.f32 %v341, 0.0
      %v366 = vmax.f32 %v343, 0.0
      %v367 = vmax.f32 %v346, 0.0
      %v368 = vmax.f32 %v348, 0.0
      %v369 = vmax.f32 %v351, 0.0
      %v370 = vmax.f32 %v353, 0.0
      %v371 = vpack.c.bf16 %v355, %v355
      %v372 = vpack.c.bf16 %v356, %v356
      %v373 = vpack.c.bf16 %v357, %v357
      %v374 = vpack.c.bf16 %v358, %v358
      %v375 = vpack.c.bf16 %v359, %v359
      %v376 = vpack.c.bf16 %v360, %v360
      %v377 = vpack.c.bf16 %v361, %v361
      %v378 = vpack.c.bf16 %v362, %v362
      %v379 = vpack.c.bf16 %v363, %v363
      %v380 = vpack.c.bf16 %v364, %v364
      %v381 = vpack.c.bf16 %v365, %v365
      %v382 = vpack.c.bf16 %v366, %v366
      %v383 = vpack.c.bf16 %v367, %v367
      %v384 = vpack.c.bf16 %v368, %v368
      %v385 = vpack.c.bf16 %v369, %v369
      %v386 = vpack.c.bf16 %v370, %v370
      %387 = vst [vmem:[%s172] sm:$0xf] %v371
      %388 = vst [vmem:[%s172 + $0x4] sm:$0xf] %v372
      %389 = vst [vmem:[%s172 + $0x8] sm:$0xf] %v373
      %390 = vst [vmem:[%s172 + $0xc] sm:$0xf] %v374
      %391 = vst [vmem:[%s172 + $0x10] sm:$0xf] %v375
      %392 = vst [vmem:[%s172 + $0x14] sm:$0xf] %v376
      %393 = vst [vmem:[%s172 + $0x18] sm:$0xf] %v377
      %394 = vst [vmem:[%s172 + $0x1c] sm:$0xf] %v378
      %395 = vst [vmem:[%s172 + $0x20] sm:$0xf] %v379
      %396 = vst [vmem:[%s172 + $0x24] sm:$0xf] %v380
      %397 = vst [vmem:[%s172 + $0x28] sm:$0xf] %v381
      %398 = vst [vmem:[%s172 + $0x2c] sm:$0xf] %v382
      %399 = vst [vmem:[%s172 + $0x30] sm:$0xf] %v383
      %400 = vst [vmem:[%s172 + $0x34] sm:$0xf] %v384
      %401 = vst [vmem:[%s172 + $0x38] sm:$0xf] %v385
      %402 = vst [vmem:[%s172 + $0x3c] sm:$0xf] %v386
      %s403 = smul.u32 16, %s14
      %p404 = scmp.lt.s32.totalorder %s403, 31
      %s405 = scalar_select %p404, %s403, 31
      %s406 = smul.addr %s405, 4
      %s407 = scalar_lea.vmem %s3, %s406
      // Predicated region
      $region33: #{forward.15} parent=31 // pred_check
        %p408 = pneg %p100
      $region34: #{forward.15} parent=31 // pred_check_branch
        %410 = sbr.rel (%p408) target = $region36
      $region35: #{forward.15} parent=31 // pred_region
        %s411 = smul.u32 16, %s14
      $region36: #{forward.15} parent=31 // pred_fallthru
        _
    $region32: #{forward.15} parent=5 // pred_fallthru
      _
    %p412 = scmp.le.s32.totalorder 2, %s9
    // Predicated region
    $region37: #{forward.15} parent=5 // pred_check
      %p413 = pneg %p412
    $region38: #{forward.15} parent=5 // pred_check_branch
      %415 = sbr.rel (%p413) target = $region40
    $region39: #{forward.15} parent=5 // pred_region
      %s416 = ssub.s32 %s9, 2
      // Predicated region
      $region41: #{forward.15} parent=39 // pred_check
        %p417 = pneg %p106
      $region42: #{forward.15} parent=39 // pred_check_branch
        %419 = sbr.rel (%p417) target = $region44
      $region43: #{forward.15} parent=39 // pred_region
        %s420 = smul.u32 16, %s15
        %p421 = scmp.lt.s32.totalorder %s420, 31
        %s422 = scalar_select %p421, %s420, 31
        %s423 = smul.addr %s422, 4
        %s424 = scalar_lea.vmem %s3, %s423
      $region44: #{forward.15} parent=39 // pred_fallthru
        _
    $region40: #{forward.15} parent=5 // pred_fallthru
      _
  $region6: #{forward.15} parent=0 // loop_footer
    %s13 = sadd.s32 1, %s9
  $region7: #{forward.15} parent=0 // loop_footer_branch
    %8 = sbr.rel target = $region3
  $region8: #{forward.15} parent=0 // loop_exit
    _

// kernel: forward.14
$region0: #{forward.14}
  #allocation0 [shape = 'u32[]', space=smem, size = 0x4, offset = 0x4, fixed_abs, tag = 'smem constant byte address 0x4 - core index']
  #allocation1 [shape = 'u32[72,128]{1,0:T(1,128)}', space=vmem, size = 0x9000, scoped, tag = 'internal scratch']
  %s0 = inlined_call_operand.vmem [shape: bf16[1024,784], index: 0, kind: input, shape index: {}]
  %s1 = inlined_call_operand.vmem [shape: bf16[784,128], index: 1, kind: input, shape index: {}]
  %s2 = inlined_call_operand.vmem [shape: f32[1,128], index: 2, kind: input, shape index: {}]
  %s3 = inlined_call_operand.vmem [shape: bf16[1024,128], index: 3, kind: output, shape index: {}]
  %s4 = sld [smem:[#allocation0]]
  $region45: #{forward.14} parent=0
    _
  %s6 = ssub.s32 1, %s4
  %s7 = scalar_select 0, %s6, %s4
  loop: start=0, step=1, limit=4
  $region2: #{forward.14} parent=0 // loop_pre_header
    _
  $region3: #{forward.14} parent=0 // loop_header
    %s9 = sphi 0, %s13
    %p10 = scmp.ge.s32.totalorder %s9, 4
    %s19 = sphi 0, %s21
    %s22 = sphi 0, %s19
    %s23 = sphi 0, %s22
    %s39 = sphi 0, %s23
    %s43 = sphi 0, %s43
    %s45 = sphi 0, %s43
    %s46 = sphi 0, %s45
    %s60 = sphi 0, %s46
    %s64 = sphi 0, %s64
    %s66 = sphi 0, %s64
    %s67 = sphi 0, %s66
    %s81 = sphi 0, %s67
    %s87 = sphi 0, %s89
    %s90 = sphi 0, %s87
    %s91 = sphi 0, %s90
    %s107 = sphi 0, %s91
  $region4: #{forward.14} parent=0 // loop_header_branch
    %12 = sbr.rel (%p10) target = $region8
  $region5: #{forward.14} parent=0 // loop_body
    %s14 = ssub.s32 %s9, 1
    %s15 = ssub.s32 %s9, 2
    %s16 = sadd.s32 %s9, 1
    %s17 = ssub.s32 %s9, %s16
    %p18 = scmp.eq.s32.totalorder %s17, 0
    %s20 = sadd.s32 %s19, 1
    %s21 = scalar_select %p18, %s19, %s20
    %p24 = pneg %p18
    %p25 = scmp.eq.s32.totalorder %s9, 1
    %p26 = por %p24, %p25
    %p27 = scmp.ne.s32.totalorder %s19, %s22
    %p28 = scmp.eq.s32.totalorder %s9, 0
    %p29 = por %p27, %p28
    %p30 = scmp.ne.s32.totalorder %s19, %s22
    %p31 = scmp.eq.s32.totalorder %s14, 1
    %p32 = por %p30, %p31
    %p33 = scmp.ne.s32.totalorder %s22, %s23
    %p34 = scmp.eq.s32.totalorder %s14, 0
    %p35 = por %p33, %p34
    %p36 = scmp.ne.s32.totalorder %s22, %s23
    %p37 = scmp.eq.s32.totalorder %s15, 1
    %p38 = por %p36, %p37
    %p40 = scmp.ne.s32.totalorder %s23, %s39
    %p41 = scmp.eq.s32.totalorder %s15, 0
    %p42 = por %p40, %p41
    %s44 = sadd.s32 %s43, 1
    %p47 = scmp.eq.s32.totalorder %s9, 1
    %p48 = scmp.ne.s32.totalorder %s43, %s45
    %p49 = scmp.eq.s32.totalorder %s9, 0
    %p50 = por %p48, %p49
    %p51 = scmp.ne.s32.totalorder %s43, %s45
    %p52 = scmp.eq.s32.totalorder %s14, 1
    %p53 = por %p51, %p52
    %p54 = scmp.ne.s32.totalorder %s45, %s46
    %p55 = scmp.eq.s32.totalorder %s14, 0
    %p56 = por %p54, %p55
    %p57 = scmp.ne.s32.totalorder %s45, %s46
    %p58 = scmp.eq.s32.totalorder %s15, 1
    %p59 = por %p57, %p58
    %p61 = scmp.ne.s32.totalorder %s46, %s60
    %p62 = scmp.eq.s32.totalorder %s15, 0
    %p63 = por %p61, %p62
    %s65 = sadd.s32 %s64, 1
    %p68 = scmp.eq.s32.totalorder %s9, 1
    %p69 = scmp.ne.s32.totalorder %s64, %s66
    %p70 = scmp.eq.s32.totalorder %s9, 0
    %p71 = por %p69, %p70
    %p72 = scmp.ne.s32.totalorder %s64, %s66
    %p73 = scmp.eq.s32.totalorder %s14, 1
    %p74 = por %p72, %p73
    %p75 = scmp.ne.s32.totalorder %s66, %s67
    %p76 = scmp.eq.s32.totalorder %s14, 0
    %p77 = por %p75, %p76
    %p78 = scmp.ne.s32.totalorder %s66, %s67
    %p79 = scmp.eq.s32.totalorder %s15, 1
    %p80 = por %p78, %p79
    %p82 = scmp.ne.s32.totalorder %s67, %s81
    %p83 = scmp.eq.s32.totalorder %s15, 0
    %p84 = por %p82, %p83
    %s85 = ssub.s32 %s9, %s16
    %p86 = scmp.eq.s32.totalorder %s85, 0
    %s88 = sadd.s32 %s87, 1
    %s89 = scalar_select %p86, %s87, %s88
    %p92 = pneg %p86
    %p93 = scmp.eq.s32.totalorder %s9, 1
    %p94 = por %p92, %p93
    %p95 = scmp.ne.s32.totalorder %s87, %s90
    %p96 = scmp.eq.s32.totalorder %s9, 0
    %p97 = por %p95, %p96
    %p98 = scmp.ne.s32.totalorder %s87, %s90
    %p99 = scmp.eq.s32.totalorder %s14, 1
    %p100 = por %p98, %p99
    %p101 = scmp.ne.s32.totalorder %s90, %s91
    %p102 = scmp.eq.s32.totalorder %s14, 0
    %p103 = por %p101, %p102
    %p104 = scmp.ne.s32.totalorder %s90, %s91
    %p105 = scmp.eq.s32.totalorder %s15, 1
    %p106 = por %p104, %p105
    %p108 = scmp.ne.s32.totalorder %s91, %s107
    %p109 = scmp.eq.s32.totalorder %s15, 0
    %p110 = por %p108, %p109
    %p111 = scmp.le.s32.totalorder 1, %s9
    %p112 = scmp.lt.s32.totalorder %s9, 3
    %p113 = pnand %p111, %p112
    %p114 = pneg %p113
    // Predicated region
    $region9: #{forward.14} parent=5 // pred_check
      _
    $region10: #{forward.14} parent=5 // pred_check_branch
      %116 = sbr.rel (%p113) target = $region12
    $region11: #{forward.14} parent=5 // pred_region
      %s117 = ssub.s32 %s9, 1
      // Predicated region
      $region13: #{forward.14} parent=11 // pred_check
        %p118 = pneg %p56
      $region14: #{forward.14} parent=11 // pred_check_branch
        %120 = sbr.rel (%p118) target = $region16
      $region15: #{forward.14} parent=11 // pred_region
        _
      $region16: #{forward.14} parent=11 // pred_fallthru
        _
      // Predicated region
      $region17: #{forward.14} parent=11 // pred_check
        %p121 = pneg %p77
      $region18: #{forward.14} parent=11 // pred_check_branch
        %123 = sbr.rel (%p121) target = $region20
      $region19: #{forward.14} parent=11 // pred_region
        _
      $region20: #{forward.14} parent=11 // pred_fallthru
        _
    $region12: #{forward.14} parent=5 // pred_fallthru
      _
    %p124 = scmp.lt.s32.totalorder %s9, 2
    // Predicated region
    $region21: #{forward.14} parent=5 // pred_check
      %p125 = pneg %p124
    $region22: #{forward.14} parent=5 // pred_check_branch
      %127 = sbr.rel (%p125) target = $region24
    $region23: #{forward.14} parent=5 // pred_region
      // Predicated region
      $region25: #{forward.14} parent=23 // pred_check
        %p128 = pneg %p29
      $region26: #{forward.14} parent=23 // pred_check_branch
        %130 = sbr.rel (%p128) target = $region28
      $region27: #{forward.14} parent=23 // pred_region
        %s131 = smul.u32 64, %s9
        %p132 = scmp.lt.s32.totalorder %s131, 127
        %s133 = scalar_select %p132, %s131, 127
        %s134 = smul.addr %s133, 7
        %s135 = smul.addr %s134, 4
        %s136 = scalar_lea.vmem %s0, %s135
        %s137 = smul.u32 64, %s9
      $region28: #{forward.14} parent=23 // pred_fallthru
        _
    $region24: #{forward.14} parent=5 // pred_fallthru
      _
    %p138 = scmp.le.s32.totalorder 1, %s9
    %p139 = scmp.lt.s32.totalorder %s9, 3
    %p140 = pnand %p138, %p139
    %p141 = pneg %p140
    // Predicated region
    $region29: #{forward.14} parent=5 // pred_check
      _
    $region30: #{forward.14} parent=5 // pred_check_branch
      %143 = sbr.rel (%p140) target = $region32
    $region31: #{forward.14} parent=5 // pred_region
      %s144 = ssub.s32 %s9, 1
      %s145 = smul.u32 64, %s14
      %p146 = scmp.lt.s32.totalorder %s145, 127
      %s147 = scalar_select %p146, %s145, 127
      %s148 = smul.addr %s147, 7
      %s149 = smul.addr %s148, 4
      %s150 = scalar_lea.vmem %s0, %s149
      %p151 = pneg %p35
      %p152 = pneg %p32
      %p153 = pneg %p56
      %p154 = pneg %p53
      %p155 = pneg %p77
      %p156 = pneg %p74
      %p157 = pneg %p103
      %p158 = pneg %p100
      %s159 = smul.u32 64, %s14
      %p160 = scmp.lt.s32.totalorder %s159, 127
      %s161 = scalar_select %p160, %s159, 127
      %s162 = smul.addr %s161, 4
      %s163 = scalar_lea.vmem %s3, %s162
      %s164 = smul.u32 64, %s14
      %p165 = scmp.lt.s32.totalorder %s164, 127
      %s166 = scalar_select %p165, %s164, 127
      %s167 = smul.addr %s166, 7
      %s168 = smul.addr %s167, 4
      %s169 = scalar_lea.vmem %s0, %s168
      %s170 = smul.u32 64, %s14
      %s171 = smul.u32 64, %s14
      %p172 = scmp.lt.s32.totalorder %s171, 127
      %s173 = scalar_select %p172, %s171, 127
      %s174 = smul.addr %s173, 4
      %s175 = scalar_lea.vmem %s3, %s174
      %s176 = smul.u32 64, %s14
      %v178 = vld [vmem:[%s169] sm:$0xff]
      %v179 = vld [vmem:[%s169 + $0x8] sm:$0xff]
      %v180 = vld [vmem:[%s169 + $0x10] sm:$0xff]
      %v181 = vld [vmem:[%s169 + $0x18] sm:$0xf]
      %v182 = vld [vmem:[%s169 + $0x1c] sm:$0xff]
      %v183 = vld [vmem:[%s169 + $0x24] sm:$0xff]
      %v184 = vld [vmem:[%s169 + $0x2c] sm:$0xff]
      %v185 = vld [vmem:[%s169 + $0x34] sm:$0xf]
      %v186 = vld [vmem:[%s169 + $0x38] sm:$0xff]
      %v187 = vld [vmem:[%s169 + $0x40] sm:$0xff]
      %v188 = vld [vmem:[%s169 + $0x48] sm:$0xff]
      %v189 = vld [vmem:[%s169 + $0x50] sm:$0xf]
      %v190 = vld [vmem:[%s169 + $0x54] sm:$0xff]
      %v191 = vld [vmem:[%s169 + $0x5c] sm:$0xff]
      %v192 = vld [vmem:[%s169 + $0x64] sm:$0xff]
      %v193 = vld [vmem:[%s169 + $0x6c] sm:$0xf]
      %v194 = vld [vmem:[%s169 + $0x70] sm:$0xff]
      %v195 = vld [vmem:[%s169 + $0x78] sm:$0xff]
      %v196 = vld [vmem:[%s169 + $0x80] sm:$0xff]
      %v197 = vld [vmem:[%s169 + $0x88] sm:$0xf]
      %v198 = vld [vmem:[%s169 + $0x8c] sm:$0xff]
      %v199 = vld [vmem:[%s169 + $0x94] sm:$0xff]
      %v200 = vld [vmem:[%s169 + $0x9c] sm:$0xff]
      %v201 = vld [vmem:[%s169 + $0xa4] sm:$0xf]
      %v202 = vld [vmem:[%s169 + $0xa8] sm:$0xff]
      %v203 = vld [vmem:[%s169 + $0xb0] sm:$0xff]
      %v204 = vld [vmem:[%s169 + $0xb8] sm:$0xff]
      %v205 = vld [vmem:[%s169 + $0xc0] sm:$0xf]
      %v206 = vld [vmem:[%s169 + $0xc4] sm:$0xff]
      %v207 = vld [vmem:[%s169 + $0xcc] sm:$0xff]
      %v208 = vld [vmem:[%s169 + $0xd4] sm:$0xff]
      %v209 = vld [vmem:[%s169 + $0xdc] sm:$0xf]
      %v210 = vld [vmem:[%s169 + $0xe0] sm:$0xff]
      %v211 = vld [vmem:[%s169 + $0xe8] sm:$0xff]
      %v212 = vld [vmem:[%s169 + $0xf0] sm:$0xff]
      %v213 = vld [vmem:[%s169 + $0xf8] sm:$0xf]
      %v214 = vld [vmem:[%s169 + $0xfc] sm:$0xff]
      %v215 = vld [vmem:[%s169 + $0x104] sm:$0xff]
      %v216 = vld [vmem:[%s169 + $0x10c] sm:$0xff]
      %v217 = vld [vmem:[%s169 + $0x114] sm:$0xf]
      %v218 = vld [vmem:[%s169 + $0x118] sm:$0xff]
      %v219 = vld [vmem:[%s169 + $0x120] sm:$0xff]
      %v220 = vld [vmem:[%s169 + $0x128] sm:$0xff]
      %v221 = vld [vmem:[%s169 + $0x130] sm:$0xf]
      %v222 = vld [vmem:[%s169 + $0x134] sm:$0xff]
      %v223 = vld [vmem:[%s169 + $0x13c] sm:$0xff]
      %v224 = vld [vmem:[%s169 + $0x144] sm:$0xff]
      %v225 = vld [vmem:[%s169 + $0x14c] sm:$0xf]
      %v226 = vld [vmem:[%s169 + $0x150] sm:$0xff]
      %v227 = vld [vmem:[%s169 + $0x158] sm:$0xff]
      %v228 = vld [vmem:[%s169 + $0x160] sm:$0xff]
      %v229 = vld [vmem:[%s169 + $0x168] sm:$0xf]
      %v230 = vld [vmem:[%s169 + $0x16c] sm:$0xff]
      %v231 = vld [vmem:[%s169 + $0x174] sm:$0xff]
      %v232 = vld [vmem:[%s169 + $0x17c] sm:$0xff]
      %v233 = vld [vmem:[%s169 + $0x184] sm:$0xf]
      %v234 = vld [vmem:[%s169 + $0x188] sm:$0xff]
      %v235 = vld [vmem:[%s169 + $0x190] sm:$0xff]
      %v236 = vld [vmem:[%s169 + $0x198] sm:$0xff]
      %v237 = vld [vmem:[%s169 + $0x1a0] sm:$0xf]
      %v238 = vld [vmem:[%s169 + $0x1a4] sm:$0xff]
      %v239 = vld [vmem:[%s169 + $0x1ac] sm:$0xff]
      %v240 = vld [vmem:[%s169 + $0x1b4] sm:$0xff]
      %v241 = vld [vmem:[%s169 + $0x1bc] sm:$0xf]
      %v242 = vld [vmem:[%s169 + $0x1c0] sm:$0xff]
      %v243 = vld [vmem:[%s169 + $0x1c8] sm:$0xff]
      %v244 = vld [vmem:[%s169 + $0x1d0] sm:$0xff]
      %v245 = vld [vmem:[%s169 + $0x1d8] sm:$0xf]
      %v246 = vld [vmem:[%s169 + $0x1dc] sm:$0xff]
      %v247 = vld [vmem:[%s169 + $0x1e4] sm:$0xff]
      %v248 = vld [vmem:[%s169 + $0x1ec] sm:$0xff]
      %v249 = vld [vmem:[%s169 + $0x1f4] sm:$0xf]
      %v250 = vld [vmem:[%s169 + $0x1f8] sm:$0xff]
      %v251 = vld [vmem:[%s169 + $0x200] sm:$0xff]
      %v252 = vld [vmem:[%s169 + $0x208] sm:$0xff]
      %v253 = vld [vmem:[%s169 + $0x210] sm:$0xf]
      %v254 = vld [vmem:[%s169 + $0x214] sm:$0xff]
      %v255 = vld [vmem:[%s169 + $0x21c] sm:$0xff]
      %v256 = vld [vmem:[%s169 + $0x224] sm:$0xff]
      %v257 = vld [vmem:[%s169 + $0x22c] sm:$0xf]
      %v258 = vld [vmem:[%s169 + $0x230] sm:$0xff]
      %v259 = vld [vmem:[%s169 + $0x238] sm:$0xff]
      %v260 = vld [vmem:[%s169 + $0x240] sm:$0xff]
      %v261 = vld [vmem:[%s169 + $0x248] sm:$0xf]
      %v262 = vld [vmem:[%s169 + $0x24c] sm:$0xff]
      %v263 = vld [vmem:[%s169 + $0x254] sm:$0xff]
      %v264 = vld [vmem:[%s169 + $0x25c] sm:$0xff]
      %v265 = vld [vmem:[%s169 + $0x264] sm:$0xf]
      %v266 = vld [vmem:[%s169 + $0x268] sm:$0xff]
      %v267 = vld [vmem:[%s169 + $0x270] sm:$0xff]
      %v268 = vld [vmem:[%s169 + $0x278] sm:$0xff]
      %v269 = vld [vmem:[%s169 + $0x280] sm:$0xf]
      %v270 = vld [vmem:[%s169 + $0x284] sm:$0xff]
      %v271 = vld [vmem:[%s169 + $0x28c] sm:$0xff]
      %v272 = vld [vmem:[%s169 + $0x294] sm:$0xff]
      %v273 = vld [vmem:[%s169 + $0x29c] sm:$0xf]
      %v274 = vld [vmem:[%s169 + $0x2a0] sm:$0xff]
      %v275 = vld [vmem:[%s169 + $0x2a8] sm:$0xff]
      %v276 = vld [vmem:[%s169 + $0x2b0] sm:$0xff]
      %v277 = vld [vmem:[%s169 + $0x2b8] sm:$0xf]
      %v278 = vld [vmem:[%s169 + $0x2bc] sm:$0xff]
      %v279 = vld [vmem:[%s169 + $0x2c4] sm:$0xff]
      %v280 = vld [vmem:[%s169 + $0x2cc] sm:$0xff]
      %v281 = vld [vmem:[%s169 + $0x2d4] sm:$0xf]
      %v282 = vld [vmem:[%s169 + $0x2d8] sm:$0xff]
      %v283 = vld [vmem:[%s169 + $0x2e0] sm:$0xff]
      %v284 = vld [vmem:[%s169 + $0x2e8] sm:$0xff]
      %v285 = vld [vmem:[%s169 + $0x2f0] sm:$0xf]
      %v286 = vld [vmem:[%s169 + $0x2f4] sm:$0xff]
      %v287 = vld [vmem:[%s169 + $0x2fc] sm:$0xff]
      %v288 = vld [vmem:[%s169 + $0x304] sm:$0xff]
      %v289 = vld [vmem:[%s169 + $0x30c] sm:$0xf]
      %v290 = vld [vmem:[%s169 + $0x310] sm:$0xff]
      %v291 = vld [vmem:[%s169 + $0x318] sm:$0xff]
      %v292 = vld [vmem:[%s169 + $0x320] sm:$0xff]
      %v293 = vld [vmem:[%s169 + $0x328] sm:$0xf]
      %v294 = vld [vmem:[%s169 + $0x32c] sm:$0xff]
      %v295 = vld [vmem:[%s169 + $0x334] sm:$0xff]
      %v296 = vld [vmem:[%s169 + $0x33c] sm:$0xff]
      %v297 = vld [vmem:[%s169 + $0x344] sm:$0xf]
      %v298 = vld [vmem:[%s169 + $0x348] sm:$0xff]
      %v299 = vld [vmem:[%s169 + $0x350] sm:$0xff]
      %v300 = vld [vmem:[%s169 + $0x358] sm:$0xff]
      %v301 = vld [vmem:[%s169 + $0x360] sm:$0xf]
      %v302 = vld [vmem:[%s169 + $0x364] sm:$0xff]
      %v303 = vld [vmem:[%s169 + $0x36c] sm:$0xff]
      %v304 = vld [vmem:[%s169 + $0x374] sm:$0xff]
      %v305 = vld [vmem:[%s169 + $0x37c] sm:$0xf]
      %v306 = vld [vmem:[%s169 + $0x380] sm:$0xff]
      %v307 = vld [vmem:[%s169 + $0x388] sm:$0xff]
      %v308 = vld [vmem:[%s169 + $0x390] sm:$0xff]
      %v309 = vld [vmem:[%s169 + $0x398] sm:$0xf]
      %v310 = vld [vmem:[%s169 + $0x39c] sm:$0xff]
      %v311 = vld [vmem:[%s169 + $0x3a4] sm:$0xff]
      %v312 = vld [vmem:[%s169 + $0x3ac] sm:$0xff]
      %v313 = vld [vmem:[%s169 + $0x3b4] sm:$0xf]
      %v314 = vld [vmem:[%s169 + $0x3b8] sm:$0xff]
      %v315 = vld [vmem:[%s169 + $0x3c0] sm:$0xff]
      %v316 = vld [vmem:[%s169 + $0x3c8] sm:$0xff]
      %v317 = vld [vmem:[%s169 + $0x3d0] sm:$0xf]
      %v318 = vld [vmem:[%s169 + $0x3d4] sm:$0xff]
      %v319 = vld [vmem:[%s169 + $0x3dc] sm:$0xff]
      %v320 = vld [vmem:[%s169 + $0x3e4] sm:$0xff]
      %v321 = vld [vmem:[%s169 + $0x3ec] sm:$0xf]
      %v322 = vld [vmem:[%s169 + $0x3f0] sm:$0xff]
      %v323 = vld [vmem:[%s169 + $0x3f8] sm:$0xff]
      %v324 = vld [vmem:[%s169 + $0x400] sm:$0xff]
      %v325 = vld [vmem:[%s169 + $0x408] sm:$0xf]
      %v326 = vld [vmem:[%s169 + $0x40c] sm:$0xff]
      %v327 = vld [vmem:[%s169 + $0x414] sm:$0xff]
      %v328 = vld [vmem:[%s169 + $0x41c] sm:$0xff]
      %v329 = vld [vmem:[%s169 + $0x424] sm:$0xf]
      %v330 = vld [vmem:[%s169 + $0x428] sm:$0xff]
      %v331 = vld [vmem:[%s169 + $0x430] sm:$0xff]
      %v332 = vld [vmem:[%s169 + $0x438] sm:$0xff]
      %v333 = vld [vmem:[%s169 + $0x440] sm:$0xf]
      %v334 = vld [vmem:[%s169 + $0x444] sm:$0xff]
      %v335 = vld [vmem:[%s169 + $0x44c] sm:$0xff]
      %v336 = vld [vmem:[%s169 + $0x454] sm:$0xff]
      %v337 = vld [vmem:[%s169 + $0x45c] sm:$0xf]
      %v338 = vld [vmem:[%s169 + $0x460] sm:$0xff]
      %v339 = vld [vmem:[%s169 + $0x468] sm:$0xff]
      %v340 = vld [vmem:[%s169 + $0x470] sm:$0xff]
      %v341 = vld [vmem:[%s169 + $0x478] sm:$0xf]
      %v342 = vld [vmem:[%s169 + $0x47c] sm:$0xff]
      %v343 = vld [vmem:[%s169 + $0x484] sm:$0xff]
      %v344 = vld [vmem:[%s169 + $0x48c] sm:$0xff]
      %v345 = vld [vmem:[%s169 + $0x494] sm:$0xf]
      %v346 = vld [vmem:[%s169 + $0x498] sm:$0xff]
      %v347 = vld [vmem:[%s169 + $0x4a0] sm:$0xff]
      %v348 = vld [vmem:[%s169 + $0x4a8] sm:$0xff]
      %v349 = vld [vmem:[%s169 + $0x4b0] sm:$0xf]
      %v350 = vld [vmem:[%s169 + $0x4b4] sm:$0xff]
      %v351 = vld [vmem:[%s169 + $0x4bc] sm:$0xff]
      %v352 = vld [vmem:[%s169 + $0x4c4] sm:$0xff]
      %v353 = vld [vmem:[%s169 + $0x4cc] sm:$0xf]
      %v354 = vld [vmem:[%s169 + $0x4d0] sm:$0xff]
      %v355 = vld [vmem:[%s169 + $0x4d8] sm:$0xff]
      %v356 = vld [vmem:[%s169 + $0x4e0] sm:$0xff]
      %v357 = vld [vmem:[%s169 + $0x4e8] sm:$0xf]
      %v358 = vld [vmem:[%s169 + $0x4ec] sm:$0xff]
      %v359 = vld [vmem:[%s169 + $0x4f4] sm:$0xff]
      %v360 = vld [vmem:[%s169 + $0x4fc] sm:$0xff]
      %v361 = vld [vmem:[%s169 + $0x504] sm:$0xf]
      %v362 = vld [vmem:[%s169 + $0x508] sm:$0xff]
      %v363 = vld [vmem:[%s169 + $0x510] sm:$0xff]
      %v364 = vld [vmem:[%s169 + $0x518] sm:$0xff]
      %v365 = vld [vmem:[%s169 + $0x520] sm:$0xf]
      %v366 = vld [vmem:[%s169 + $0x524] sm:$0xff]
      %v367 = vld [vmem:[%s169 + $0x52c] sm:$0xff]
      %v368 = vld [vmem:[%s169 + $0x534] sm:$0xff]
      %v369 = vld [vmem:[%s169 + $0x53c] sm:$0xf]
      %v370 = vld [vmem:[%s169 + $0x540] sm:$0xff]
      %v371 = vld [vmem:[%s169 + $0x548] sm:$0xff]
      %v372 = vld [vmem:[%s169 + $0x550] sm:$0xff]
      %v373 = vld [vmem:[%s169 + $0x558] sm:$0xf]
      %v374 = vld [vmem:[%s169 + $0x55c] sm:$0xff]
      %v375 = vld [vmem:[%s169 + $0x564] sm:$0xff]
      %v376 = vld [vmem:[%s169 + $0x56c] sm:$0xff]
      %v377 = vld [vmem:[%s169 + $0x574] sm:$0xf]
      %v378 = vld [vmem:[%s169 + $0x578] sm:$0xff]
      %v379 = vld [vmem:[%s169 + $0x580] sm:$0xff]
      %v380 = vld [vmem:[%s169 + $0x588] sm:$0xff]
      %v381 = vld [vmem:[%s169 + $0x590] sm:$0xf]
      %v382 = vld [vmem:[%s169 + $0x594] sm:$0xff]
      %v383 = vld [vmem:[%s169 + $0x59c] sm:$0xff]
      %v384 = vld [vmem:[%s169 + $0x5a4] sm:$0xff]
      %v385 = vld [vmem:[%s169 + $0x5ac] sm:$0xf]
      %v386 = vld [vmem:[%s169 + $0x5b0] sm:$0xff]
      %v387 = vld [vmem:[%s169 + $0x5b8] sm:$0xff]
      %v388 = vld [vmem:[%s169 + $0x5c0] sm:$0xff]
      %v389 = vld [vmem:[%s169 + $0x5c8] sm:$0xf]
      %v390 = vld [vmem:[%s169 + $0x5cc] sm:$0xff]
      %v391 = vld [vmem:[%s169 + $0x5d4] sm:$0xff]
      %v392 = vld [vmem:[%s169 + $0x5dc] sm:$0xff]
      %v393 = vld [vmem:[%s169 + $0x5e4] sm:$0xf]
      %v394 = vld [vmem:[%s169 + $0x5e8] sm:$0xff]
      %v395 = vld [vmem:[%s169 + $0x5f0] sm:$0xff]
      %v396 = vld [vmem:[%s169 + $0x5f8] sm:$0xff]
      %v397 = vld [vmem:[%s169 + $0x600] sm:$0xf]
      %v398 = vld [vmem:[%s169 + $0x604] sm:$0xff]
      %v399 = vld [vmem:[%s169 + $0x60c] sm:$0xff]
      %v400 = vld [vmem:[%s169 + $0x614] sm:$0xff]
      %v401 = vld [vmem:[%s169 + $0x61c] sm:$0xf]
      %v402 = vld [vmem:[%s169 + $0x620] sm:$0xff]
      %v403 = vld [vmem:[%s169 + $0x628] sm:$0xff]
      %v404 = vld [vmem:[%s169 + $0x630] sm:$0xff]
      %v405 = vld [vmem:[%s169 + $0x638] sm:$0xf]
      %v406 = vld [vmem:[%s169 + $0x63c] sm:$0xff]
      %v407 = vld [vmem:[%s169 + $0x644] sm:$0xff]
      %v408 = vld [vmem:[%s169 + $0x64c] sm:$0xff]
      %v409 = vld [vmem:[%s169 + $0x654] sm:$0xf]
      %v410 = vld [vmem:[%s169 + $0x658] sm:$0xff]
      %v411 = vld [vmem:[%s169 + $0x660] sm:$0xff]
      %v412 = vld [vmem:[%s169 + $0x668] sm:$0xff]
      %v413 = vld [vmem:[%s169 + $0x670] sm:$0xf]
      %v414 = vld [vmem:[%s169 + $0x674] sm:$0xff]
      %v415 = vld [vmem:[%s169 + $0x67c] sm:$0xff]
      %v416 = vld [vmem:[%s169 + $0x684] sm:$0xff]
      %v417 = vld [vmem:[%s169 + $0x68c] sm:$0xf]
      %v418 = vld [vmem:[%s169 + $0x690] sm:$0xff]
      %v419 = vld [vmem:[%s169 + $0x698] sm:$0xff]
      %v420 = vld [vmem:[%s169 + $0x6a0] sm:$0xff]
      %v421 = vld [vmem:[%s169 + $0x6a8] sm:$0xf]
      %v422 = vld [vmem:[%s169 + $0x6ac] sm:$0xff]
      %v423 = vld [vmem:[%s169 + $0x6b4] sm:$0xff]
      %v424 = vld [vmem:[%s169 + $0x6bc] sm:$0xff]
      %v425 = vld [vmem:[%s169 + $0x6c4] sm:$0xf]
      %v426 = vld [vmem:[%s169 + $0x6c8] sm:$0xff]
      %v427 = vld [vmem:[%s169 + $0x6d0] sm:$0xff]
      %v428 = vld [vmem:[%s169 + $0x6d8] sm:$0xff]
      %v429 = vld [vmem:[%s169 + $0x6e0] sm:$0xf]
      %v430 = vld [vmem:[%s169 + $0x6e4] sm:$0xff]
      %v431 = vld [vmem:[%s169 + $0x6ec] sm:$0xff]
      %v432 = vld [vmem:[%s169 + $0x6f4] sm:$0xff]
      %v433 = vld [vmem:[%s169 + $0x6fc] sm:$0xf]
      %v434 = vld [vmem:[%s1] sm:$0xf]
      %v435 = vld [vmem:[%s1 + $0x4] sm:$0xf]
      %v436 = vld [vmem:[%s1 + $0x8] sm:$0xf]
      %v437 = vld [vmem:[%s1 + $0xc] sm:$0xf]
      %v438 = vld [vmem:[%s1 + $0x10] sm:$0xf]
      %v439 = vld [vmem:[%s1 + $0x14] sm:$0xf]
      %v440 = vld [vmem:[%s1 + $0x18] sm:$0xf]
      %v441 = vld [vmem:[%s1 + $0x1c] sm:$0xf]
      %v442 = vld [vmem:[%s1 + $0x20] sm:$0xf]
      %v443 = vld [vmem:[%s1 + $0x24] sm:$0xf]
      %v444 = vld [vmem:[%s1 + $0x28] sm:$0xf]
      %v445 = vld [vmem:[%s1 + $0x2c] sm:$0xf]
      %v446 = vld [vmem:[%s1 + $0x30] sm:$0xf]
      %v447 = vld [vmem:[%s1 + $0x34] sm:$0xf]
      %v448 = vld [vmem:[%s1 + $0x38] sm:$0xf]
      %v449 = vld [vmem:[%s1 + $0x3c] sm:$0xf]
      %v450 = vld [vmem:[%s1 + $0x40] sm:$0xf]
      %v451 = vld [vmem:[%s1 + $0x44] sm:$0xf]
      %v452 = vld [vmem:[%s1 + $0x48] sm:$0xf]
      %v453 = vld [vmem:[%s1 + $0x4c] sm:$0xf]
      %v454 = vld [vmem:[%s1 + $0x50] sm:$0xf]
      %v455 = vld [vmem:[%s1 + $0x54] sm:$0xf]
      %v456 = vld [vmem:[%s1 + $0x58] sm:$0xf]
      %v457 = vld [vmem:[%s1 + $0x5c] sm:$0xf]
      %v458 = vld [vmem:[%s1 + $0x60] sm:$0xf]
      %v459 = vld [vmem:[%s1 + $0x64] sm:$0xf]
      %v460 = vld [vmem:[%s1 + $0x68] sm:$0xf]
      %v461 = vld [vmem:[%s1 + $0x6c] sm:$0xf]
      %v462 = vld [vmem:[%s1 + $0x70] sm:$0xf]
      %v463 = vld [vmem:[%s1 + $0x74] sm:$0xf]
      %v464 = vld [vmem:[%s1 + $0x78] sm:$0xf]
      %v465 = vld [vmem:[%s1 + $0x7c] sm:$0xf]
      %v466 = vld [vmem:[%s1 + $0x80] sm:$0xf]
      %v467 = vld [vmem:[%s1 + $0x84] sm:$0xf]
      %v468 = vld [vmem:[%s1 + $0x88] sm:$0xf]
      %v469 = vld [vmem:[%s1 + $0x8c] sm:$0xf]
      %v470 = vld [vmem:[%s1 + $0x90] sm:$0xf]
      %v471 = vld [vmem:[%s1 + $0x94] sm:$0xf]
      %v472 = vld [vmem:[%s1 + $0x98] sm:$0xf]
      %v473 = vld [vmem:[%s1 + $0x9c] sm:$0xf]
      %v474 = vld [vmem:[%s1 + $0xa0] sm:$0xf]
      %v475 = vld [vmem:[%s1 + $0xa4] sm:$0xf]
      %v476 = vld [vmem:[%s1 + $0xa8] sm:$0xf]
      %v477 = vld [vmem:[%s1 + $0xac] sm:$0xf]
      %v478 = vld [vmem:[%s1 + $0xb0] sm:$0xf]
      %v479 = vld [vmem:[%s1 + $0xb4] sm:$0xf]
      %v480 = vld [vmem:[%s1 + $0xb8] sm:$0xf]
      %v481 = vld [vmem:[%s1 + $0xbc] sm:$0xf]
      %v482 = vld [vmem:[%s1 + $0xc0] sm:$0xf]
      %v483 = vld [vmem:[%s1 + $0xc4] sm:$0xf]
      %v484 = vld [vmem:[%s1 + $0xc8] sm:$0xf]
      %v485 = vld [vmem:[%s1 + $0xcc] sm:$0xf]
      %v486 = vld [vmem:[%s1 + $0xd0] sm:$0xf]
      %v487 = vld [vmem:[%s1 + $0xd4] sm:$0xf]
      %v488 = vld [vmem:[%s1 + $0xd8] sm:$0xf]
      %v489 = vld [vmem:[%s1 + $0xdc] sm:$0xf]
      %v490 = vld [vmem:[%s1 + $0xe0] sm:$0xf]
      %v491 = vld [vmem:[%s1 + $0xe4] sm:$0xf]
      %v492 = vld [vmem:[%s1 + $0xe8] sm:$0xf]
      %v493 = vld [vmem:[%s1 + $0xec] sm:$0xf]
      %v494 = vld [vmem:[%s1 + $0xf0] sm:$0xf]
      %v495 = vld [vmem:[%s1 + $0xf4] sm:$0xf]
      %v496 = vld [vmem:[%s1 + $0xf8] sm:$0xf]
      %v497 = vld [vmem:[%s1 + $0xfc] sm:$0xf]
      %v498 = vld [vmem:[%s1 + $0x100] sm:$0xf]
      %v499 = vld [vmem:[%s1 + $0x104] sm:$0xf]
      %v500 = vld [vmem:[%s1 + $0x108] sm:$0xf]
      %v501 = vld [vmem:[%s1 + $0x10c] sm:$0xf]
      %v502 = vld [vmem:[%s1 + $0x110] sm:$0xf]
      %v503 = vld [vmem:[%s1 + $0x114] sm:$0xf]
      %v504 = vld [vmem:[%s1 + $0x118] sm:$0xf]
      %v505 = vld [vmem:[%s1 + $0x11c] sm:$0xf]
      %v506 = vld [vmem:[%s1 + $0x120] sm:$0xf]
      %v507 = vld [vmem:[%s1 + $0x124] sm:$0xf]
      %v508 = vld [vmem:[%s1 + $0x128] sm:$0xf]
      %v509 = vld [vmem:[%s1 + $0x12c] sm:$0xf]
      %v510 = vld [vmem:[%s1 + $0x130] sm:$0xf]
      %v511 = vld [vmem:[%s1 + $0x134] sm:$0xf]
      %v512 = vld [vmem:[%s1 + $0x138] sm:$0xf]
      %v513 = vld [vmem:[%s1 + $0x13c] sm:$0xf]
      %v514 = vld [vmem:[%s1 + $0x140] sm:$0xf]
      %v515 = vld [vmem:[%s1 + $0x144] sm:$0xf]
      %v516 = vld [vmem:[%s1 + $0x148] sm:$0xf]
      %v517 = vld [vmem:[%s1 + $0x14c] sm:$0xf]
      %v518 = vld [vmem:[%s1 + $0x150] sm:$0xf]
      %v519 = vld [vmem:[%s1 + $0x154] sm:$0xf]
      %v520 = vld [vmem:[%s1 + $0x158] sm:$0xf]
      %v521 = vld [vmem:[%s1 + $0x15c] sm:$0xf]
      %v522 = vld [vmem:[%s1 + $0x160] sm:$0xf]
      %v523 = vld [vmem:[%s1 + $0x164] sm:$0xf]
      %v524 = vld [vmem:[%s1 + $0x168] sm:$0xf]
      %v525 = vld [vmem:[%s1 + $0x16c] sm:$0xf]
      %v526 = vld [vmem:[%s1 + $0x170] sm:$0xf]
      %v527 = vld [vmem:[%s1 + $0x174] sm:$0xf]
      %v528 = vld [vmem:[%s1 + $0x178] sm:$0xf]
      %v529 = vld [vmem:[%s1 + $0x17c] sm:$0xf]
      %v530 = vld [vmem:[%s1 + $0x180] sm:$0xf]
      %v531 = vld [vmem:[%s1 + $0x184] sm:$0xf]
      %v532 = vld [vmem:[%s2] sm:$0x1]
      %v534 = vperm.slane %v532, 0
      %v792 = vunpack.c.l.b16 %v178
      %v793 = vunpack.c.h.b16 %v178
      %v794 = vunpack.c.l.b16 %v179
      %v795 = vunpack.c.h.b16 %v179
      %v796 = vunpack.c.l.b16 %v180
      %v797 = vunpack.c.h.b16 %v180
      %v798 = vunpack.c.l.b16 %v181
      %v799 = vunpack.c.l.b16 %v182
      %v800 = vunpack.c.h.b16 %v182
      %v801 = vunpack.c.l.b16 %v183
      %v802 = vunpack.c.h.b16 %v183
      %v803 = vunpack.c.l.b16 %v184
      %v804 = vunpack.c.h.b16 %v184
      %v805 = vunpack.c.l.b16 %v185
      %v806 = vunpack.c.l.b16 %v186
      %v807 = vunpack.c.h.b16 %v186
      %v808 = vunpack.c.l.b16 %v187
      %v809 = vunpack.c.h.b16 %v187
      %v810 = vunpack.c.l.b16 %v188
      %v811 = vunpack.c.h.b16 %v188
      %v812 = vunpack.c.l.b16 %v189
      %v813 = vunpack.c.l.b16 %v190
      %v814 = vunpack.c.h.b16 %v190
      %v815 = vunpack.c.l.b16 %v191
      %v816 = vunpack.c.h.b16 %v191
      %v817 = vunpack.c.l.b16 %v192
      %v818 = vunpack.c.h.b16 %v192
      %v819 = vunpack.c.l.b16 %v193
      %v820 = vunpack.c.l.b16 %v194
      %v821 = vunpack.c.h.b16 %v194
      %v822 = vunpack.c.l.b16 %v195
      %v823 = vunpack.c.h.b16 %v195
      %v824 = vunpack.c.l.b16 %v196
      %v825 = vunpack.c.h.b16 %v196
      %v826 = vunpack.c.l.b16 %v197
      %v827 = vunpack.c.l.b16 %v198
      %v828 = vunpack.c.h.b16 %v198
      %v829 = vunpack.c.l.b16 %v199
      %v830 = vunpack.c.h.b16 %v199
      %v831 = vunpack.c.l.b16 %v200
      %v832 = vunpack.c.h.b16 %v200
      %v833 = vunpack.c.l.b16 %v201
      %v834 = vunpack.c.l.b16 %v202
      %v835 = vunpack.c.h.b16 %v202
      %v836 = vunpack.c.l.b16 %v203
      %v837 = vunpack.c.h.b16 %v203
      %v838 = vunpack.c.l.b16 %v204
      %v839 = vunpack.c.h.b16 %v204
      %v840 = vunpack.c.l.b16 %v205
      %v841 = vunpack.c.l.b16 %v206
      %v842 = vunpack.c.h.b16 %v206
      %v843 = vunpack.c.l.b16 %v207
      %v844 = vunpack.c.h.b16 %v207
      %v845 = vunpack.c.l.b16 %v208
      %v846 = vunpack.c.h.b16 %v208
      %v847 = vunpack.c.l.b16 %v209
      %v848 = vunpack.c.l.b16 %v210
      %v849 = vunpack.c.h.b16 %v210
      %v850 = vunpack.c.l.b16 %v211
      %v851 = vunpack.c.h.b16 %v211
      %v852 = vunpack.c.l.b16 %v212
      %v853 = vunpack.c.h.b16 %v212
      %v854 = vunpack.c.l.b16 %v213
      %v855 = vunpack.c.l.b16 %v214
      %v856 = vunpack.c.h.b16 %v214
      %v857 = vunpack.c.l.b16 %v215
      %v858 = vunpack.c.h.b16 %v215
      %v859 = vunpack.c.l.b16 %v216
      %v860 = vunpack.c.h.b16 %v216
      %v861 = vunpack.c.l.b16 %v217
      %v862 = vunpack.c.l.b16 %v218
      %v863 = vunpack.c.h.b16 %v218
      %v864 = vunpack.c.l.b16 %v219
      %v865 = vunpack.c.h.b16 %v219
      %v866 = vunpack.c.l.b16 %v220
      %v867 = vunpack.c.h.b16 %v220
      %v868 = vunpack.c.l.b16 %v221
      %v869 = vunpack.c.l.b16 %v222
      %v870 = vunpack.c.h.b16 %v222
      %v871 = vunpack.c.l.b16 %v223
      %v872 = vunpack.c.h.b16 %v223
      %v873 = vunpack.c.l.b16 %v224
      %v874 = vunpack.c.h.b16 %v224
      %v875 = vunpack.c.l.b16 %v225
      %v876 = vunpack.c.l.b16 %v226
      %v877 = vunpack.c.h.b16 %v226
      %v878 = vunpack.c.l.b16 %v227
      %v879 = vunpack.c.h.b16 %v227
      %v880 = vunpack.c.l.b16 %v228
      %v881 = vunpack.c.h.b16 %v228
      %v882 = vunpack.c.l.b16 %v229
      %v883 = vunpack.c.l.b16 %v230
      %v884 = vunpack.c.h.b16 %v230
      %v885 = vunpack.c.l.b16 %v231
      %v886 = vunpack.c.h.b16 %v231
      %v887 = vunpack.c.l.b16 %v232
      %v888 = vunpack.c.h.b16 %v232
      %v889 = vunpack.c.l.b16 %v233
      %v890 = vunpack.c.l.b16 %v234
      %v891 = vunpack.c.h.b16 %v234
      %v892 = vunpack.c.l.b16 %v235
      %v893 = vunpack.c.h.b16 %v235
      %v894 = vunpack.c.l.b16 %v236
      %v895 = vunpack.c.h.b16 %v236
      %v896 = vunpack.c.l.b16 %v237
      %v897 = vunpack.c.l.b16 %v238
      %v898 = vunpack.c.h.b16 %v238
      %v899 = vunpack.c.l.b16 %v239
      %v900 = vunpack.c.h.b16 %v239
      %v901 = vunpack.c.l.b16 %v240
      %v902 = vunpack.c.h.b16 %v240
      %v903 = vunpack.c.l.b16 %v241
      %v904 = vunpack.c.l.b16 %v242
      %v905 = vunpack.c.h.b16 %v242
      %v906 = vunpack.c.l.b16 %v243
      %v907 = vunpack.c.h.b16 %v243
      %v908 = vunpack.c.l.b16 %v244
      %v909 = vunpack.c.h.b16 %v244
      %v910 = vunpack.c.l.b16 %v245
      %v911 = vunpack.c.l.b16 %v246
      %v912 = vunpack.c.h.b16 %v246
      %v913 = vunpack.c.l.b16 %v247
      %v914 = vunpack.c.h.b16 %v247
      %v915 = vunpack.c.l.b16 %v248
      %v916 = vunpack.c.h.b16 %v248
      %v917 = vunpack.c.l.b16 %v249
      %v918 = vunpack.c.l.b16 %v250
      %v919 = vunpack.c.h.b16 %v250
      %v920 = vunpack.c.l.b16 %v251
      %v921 = vunpack.c.h.b16 %v251
      %v922 = vunpack.c.l.b16 %v252
      %v923 = vunpack.c.h.b16 %v252
      %v924 = vunpack.c.l.b16 %v253
      %v925 = vunpack.c.l.b16 %v254
      %v926 = vunpack.c.h.b16 %v254
      %v927 = vunpack.c.l.b16 %v255
      %v928 = vunpack.c.h.b16 %v255
      %v929 = vunpack.c.l.b16 %v256
      %v930 = vunpack.c.h.b16 %v256
      %v931 = vunpack.c.l.b16 %v257
      %v932 = vunpack.c.l.b16 %v258
      %v933 = vunpack.c.h.b16 %v258
      %v934 = vunpack.c.l.b16 %v259
      %v935 = vunpack.c.h.b16 %v259
      %v936 = vunpack.c.l.b16 %v260
      %v937 = vunpack.c.h.b16 %v260
      %v938 = vunpack.c.l.b16 %v261
      %v939 = vunpack.c.l.b16 %v262
      %v940 = vunpack.c.h.b16 %v262
      %v941 = vunpack.c.l.b16 %v263
      %v942 = vunpack.c.h.b16 %v263
      %v943 = vunpack.c.l.b16 %v264
      %v944 = vunpack.c.h.b16 %v264
      %v945 = vunpack.c.l.b16 %v265
      %v946 = vunpack.c.l.b16 %v266
      %v947 = vunpack.c.h.b16 %v266
      %v948 = vunpack.c.l.b16 %v267
      %v949 = vunpack.c.h.b16 %v267
      %v950 = vunpack.c.l.b16 %v268
      %v951 = vunpack.c.h.b16 %v268
      %v952 = vunpack.c.l.b16 %v269
      %v953 = vunpack.c.l.b16 %v270
      %v954 = vunpack.c.h.b16 %v270
      %v955 = vunpack.c.l.b16 %v271
      %v956 = vunpack.c.h.b16 %v271
      %v957 = vunpack.c.l.b16 %v272
      %v958 = vunpack.c.h.b16 %v272
      %v959 = vunpack.c.l.b16 %v273
      %v960 = vunpack.c.l.b16 %v274
      %v961 = vunpack.c.h.b16 %v274
      %v962 = vunpack.c.l.b16 %v275
      %v963 = vunpack.c.h.b16 %v275
      %v964 = vunpack.c.l.b16 %v276
      %v965 = vunpack.c.h.b16 %v276
      %v966 = vunpack.c.l.b16 %v277
      %v967 = vunpack.c.l.b16 %v278
      %v968 = vunpack.c.h.b16 %v278
      %v969 = vunpack.c.l.b16 %v279
      %v970 = vunpack.c.h.b16 %v279
      %v971 = vunpack.c.l.b16 %v280
      %v972 = vunpack.c.h.b16 %v280
      %v973 = vunpack.c.l.b16 %v281
      %v974 = vunpack.c.l.b16 %v282
      %v975 = vunpack.c.h.b16 %v282
      %v976 = vunpack.c.l.b16 %v283
      %v977 = vunpack.c.h.b16 %v283
      %v978 = vunpack.c.l.b16 %v284
      %v979 = vunpack.c.h.b16 %v284
      %v980 = vunpack.c.l.b16 %v285
      %v981 = vunpack.c.l.b16 %v286
      %v982 = vunpack.c.h.b16 %v286
      %v983 = vunpack.c.l.b16 %v287
      %v984 = vunpack.c.h.b16 %v287
      %v985 = vunpack.c.l.b16 %v288
      %v986 = vunpack.c.h.b16 %v288
      %v987 = vunpack.c.l.b16 %v289
      %v988 = vunpack.c.l.b16 %v290
      %v989 = vunpack.c.h.b16 %v290
      %v990 = vunpack.c.l.b16 %v291
      %v991 = vunpack.c.h.b16 %v291
      %v992 = vunpack.c.l.b16 %v292
      %v993 = vunpack.c.h.b16 %v292
      %v994 = vunpack.c.l.b16 %v293
      %v995 = vunpack.c.l.b16 %v294
      %v996 = vunpack.c.h.b16 %v294
      %v997 = vunpack.c.l.b16 %v295
      %v998 = vunpack.c.h.b16 %v295
      %v999 = vunpack.c.l.b16 %v296
      %v1000 = vunpack.c.h.b16 %v296
      %v1001 = vunpack.c.l.b16 %v297
      %v1002 = vunpack.c.l.b16 %v298
      %v1003 = vunpack.c.h.b16 %v298
      %v1004 = vunpack.c.l.b16 %v299
      %v1005 = vunpack.c.h.b16 %v299
      %v1006 = vunpack.c.l.b16 %v300
      %v1007 = vunpack.c.h.b16 %v300
      %v1008 = vunpack.c.l.b16 %v301
      %v1009 = vunpack.c.l.b16 %v302
      %v1010 = vunpack.c.h.b16 %v302
      %v1011 = vunpack.c.l.b16 %v303
      %v1012 = vunpack.c.h.b16 %v303
      %v1013 = vunpack.c.l.b16 %v304
      %v1014 = vunpack.c.h.b16 %v304
      %v1015 = vunpack.c.l.b16 %v305
      %v1016 = vunpack.c.l.b16 %v306
      %v1017 = vunpack.c.h.b16 %v306
      %v1018 = vunpack.c.l.b16 %v307
      %v1019 = vunpack.c.h.b16 %v307
      %v1020 = vunpack.c.l.b16 %v308
      %v1021 = vunpack.c.h.b16 %v308
      %v1022 = vunpack.c.l.b16 %v309
      %v1023 = vunpack.c.l.b16 %v310
      %v1024 = vunpack.c.h.b16 %v310
      %v1025 = vunpack.c.l.b16 %v311
      %v1026 = vunpack.c.h.b16 %v311
      %v1027 = vunpack.c.l.b16 %v312
      %v1028 = vunpack.c.h.b16 %v312
      %v1029 = vunpack.c.l.b16 %v313
      %v1030 = vunpack.c.l.b16 %v314
      %v1031 = vunpack.c.h.b16 %v314
      %v1032 = vunpack.c.l.b16 %v315
      %v1033 = vunpack.c.h.b16 %v315
      %v1034 = vunpack.c.l.b16 %v316
      %v1035 = vunpack.c.h.b16 %v316
      %v1036 = vunpack.c.l.b16 %v317
      %v1037 = vunpack.c.l.b16 %v318
      %v1038 = vunpack.c.h.b16 %v318
      %v1039 = vunpack.c.l.b16 %v319
      %v1040 = vunpack.c.h.b16 %v319
      %v1041 = vunpack.c.l.b16 %v320
      %v1042 = vunpack.c.h.b16 %v320
      %v1043 = vunpack.c.l.b16 %v321
      %v1044 = vunpack.c.l.b16 %v322
      %v1045 = vunpack.c.h.b16 %v322
      %v1046 = vunpack.c.l.b16 %v323
      %v1047 = vunpack.c.h.b16 %v323
      %v1048 = vunpack.c.l.b16 %v324
      %v1049 = vunpack.c.h.b16 %v324
      %v1050 = vunpack.c.l.b16 %v325
      %v1051 = vunpack.c.l.b16 %v326
      %v1052 = vunpack.c.h.b16 %v326
      %v1053 = vunpack.c.l.b16 %v327
      %v1054 = vunpack.c.h.b16 %v327
      %v1055 = vunpack.c.l.b16 %v328
      %v1056 = vunpack.c.h.b16 %v328
      %v1057 = vunpack.c.l.b16 %v329
      %v1058 = vunpack.c.l.b16 %v330
      %v1059 = vunpack.c.h.b16 %v330
      %v1060 = vunpack.c.l.b16 %v331
      %v1061 = vunpack.c.h.b16 %v331
      %v1062 = vunpack.c.l.b16 %v332
      %v1063 = vunpack.c.h.b16 %v332
      %v1064 = vunpack.c.l.b16 %v333
      %v1065 = vunpack.c.l.b16 %v334
      %v1066 = vunpack.c.h.b16 %v334
      %v1067 = vunpack.c.l.b16 %v335
      %v1068 = vunpack.c.h.b16 %v335
      %v1069 = vunpack.c.l.b16 %v336
      %v1070 = vunpack.c.h.b16 %v336
      %v1071 = vunpack.c.l.b16 %v337
      %v1072 = vunpack.c.l.b16 %v338
      %v1073 = vunpack.c.h.b16 %v338
      %v1074 = vunpack.c.l.b16 %v339
      %v1075 = vunpack.c.h.b16 %v339
      %v1076 = vunpack.c.l.b16 %v340
      %v1077 = vunpack.c.h.b16 %v340
      %v1078 = vunpack.c.l.b16 %v341
      %v1079 = vunpack.c.l.b16 %v342
      %v1080 = vunpack.c.h.b16 %v342
      %v1081 = vunpack.c.l.b16 %v343
      %v1082 = vunpack.c.h.b16 %v343
      %v1083 = vunpack.c.l.b16 %v344
      %v1084 = vunpack.c.h.b16 %v344
      %v1085 = vunpack.c.l.b16 %v345
      %v1086 = vunpack.c.l.b16 %v346
      %v1087 = vunpack.c.h.b16 %v346
      %v1088 = vunpack.c.l.b16 %v347
      %v1089 = vunpack.c.h.b16 %v347
      %v1090 = vunpack.c.l.b16 %v348
      %v1091 = vunpack.c.h.b16 %v348
      %v1092 = vunpack.c.l.b16 %v349
      %v1093 = vunpack.c.l.b16 %v350
      %v1094 = vunpack.c.h.b16 %v350
      %v1095 = vunpack.c.l.b16 %v351
      %v1096 = vunpack.c.h.b16 %v351
      %v1097 = vunpack.c.l.b16 %v352
      %v1098 = vunpack.c.h.b16 %v352
      %v1099 = vunpack.c.l.b16 %v353
      %v1100 = vunpack.c.l.b16 %v354
      %v1101 = vunpack.c.h.b16 %v354
      %v1102 = vunpack.c.l.b16 %v355
      %v1103 = vunpack.c.h.b16 %v355
      %v1104 = vunpack.c.l.b16 %v356
      %v1105 = vunpack.c.h.b16 %v356
      %v1106 = vunpack.c.l.b16 %v357
      %v1107 = vunpack.c.l.b16 %v358
      %v1108 = vunpack.c.h.b16 %v358
      %v1109 = vunpack.c.l.b16 %v359
      %v1110 = vunpack.c.h.b16 %v359
      %v1111 = vunpack.c.l.b16 %v360
      %v1112 = vunpack.c.h.b16 %v360
      %v1113 = vunpack.c.l.b16 %v361
      %v1114 = vunpack.c.l.b16 %v362
      %v1115 = vunpack.c.h.b16 %v362
      %v1116 = vunpack.c.l.b16 %v363
      %v1117 = vunpack.c.h.b16 %v363
      %v1118 = vunpack.c.l.b16 %v364
      %v1119 = vunpack.c.h.b16 %v364
      %v1120 = vunpack.c.l.b16 %v365
      %v1121 = vunpack.c.l.b16 %v366
      %v1122 = vunpack.c.h.b16 %v366
      %v1123 = vunpack.c.l.b16 %v367
      %v1124 = vunpack.c.h.b16 %v367
      %v1125 = vunpack.c.l.b16 %v368
      %v1126 = vunpack.c.h.b16 %v368
      %v1127 = vunpack.c.l.b16 %v369
      %v1128 = vunpack.c.l.b16 %v370
      %v1129 = vunpack.c.h.b16 %v370
      %v1130 = vunpack.c.l.b16 %v371
      %v1131 = vunpack.c.h.b16 %v371
      %v1132 = vunpack.c.l.b16 %v372
      %v1133 = vunpack.c.h.b16 %v372
      %v1134 = vunpack.c.l.b16 %v373
      %v1135 = vunpack.c.l.b16 %v374
      %v1136 = vunpack.c.h.b16 %v374
      %v1137 = vunpack.c.l.b16 %v375
      %v1138 = vunpack.c.h.b16 %v375
      %v1139 = vunpack.c.l.b16 %v376
      %v1140 = vunpack.c.h.b16 %v376
      %v1141 = vunpack.c.l.b16 %v377
      %v1142 = vunpack.c.l.b16 %v378
      %v1143 = vunpack.c.h.b16 %v378
      %v1144 = vunpack.c.l.b16 %v379
      %v1145 = vunpack.c.h.b16 %v379
      %v1146 = vunpack.c.l.b16 %v380
      %v1147 = vunpack.c.h.b16 %v380
      %v1148 = vunpack.c.l.b16 %v381
      %v1149 = vunpack.c.l.b16 %v382
      %v1150 = vunpack.c.h.b16 %v382
      %v1151 = vunpack.c.l.b16 %v383
      %v1152 = vunpack.c.h.b16 %v383
      %v1153 = vunpack.c.l.b16 %v384
      %v1154 = vunpack.c.h.b16 %v384
      %v1155 = vunpack.c.l.b16 %v385
      %v1156 = vunpack.c.l.b16 %v386
      %v1157 = vunpack.c.h.b16 %v386
      %v1158 = vunpack.c.l.b16 %v387
      %v1159 = vunpack.c.h.b16 %v387
      %v1160 = vunpack.c.l.b16 %v388
      %v1161 = vunpack.c.h.b16 %v388
      %v1162 = vunpack.c.l.b16 %v389
      %v1163 = vunpack.c.l.b16 %v390
      %v1164 = vunpack.c.h.b16 %v390
      %v1165 = vunpack.c.l.b16 %v391
      %v1166 = vunpack.c.h.b16 %v391
      %v1167 = vunpack.c.l.b16 %v392
      %v1168 = vunpack.c.h.b16 %v392
      %v1169 = vunpack.c.l.b16 %v393
      %v1170 = vunpack.c.l.b16 %v394
      %v1171 = vunpack.c.h.b16 %v394
      %v1172 = vunpack.c.l.b16 %v395
      %v1173 = vunpack.c.h.b16 %v395
      %v1174 = vunpack.c.l.b16 %v396
      %v1175 = vunpack.c.h.b16 %v396
      %v1176 = vunpack.c.l.b16 %v397
      %v1177 = vunpack.c.l.b16 %v398
      %v1178 = vunpack.c.h.b16 %v398
      %v1179 = vunpack.c.l.b16 %v399
      %v1180 = vunpack.c.h.b16 %v399
      %v1181 = vunpack.c.l.b16 %v400
      %v1182 = vunpack.c.h.b16 %v400
      %v1183 = vunpack.c.l.b16 %v401
      %v1184 = vunpack.c.l.b16 %v402
      %v1185 = vunpack.c.h.b16 %v402
      %v1186 = vunpack.c.l.b16 %v403
      %v1187 = vunpack.c.h.b16 %v403
      %v1188 = vunpack.c.l.b16 %v404
      %v1189 = vunpack.c.h.b16 %v404
      %v1190 = vunpack.c.l.b16 %v405
      %v1191 = vunpack.c.l.b16 %v406
      %v1192 = vunpack.c.h.b16 %v406
      %v1193 = vunpack.c.l.b16 %v407
      %v1194 = vunpack.c.h.b16 %v407
      %v1195 = vunpack.c.l.b16 %v408
      %v1196 = vunpack.c.h.b16 %v408
      %v1197 = vunpack.c.l.b16 %v409
      %v1198 = vunpack.c.l.b16 %v410
      %v1199 = vunpack.c.h.b16 %v410
      %v1200 = vunpack.c.l.b16 %v411
      %v1201 = vunpack.c.h.b16 %v411
      %v1202 = vunpack.c.l.b16 %v412
      %v1203 = vunpack.c.h.b16 %v412
      %v1204 = vunpack.c.l.b16 %v413
      %v1205 = vunpack.c.l.b16 %v414
      %v1206 = vunpack.c.h.b16 %v414
      %v1207 = vunpack.c.l.b16 %v415
      %v1208 = vunpack.c.h.b16 %v415
      %v1209 = vunpack.c.l.b16 %v416
      %v1210 = vunpack.c.h.b16 %v416
      %v1211 = vunpack.c.l.b16 %v417
      %v1212 = vunpack.c.l.b16 %v418
      %v1213 = vunpack.c.h.b16 %v418
      %v1214 = vunpack.c.l.b16 %v419
      %v1215 = vunpack.c.h.b16 %v419
      %v1216 = vunpack.c.l.b16 %v420
      %v1217 = vunpack.c.h.b16 %v420
      %v1218 = vunpack.c.l.b16 %v421
      %v1219 = vunpack.c.l.b16 %v422
      %v1220 = vunpack.c.h.b16 %v422
      %v1221 = vunpack.c.l.b16 %v423
      %v1222 = vunpack.c.h.b16 %v423
      %v1223 = vunpack.c.l.b16 %v424
      %v1224 = vunpack.c.h.b16 %v424
      %v1225 = vunpack.c.l.b16 %v425
      %v1226 = vunpack.c.l.b16 %v426
      %v1227 = vunpack.c.h.b16 %v426
      %v1228 = vunpack.c.l.b16 %v427
      %v1229 = vunpack.c.h.b16 %v427
      %v1230 = vunpack.c.l.b16 %v428
      %v1231 = vunpack.c.h.b16 %v428
      %v1232 = vunpack.c.l.b16 %v429
      %v1233 = vunpack.c.l.b16 %v430
      %v1234 = vunpack.c.h.b16 %v430
      %v1235 = vunpack.c.l.b16 %v431
      %v1236 = vunpack.c.h.b16 %v431
      %v1237 = vunpack.c.l.b16 %v432
      %v1238 = vunpack.c.h.b16 %v432
      %v1239 = vunpack.c.l.b16 %v433
      %v1240 = vpack.c.b16 %v799, %v792
      %v1241 = vpack.c.b16 %v800, %v793
      %v1242 = vpack.c.b16 %v801, %v794
      %v1243 = vpack.c.b16 %v802, %v795
      %v1244 = vpack.c.b16 %v803, %v796
      %v1245 = vpack.c.b16 %v804, %v797
      %v1246 = vpack.c.b16 %v805, %v798
      %v1247 = vpack.c.b16 %v813, %v806
      %v1248 = vpack.c.b16 %v814, %v807
      %v1249 = vpack.c.b16 %v815, %v808
      %v1250 = vpack.c.b16 %v816, %v809
      %v1251 = vpack.c.b16 %v817, %v810
      %v1252 = vpack.c.b16 %v818, %v811
      %v1253 = vpack.c.b16 %v819, %v812
      %v1254 = vpack.c.b16 %v827, %v820
      %v1255 = vpack.c.b16 %v828, %v821
      %v1256 = vpack.c.b16 %v829, %v822
      %v1257 = vpack.c.b16 %v830, %v823
      %v1258 = vpack.c.b16 %v831, %v824
      %v1259 = vpack.c.b16 %v832, %v825
      %v1260 = vpack.c.b16 %v833, %v826
      %v1261 = vpack.c.b16 %v841, %v834
      %v1262 = vpack.c.b16 %v842, %v835
      %v1263 = vpack.c.b16 %v843, %v836
      %v1264 = vpack.c.b16 %v844, %v837
      %v1265 = vpack.c.b16 %v845, %v838
      %v1266 = vpack.c.b16 %v846, %v839
      %v1267 = vpack.c.b16 %v847, %v840
      %v1268 = vpack.c.b16 %v855, %v848
      %v1269 = vpack.c.b16 %v856, %v849
      %v1270 = vpack.c.b16 %v857, %v850
      %v1271 = vpack.c.b16 %v858, %v851
      %v1272 = vpack.c.b16 %v859, %v852
      %v1273 = vpack.c.b16 %v860, %v853
      %v1274 = vpack.c.b16 %v861, %v854
      %v1275 = vpack.c.b16 %v869, %v862
      %v1276 = vpack.c.b16 %v870, %v863
      %v1277 = vpack.c.b16 %v871, %v864
      %v1278 = vpack.c.b16 %v872, %v865
      %v1279 = vpack.c.b16 %v873, %v866
      %v1280 = vpack.c.b16 %v874, %v867
      %v1281 = vpack.c.b16 %v875, %v868
      %v1282 = vpack.c.b16 %v883, %v876
      %v1283 = vpack.c.b16 %v884, %v877
      %v1284 = vpack.c.b16 %v885, %v878
      %v1285 = vpack.c.b16 %v886, %v879
      %v1286 = vpack.c.b16 %v887, %v880
      %v1287 = vpack.c.b16 %v888, %v881
      %v1288 = vpack.c.b16 %v889, %v882
      %v1289 = vpack.c.b16 %v897, %v890
      %v1290 = vpack.c.b16 %v898, %v891
      %v1291 = vpack.c.b16 %v899, %v892
      %v1292 = vpack.c.b16 %v900, %v893
      %v1293 = vpack.c.b16 %v901, %v894
      %v1294 = vpack.c.b16 %v902, %v895
      %v1295 = vpack.c.b16 %v903, %v896
      %v1296 = vpack.c.b16 %v911, %v904
      %v1297 = vpack.c.b16 %v912, %v905
      %v1298 = vpack.c.b16 %v913, %v906
      %v1299 = vpack.c.b16 %v914, %v907
      %v1300 = vpack.c.b16 %v915, %v908
      %v1301 = vpack.c.b16 %v916, %v909
      %v1302 = vpack.c.b16 %v917, %v910
      %v1303 = vpack.c.b16 %v925, %v918
      %v1304 = vpack.c.b16 %v926, %v919
      %v1305 = vpack.c.b16 %v927, %v920
      %v1306 = vpack.c.b16 %v928, %v921
      %v1307 = vpack.c.b16 %v929, %v922
      %v1308 = vpack.c.b16 %v930, %v923
      %v1309 = vpack.c.b16 %v931, %v924
      %v1310 = vpack.c.b16 %v939, %v932
      %v1311 = vpack.c.b16 %v940, %v933
      %v1312 = vpack.c.b16 %v941, %v934
      %v1313 = vpack.c.b16 %v942, %v935
      %v1314 = vpack.c.b16 %v943, %v936
      %v1315 = vpack.c.b16 %v944, %v937
      %v1316 = vpack.c.b16 %v945, %v938
      %v1317 = vpack.c.b16 %v953, %v946
      %v1318 = vpack.c.b16 %v954, %v947
      %v1319 = vpack.c.b16 %v955, %v948
      %v1320 = vpack.c.b16 %v956, %v949
      %v1321 = vpack.c.b16 %v957, %v950
      %v1322 = vpack.c.b16 %v958, %v951
      %v1323 = vpack.c.b16 %v959, %v952
      %v1324 = vpack.c.b16 %v967, %v960
      %v1325 = vpack.c.b16 %v968, %v961
      %v1326 = vpack.c.b16 %v969, %v962
      %v1327 = vpack.c.b16 %v970, %v963
      %v1328 = vpack.c.b16 %v971, %v964
      %v1329 = vpack.c.b16 %v972, %v965
      %v1330 = vpack.c.b16 %v973, %v966
      %v1331 = vpack.c.b16 %v981, %v974
      %v1332 = vpack.c.b16 %v982, %v975
      %v1333 = vpack.c.b16 %v983, %v976
      %v1334 = vpack.c.b16 %v984, %v977
      %v1335 = vpack.c.b16 %v985, %v978
      %v1336 = vpack.c.b16 %v986, %v979
      %v1337 = vpack.c.b16 %v987, %v980
      %v1338 = vpack.c.b16 %v995, %v988
      %v1339 = vpack.c.b16 %v996, %v989
      %v1340 = vpack.c.b16 %v997, %v990
      %v1341 = vpack.c.b16 %v998, %v991
      %v1342 = vpack.c.b16 %v999, %v992
      %v1343 = vpack.c.b16 %v1000, %v993
      %v1344 = vpack.c.b16 %v1001, %v994
      %v1345 = vpack.c.b16 %v1009, %v1002
      %v1346 = vpack.c.b16 %v1010, %v1003
      %v1347 = vpack.c.b16 %v1011, %v1004
      %v1348 = vpack.c.b16 %v1012, %v1005
      %v1349 = vpack.c.b16 %v1013, %v1006
      %v1350 = vpack.c.b16 %v1014, %v1007
      %v1351 = vpack.c.b16 %v1015, %v1008
      %v1352 = vpack.c.b16 %v1023, %v1016
      %v1353 = vpack.c.b16 %v1024, %v1017
      %v1354 = vpack.c.b16 %v1025, %v1018
      %v1355 = vpack.c.b16 %v1026, %v1019
      %v1356 = vpack.c.b16 %v1027, %v1020
      %v1357 = vpack.c.b16 %v1028, %v1021
      %v1358 = vpack.c.b16 %v1029, %v1022
      %v1359 = vpack.c.b16 %v1037, %v1030
      %v1360 = vpack.c.b16 %v1038, %v1031
      %v1361 = vpack.c.b16 %v1039, %v1032
      %v1362 = vpack.c.b16 %v1040, %v1033
      %v1363 = vpack.c.b16 %v1041, %v1034
      %v1364 = vpack.c.b16 %v1042, %v1035
      %v1365 = vpack.c.b16 %v1043, %v1036
      %v1366 = vpack.c.b16 %v1051, %v1044
      %v1367 = vpack.c.b16 %v1052, %v1045
      %v1368 = vpack.c.b16 %v1053, %v1046
      %v1369 = vpack.c.b16 %v1054, %v1047
      %v1370 = vpack.c.b16 %v1055, %v1048
      %v1371 = vpack.c.b16 %v1056, %v1049
      %v1372 = vpack.c.b16 %v1057, %v1050
      %v1373 = vpack.c.b16 %v1065, %v1058
      %v1374 = vpack.c.b16 %v1066, %v1059
      %v1375 = vpack.c.b16 %v1067, %v1060
      %v1376 = vpack.c.b16 %v1068, %v1061
      %v1377 = vpack.c.b16 %v1069, %v1062
      %v1378 = vpack.c.b16 %v1070, %v1063
      %v1379 = vpack.c.b16 %v1071, %v1064
      %v1380 = vpack.c.b16 %v1079, %v1072
      %v1381 = vpack.c.b16 %v1080, %v1073
      %v1382 = vpack.c.b16 %v1081, %v1074
      %v1383 = vpack.c.b16 %v1082, %v1075
      %v1384 = vpack.c.b16 %v1083, %v1076
      %v1385 = vpack.c.b16 %v1084, %v1077
      %v1386 = vpack.c.b16 %v1085, %v1078
      %v1387 = vpack.c.b16 %v1093, %v1086
      %v1388 = vpack.c.b16 %v1094, %v1087
      %v1389 = vpack.c.b16 %v1095, %v1088
      %v1390 = vpack.c.b16 %v1096, %v1089
      %v1391 = vpack.c.b16 %v1097, %v1090
      %v1392 = vpack.c.b16 %v1098, %v1091
      %v1393 = vpack.c.b16 %v1099, %v1092
      %v1394 = vpack.c.b16 %v1107, %v1100
      %v1395 = vpack.c.b16 %v1108, %v1101
      %v1396 = vpack.c.b16 %v1109, %v1102
      %v1397 = vpack.c.b16 %v1110, %v1103
      %v1398 = vpack.c.b16 %v1111, %v1104
      %v1399 = vpack.c.b16 %v1112, %v1105
      %v1400 = vpack.c.b16 %v1113, %v1106
      %v1401 = vpack.c.b16 %v1121, %v1114
      %v1402 = vpack.c.b16 %v1122, %v1115
      %v1403 = vpack.c.b16 %v1123, %v1116
      %v1404 = vpack.c.b16 %v1124, %v1117
      %v1405 = vpack.c.b16 %v1125, %v1118
      %v1406 = vpack.c.b16 %v1126, %v1119
      %v1407 = vpack.c.b16 %v1127, %v1120
      %v1408 = vpack.c.b16 %v1135, %v1128
      %v1409 = vpack.c.b16 %v1136, %v1129
      %v1410 = vpack.c.b16 %v1137, %v1130
      %v1411 = vpack.c.b16 %v1138, %v1131
      %v1412 = vpack.c.b16 %v1139, %v1132
      %v1413 = vpack.c.b16 %v1140, %v1133
      %v1414 = vpack.c.b16 %v1141, %v1134
      %v1415 = vpack.c.b16 %v1149, %v1142
      %v1416 = vpack.c.b16 %v1150, %v1143
      %v1417 = vpack.c.b16 %v1151, %v1144
      %v1418 = vpack.c.b16 %v1152, %v1145
      %v1419 = vpack.c.b16 %v1153, %v1146
      %v1420 = vpack.c.b16 %v1154, %v1147
      %v1421 = vpack.c.b16 %v1155, %v1148
      %v1422 = vpack.c.b16 %v1163, %v1156
      %v1423 = vpack.c.b16 %v1164, %v1157
      %v1424 = vpack.c.b16 %v1165, %v1158
      %v1425 = vpack.c.b16 %v1166, %v1159
      %v1426 = vpack.c.b16 %v1167, %v1160
      %v1427 = vpack.c.b16 %v1168, %v1161
      %v1428 = vpack.c.b16 %v1169, %v1162
      %v1429 = vpack.c.b16 %v1177, %v1170
      %v1430 = vpack.c.b16 %v1178, %v1171
      %v1431 = vpack.c.b16 %v1179, %v1172
      %v1432 = vpack.c.b16 %v1180, %v1173
      %v1433 = vpack.c.b16 %v1181, %v1174
      %v1434 = vpack.c.b16 %v1182, %v1175
      %v1435 = vpack.c.b16 %v1183, %v1176
      %v1436 = vpack.c.b16 %v1191, %v1184
      %v1437 = vpack.c.b16 %v1192, %v1185
      %v1438 = vpack.c.b16 %v1193, %v1186
      %v1439 = vpack.c.b16 %v1194, %v1187
      %v1440 = vpack.c.b16 %v1195, %v1188
      %v1441 = vpack.c.b16 %v1196, %v1189
      %v1442 = vpack.c.b16 %v1197, %v1190
      %v1443 = vpack.c.b16 %v1205, %v1198
      %v1444 = vpack.c.b16 %v1206, %v1199
      %v1445 = vpack.c.b16 %v1207, %v1200
      %v1446 = vpack.c.b16 %v1208, %v1201
      %v1447 = vpack.c.b16 %v1209, %v1202
      %v1448 = vpack.c.b16 %v1210, %v1203
      %v1449 = vpack.c.b16 %v1211, %v1204
      %v1450 = vpack.c.b16 %v1219, %v1212
      %v1451 = vpack.c.b16 %v1220, %v1213
      %v1452 = vpack.c.b16 %v1221, %v1214
      %v1453 = vpack.c.b16 %v1222, %v1215
      %v1454 = vpack.c.b16 %v1223, %v1216
      %v1455 = vpack.c.b16 %v1224, %v1217
      %v1456 = vpack.c.b16 %v1225, %v1218
      %v1457 = vpack.c.b16 %v1233, %v1226
      %v1458 = vpack.c.b16 %v1234, %v1227
      %v1459 = vpack.c.b16 %v1235, %v1228
      %v1460 = vpack.c.b16 %v1236, %v1229
      %v1461 = vpack.c.b16 %v1237, %v1230
      %v1462 = vpack.c.b16 %v1238, %v1231
      %v1463 = vpack.c.b16 %v1239, %v1232
      %v1754 = vunpack.c.l.b16 %v434
      %v1755 = vunpack.c.l.b16 %v435
      %v1756 = vunpack.c.l.b16 %v436
      %v1757 = vunpack.c.l.b16 %v437
      %v1758 = vunpack.c.l.b16 %v438
      %v1759 = vunpack.c.l.b16 %v439
      %v1760 = vunpack.c.l.b16 %v440
      %v1761 = vunpack.c.l.b16 %v441
      %v1762 = vunpack.c.l.b16 %v442
      %v1763 = vunpack.c.l.b16 %v443
      %v1764 = vunpack.c.l.b16 %v444
      %v1765 = vunpack.c.l.b16 %v445
      %v1766 = vunpack.c.l.b16 %v446
      %v1767 = vunpack.c.l.b16 %v447
      %v1768 = vunpack.c.l.b16 %v448
      %v1769 = vunpack.c.l.b16 %v449
      %v1770 = vunpack.c.l.b16 %v450
      %v1771 = vunpack.c.l.b16 %v451
      %v1772 = vunpack.c.l.b16 %v452
      %v1773 = vunpack.c.l.b16 %v453
      %v1774 = vunpack.c.l.b16 %v454
      %v1775 = vunpack.c.l.b16 %v455
      %v1776 = vunpack.c.l.b16 %v456
      %v1777 = vunpack.c.l.b16 %v457
      %v1778 = vunpack.c.l.b16 %v458
      %v1779 = vunpack.c.l.b16 %v459
      %v1780 = vunpack.c.l.b16 %v460
      %v1781 = vunpack.c.l.b16 %v461
      %v1782 = vunpack.c.l.b16 %v462
      %v1783 = vunpack.c.l.b16 %v463
      %v1784 = vunpack.c.l.b16 %v464
      %v1785 = vunpack.c.l.b16 %v465
      %v1786 = vunpack.c.l.b16 %v466
      %v1787 = vunpack.c.l.b16 %v467
      %v1788 = vunpack.c.l.b16 %v468
      %v1789 = vunpack.c.l.b16 %v469
      %v1790 = vunpack.c.l.b16 %v470
      %v1791 = vunpack.c.l.b16 %v471
      %v1792 = vunpack.c.l.b16 %v472
      %v1793 = vunpack.c.l.b16 %v473
      %v1794 = vunpack.c.l.b16 %v474
      %v1795 = vunpack.c.l.b16 %v475
      %v1796 = vunpack.c.l.b16 %v476
      %v1797 = vunpack.c.l.b16 %v477
      %v1798 = vunpack.c.l.b16 %v478
      %v1799 = vunpack.c.l.b16 %v479
      %v1800 = vunpack.c.l.b16 %v480
      %v1801 = vunpack.c.l.b16 %v481
      %v1802 = vunpack.c.l.b16 %v482
      %v1803 = vunpack.c.l.b16 %v483
      %v1804 = vunpack.c.l.b16 %v484
      %v1805 = vunpack.c.l.b16 %v485
      %v1806 = vunpack.c.l.b16 %v486
      %v1807 = vunpack.c.l.b16 %v487
      %v1808 = vunpack.c.l.b16 %v488
      %v1809 = vunpack.c.l.b16 %v489
      %v1810 = vunpack.c.l.b16 %v490
      %v1811 = vunpack.c.l.b16 %v491
      %v1812 = vunpack.c.l.b16 %v492
      %v1813 = vunpack.c.l.b16 %v493
      %v1814 = vunpack.c.l.b16 %v494
      %v1815 = vunpack.c.l.b16 %v495
      %v1816 = vunpack.c.l.b16 %v496
      %v1817 = vunpack.c.l.b16 %v497
      %v1818 = vunpack.c.l.b16 %v498
      %v1819 = vunpack.c.l.b16 %v499
      %v1820 = vunpack.c.l.b16 %v500
      %v1821 = vunpack.c.l.b16 %v501
      %v1822 = vunpack.c.l.b16 %v502
      %v1823 = vunpack.c.l.b16 %v503
      %v1824 = vunpack.c.l.b16 %v504
      %v1825 = vunpack.c.l.b16 %v505
      %v1826 = vunpack.c.l.b16 %v506
      %v1827 = vunpack.c.l.b16 %v507
      %v1828 = vunpack.c.l.b16 %v508
      %v1829 = vunpack.c.l.b16 %v509
      %v1830 = vunpack.c.l.b16 %v510
      %v1831 = vunpack.c.l.b16 %v511
      %v1832 = vunpack.c.l.b16 %v512
      %v1833 = vunpack.c.l.b16 %v513
      %v1834 = vunpack.c.l.b16 %v514
      %v1835 = vunpack.c.l.b16 %v515
      %v1836 = vunpack.c.l.b16 %v516
      %v1837 = vunpack.c.l.b16 %v517
      %v1838 = vunpack.c.l.b16 %v518
      %v1839 = vunpack.c.l.b16 %v519
      %v1840 = vunpack.c.l.b16 %v520
      %v1841 = vunpack.c.l.b16 %v521
      %v1842 = vunpack.c.l.b16 %v522
      %v1843 = vunpack.c.l.b16 %v523
      %v1844 = vunpack.c.l.b16 %v524
      %v1845 = vunpack.c.l.b16 %v525
      %v1846 = vunpack.c.l.b16 %v526
      %v1847 = vunpack.c.l.b16 %v527
      %v1848 = vunpack.c.l.b16 %v528
      %v1849 = vunpack.c.l.b16 %v529
      %v1850 = vunpack.c.l.b16 %v530
      %v1851 = vunpack.c.l.b16 %v531
      %v1852 = vpack.c.b16 %v1755, %v1754
      %v1853 = vpack.c.b16 %v1757, %v1756
      %v1854 = vpack.c.b16 %v1759, %v1758
      %v1855 = vpack.c.b16 %v1761, %v1760
      %v1856 = vpack.c.b16 %v1763, %v1762
      %v1857 = vpack.c.b16 %v1765, %v1764
      %v1858 = vpack.c.b16 %v1767, %v1766
      %v1859 = vpack.c.b16 %v1769, %v1768
      %v1860 = vpack.c.b16 %v1771, %v1770
      %v1861 = vpack.c.b16 %v1773, %v1772
      %v1862 = vpack.c.b16 %v1775, %v1774
      %v1863 = vpack.c.b16 %v1777, %v1776
      %v1864 = vpack.c.b16 %v1779, %v1778
      %v1865 = vpack.c.b16 %v1781, %v1780
      %v1866 = vpack.c.b16 %v1783, %v1782
      %v1867 = vpack.c.b16 %v1785, %v1784
      %v1868 = vpack.c.b16 %v1787, %v1786
      %v1869 = vpack.c.b16 %v1789, %v1788
      %v1870 = vpack.c.b16 %v1791, %v1790
      %v1871 = vpack.c.b16 %v1793, %v1792
      %v1872 = vpack.c.b16 %v1795, %v1794
      %v1873 = vpack.c.b16 %v1797, %v1796
      %v1874 = vpack.c.b16 %v1799, %v1798
      %v1875 = vpack.c.b16 %v1801, %v1800
      %v1876 = vpack.c.b16 %v1803, %v1802
      %v1877 = vpack.c.b16 %v1805, %v1804
      %v1878 = vpack.c.b16 %v1807, %v1806
      %v1879 = vpack.c.b16 %v1809, %v1808
      %v1880 = vpack.c.b16 %v1811, %v1810
      %v1881 = vpack.c.b16 %v1813, %v1812
      %v1882 = vpack.c.b16 %v1815, %v1814
      %v1883 = vpack.c.b16 %v1817, %v1816
      %v1884 = vpack.c.b16 %v1819, %v1818
      %v1885 = vpack.c.b16 %v1821, %v1820
      %v1886 = vpack.c.b16 %v1823, %v1822
      %v1887 = vpack.c.b16 %v1825, %v1824
      %v1888 = vpack.c.b16 %v1827, %v1826
      %v1889 = vpack.c.b16 %v1829, %v1828
      %v1890 = vpack.c.b16 %v1831, %v1830
      %v1891 = vpack.c.b16 %v1833, %v1832
      %v1892 = vpack.c.b16 %v1835, %v1834
      %v1893 = vpack.c.b16 %v1837, %v1836
      %v1894 = vpack.c.b16 %v1839, %v1838
      %v1895 = vpack.c.b16 %v1841, %v1840
      %v1896 = vpack.c.b16 %v1843, %v1842
      %v1897 = vpack.c.b16 %v1845, %v1844
      %v1898 = vpack.c.b16 %v1847, %v1846
      %v1899 = vpack.c.b16 %v1849, %v1848
      %v1900 = vpack.c.b16 %v1851, %v1850
      %vm1950 = vcmask 130048
      %v1952 = vsel %vm1950, %v1246, 0
      %v1955 = vsel %vm1950, %v1253, 0
      %v1958 = vsel %vm1950, %v1260, 0
      %v1961 = vsel %vm1950, %v1267, 0
      %v1964 = vsel %vm1950, %v1274, 0
      %v1967 = vsel %vm1950, %v1281, 0
      %v1970 = vsel %vm1950, %v1288, 0
      %v1973 = vsel %vm1950, %v1295, 0
      %v1976 = vsel %vm1950, %v1302, 0
      %v1979 = vsel %vm1950, %v1309, 0
      %v1982 = vsel %vm1950, %v1316, 0
      %v1985 = vsel %vm1950, %v1323, 0
      %v1988 = vsel %vm1950, %v1330, 0
      %v1991 = vsel %vm1950, %v1337, 0
      %v1994 = vsel %vm1950, %v1344, 0
      %v1997 = vsel %vm1950, %v1351, 0
      %v2000 = vsel %vm1950, %v1358, 0
      %v2003 = vsel %vm1950, %v1365, 0
      %v2006 = vsel %vm1950, %v1372, 0
      %v2009 = vsel %vm1950, %v1379, 0
      %v2012 = vsel %vm1950, %v1386, 0
      %v2015 = vsel %vm1950, %v1393, 0
      %v2018 = vsel %vm1950, %v1400, 0
      %v2021 = vsel %vm1950, %v1407, 0
      %v2024 = vsel %vm1950, %v1414, 0
      %v2027 = vsel %vm1950, %v1421, 0
      %v2030 = vsel %vm1950, %v1428, 0
      %v2033 = vsel %vm1950, %v1435, 0
      %v2036 = vsel %vm1950, %v1442, 0
      %v2039 = vsel %vm1950, %v1449, 0
      %v2042 = vsel %vm1950, %v1456, 0
      %v2045 = vsel %vm1950, %v1463, 0
      %2047 = vmatpush.bf16.msra.mxu0 %v1859
      %2048 = vmatpush.bf16.msra.mxu0 %v1858
      %2049 = vmatpush.bf16.msra.mxu0 %v1857
      %2050 = vmatpush.bf16.msra.mxu0 %v1856
      %2051 = vmatpush.bf16.msra.mxu0 %v1855
      %2052 = vmatpush.bf16.msra.mxu0 %v1854
      %2053 = vmatpush.bf16.msra.mxu0 %v1853
      %2054 = vmatpush.bf16.msra.mxu0 %v1852
      %2055 = vmatmul.bf16.gmra.mxu0 %v1240
      %v2056 = vpop.f32.mrf.mxu0
      %v2057 = vadd.f32 %v534, %v2056
      %v2058 = vpop.f32.mrf.mxu0
      %v2059 = vadd.f32 %v534, %v2058
      %2060 = vmatmul.bf16.gmra.mxu0 %v1247
      %v2061 = vpop.f32.mrf.mxu0
      %v2062 = vadd.f32 %v534, %v2061
      %v2063 = vpop.f32.mrf.mxu0
      %v2064 = vadd.f32 %v534, %v2063
      %2065 = vmatmul.bf16.gmra.mxu0 %v1254
      %v2066 = vpop.f32.mrf.mxu0
      %v2067 = vadd.f32 %v534, %v2066
      %v2068 = vpop.f32.mrf.mxu0
      %v2069 = vadd.f32 %v534, %v2068
      %2070 = vmatmul.bf16.gmra.mxu0 %v1261
      %v2071 = vpop.f32.mrf.mxu0
      %v2072 = vadd.f32 %v534, %v2071
      %v2073 = vpop.f32.mrf.mxu0
      %v2074 = vadd.f32 %v534, %v2073
      %2075 = vmatmul.bf16.gmra.mxu0 %v1268
      %v2076 = vpop.f32.mrf.mxu0
      %v2077 = vadd.f32 %v534, %v2076
      %v2078 = vpop.f32.mrf.mxu0
      %v2079 = vadd.f32 %v534, %v2078
      %2080 = vmatmul.bf16.gmra.mxu0 %v1275
      %v2081 = vpop.f32.mrf.mxu0
      %v2082 = vadd.f32 %v534, %v2081
      %v2083 = vpop.f32.mrf.mxu0
      %v2084 = vadd.f32 %v534, %v2083
      %2085 = vmatmul.bf16.gmra.mxu0 %v1282
      %v2086 = vpop.f32.mrf.mxu0
      %v2087 = vadd.f32 %v534, %v2086
      %v2088 = vpop.f32.mrf.mxu0
      %v2089 = vadd.f32 %v534, %v2088
      %2090 = vmatmul.bf16.gmra.mxu0 %v1289
      %v2091 = vpop.f32.mrf.mxu0
      %v2092 = vadd.f32 %v534, %v2091
      %v2093 = vpop.f32.mrf.mxu0
      %v2094 = vadd.f32 %v534, %v2093
      %2095 = vmatmul.bf16.gmra.mxu0 %v1296
      %v2096 = vpop.f32.mrf.mxu0
      %v2097 = vadd.f32 %v534, %v2096
      %v2098 = vpop.f32.mrf.mxu0
      %v2099 = vadd.f32 %v534, %v2098
      %2100 = vmatmul.bf16.gmra.mxu0 %v1303
      %v2101 = vpop.f32.mrf.mxu0
      %v2102 = vadd.f32 %v534, %v2101
      %v2103 = vpop.f32.mrf.mxu0
      %v2104 = vadd.f32 %v534, %v2103
      %2105 = vmatmul.bf16.gmra.mxu0 %v1310
      %v2106 = vpop.f32.mrf.mxu0
      %v2107 = vadd.f32 %v534, %v2106
      %v2108 = vpop.f32.mrf.mxu0
      %v2109 = vadd.f32 %v534, %v2108
      %2110 = vmatmul.bf16.gmra.mxu0 %v1317
      %v2111 = vpop.f32.mrf.mxu0
      %v2112 = vadd.f32 %v534, %v2111
      %v2113 = vpop.f32.mrf.mxu0
      %v2114 = vadd.f32 %v534, %v2113
      %2115 = vmatmul.bf16.gmra.mxu0 %v1324
      %v2116 = vpop.f32.mrf.mxu0
      %v2117 = vadd.f32 %v534, %v2116
      %v2118 = vpop.f32.mrf.mxu0
      %v2119 = vadd.f32 %v534, %v2118
      %2120 = vmatmul.bf16.gmra.mxu0 %v1331
      %v2121 = vpop.f32.mrf.mxu0
      %v2122 = vadd.f32 %v534, %v2121
      %v2123 = vpop.f32.mrf.mxu0
      %v2124 = vadd.f32 %v534, %v2123
      %2125 = vmatmul.bf16.gmra.mxu0 %v1338
      %v2126 = vpop.f32.mrf.mxu0
      %v2127 = vadd.f32 %v534, %v2126
      %v2128 = vpop.f32.mrf.mxu0
      %v2129 = vadd.f32 %v534, %v2128
      %2130 = vmatmul.bf16.gmra.mxu0 %v1345
      %v2131 = vpop.f32.mrf.mxu0
      %v2132 = vadd.f32 %v534, %v2131
      %v2133 = vpop.f32.mrf.mxu0
      %v2134 = vadd.f32 %v534, %v2133
      %2135 = vmatmul.bf16.gmra.mxu0 %v1352
      %v2136 = vpop.f32.mrf.mxu0
      %v2137 = vadd.f32 %v534, %v2136
      %v2138 = vpop.f32.mrf.mxu0
      %v2139 = vadd.f32 %v534, %v2138
      %2140 = vmatmul.bf16.gmra.mxu0 %v1359
      %v2141 = vpop.f32.mrf.mxu0
      %v2142 = vadd.f32 %v534, %v2141
      %v2143 = vpop.f32.mrf.mxu0
      %v2144 = vadd.f32 %v534, %v2143
      %2145 = vmatmul.bf16.gmra.mxu0 %v1366
      %v2146 = vpop.f32.mrf.mxu0
      %v2147 = vadd.f32 %v534, %v2146
      %v2148 = vpop.f32.mrf.mxu0
      %v2149 = vadd.f32 %v534, %v2148
      %2150 = vmatmul.bf16.gmra.mxu0 %v1373
      %v2151 = vpop.f32.mrf.mxu0
      %v2152 = vadd.f32 %v534, %v2151
      %v2153 = vpop.f32.mrf.mxu0
      %v2154 = vadd.f32 %v534, %v2153
      %2155 = vmatmul.bf16.gmra.mxu0 %v1380
      %v2156 = vpop.f32.mrf.mxu0
      %v2157 = vadd.f32 %v534, %v2156
      %v2158 = vpop.f32.mrf.mxu0
      %v2159 = vadd.f32 %v534, %v2158
      %2160 = vmatmul.bf16.gmra.mxu0 %v1387
      %v2161 = vpop.f32.mrf.mxu0
      %v2162 = vadd.f32 %v534, %v2161
      %v2163 = vpop.f32.mrf.mxu0
      %v2164 = vadd.f32 %v534, %v2163
      %2165 = vmatmul.bf16.gmra.mxu0 %v1394
      %v2166 = vpop.f32.mrf.mxu0
      %v2167 = vadd.f32 %v534, %v2166
      %v2168 = vpop.f32.mrf.mxu0
      %v2169 = vadd.f32 %v534, %v2168
      %2170 = vmatmul.bf16.gmra.mxu0 %v1401
      %v2171 = vpop.f32.mrf.mxu0
      %v2172 = vadd.f32 %v534, %v2171
      %v2173 = vpop.f32.mrf.mxu0
      %v2174 = vadd.f32 %v534, %v2173
      %2175 = vmatmul.bf16.gmra.mxu0 %v1408
      %v2176 = vpop.f32.mrf.mxu0
      %v2177 = vadd.f32 %v534, %v2176
      %v2178 = vpop.f32.mrf.mxu0
      %v2179 = vadd.f32 %v534, %v2178
      %2180 = vmatmul.bf16.gmra.mxu0 %v1415
      %v2181 = vpop.f32.mrf.mxu0
      %v2182 = vadd.f32 %v534, %v2181
      %v2183 = vpop.f32.mrf.mxu0
      %v2184 = vadd.f32 %v534, %v2183
      %2185 = vmatmul.bf16.gmra.mxu0 %v1422
      %v2186 = vpop.f32.mrf.mxu0
      %v2187 = vadd.f32 %v534, %v2186
      %v2188 = vpop.f32.mrf.mxu0
      %v2189 = vadd.f32 %v534, %v2188
      %2190 = vmatmul.bf16.gmra.mxu0 %v1429
      %v2191 = vpop.f32.mrf.mxu0
      %v2192 = vadd.f32 %v534, %v2191
      %v2193 = vpop.f32.mrf.mxu0
      %v2194 = vadd.f32 %v534, %v2193
      %2195 = vmatmul.bf16.gmra.mxu0 %v1436
      %v2196 = vpop.f32.mrf.mxu0
      %v2197 = vadd.f32 %v534, %v2196
      %v2198 = vpop.f32.mrf.mxu0
      %v2199 = vadd.f32 %v534, %v2198
      %2200 = vmatmul.bf16.gmra.mxu0 %v1443
      %v2201 = vpop.f32.mrf.mxu0
      %v2202 = vadd.f32 %v534, %v2201
      %v2203 = vpop.f32.mrf.mxu0
      %v2204 = vadd.f32 %v534, %v2203
      %2205 = vmatmul.bf16.gmra.mxu0 %v1450
      %v2206 = vpop.f32.mrf.mxu0
      %v2207 = vadd.f32 %v534, %v2206
      %v2208 = vpop.f32.mrf.mxu0
      %v2209 = vadd.f32 %v534, %v2208
      %2210 = vmatmul.bf16.gmra.mxu0 %v1457
      %v2211 = vpop.f32.mrf.mxu0
      %v2212 = vadd.f32 %v534, %v2211
      %v2213 = vpop.f32.mrf.mxu0
      %v2214 = vadd.f32 %v534, %v2213
      %2215 = vdwg.mxu0
      %2216 = vmatpush.bf16.msra.mxu0 %v1867
      %2217 = vmatpush.bf16.msra.mxu0 %v1866
      %2218 = vmatpush.bf16.msra.mxu0 %v1865
      %2219 = vmatpush.bf16.msra.mxu0 %v1864
      %2220 = vmatpush.bf16.msra.mxu0 %v1863
      %2221 = vmatpush.bf16.msra.mxu0 %v1862
      %2222 = vmatpush.bf16.msra.mxu0 %v1861
      %2223 = vmatpush.bf16.msra.mxu0 %v1860
      %2224 = vmatmul.bf16.gmra.mxu0 %v1241
      %v2225 = vpop.f32.mrf.mxu0
      %v2226 = vadd.f32 %v2057, %v2225
      %v2227 = vpop.f32.mrf.mxu0
      %v2228 = vadd.f32 %v2059, %v2227
      %2229 = vmatmul.bf16.gmra.mxu0 %v1248
      %v2230 = vpop.f32.mrf.mxu0
      %v2231 = vadd.f32 %v2062, %v2230
      %v2232 = vpop.f32.mrf.mxu0
      %v2233 = vadd.f32 %v2064, %v2232
      %2234 = vmatmul.bf16.gmra.mxu0 %v1255
      %v2235 = vpop.f32.mrf.mxu0
      %v2236 = vadd.f32 %v2067, %v2235
      %v2237 = vpop.f32.mrf.mxu0
      %v2238 = vadd.f32 %v2069, %v2237
      %2239 = vmatmul.bf16.gmra.mxu0 %v1262
      %v2240 = vpop.f32.mrf.mxu0
      %v2241 = vadd.f32 %v2072, %v2240
      %v2242 = vpop.f32.mrf.mxu0
      %v2243 = vadd.f32 %v2074, %v2242
      %2244 = vmatmul.bf16.gmra.mxu0 %v1269
      %v2245 = vpop.f32.mrf.mxu0
      %v2246 = vadd.f32 %v2077, %v2245
      %v2247 = vpop.f32.mrf.mxu0
      %v2248 = vadd.f32 %v2079, %v2247
      %2249 = vmatmul.bf16.gmra.mxu0 %v1276
      %v2250 = vpop.f32.mrf.mxu0
      %v2251 = vadd.f32 %v2082, %v2250
      %v2252 = vpop.f32.mrf.mxu0
      %v2253 = vadd.f32 %v2084, %v2252
      %2254 = vmatmul.bf16.gmra.mxu0 %v1283
      %v2255 = vpop.f32.mrf.mxu0
      %v2256 = vadd.f32 %v2087, %v2255
      %v2257 = vpop.f32.mrf.mxu0
      %v2258 = vadd.f32 %v2089, %v2257
      %2259 = vmatmul.bf16.gmra.mxu0 %v1290
      %v2260 = vpop.f32.mrf.mxu0
      %v2261 = vadd.f32 %v2092, %v2260
      %v2262 = vpop.f32.mrf.mxu0
      %v2263 = vadd.f32 %v2094, %v2262
      %2264 = vmatmul.bf16.gmra.mxu0 %v1297
      %v2265 = vpop.f32.mrf.mxu0
      %v2266 = vadd.f32 %v2097, %v2265
      %v2267 = vpop.f32.mrf.mxu0
      %v2268 = vadd.f32 %v2099, %v2267
      %2269 = vmatmul.bf16.gmra.mxu0 %v1304
      %v2270 = vpop.f32.mrf.mxu0
      %v2271 = vadd.f32 %v2102, %v2270
      %v2272 = vpop.f32.mrf.mxu0
      %v2273 = vadd.f32 %v2104, %v2272
      %2274 = vmatmul.bf16.gmra.mxu0 %v1311
      %v2275 = vpop.f32.mrf.mxu0
      %v2276 = vadd.f32 %v2107, %v2275
      %v2277 = vpop.f32.mrf.mxu0
      %v2278 = vadd.f32 %v2109, %v2277
      %2279 = vmatmul.bf16.gmra.mxu0 %v1318
      %v2280 = vpop.f32.mrf.mxu0
      %v2281 = vadd.f32 %v2112, %v2280
      %v2282 = vpop.f32.mrf.mxu0
      %v2283 = vadd.f32 %v2114, %v2282
      %2284 = vmatmul.bf16.gmra.mxu0 %v1325
      %v2285 = vpop.f32.mrf.mxu0
      %v2286 = vadd.f32 %v2117, %v2285
      %v2287 = vpop.f32.mrf.mxu0
      %v2288 = vadd.f32 %v2119, %v2287
      %2289 = vmatmul.bf16.gmra.mxu0 %v1332
      %v2290 = vpop.f32.mrf.mxu0
      %v2291 = vadd.f32 %v2122, %v2290
      %v2292 = vpop.f32.mrf.mxu0
      %v2293 = vadd.f32 %v2124, %v2292
      %2294 = vmatmul.bf16.gmra.mxu0 %v1339
      %v2295 = vpop.f32.mrf.mxu0
      %v2296 = vadd.f32 %v2127, %v2295
      %v2297 = vpop.f32.mrf.mxu0
      %v2298 = vadd.f32 %v2129, %v2297
      %2299 = vmatmul.bf16.gmra.mxu0 %v1346
      %v2300 = vpop.f32.mrf.mxu0
      %v2301 = vadd.f32 %v2132, %v2300
      %v2302 = vpop.f32.mrf.mxu0
      %v2303 = vadd.f32 %v2134, %v2302
      %2304 = vmatmul.bf16.gmra.mxu0 %v1353
      %v2305 = vpop.f32.mrf.mxu0
      %v2306 = vadd.f32 %v2137, %v2305
      %v2307 = vpop.f32.mrf.mxu0
      %v2308 = vadd.f32 %v2139, %v2307
      %2309 = vmatmul.bf16.gmra.mxu0 %v1360
      %v2310 = vpop.f32.mrf.mxu0
      %v2311 = vadd.f32 %v2142, %v2310
      %v2312 = vpop.f32.mrf.mxu0
      %v2313 = vadd.f32 %v2144, %v2312
      %2314 = vmatmul.bf16.gmra.mxu0 %v1367
      %v2315 = vpop.f32.mrf.mxu0
      %v2316 = vadd.f32 %v2147, %v2315
      %v2317 = vpop.f32.mrf.mxu0
      %v2318 = vadd.f32 %v2149, %v2317
      %2319 = vmatmul.bf16.gmra.mxu0 %v1374
      %v2320 = vpop.f32.mrf.mxu0
      %v2321 = vadd.f32 %v2152, %v2320
      %v2322 = vpop.f32.mrf.mxu0
      %v2323 = vadd.f32 %v2154, %v2322
      %2324 = vmatmul.bf16.gmra.mxu0 %v1381
      %v2325 = vpop.f32.mrf.mxu0
      %v2326 = vadd.f32 %v2157, %v2325
      %v2327 = vpop.f32.mrf.mxu0
      %v2328 = vadd.f32 %v2159, %v2327
      %2329 = vmatmul.bf16.gmra.mxu0 %v1388
      %v2330 = vpop.f32.mrf.mxu0
      %v2331 = vadd.f32 %v2162, %v2330
      %v2332 = vpop.f32.mrf.mxu0
      %v2333 = vadd.f32 %v2164, %v2332
      %2334 = vmatmul.bf16.gmra.mxu0 %v1395
      %v2335 = vpop.f32.mrf.mxu0
      %v2336 = vadd.f32 %v2167, %v2335
      %v2337 = vpop.f32.mrf.mxu0
      %v2338 = vadd.f32 %v2169, %v2337
      %2339 = vmatmul.bf16.gmra.mxu0 %v1402
      %v2340 = vpop.f32.mrf.mxu0
      %v2341 = vadd.f32 %v2172, %v2340
      %v2342 = vpop.f32.mrf.mxu0
      %v2343 = vadd.f32 %v2174, %v2342
      %2344 = vmatmul.bf16.gmra.mxu0 %v1409
      %v2345 = vpop.f32.mrf.mxu0
      %v2346 = vadd.f32 %v2177, %v2345
      %v2347 = vpop.f32.mrf.mxu0
      %v2348 = vadd.f32 %v2179, %v2347
      %2349 = vmatmul.bf16.gmra.mxu0 %v1416
      %v2350 = vpop.f32.mrf.mxu0
      %v2351 = vadd.f32 %v2182, %v2350
      %v2352 = vpop.f32.mrf.mxu0
      %v2353 = vadd.f32 %v2184, %v2352
      %2354 = vmatmul.bf16.gmra.mxu0 %v1423
      %v2355 = vpop.f32.mrf.mxu0
      %v2356 = vadd.f32 %v2187, %v2355
      %v2357 = vpop.f32.mrf.mxu0
      %v2358 = vadd.f32 %v2189, %v2357
      %2359 = vmatmul.bf16.gmra.mxu0 %v1430
      %v2360 = vpop.f32.mrf.mxu0
      %v2361 = vadd.f32 %v2192, %v2360
      %v2362 = vpop.f32.mrf.mxu0
      %v2363 = vadd.f32 %v2194, %v2362
      %2364 = vmatmul.bf16.gmra.mxu0 %v1437
      %v2365 = vpop.f32.mrf.mxu0
      %v2366 = vadd.f32 %v2197, %v2365
      %v2367 = vpop.f32.mrf.mxu0
      %v2368 = vadd.f32 %v2199, %v2367
      %2369 = vmatmul.bf16.gmra.mxu0 %v1444
      %v2370 = vpop.f32.mrf.mxu0
      %v2371 = vadd.f32 %v2202, %v2370
      %v2372 = vpop.f32.mrf.mxu0
      %v2373 = vadd.f32 %v2204, %v2372
      %2374 = vmatmul.bf16.gmra.mxu0 %v1451
      %v2375 = vpop.f32.mrf.mxu0
      %v2376 = vadd.f32 %v2207, %v2375
      %v2377 = vpop.f32.mrf.mxu0
      %v2378 = vadd.f32 %v2209, %v2377
      %2379 = vmatmul.bf16.gmra.mxu0 %v1458
      %v2380 = vpop.f32.mrf.mxu0
      %v2381 = vadd.f32 %v2212, %v2380
      %v2382 = vpop.f32.mrf.mxu0
      %v2383 = vadd.f32 %v2214, %v2382
      %2384 = vdwg.mxu0
      %2385 = vmatpush.bf16.msra.mxu0 %v1875
      %2386 = vmatpush.bf16.msra.mxu0 %v1874
      %2387 = vmatpush.bf16.msra.mxu0 %v1873
      %2388 = vmatpush.bf16.msra.mxu0 %v1872
      %2389 = vmatpush.bf16.msra.mxu0 %v1871
      %2390 = vmatpush.bf16.msra.mxu0 %v1870
      %2391 = vmatpush.bf16.msra.mxu0 %v1869
      %2392 = vmatpush.bf16.msra.mxu0 %v1868
      %2393 = vmatmul.bf16.gmra.mxu0 %v1242
      %v2394 = vpop.f32.mrf.mxu0
      %v2395 = vadd.f32 %v2226, %v2394
      %v2396 = vpop.f32.mrf.mxu0
      %v2397 = vadd.f32 %v2228, %v2396
      %2398 = vmatmul.bf16.gmra.mxu0 %v1249
      %v2399 = vpop.f32.mrf.mxu0
      %v2400 = vadd.f32 %v2231, %v2399
      %v2401 = vpop.f32.mrf.mxu0
      %v2402 = vadd.f32 %v2233, %v2401
      %2403 = vmatmul.bf16.gmra.mxu0 %v1256
      %v2404 = vpop.f32.mrf.mxu0
      %v2405 = vadd.f32 %v2236, %v2404
      %v2406 = vpop.f32.mrf.mxu0
      %v2407 = vadd.f32 %v2238, %v2406
      %2408 = vmatmul.bf16.gmra.mxu0 %v1263
      %v2409 = vpop.f32.mrf.mxu0
      %v2410 = vadd.f32 %v2241, %v2409
      %v2411 = vpop.f32.mrf.mxu0
      %v2412 = vadd.f32 %v2243, %v2411
      %2413 = vmatmul.bf16.gmra.mxu0 %v1270
      %v2414 = vpop.f32.mrf.mxu0
      %v2415 = vadd.f32 %v2246, %v2414
      %v2416 = vpop.f32.mrf.mxu0
      %v2417 = vadd.f32 %v2248, %v2416
      %2418 = vmatmul.bf16.gmra.mxu0 %v1277
      %v2419 = vpop.f32.mrf.mxu0
      %v2420 = vadd.f32 %v2251, %v2419
      %v2421 = vpop.f32.mrf.mxu0
      %v2422 = vadd.f32 %v2253, %v2421
      %2423 = vmatmul.bf16.gmra.mxu0 %v1284
      %v2424 = vpop.f32.mrf.mxu0
      %v2425 = vadd.f32 %v2256, %v2424
      %v2426 = vpop.f32.mrf.mxu0
      %v2427 = vadd.f32 %v2258, %v2426
      %2428 = vmatmul.bf16.gmra.mxu0 %v1291
      %v2429 = vpop.f32.mrf.mxu0
      %v2430 = vadd.f32 %v2261, %v2429
      %v2431 = vpop.f32.mrf.mxu0
      %v2432 = vadd.f32 %v2263, %v2431
      %2433 = vmatmul.bf16.gmra.mxu0 %v1298
      %v2434 = vpop.f32.mrf.mxu0
      %v2435 = vadd.f32 %v2266, %v2434
      %v2436 = vpop.f32.mrf.mxu0
      %v2437 = vadd.f32 %v2268, %v2436
      %2438 = vmatmul.bf16.gmra.mxu0 %v1305
      %v2439 = vpop.f32.mrf.mxu0
      %v2440 = vadd.f32 %v2271, %v2439
      %v2441 = vpop.f32.mrf.mxu0
      %v2442 = vadd.f32 %v2273, %v2441
      %2443 = vmatmul.bf16.gmra.mxu0 %v1312
      %v2444 = vpop.f32.mrf.mxu0
      %v2445 = vadd.f32 %v2276, %v2444
      %v2446 = vpop.f32.mrf.mxu0
      %v2447 = vadd.f32 %v2278, %v2446
      %2448 = vmatmul.bf16.gmra.mxu0 %v1319
      %v2449 = vpop.f32.mrf.mxu0
      %v2450 = vadd.f32 %v2281, %v2449
      %v2451 = vpop.f32.mrf.mxu0
      %v2452 = vadd.f32 %v2283, %v2451
      %2453 = vmatmul.bf16.gmra.mxu0 %v1326
      %v2454 = vpop.f32.mrf.mxu0
      %v2455 = vadd.f32 %v2286, %v2454
      %v2456 = vpop.f32.mrf.mxu0
      %v2457 = vadd.f32 %v2288, %v2456
      %2458 = vmatmul.bf16.gmra.mxu0 %v1333
      %v2459 = vpop.f32.mrf.mxu0
      %v2460 = vadd.f32 %v2291, %v2459
      %v2461 = vpop.f32.mrf.mxu0
      %v2462 = vadd.f32 %v2293, %v2461
      %2463 = vmatmul.bf16.gmra.mxu0 %v1340
      %v2464 = vpop.f32.mrf.mxu0
      %v2465 = vadd.f32 %v2296, %v2464
      %v2466 = vpop.f32.mrf.mxu0
      %v2467 = vadd.f32 %v2298, %v2466
      %2468 = vmatmul.bf16.gmra.mxu0 %v1347
      %v2469 = vpop.f32.mrf.mxu0
      %v2470 = vadd.f32 %v2301, %v2469
      %v2471 = vpop.f32.mrf.mxu0
      %v2472 = vadd.f32 %v2303, %v2471
      %2473 = vmatmul.bf16.gmra.mxu0 %v1354
      %v2474 = vpop.f32.mrf.mxu0
      %v2475 = vadd.f32 %v2306, %v2474
      %v2476 = vpop.f32.mrf.mxu0
      %v2477 = vadd.f32 %v2308, %v2476
      %2478 = vmatmul.bf16.gmra.mxu0 %v1361
      %v2479 = vpop.f32.mrf.mxu0
      %v2480 = vadd.f32 %v2311, %v2479
      %v2481 = vpop.f32.mrf.mxu0
      %v2482 = vadd.f32 %v2313, %v2481
      %2483 = vmatmul.bf16.gmra.mxu0 %v1368
      %v2484 = vpop.f32.mrf.mxu0
      %v2485 = vadd.f32 %v2316, %v2484
      %v2486 = vpop.f32.mrf.mxu0
      %v2487 = vadd.f32 %v2318, %v2486
      %2488 = vmatmul.bf16.gmra.mxu0 %v1375
      %v2489 = vpop.f32.mrf.mxu0
      %v2490 = vadd.f32 %v2321, %v2489
      %v2491 = vpop.f32.mrf.mxu0
      %v2492 = vadd.f32 %v2323, %v2491
      %2493 = vmatmul.bf16.gmra.mxu0 %v1382
      %v2494 = vpop.f32.mrf.mxu0
      %v2495 = vadd.f32 %v2326, %v2494
      %v2496 = vpop.f32.mrf.mxu0
      %v2497 = vadd.f32 %v2328, %v2496
      %2498 = vmatmul.bf16.gmra.mxu0 %v1389
      %v2499 = vpop.f32.mrf.mxu0
      %v2500 = vadd.f32 %v2331, %v2499
      %v2501 = vpop.f32.mrf.mxu0
      %v2502 = vadd.f32 %v2333, %v2501
      %2503 = vmatmul.bf16.gmra.mxu0 %v1396
      %v2504 = vpop.f32.mrf.mxu0
      %v2505 = vadd.f32 %v2336, %v2504
      %v2506 = vpop.f32.mrf.mxu0
      %v2507 = vadd.f32 %v2338, %v2506
      %2508 = vmatmul.bf16.gmra.mxu0 %v1403
      %v2509 = vpop.f32.mrf.mxu0
      %v2510 = vadd.f32 %v2341, %v2509
      %v2511 = vpop.f32.mrf.mxu0
      %v2512 = vadd.f32 %v2343, %v2511
      %2513 = vmatmul.bf16.gmra.mxu0 %v1410
      %v2514 = vpop.f32.mrf.mxu0
      %v2515 = vadd.f32 %v2346, %v2514
      %v2516 = vpop.f32.mrf.mxu0
      %v2517 = vadd.f32 %v2348, %v2516
      %2518 = vmatmul.bf16.gmra.mxu0 %v1417
      %v2519 = vpop.f32.mrf.mxu0
      %v2520 = vadd.f32 %v2351, %v2519
      %v2521 = vpop.f32.mrf.mxu0
      %v2522 = vadd.f32 %v2353, %v2521
      %2523 = vmatmul.bf16.gmra.mxu0 %v1424
      %v2524 = vpop.f32.mrf.mxu0
      %v2525 = vadd.f32 %v2356, %v2524
      %v2526 = vpop.f32.mrf.mxu0
      %v2527 = vadd.f32 %v2358, %v2526
      %2528 = vmatmul.bf16.gmra.mxu0 %v1431
      %v2529 = vpop.f32.mrf.mxu0
      %v2530 = vadd.f32 %v2361, %v2529
      %v2531 = vpop.f32.mrf.mxu0
      %v2532 = vadd.f32 %v2363, %v2531
      %2533 = vmatmul.bf16.gmra.mxu0 %v1438
      %v2534 = vpop.f32.mrf.mxu0
      %v2535 = vadd.f32 %v2366, %v2534
      %v2536 = vpop.f32.mrf.mxu0
      %v2537 = vadd.f32 %v2368, %v2536
      %2538 = vmatmul.bf16.gmra.mxu0 %v1445
      %v2539 = vpop.f32.mrf.mxu0
      %v2540 = vadd.f32 %v2371, %v2539
      %v2541 = vpop.f32.mrf.mxu0
      %v2542 = vadd.f32 %v2373, %v2541
      %2543 = vmatmul.bf16.gmra.mxu0 %v1452
      %v2544 = vpop.f32.mrf.mxu0
      %v2545 = vadd.f32 %v2376, %v2544
      %v2546 = vpop.f32.mrf.mxu0
      %v2547 = vadd.f32 %v2378, %v2546
      %2548 = vmatmul.bf16.gmra.mxu0 %v1459
      %v2549 = vpop.f32.mrf.mxu0
      %v2550 = vadd.f32 %v2381, %v2549
      %v2551 = vpop.f32.mrf.mxu0
      %v2552 = vadd.f32 %v2383, %v2551
      %2553 = vdwg.mxu0
      %2554 = vmatpush.bf16.msra.mxu0 %v1883
      %2555 = vmatpush.bf16.msra.mxu0 %v1882
      %2556 = vmatpush.bf16.msra.mxu0 %v1881
      %2557 = vmatpush.bf16.msra.mxu0 %v1880
      %2558 = vmatpush.bf16.msra.mxu0 %v1879
      %2559 = vmatpush.bf16.msra.mxu0 %v1878
      %2560 = vmatpush.bf16.msra.mxu0 %v1877
      %2561 = vmatpush.bf16.msra.mxu0 %v1876
      %2562 = vmatmul.bf16.gmra.mxu0 %v1243
      %v2563 = vpop.f32.mrf.mxu0
      %v2564 = vadd.f32 %v2395, %v2563
      %v2565 = vpop.f32.mrf.mxu0
      %v2566 = vadd.f32 %v2397, %v2565
      %2567 = vmatmul.bf16.gmra.mxu0 %v1250
      %v2568 = vpop.f32.mrf.mxu0
      %v2569 = vadd.f32 %v2400, %v2568
      %v2570 = vpop.f32.mrf.mxu0
      %v2571 = vadd.f32 %v2402, %v2570
      %2572 = vmatmul.bf16.gmra.mxu0 %v1257
      %v2573 = vpop.f32.mrf.mxu0
      %v2574 = vadd.f32 %v2405, %v2573
      %v2575 = vpop.f32.mrf.mxu0
      %v2576 = vadd.f32 %v2407, %v2575
      %2577 = vmatmul.bf16.gmra.mxu0 %v1264
      %v2578 = vpop.f32.mrf.mxu0
      %v2579 = vadd.f32 %v2410, %v2578
      %v2580 = vpop.f32.mrf.mxu0
      %v2581 = vadd.f32 %v2412, %v2580
      %2582 = vmatmul.bf16.gmra.mxu0 %v1271
      %v2583 = vpop.f32.mrf.mxu0
      %v2584 = vadd.f32 %v2415, %v2583
      %v2585 = vpop.f32.mrf.mxu0
      %v2586 = vadd.f32 %v2417, %v2585
      %2587 = vmatmul.bf16.gmra.mxu0 %v1278
      %v2588 = vpop.f32.mrf.mxu0
      %v2589 = vadd.f32 %v2420, %v2588
      %v2590 = vpop.f32.mrf.mxu0
      %v2591 = vadd.f32 %v2422, %v2590
      %2592 = vmatmul.bf16.gmra.mxu0 %v1285
      %v2593 = vpop.f32.mrf.mxu0
      %v2594 = vadd.f32 %v2425, %v2593
      %v2595 = vpop.f32.mrf.mxu0
      %v2596 = vadd.f32 %v2427, %v2595
      %2597 = vmatmul.bf16.gmra.mxu0 %v1292
      %v2598 = vpop.f32.mrf.mxu0
      %v2599 = vadd.f32 %v2430, %v2598
      %v2600 = vpop.f32.mrf.mxu0
      %v2601 = vadd.f32 %v2432, %v2600
      %2602 = vmatmul.bf16.gmra.mxu0 %v1299
      %v2603 = vpop.f32.mrf.mxu0
      %v2604 = vadd.f32 %v2435, %v2603
      %v2605 = vpop.f32.mrf.mxu0
      %v2606 = vadd.f32 %v2437, %v2605
      %2607 = vmatmul.bf16.gmra.mxu0 %v1306
      %v2608 = vpop.f32.mrf.mxu0
      %v2609 = vadd.f32 %v2440, %v2608
      %v2610 = vpop.f32.mrf.mxu0
      %v2611 = vadd.f32 %v2442, %v2610
      %2612 = vmatmul.bf16.gmra.mxu0 %v1313
      %v2613 = vpop.f32.mrf.mxu0
      %v2614 = vadd.f32 %v2445, %v2613
      %v2615 = vpop.f32.mrf.mxu0
      %v2616 = vadd.f32 %v2447, %v2615
      %2617 = vmatmul.bf16.gmra.mxu0 %v1320
      %v2618 = vpop.f32.mrf.mxu0
      %v2619 = vadd.f32 %v2450, %v2618
      %v2620 = vpop.f32.mrf.mxu0
      %v2621 = vadd.f32 %v2452, %v2620
      %2622 = vmatmul.bf16.gmra.mxu0 %v1327
      %v2623 = vpop.f32.mrf.mxu0
      %v2624 = vadd.f32 %v2455, %v2623
      %v2625 = vpop.f32.mrf.mxu0
      %v2626 = vadd.f32 %v2457, %v2625
      %2627 = vmatmul.bf16.gmra.mxu0 %v1334
      %v2628 = vpop.f32.mrf.mxu0
      %v2629 = vadd.f32 %v2460, %v2628
      %v2630 = vpop.f32.mrf.mxu0
      %v2631 = vadd.f32 %v2462, %v2630
      %2632 = vmatmul.bf16.gmra.mxu0 %v1341
      %v2633 = vpop.f32.mrf.mxu0
      %v2634 = vadd.f32 %v2465, %v2633
      %v2635 = vpop.f32.mrf.mxu0
      %v2636 = vadd.f32 %v2467, %v2635
      %2637 = vmatmul.bf16.gmra.mxu0 %v1348
      %v2638 = vpop.f32.mrf.mxu0
      %v2639 = vadd.f32 %v2470, %v2638
      %v2640 = vpop.f32.mrf.mxu0
      %v2641 = vadd.f32 %v2472, %v2640
      %2642 = vmatmul.bf16.gmra.mxu0 %v1355
      %v2643 = vpop.f32.mrf.mxu0
      %v2644 = vadd.f32 %v2475, %v2643
      %v2645 = vpop.f32.mrf.mxu0
      %v2646 = vadd.f32 %v2477, %v2645
      %2647 = vmatmul.bf16.gmra.mxu0 %v1362
      %v2648 = vpop.f32.mrf.mxu0
      %v2649 = vadd.f32 %v2480, %v2648
      %v2650 = vpop.f32.mrf.mxu0
      %v2651 = vadd.f32 %v2482, %v2650
      %2652 = vmatmul.bf16.gmra.mxu0 %v1369
      %v2653 = vpop.f32.mrf.mxu0
      %v2654 = vadd.f32 %v2485, %v2653
      %v2655 = vpop.f32.mrf.mxu0
      %v2656 = vadd.f32 %v2487, %v2655
      %2657 = vmatmul.bf16.gmra.mxu0 %v1376
      %v2658 = vpop.f32.mrf.mxu0
      %v2659 = vadd.f32 %v2490, %v2658
      %v2660 = vpop.f32.mrf.mxu0
      %v2661 = vadd.f32 %v2492, %v2660
      %2662 = vmatmul.bf16.gmra.mxu0 %v1383
      %v2663 = vpop.f32.mrf.mxu0
      %v2664 = vadd.f32 %v2495, %v2663
      %v2665 = vpop.f32.mrf.mxu0
      %v2666 = vadd.f32 %v2497, %v2665
      %2667 = vmatmul.bf16.gmra.mxu0 %v1390
      %v2668 = vpop.f32.mrf.mxu0
      %v2669 = vadd.f32 %v2500, %v2668
      %v2670 = vpop.f32.mrf.mxu0
      %v2671 = vadd.f32 %v2502, %v2670
      %2672 = vmatmul.bf16.gmra.mxu0 %v1397
      %v2673 = vpop.f32.mrf.mxu0
      %v2674 = vadd.f32 %v2505, %v2673
      %v2675 = vpop.f32.mrf.mxu0
      %v2676 = vadd.f32 %v2507, %v2675
      %2677 = vmatmul.bf16.gmra.mxu0 %v1404
      %v2678 = vpop.f32.mrf.mxu0
      %v2679 = vadd.f32 %v2510, %v2678
      %v2680 = vpop.f32.mrf.mxu0
      %v2681 = vadd.f32 %v2512, %v2680
      %2682 = vmatmul.bf16.gmra.mxu0 %v1411
      %v2683 = vpop.f32.mrf.mxu0
      %v2684 = vadd.f32 %v2515, %v2683
      %v2685 = vpop.f32.mrf.mxu0
      %v2686 = vadd.f32 %v2517, %v2685
      %2687 = vmatmul.bf16.gmra.mxu0 %v1418
      %v2688 = vpop.f32.mrf.mxu0
      %v2689 = vadd.f32 %v2520, %v2688
      %v2690 = vpop.f32.mrf.mxu0
      %v2691 = vadd.f32 %v2522, %v2690
      %2692 = vmatmul.bf16.gmra.mxu0 %v1425
      %v2693 = vpop.f32.mrf.mxu0
      %v2694 = vadd.f32 %v2525, %v2693
      %v2695 = vpop.f32.mrf.mxu0
      %v2696 = vadd.f32 %v2527, %v2695
      %2697 = vmatmul.bf16.gmra.mxu0 %v1432
      %v2698 = vpop.f32.mrf.mxu0
      %v2699 = vadd.f32 %v2530, %v2698
      %v2700 = vpop.f32.mrf.mxu0
      %v2701 = vadd.f32 %v2532, %v2700
      %2702 = vmatmul.bf16.gmra.mxu0 %v1439
      %v2703 = vpop.f32.mrf.mxu0
      %v2704 = vadd.f32 %v2535, %v2703
      %v2705 = vpop.f32.mrf.mxu0
      %v2706 = vadd.f32 %v2537, %v2705
      %2707 = vmatmul.bf16.gmra.mxu0 %v1446
      %v2708 = vpop.f32.mrf.mxu0
      %v2709 = vadd.f32 %v2540, %v2708
      %v2710 = vpop.f32.mrf.mxu0
      %v2711 = vadd.f32 %v2542, %v2710
      %2712 = vmatmul.bf16.gmra.mxu0 %v1453
      %v2713 = vpop.f32.mrf.mxu0
      %v2714 = vadd.f32 %v2545, %v2713
      %v2715 = vpop.f32.mrf.mxu0
      %v2716 = vadd.f32 %v2547, %v2715
      %2717 = vmatmul.bf16.gmra.mxu0 %v1460
      %v2718 = vpop.f32.mrf.mxu0
      %v2719 = vadd.f32 %v2550, %v2718
      %v2720 = vpop.f32.mrf.mxu0
      %v2721 = vadd.f32 %v2552, %v2720
      %2722 = vdwg.mxu0
      %2723 = vmatpush.bf16.msra.mxu0 %v1891
      %2724 = vmatpush.bf16.msra.mxu0 %v1890
      %2725 = vmatpush.bf16.msra.mxu0 %v1889
      %2726 = vmatpush.bf16.msra.mxu0 %v1888
      %2727 = vmatpush.bf16.msra.mxu0 %v1887
      %2728 = vmatpush.bf16.msra.mxu0 %v1886
      %2729 = vmatpush.bf16.msra.mxu0 %v1885
      %2730 = vmatpush.bf16.msra.mxu0 %v1884
      %2731 = vmatmul.bf16.gmra.mxu0 %v1244
      %v2732 = vpop.f32.mrf.mxu0
      %v2733 = vadd.f32 %v2564, %v2732
      %v2734 = vpop.f32.mrf.mxu0
      %v2735 = vadd.f32 %v2566, %v2734
      %2736 = vmatmul.bf16.gmra.mxu0 %v1251
      %v2737 = vpop.f32.mrf.mxu0
      %v2738 = vadd.f32 %v2569, %v2737
      %v2739 = vpop.f32.mrf.mxu0
      %v2740 = vadd.f32 %v2571, %v2739
      %2741 = vmatmul.bf16.gmra.mxu0 %v1258
      %v2742 = vpop.f32.mrf.mxu0
      %v2743 = vadd.f32 %v2574, %v2742
      %v2744 = vpop.f32.mrf.mxu0
      %v2745 = vadd.f32 %v2576, %v2744
      %2746 = vmatmul.bf16.gmra.mxu0 %v1265
      %v2747 = vpop.f32.mrf.mxu0
      %v2748 = vadd.f32 %v2579, %v2747
      %v2749 = vpop.f32.mrf.mxu0
      %v2750 = vadd.f32 %v2581, %v2749
      %2751 = vmatmul.bf16.gmra.mxu0 %v1272
      %v2752 = vpop.f32.mrf.mxu0
      %v2753 = vadd.f32 %v2584, %v2752
      %v2754 = vpop.f32.mrf.mxu0
      %v2755 = vadd.f32 %v2586, %v2754
      %2756 = vmatmul.bf16.gmra.mxu0 %v1279
      %v2757 = vpop.f32.mrf.mxu0
      %v2758 = vadd.f32 %v2589, %v2757
      %v2759 = vpop.f32.mrf.mxu0
      %v2760 = vadd.f32 %v2591, %v2759
      %2761 = vmatmul.bf16.gmra.mxu0 %v1286
      %v2762 = vpop.f32.mrf.mxu0
      %v2763 = vadd.f32 %v2594, %v2762
      %v2764 = vpop.f32.mrf.mxu0
      %v2765 = vadd.f32 %v2596, %v2764
      %2766 = vmatmul.bf16.gmra.mxu0 %v1293
      %v2767 = vpop.f32.mrf.mxu0
      %v2768 = vadd.f32 %v2599, %v2767
      %v2769 = vpop.f32.mrf.mxu0
      %v2770 = vadd.f32 %v2601, %v2769
      %2771 = vmatmul.bf16.gmra.mxu0 %v1300
      %v2772 = vpop.f32.mrf.mxu0
      %v2773 = vadd.f32 %v2604, %v2772
      %v2774 = vpop.f32.mrf.mxu0
      %v2775 = vadd.f32 %v2606, %v2774
      %2776 = vmatmul.bf16.gmra.mxu0 %v1307
      %v2777 = vpop.f32.mrf.mxu0
      %v2778 = vadd.f32 %v2609, %v2777
      %v2779 = vpop.f32.mrf.mxu0
      %v2780 = vadd.f32 %v2611, %v2779
      %2781 = vmatmul.bf16.gmra.mxu0 %v1314
      %v2782 = vpop.f32.mrf.mxu0
      %v2783 = vadd.f32 %v2614, %v2782
      %v2784 = vpop.f32.mrf.mxu0
      %v2785 = vadd.f32 %v2616, %v2784
      %2786 = vmatmul.bf16.gmra.mxu0 %v1321
      %v2787 = vpop.f32.mrf.mxu0
      %v2788 = vadd.f32 %v2619, %v2787
      %v2789 = vpop.f32.mrf.mxu0
      %v2790 = vadd.f32 %v2621, %v2789
      %2791 = vmatmul.bf16.gmra.mxu0 %v1328
      %v2792 = vpop.f32.mrf.mxu0
      %v2793 = vadd.f32 %v2624, %v2792
      %v2794 = vpop.f32.mrf.mxu0
      %v2795 = vadd.f32 %v2626, %v2794
      %2796 = vmatmul.bf16.gmra.mxu0 %v1335
      %v2797 = vpop.f32.mrf.mxu0
      %v2798 = vadd.f32 %v2629, %v2797
      %v2799 = vpop.f32.mrf.mxu0
      %v2800 = vadd.f32 %v2631, %v2799
      %2801 = vmatmul.bf16.gmra.mxu0 %v1342
      %v2802 = vpop.f32.mrf.mxu0
      %v2803 = vadd.f32 %v2634, %v2802
      %v2804 = vpop.f32.mrf.mxu0
      %v2805 = vadd.f32 %v2636, %v2804
      %2806 = vmatmul.bf16.gmra.mxu0 %v1349
      %v2807 = vpop.f32.mrf.mxu0
      %v2808 = vadd.f32 %v2639, %v2807
      %v2809 = vpop.f32.mrf.mxu0
      %v2810 = vadd.f32 %v2641, %v2809
      %2811 = vmatmul.bf16.gmra.mxu0 %v1356
      %v2812 = vpop.f32.mrf.mxu0
      %v2813 = vadd.f32 %v2644, %v2812
      %v2814 = vpop.f32.mrf.mxu0
      %v2815 = vadd.f32 %v2646, %v2814
      %2816 = vmatmul.bf16.gmra.mxu0 %v1363
      %v2817 = vpop.f32.mrf.mxu0
      %v2818 = vadd.f32 %v2649, %v2817
      %v2819 = vpop.f32.mrf.mxu0
      %v2820 = vadd.f32 %v2651, %v2819
      %2821 = vmatmul.bf16.gmra.mxu0 %v1370
      %v2822 = vpop.f32.mrf.mxu0
      %v2823 = vadd.f32 %v2654, %v2822
      %v2824 = vpop.f32.mrf.mxu0
      %v2825 = vadd.f32 %v2656, %v2824
      %2826 = vmatmul.bf16.gmra.mxu0 %v1377
      %v2827 = vpop.f32.mrf.mxu0
      %v2828 = vadd.f32 %v2659, %v2827
      %v2829 = vpop.f32.mrf.mxu0
      %v2830 = vadd.f32 %v2661, %v2829
      %2831 = vmatmul.bf16.gmra.mxu0 %v1384
      %v2832 = vpop.f32.mrf.mxu0
      %v2833 = vadd.f32 %v2664, %v2832
      %v2834 = vpop.f32.mrf.mxu0
      %v2835 = vadd.f32 %v2666, %v2834
      %2836 = vmatmul.bf16.gmra.mxu0 %v1391
      %v2837 = vpop.f32.mrf.mxu0
      %v2838 = vadd.f32 %v2669, %v2837
      %v2839 = vpop.f32.mrf.mxu0
      %v2840 = vadd.f32 %v2671, %v2839
      %2841 = vmatmul.bf16.gmra.mxu0 %v1398
      %v2842 = vpop.f32.mrf.mxu0
      %v2843 = vadd.f32 %v2674, %v2842
      %v2844 = vpop.f32.mrf.mxu0
      %v2845 = vadd.f32 %v2676, %v2844
      %2846 = vmatmul.bf16.gmra.mxu0 %v1405
      %v2847 = vpop.f32.mrf.mxu0
      %v2848 = vadd.f32 %v2679, %v2847
      %v2849 = vpop.f32.mrf.mxu0
      %v2850 = vadd.f32 %v2681, %v2849
      %2851 = vmatmul.bf16.gmra.mxu0 %v1412
      %v2852 = vpop.f32.mrf.mxu0
      %v2853 = vadd.f32 %v2684, %v2852
      %v2854 = vpop.f32.mrf.mxu0
      %v2855 = vadd.f32 %v2686, %v2854
      %2856 = vmatmul.bf16.gmra.mxu0 %v1419
      %v2857 = vpop.f32.mrf.mxu0
      %v2858 = vadd.f32 %v2689, %v2857
      %v2859 = vpop.f32.mrf.mxu0
      %v2860 = vadd.f32 %v2691, %v2859
      %2861 = vmatmul.bf16.gmra.mxu0 %v1426
      %v2862 = vpop.f32.mrf.mxu0
      %v2863 = vadd.f32 %v2694, %v2862
      %v2864 = vpop.f32.mrf.mxu0
      %v2865 = vadd.f32 %v2696, %v2864
      %2866 = vmatmul.bf16.gmra.mxu0 %v1433
      %v2867 = vpop.f32.mrf.mxu0
      %v2868 = vadd.f32 %v2699, %v2867
      %v2869 = vpop.f32.mrf.mxu0
      %v2870 = vadd.f32 %v2701, %v2869
      %2871 = vmatmul.bf16.gmra.mxu0 %v1440
      %v2872 = vpop.f32.mrf.mxu0
      %v2873 = vadd.f32 %v2704, %v2872
      %v2874 = vpop.f32.mrf.mxu0
      %v2875 = vadd.f32 %v2706, %v2874
      %2876 = vmatmul.bf16.gmra.mxu0 %v1447
      %v2877 = vpop.f32.mrf.mxu0
      %v2878 = vadd.f32 %v2709, %v2877
      %v2879 = vpop.f32.mrf.mxu0
      %v2880 = vadd.f32 %v2711, %v2879
      %2881 = vmatmul.bf16.gmra.mxu0 %v1454
      %v2882 = vpop.f32.mrf.mxu0
      %v2883 = vadd.f32 %v2714, %v2882
      %v2884 = vpop.f32.mrf.mxu0
      %v2885 = vadd.f32 %v2716, %v2884
      %2886 = vmatmul.bf16.gmra.mxu0 %v1461
      %v2887 = vpop.f32.mrf.mxu0
      %v2888 = vadd.f32 %v2719, %v2887
      %v2889 = vpop.f32.mrf.mxu0
      %v2890 = vadd.f32 %v2721, %v2889
      %2891 = vdwg.mxu0
      %2892 = vmatpush.bf16.msra.mxu0 %v1899
      %2893 = vmatpush.bf16.msra.mxu0 %v1898
      %2894 = vmatpush.bf16.msra.mxu0 %v1897
      %2895 = vmatpush.bf16.msra.mxu0 %v1896
      %2896 = vmatpush.bf16.msra.mxu0 %v1895
      %2897 = vmatpush.bf16.msra.mxu0 %v1894
      %2898 = vmatpush.bf16.msra.mxu0 %v1893
      %2899 = vmatpush.bf16.msra.mxu0 %v1892
      %2900 = vmatmul.bf16.gmra.mxu0 %v1245
      %v2901 = vpop.f32.mrf.mxu0
      %v2902 = vadd.f32 %v2733, %v2901
      %v2903 = vpop.f32.mrf.mxu0
      %v2904 = vadd.f32 %v2735, %v2903
      %2905 = vmatmul.bf16.gmra.mxu0 %v1252
      %v2906 = vpop.f32.mrf.mxu0
      %v2907 = vadd.f32 %v2738, %v2906
      %v2908 = vpop.f32.mrf.mxu0
      %v2909 = vadd.f32 %v2740, %v2908
      %2910 = vmatmul.bf16.gmra.mxu0 %v1259
      %v2911 = vpop.f32.mrf.mxu0
      %v2912 = vadd.f32 %v2743, %v2911
      %v2913 = vpop.f32.mrf.mxu0
      %v2914 = vadd.f32 %v2745, %v2913
      %2915 = vmatmul.bf16.gmra.mxu0 %v1266
      %v2916 = vpop.f32.mrf.mxu0
      %v2917 = vadd.f32 %v2748, %v2916
      %v2918 = vpop.f32.mrf.mxu0
      %v2919 = vadd.f32 %v2750, %v2918
      %2920 = vmatmul.bf16.gmra.mxu0 %v1273
      %v2921 = vpop.f32.mrf.mxu0
      %v2922 = vadd.f32 %v2753, %v2921
      %v2923 = vpop.f32.mrf.mxu0
      %v2924 = vadd.f32 %v2755, %v2923
      %2925 = vmatmul.bf16.gmra.mxu0 %v1280
      %v2926 = vpop.f32.mrf.mxu0
      %v2927 = vadd.f32 %v2758, %v2926
      %v2928 = vpop.f32.mrf.mxu0
      %v2929 = vadd.f32 %v2760, %v2928
      %2930 = vmatmul.bf16.gmra.mxu0 %v1287
      %v2931 = vpop.f32.mrf.mxu0
      %v2932 = vadd.f32 %v2763, %v2931
      %v2933 = vpop.f32.mrf.mxu0
      %v2934 = vadd.f32 %v2765, %v2933
      %2935 = vmatmul.bf16.gmra.mxu0 %v1294
      %v2936 = vpop.f32.mrf.mxu0
      %v2937 = vadd.f32 %v2768, %v2936
      %v2938 = vpop.f32.mrf.mxu0
      %v2939 = vadd.f32 %v2770, %v2938
      %2940 = vmatmul.bf16.gmra.mxu0 %v1301
      %v2941 = vpop.f32.mrf.mxu0
      %v2942 = vadd.f32 %v2773, %v2941
      %v2943 = vpop.f32.mrf.mxu0
      %v2944 = vadd.f32 %v2775, %v2943
      %2945 = vmatmul.bf16.gmra.mxu0 %v1308
      %v2946 = vpop.f32.mrf.mxu0
      %v2947 = vadd.f32 %v2778, %v2946
      %v2948 = vpop.f32.mrf.mxu0
      %v2949 = vadd.f32 %v2780, %v2948
      %2950 = vmatmul.bf16.gmra.mxu0 %v1315
      %v2951 = vpop.f32.mrf.mxu0
      %v2952 = vadd.f32 %v2783, %v2951
      %v2953 = vpop.f32.mrf.mxu0
      %v2954 = vadd.f32 %v2785, %v2953
      %2955 = vmatmul.bf16.gmra.mxu0 %v1322
      %v2956 = vpop.f32.mrf.mxu0
      %v2957 = vadd.f32 %v2788, %v2956
      %v2958 = vpop.f32.mrf.mxu0
      %v2959 = vadd.f32 %v2790, %v2958
      %2960 = vmatmul.bf16.gmra.mxu0 %v1329
      %v2961 = vpop.f32.mrf.mxu0
      %v2962 = vadd.f32 %v2793, %v2961
      %v2963 = vpop.f32.mrf.mxu0
      %v2964 = vadd.f32 %v2795, %v2963
      %2965 = vmatmul.bf16.gmra.mxu0 %v1336
      %v2966 = vpop.f32.mrf.mxu0
      %v2967 = vadd.f32 %v2798, %v2966
      %v2968 = vpop.f32.mrf.mxu0
      %v2969 = vadd.f32 %v2800, %v2968
      %2970 = vmatmul.bf16.gmra.mxu0 %v1343
      %v2971 = vpop.f32.mrf.mxu0
      %v2972 = vadd.f32 %v2803, %v2971
      %v2973 = vpop.f32.mrf.mxu0
      %v2974 = vadd.f32 %v2805, %v2973
      %2975 = vmatmul.bf16.gmra.mxu0 %v1350
      %v2976 = vpop.f32.mrf.mxu0
      %v2977 = vadd.f32 %v2808, %v2976
      %v2978 = vpop.f32.mrf.mxu0
      %v2979 = vadd.f32 %v2810, %v2978
      %2980 = vmatmul.bf16.gmra.mxu0 %v1357
      %v2981 = vpop.f32.mrf.mxu0
      %v2982 = vadd.f32 %v2813, %v2981
      %v2983 = vpop.f32.mrf.mxu0
      %v2984 = vadd.f32 %v2815, %v2983
      %2985 = vmatmul.bf16.gmra.mxu0 %v1364
      %v2986 = vpop.f32.mrf.mxu0
      %v2987 = vadd.f32 %v2818, %v2986
      %v2988 = vpop.f32.mrf.mxu0
      %v2989 = vadd.f32 %v2820, %v2988
      %2990 = vmatmul.bf16.gmra.mxu0 %v1371
      %v2991 = vpop.f32.mrf.mxu0
      %v2992 = vadd.f32 %v2823, %v2991
      %v2993 = vpop.f32.mrf.mxu0
      %v2994 = vadd.f32 %v2825, %v2993
      %2995 = vmatmul.bf16.gmra.mxu0 %v1378
      %v2996 = vpop.f32.mrf.mxu0
      %v2997 = vadd.f32 %v2828, %v2996
      %v2998 = vpop.f32.mrf.mxu0
      %v2999 = vadd.f32 %v2830, %v2998
      %3000 = vmatmul.bf16.gmra.mxu0 %v1385
      %v3001 = vpop.f32.mrf.mxu0
      %v3002 = vadd.f32 %v2833, %v3001
      %v3003 = vpop.f32.mrf.mxu0
      %v3004 = vadd.f32 %v2835, %v3003
      %3005 = vmatmul.bf16.gmra.mxu0 %v1392
      %v3006 = vpop.f32.mrf.mxu0
      %v3007 = vadd.f32 %v2838, %v3006
      %v3008 = vpop.f32.mrf.mxu0
      %v3009 = vadd.f32 %v2840, %v3008
      %3010 = vmatmul.bf16.gmra.mxu0 %v1399
      %v3011 = vpop.f32.mrf.mxu0
      %v3012 = vadd.f32 %v2843, %v3011
      %v3013 = vpop.f32.mrf.mxu0
      %v3014 = vadd.f32 %v2845, %v3013
      %3015 = vmatmul.bf16.gmra.mxu0 %v1406
      %v3016 = vpop.f32.mrf.mxu0
      %v3017 = vadd.f32 %v2848, %v3016
      %v3018 = vpop.f32.mrf.mxu0
      %v3019 = vadd.f32 %v2850, %v3018
      %3020 = vmatmul.bf16.gmra.mxu0 %v1413
      %v3021 = vpop.f32.mrf.mxu0
      %v3022 = vadd.f32 %v2853, %v3021
      %v3023 = vpop.f32.mrf.mxu0
      %v3024 = vadd.f32 %v2855, %v3023
      %3025 = vmatmul.bf16.gmra.mxu0 %v1420
      %v3026 = vpop.f32.mrf.mxu0
      %v3027 = vadd.f32 %v2858, %v3026
      %v3028 = vpop.f32.mrf.mxu0
      %v3029 = vadd.f32 %v2860, %v3028
      %3030 = vmatmul.bf16.gmra.mxu0 %v1427
      %v3031 = vpop.f32.mrf.mxu0
      %v3032 = vadd.f32 %v2863, %v3031
      %v3033 = vpop.f32.mrf.mxu0
      %v3034 = vadd.f32 %v2865, %v3033
      %3035 = vmatmul.bf16.gmra.mxu0 %v1434
      %v3036 = vpop.f32.mrf.mxu0
      %v3037 = vadd.f32 %v2868, %v3036
      %v3038 = vpop.f32.mrf.mxu0
      %v3039 = vadd.f32 %v2870, %v3038
      %3040 = vmatmul.bf16.gmra.mxu0 %v1441
      %v3041 = vpop.f32.mrf.mxu0
      %v3042 = vadd.f32 %v2873, %v3041
      %v3043 = vpop.f32.mrf.mxu0
      %v3044 = vadd.f32 %v2875, %v3043
      %3045 = vmatmul.bf16.gmra.mxu0 %v1448
      %v3046 = vpop.f32.mrf.mxu0
      %v3047 = vadd.f32 %v2878, %v3046
      %v3048 = vpop.f32.mrf.mxu0
      %v3049 = vadd.f32 %v2880, %v3048
      %3050 = vmatmul.bf16.gmra.mxu0 %v1455
      %v3051 = vpop.f32.mrf.mxu0
      %v3052 = vadd.f32 %v2883, %v3051
      %v3053 = vpop.f32.mrf.mxu0
      %v3054 = vadd.f32 %v2885, %v3053
      %3055 = vmatmul.bf16.gmra.mxu0 %v1462
      %v3056 = vpop.f32.mrf.mxu0
      %v3057 = vadd.f32 %v2888, %v3056
      %v3058 = vpop.f32.mrf.mxu0
      %v3059 = vadd.f32 %v2890, %v3058
      %3060 = vdwg.mxu0
      %3061 = vmatpush.bf16.msra.mxu0 0
      %3062 = vmatpush.bf16.msra.mxu0 0
      %3063 = vmatpush.bf16.msra.mxu0 0
      %3064 = vmatpush.bf16.msra.mxu0 0
      %3065 = vmatpush.bf16.msra.mxu0 0
      %3066 = vmatpush.bf16.msra.mxu0 0
      %3067 = vmatpush.bf16.msra.mxu0 0
      %3068 = vmatpush.bf16.msra.mxu0 %v1900
      %3069 = vmatmul.bf16.gmra.mxu0 %v1952
      %v3070 = vpop.f32.mrf.mxu0
      %v3071 = vadd.f32 %v2902, %v3070
      %v3072 = vpop.f32.mrf.mxu0
      %v3073 = vadd.f32 %v2904, %v3072
      %3074 = vmatmul.bf16.gmra.mxu0 %v1955
      %v3075 = vpop.f32.mrf.mxu0
      %v3076 = vadd.f32 %v2907, %v3075
      %v3077 = vpop.f32.mrf.mxu0
      %v3078 = vadd.f32 %v2909, %v3077
      %3079 = vmatmul.bf16.gmra.mxu0 %v1958
      %v3080 = vpop.f32.mrf.mxu0
      %v3081 = vadd.f32 %v2912, %v3080
      %v3082 = vpop.f32.mrf.mxu0
      %v3083 = vadd.f32 %v2914, %v3082
      %3084 = vmatmul.bf16.gmra.mxu0 %v1961
      %v3085 = vpop.f32.mrf.mxu0
      %v3086 = vadd.f32 %v2917, %v3085
      %v3087 = vpop.f32.mrf.mxu0
      %v3088 = vadd.f32 %v2919, %v3087
      %3089 = vmatmul.bf16.gmra.mxu0 %v1964
      %v3090 = vpop.f32.mrf.mxu0
      %v3091 = vadd.f32 %v2922, %v3090
      %v3092 = vpop.f32.mrf.mxu0
      %v3093 = vadd.f32 %v2924, %v3092
      %3094 = vmatmul.bf16.gmra.mxu0 %v1967
      %v3095 = vpop.f32.mrf.mxu0
      %v3096 = vadd.f32 %v2927, %v3095
      %v3097 = vpop.f32.mrf.mxu0
      %v3098 = vadd.f32 %v2929, %v3097
      %3099 = vmatmul.bf16.gmra.mxu0 %v1970
      %v3100 = vpop.f32.mrf.mxu0
      %v3101 = vadd.f32 %v2932, %v3100
      %v3102 = vpop.f32.mrf.mxu0
      %v3103 = vadd.f32 %v2934, %v3102
      %3104 = vmatmul.bf16.gmra.mxu0 %v1973
      %v3105 = vpop.f32.mrf.mxu0
      %v3106 = vadd.f32 %v2937, %v3105
      %v3107 = vpop.f32.mrf.mxu0
      %v3108 = vadd.f32 %v2939, %v3107
      %3109 = vmatmul.bf16.gmra.mxu0 %v1976
      %v3110 = vpop.f32.mrf.mxu0
      %v3111 = vadd.f32 %v2942, %v3110
      %v3112 = vpop.f32.mrf.mxu0
      %v3113 = vadd.f32 %v2944, %v3112
      %3114 = vmatmul.bf16.gmra.mxu0 %v1979
      %v3115 = vpop.f32.mrf.mxu0
      %v3116 = vadd.f32 %v2947, %v3115
      %v3117 = vpop.f32.mrf.mxu0
      %v3118 = vadd.f32 %v2949, %v3117
      %3119 = vmatmul.bf16.gmra.mxu0 %v1982
      %v3120 = vpop.f32.mrf.mxu0
      %v3121 = vadd.f32 %v2952, %v3120
      %v3122 = vpop.f32.mrf.mxu0
      %v3123 = vadd.f32 %v2954, %v3122
      %3124 = vmatmul.bf16.gmra.mxu0 %v1985
      %v3125 = vpop.f32.mrf.mxu0
      %v3126 = vadd.f32 %v2957, %v3125
      %v3127 = vpop.f32.mrf.mxu0
      %v3128 = vadd.f32 %v2959, %v3127
      %3129 = vmatmul.bf16.gmra.mxu0 %v1988
      %v3130 = vpop.f32.mrf.mxu0
      %v3131 = vadd.f32 %v2962, %v3130
      %v3132 = vpop.f32.mrf.mxu0
      %v3133 = vadd.f32 %v2964, %v3132
      %3134 = vmatmul.bf16.gmra.mxu0 %v1991
      %v3135 = vpop.f32.mrf.mxu0
      %v3136 = vadd.f32 %v2967, %v3135
      %v3137 = vpop.f32.mrf.mxu0
      %v3138 = vadd.f32 %v2969, %v3137
      %3139 = vmatmul.bf16.gmra.mxu0 %v1994
      %v3140 = vpop.f32.mrf.mxu0
      %v3141 = vadd.f32 %v2972, %v3140
      %v3142 = vpop.f32.mrf.mxu0
      %v3143 = vadd.f32 %v2974, %v3142
      %3144 = vmatmul.bf16.gmra.mxu0 %v1997
      %v3145 = vpop.f32.mrf.mxu0
      %v3146 = vadd.f32 %v2977, %v3145
      %v3147 = vpop.f32.mrf.mxu0
      %v3148 = vadd.f32 %v2979, %v3147
      %3149 = vmatmul.bf16.gmra.mxu0 %v2000
      %v3150 = vpop.f32.mrf.mxu0
      %v3151 = vadd.f32 %v2982, %v3150
      %v3152 = vpop.f32.mrf.mxu0
      %v3153 = vadd.f32 %v2984, %v3152
      %3154 = vmatmul.bf16.gmra.mxu0 %v2003
      %v3155 = vpop.f32.mrf.mxu0
      %v3156 = vadd.f32 %v2987, %v3155
      %v3157 = vpop.f32.mrf.mxu0
      %v3158 = vadd.f32 %v2989, %v3157
      %3159 = vmatmul.bf16.gmra.mxu0 %v2006
      %v3160 = vpop.f32.mrf.mxu0
      %v3161 = vadd.f32 %v2992, %v3160
      %v3162 = vpop.f32.mrf.mxu0
      %v3163 = vadd.f32 %v2994, %v3162
      %3164 = vmatmul.bf16.gmra.mxu0 %v2009
      %v3165 = vpop.f32.mrf.mxu0
      %v3166 = vadd.f32 %v2997, %v3165
      %v3167 = vpop.f32.mrf.mxu0
      %v3168 = vadd.f32 %v2999, %v3167
      %3169 = vmatmul.bf16.gmra.mxu0 %v2012
      %v3170 = vpop.f32.mrf.mxu0
      %v3171 = vadd.f32 %v3002, %v3170
      %v3172 = vpop.f32.mrf.mxu0
      %v3173 = vadd.f32 %v3004, %v3172
      %3174 = vmatmul.bf16.gmra.mxu0 %v2015
      %v3175 = vpop.f32.mrf.mxu0
      %v3176 = vadd.f32 %v3007, %v3175
      %v3177 = vpop.f32.mrf.mxu0
      %v3178 = vadd.f32 %v3009, %v3177
      %3179 = vmatmul.bf16.gmra.mxu0 %v2018
      %v3180 = vpop.f32.mrf.mxu0
      %v3181 = vadd.f32 %v3012, %v3180
      %v3182 = vpop.f32.mrf.mxu0
      %v3183 = vadd.f32 %v3014, %v3182
      %3184 = vmatmul.bf16.gmra.mxu0 %v2021
      %v3185 = vpop.f32.mrf.mxu0
      %v3186 = vadd.f32 %v3017, %v3185
      %v3187 = vpop.f32.mrf.mxu0
      %v3188 = vadd.f32 %v3019, %v3187
      %3189 = vmatmul.bf16.gmra.mxu0 %v2024
      %v3190 = vpop.f32.mrf.mxu0
      %v3191 = vadd.f32 %v3022, %v3190
      %v3192 = vpop.f32.mrf.mxu0
      %v3193 = vadd.f32 %v3024, %v3192
      %3194 = vmatmul.bf16.gmra.mxu0 %v2027
      %v3195 = vpop.f32.mrf.mxu0
      %v3196 = vadd.f32 %v3027, %v3195
      %v3197 = vpop.f32.mrf.mxu0
      %v3198 = vadd.f32 %v3029, %v3197
      %3199 = vmatmul.bf16.gmra.mxu0 %v2030
      %v3200 = vpop.f32.mrf.mxu0
      %v3201 = vadd.f32 %v3032, %v3200
      %v3202 = vpop.f32.mrf.mxu0
      %v3203 = vadd.f32 %v3034, %v3202
      %3204 = vmatmul.bf16.gmra.mxu0 %v2033
      %v3205 = vpop.f32.mrf.mxu0
      %v3206 = vadd.f32 %v3037, %v3205
      %v3207 = vpop.f32.mrf.mxu0
      %v3208 = vadd.f32 %v3039, %v3207
      %3209 = vmatmul.bf16.gmra.mxu0 %v2036
      %v3210 = vpop.f32.mrf.mxu0
      %v3211 = vadd.f32 %v3042, %v3210
      %v3212 = vpop.f32.mrf.mxu0
      %v3213 = vadd.f32 %v3044, %v3212
      %3214 = vmatmul.bf16.gmra.mxu0 %v2039
      %v3215 = vpop.f32.mrf.mxu0
      %v3216 = vadd.f32 %v3047, %v3215
      %v3217 = vpop.f32.mrf.mxu0
      %v3218 = vadd.f32 %v3049, %v3217
      %3219 = vmatmul.bf16.gmra.mxu0 %v2042
      %v3220 = vpop.f32.mrf.mxu0
      %v3221 = vadd.f32 %v3052, %v3220
      %v3222 = vpop.f32.mrf.mxu0
      %v3223 = vadd.f32 %v3054, %v3222
      %3224 = vmatmul.bf16.gmra.mxu0 %v2045
      %v3225 = vpop.f32.mrf.mxu0
      %v3226 = vadd.f32 %v3057, %v3225
      %v3227 = vpop.f32.mrf.mxu0
      %v3228 = vadd.f32 %v3059, %v3227
      %3229 = vdwg.mxu0
      %v3230 = vmax.f32 %v3071, 0.0
      %v3231 = vmax.f32 %v3073, 0.0
      %v3232 = vmax.f32 %v3076, 0.0
      %v3233 = vmax.f32 %v3078, 0.0
      %v3234 = vmax.f32 %v3081, 0.0
      %v3235 = vmax.f32 %v3083, 0.0
      %v3236 = vmax.f32 %v3086, 0.0
      %v3237 = vmax.f32 %v3088, 0.0
      %v3238 = vmax.f32 %v3091, 0.0
      %v3239 = vmax.f32 %v3093, 0.0
      %v3240 = vmax.f32 %v3096, 0.0
      %v3241 = vmax.f32 %v3098, 0.0
      %v3242 = vmax.f32 %v3101, 0.0
      %v3243 = vmax.f32 %v3103, 0.0
      %v3244 = vmax.f32 %v3106, 0.0
      %v3245 = vmax.f32 %v3108, 0.0
      %v3246 = vmax.f32 %v3111, 0.0
      %v3247 = vmax.f32 %v3113, 0.0
      %v3248 = vmax.f32 %v3116, 0.0
      %v3249 = vmax.f32 %v3118, 0.0
      %v3250 = vmax.f32 %v3121, 0.0
      %v3251 = vmax.f32 %v3123, 0.0
      %v3252 = vmax.f32 %v3126, 0.0
      %v3253 = vmax.f32 %v3128, 0.0
      %v3254 = vmax.f32 %v3131, 0.0
      %v3255 = vmax.f32 %v3133, 0.0
      %v3256 = vmax.f32 %v3136, 0.0
      %v3257 = vmax.f32 %v3138, 0.0
      %v3258 = vmax.f32 %v3141, 0.0
      %v3259 = vmax.f32 %v3143, 0.0
      %v3260 = vmax.f32 %v3146, 0.0
      %v3261 = vmax.f32 %v3148, 0.0
      %v3262 = vmax.f32 %v3151, 0.0
      %v3263 = vmax.f32 %v3153, 0.0
      %v3264 = vmax.f32 %v3156, 0.0
      %v3265 = vmax.f32 %v3158, 0.0
      %v3266 = vmax.f32 %v3161, 0.0
      %v3267 = vmax.f32 %v3163, 0.0
      %v3268 = vmax.f32 %v3166, 0.0
      %v3269 = vmax.f32 %v3168, 0.0
      %v3270 = vmax.f32 %v3171, 0.0
      %v3271 = vmax.f32 %v3173, 0.0
      %v3272 = vmax.f32 %v3176, 0.0
      %v3273 = vmax.f32 %v3178, 0.0
      %v3274 = vmax.f32 %v3181, 0.0
      %v3275 = vmax.f32 %v3183, 0.0
      %v3276 = vmax.f32 %v3186, 0.0
      %v3277 = vmax.f32 %v3188, 0.0
      %v3278 = vmax.f32 %v3191, 0.0
      %v3279 = vmax.f32 %v3193, 0.0
      %v3280 = vmax.f32 %v3196, 0.0
      %v3281 = vmax.f32 %v3198, 0.0
      %v3282 = vmax.f32 %v3201, 0.0
      %v3283 = vmax.f32 %v3203, 0.0
      %v3284 = vmax.f32 %v3206, 0.0
      %v3285 = vmax.f32 %v3208, 0.0
      %v3286 = vmax.f32 %v3211, 0.0
      %v3287 = vmax.f32 %v3213, 0.0
      %v3288 = vmax.f32 %v3216, 0.0
      %v3289 = vmax.f32 %v3218, 0.0
      %v3290 = vmax.f32 %v3221, 0.0
      %v3291 = vmax.f32 %v3223, 0.0
      %v3292 = vmax.f32 %v3226, 0.0
      %v3293 = vmax.f32 %v3228, 0.0
      %v3294 = vpack.c.bf16 %v3230, %v3230
      %v3295 = vpack.c.bf16 %v3231, %v3231
      %v3296 = vpack.c.bf16 %v3232, %v3232
      %v3297 = vpack.c.bf16 %v3233, %v3233
      %v3298 = vpack.c.bf16 %v3234, %v3234
      %v3299 = vpack.c.bf16 %v3235, %v3235
      %v3300 = vpack.c.bf16 %v3236, %v3236
      %v3301 = vpack.c.bf16 %v3237, %v3237
      %v3302 = vpack.c.bf16 %v3238, %v3238
      %v3303 = vpack.c.bf16 %v3239, %v3239
      %v3304 = vpack.c.bf16 %v3240, %v3240
      %v3305 = vpack.c.bf16 %v3241, %v3241
      %v3306 = vpack.c.bf16 %v3242, %v3242
      %v3307 = vpack.c.bf16 %v3243, %v3243
      %v3308 = vpack.c.bf16 %v3244, %v3244
      %v3309 = vpack.c.bf16 %v3245, %v3245
      %v3310 = vpack.c.bf16 %v3246, %v3246
      %v3311 = vpack.c.bf16 %v3247, %v3247
      %v3312 = vpack.c.bf16 %v3248, %v3248
      %v3313 = vpack.c.bf16 %v3249, %v3249
      %v3314 = vpack.c.bf16 %v3250, %v3250
      %v3315 = vpack.c.bf16 %v3251, %v3251
      %v3316 = vpack.c.bf16 %v3252, %v3252
      %v3317 = vpack.c.bf16 %v3253, %v3253
      %v3318 = vpack.c.bf16 %v3254, %v3254
      %v3319 = vpack.c.bf16 %v3255, %v3255
      %v3320 = vpack.c.bf16 %v3256, %v3256
      %v3321 = vpack.c.bf16 %v3257, %v3257
      %v3322 = vpack.c.bf16 %v3258, %v3258
      %v3323 = vpack.c.bf16 %v3259, %v3259
      %v3324 = vpack.c.bf16 %v3260, %v3260
      %v3325 = vpack.c.bf16 %v3261, %v3261
      %v3326 = vpack.c.bf16 %v3262, %v3262
      %v3327 = vpack.c.bf16 %v3263, %v3263
      %v3328 = vpack.c.bf16 %v3264, %v3264
      %v3329 = vpack.c.bf16 %v3265, %v3265
      %v3330 = vpack.c.bf16 %v3266, %v3266
      %v3331 = vpack.c.bf16 %v3267, %v3267
      %v3332 = vpack.c.bf16 %v3268, %v3268
      %v3333 = vpack.c.bf16 %v3269, %v3269
      %v3334 = vpack.c.bf16 %v3270, %v3270
      %v3335 = vpack.c.bf16 %v3271, %v3271
      %v3336 = vpack.c.bf16 %v3272, %v3272
      %v3337 = vpack.c.bf16 %v3273, %v3273
      %v3338 = vpack.c.bf16 %v3274, %v3274
      %v3339 = vpack.c.bf16 %v3275, %v3275
      %v3340 = vpack.c.bf16 %v3276, %v3276
      %v3341 = vpack.c.bf16 %v3277, %v3277
      %v3342 = vpack.c.bf16 %v3278, %v3278
      %v3343 = vpack.c.bf16 %v3279, %v3279
      %v3344 = vpack.c.bf16 %v3280, %v3280
      %v3345 = vpack.c.bf16 %v3281, %v3281
      %v3346 = vpack.c.bf16 %v3282, %v3282
      %v3347 = vpack.c.bf16 %v3283, %v3283
      %v3348 = vpack.c.bf16 %v3284, %v3284
      %v3349 = vpack.c.bf16 %v3285, %v3285
      %v3350 = vpack.c.bf16 %v3286, %v3286
      %v3351 = vpack.c.bf16 %v3287, %v3287
      %v3352 = vpack.c.bf16 %v3288, %v3288
      %v3353 = vpack.c.bf16 %v3289, %v3289
      %v3354 = vpack.c.bf16 %v3290, %v3290
      %v3355 = vpack.c.bf16 %v3291, %v3291
      %v3356 = vpack.c.bf16 %v3292, %v3292
      %v3357 = vpack.c.bf16 %v3293, %v3293
      %3358 = vst [vmem:[%s175] sm:$0xf] %v3294
      %3359 = vst [vmem:[%s175 + $0x4] sm:$0xf] %v3295
      %3360 = vst [vmem:[%s175 + $0x8] sm:$0xf] %v3296
      %3361 = vst [vmem:[%s175 + $0xc] sm:$0xf] %v3297
      %3362 = vst [vmem:[%s175 + $0x10] sm:$0xf] %v3298
      %3363 = vst [vmem:[%s175 + $0x14] sm:$0xf] %v3299
      %3364 = vst [vmem:[%s175 + $0x18] sm:$0xf] %v3300
      %3365 = vst [vmem:[%s175 + $0x1c] sm:$0xf] %v3301
      %3366 = vst [vmem:[%s175 + $0x20] sm:$0xf] %v3302
      %3367 = vst [vmem:[%s175 + $0x24] sm:$0xf] %v3303
      %3368 = vst [vmem:[%s175 + $0x28] sm:$0xf] %v3304
      %3369 = vst [vmem:[%s175 + $0x2c] sm:$0xf] %v3305
      %3370 = vst [vmem:[%s175 + $0x30] sm:$0xf] %v3306
      %3371 = vst [vmem:[%s175 + $0x34] sm:$0xf] %v3307
      %3372 = vst [vmem:[%s175 + $0x38] sm:$0xf] %v3308
      %3373 = vst [vmem:[%s175 + $0x3c] sm:$0xf] %v3309
      %3374 = vst [vmem:[%s175 + $0x40] sm:$0xf] %v3310
      %3375 = vst [vmem:[%s175 + $0x44] sm:$0xf] %v3311
      %3376 = vst [vmem:[%s175 + $0x48] sm:$0xf] %v3312
      %3377 = vst [vmem:[%s175 + $0x4c] sm:$0xf] %v3313
      %3378 = vst [vmem:[%s175 + $0x50] sm:$0xf] %v3314
      %3379 = vst [vmem:[%s175 + $0x54] sm:$0xf] %v3315
      %3380 = vst [vmem:[%s175 + $0x58] sm:$0xf] %v3316
      %3381 = vst [vmem:[%s175 + $0x5c] sm:$0xf] %v3317
      %3382 = vst [vmem:[%s175 + $0x60] sm:$0xf] %v3318
      %3383 = vst [vmem:[%s175 + $0x64] sm:$0xf] %v3319
      %3384 = vst [vmem:[%s175 + $0x68] sm:$0xf] %v3320
      %3385 = vst [vmem:[%s175 + $0x6c] sm:$0xf] %v3321
      %3386 = vst [vmem:[%s175 + $0x70] sm:$0xf] %v3322
      %3387 = vst [vmem:[%s175 + $0x74] sm:$0xf] %v3323
      %3388 = vst [vmem:[%s175 + $0x78] sm:$0xf] %v3324
      %3389 = vst [vmem:[%s175 + $0x7c] sm:$0xf] %v3325
      %3390 = vst [vmem:[%s175 + $0x80] sm:$0xf] %v3326
      %3391 = vst [vmem:[%s175 + $0x84] sm:$0xf] %v3327
      %3392 = vst [vmem:[%s175 + $0x88] sm:$0xf] %v3328
      %3393 = vst [vmem:[%s175 + $0x8c] sm:$0xf] %v3329
      %3394 = vst [vmem:[%s175 + $0x90] sm:$0xf] %v3330
      %3395 = vst [vmem:[%s175 + $0x94] sm:$0xf] %v3331
      %3396 = vst [vmem:[%s175 + $0x98] sm:$0xf] %v3332
      %3397 = vst [vmem:[%s175 + $0x9c] sm:$0xf] %v3333
      %3398 = vst [vmem:[%s175 + $0xa0] sm:$0xf] %v3334
      %3399 = vst [vmem:[%s175 + $0xa4] sm:$0xf] %v3335
      %3400 = vst [vmem:[%s175 + $0xa8] sm:$0xf] %v3336
      %3401 = vst [vmem:[%s175 + $0xac] sm:$0xf] %v3337
      %3402 = vst [vmem:[%s175 + $0xb0] sm:$0xf] %v3338
      %3403 = vst [vmem:[%s175 + $0xb4] sm:$0xf] %v3339
      %3404 = vst [vmem:[%s175 + $0xb8] sm:$0xf] %v3340
      %3405 = vst [vmem:[%s175 + $0xbc] sm:$0xf] %v3341
      %3406 = vst [vmem:[%s175 + $0xc0] sm:$0xf] %v3342
      %3407 = vst [vmem:[%s175 + $0xc4] sm:$0xf] %v3343
      %3408 = vst [vmem:[%s175 + $0xc8] sm:$0xf] %v3344
      %3409 = vst [vmem:[%s175 + $0xcc] sm:$0xf] %v3345
      %3410 = vst [vmem:[%s175 + $0xd0] sm:$0xf] %v3346
      %3411 = vst [vmem:[%s175 + $0xd4] sm:$0xf] %v3347
      %3412 = vst [vmem:[%s175 + $0xd8] sm:$0xf] %v3348
      %3413 = vst [vmem:[%s175 + $0xdc] sm:$0xf] %v3349
      %3414 = vst [vmem:[%s175 + $0xe0] sm:$0xf] %v3350
      %3415 = vst [vmem:[%s175 + $0xe4] sm:$0xf] %v3351
      %3416 = vst [vmem:[%s175 + $0xe8] sm:$0xf] %v3352
      %3417 = vst [vmem:[%s175 + $0xec] sm:$0xf] %v3353
      %3418 = vst [vmem:[%s175 + $0xf0] sm:$0xf] %v3354
      %3419 = vst [vmem:[%s175 + $0xf4] sm:$0xf] %v3355
      %3420 = vst [vmem:[%s175 + $0xf8] sm:$0xf] %v3356
      %3421 = vst [vmem:[%s175 + $0xfc] sm:$0xf] %v3357
      %s3422 = smul.u32 64, %s14
      %p3423 = scmp.lt.s32.totalorder %s3422, 127
      %s3424 = scalar_select %p3423, %s3422, 127
      %s3425 = smul.addr %s3424, 4
      %s3426 = scalar_lea.vmem %s3, %s3425
      // Predicated region
      $region33: #{forward.14} parent=31 // pred_check
        %p3427 = pneg %p100
      $region34: #{forward.14} parent=31 // pred_check_branch
        %3429 = sbr.rel (%p3427) target = $region36
      $region35: #{forward.14} parent=31 // pred_region
        %s3430 = smul.u32 64, %s14
      $region36: #{forward.14} parent=31 // pred_fallthru
        _
    $region32: #{forward.14} parent=5 // pred_fallthru
      _
    %p3431 = scmp.le.s32.totalorder 2, %s9
    // Predicated region
    $region37: #{forward.14} parent=5 // pred_check
      %p3432 = pneg %p3431
    $region38: #{forward.14} parent=5 // pred_check_branch
      %3434 = sbr.rel (%p3432) target = $region40
    $region39: #{forward.14} parent=5 // pred_region
      %s3435 = ssub.s32 %s9, 2
      // Predicated region
      $region41: #{forward.14} parent=39 // pred_check
        %p3436 = pneg %p106
      $region42: #{forward.14} parent=39 // pred_check_branch
        %3438 = sbr.rel (%p3436) target = $region44
      $region43: #{forward.14} parent=39 // pred_region
        %s3439 = smul.u32 64, %s15
        %p3440 = scmp.lt.s32.totalorder %s3439, 127
        %s3441 = scalar_select %p3440, %s3439, 127
        %s3442 = smul.addr %s3441, 4
        %s3443 = scalar_lea.vmem %s3, %s3442
      $region44: #{forward.14} parent=39 // pred_fallthru
        _
    $region40: #{forward.14} parent=5 // pred_fallthru
      _
  $region6: #{forward.14} parent=0 // loop_footer
    %s13 = sadd.s32 1, %s9
  $region7: #{forward.14} parent=0 // loop_footer_branch
    %8 = sbr.rel target = $region3
  $region8: #{forward.14} parent=0 // loop_exit
    _

// kernel: forward.17
$region0: #{forward.17}
  #allocation0 [shape = 'u32[]', space=smem, size = 0x4, offset = 0x4, fixed_abs, tag = 'smem constant byte address 0x4 - core index']
  #allocation1 [shape = 'u32[72,128]{1,0:T(1,128)}', space=vmem, size = 0x9000, scoped, tag = 'internal scratch']
  %s0 = inlined_call_operand.vmem [shape: bf16[256,128], index: 0, kind: input, shape index: {}]
  %s1 = inlined_call_operand.vmem [shape: bf16[128,128], index: 1, kind: input, shape index: {}]
  %s2 = inlined_call_operand.vmem [shape: f32[1,128], index: 2, kind: input, shape index: {}]
  %s3 = inlined_call_operand.vmem [shape: bf16[256,128], index: 3, kind: input, shape index: {}]
  %s4 = inlined_call_operand.vmem [shape: bf16[128,128], index: 4, kind: input, shape index: {}]
  %s5 = inlined_call_operand.vmem [shape: f32[1,128], index: 5, kind: input, shape index: {}]
  %s6 = inlined_call_operand.vmem [shape: bf16[256,128], index: 6, kind: output, shape index: {}]
  %s7 = sld [smem:[#allocation0]]
  $region57: #{forward.17} parent=0
    _
  %s9 = ssub.s32 1, %s7
  %s10 = scalar_select 0, %s9, %s7
  loop: start=0, step=1, limit=4
  $region2: #{forward.17} parent=0 // loop_pre_header
    _
  $region3: #{forward.17} parent=0 // loop_header
    %s12 = sphi 0, %s16
    %p13 = scmp.ge.s32.totalorder %s12, 4
    %s22 = sphi 0, %s24
    %s25 = sphi 0, %s22
    %s26 = sphi 0, %s25
    %s42 = sphi 0, %s26
    %s46 = sphi 0, %s46
    %s48 = sphi 0, %s46
    %s49 = sphi 0, %s48
    %s63 = sphi 0, %s49
    %s67 = sphi 0, %s67
    %s69 = sphi 0, %s67
    %s70 = sphi 0, %s69
    %s84 = sphi 0, %s70
    %s90 = sphi 0, %s92
    %s93 = sphi 0, %s90
    %s94 = sphi 0, %s93
    %s110 = sphi 0, %s94
    %s114 = sphi 0, %s114
    %s116 = sphi 0, %s114
    %s117 = sphi 0, %s116
    %s131 = sphi 0, %s117
    %s135 = sphi 0, %s135
    %s137 = sphi 0, %s135
    %s138 = sphi 0, %s137
    %s152 = sphi 0, %s138
    %s158 = sphi 0, %s160
    %s161 = sphi 0, %s158
    %s162 = sphi 0, %s161
    %s178 = sphi 0, %s162
  $region4: #{forward.17} parent=0 // loop_header_branch
    %15 = sbr.rel (%p13) target = $region8
  $region5: #{forward.17} parent=0 // loop_body
    %s17 = ssub.s32 %s12, 1
    %s18 = ssub.s32 %s12, 2
    %s19 = sadd.s32 %s12, 1
    %s20 = ssub.s32 %s12, %s19
    %p21 = scmp.eq.s32.totalorder %s20, 0
    %s23 = sadd.s32 %s22, 1
    %s24 = scalar_select %p21, %s22, %s23
    %p27 = pneg %p21
    %p28 = scmp.eq.s32.totalorder %s12, 1
    %p29 = por %p27, %p28
    %p30 = scmp.ne.s32.totalorder %s22, %s25
    %p31 = scmp.eq.s32.totalorder %s12, 0
    %p32 = por %p30, %p31
    %p33 = scmp.ne.s32.totalorder %s22, %s25
    %p34 = scmp.eq.s32.totalorder %s17, 1
    %p35 = por %p33, %p34
    %p36 = scmp.ne.s32.totalorder %s25, %s26
    %p37 = scmp.eq.s32.totalorder %s17, 0
    %p38 = por %p36, %p37
    %p39 = scmp.ne.s32.totalorder %s25, %s26
    %p40 = scmp.eq.s32.totalorder %s18, 1
    %p41 = por %p39, %p40
    %p43 = scmp.ne.s32.totalorder %s26, %s42
    %p44 = scmp.eq.s32.totalorder %s18, 0
    %p45 = por %p43, %p44
    %s47 = sadd.s32 %s46, 1
    %p50 = scmp.eq.s32.totalorder %s12, 1
    %p51 = scmp.ne.s32.totalorder %s46, %s48
    %p52 = scmp.eq.s32.totalorder %s12, 0
    %p53 = por %p51, %p52
    %p54 = scmp.ne.s32.totalorder %s46, %s48
    %p55 = scmp.eq.s32.totalorder %s17, 1
    %p56 = por %p54, %p55
    %p57 = scmp.ne.s32.totalorder %s48, %s49
    %p58 = scmp.eq.s32.totalorder %s17, 0
    %p59 = por %p57, %p58
    %p60 = scmp.ne.s32.totalorder %s48, %s49
    %p61 = scmp.eq.s32.totalorder %s18, 1
    %p62 = por %p60, %p61
    %p64 = scmp.ne.s32.totalorder %s49, %s63
    %p65 = scmp.eq.s32.totalorder %s18, 0
    %p66 = por %p64, %p65
    %s68 = sadd.s32 %s67, 1
    %p71 = scmp.eq.s32.totalorder %s12, 1
    %p72 = scmp.ne.s32.totalorder %s67, %s69
    %p73 = scmp.eq.s32.totalorder %s12, 0
    %p74 = por %p72, %p73
    %p75 = scmp.ne.s32.totalorder %s67, %s69
    %p76 = scmp.eq.s32.totalorder %s17, 1
    %p77 = por %p75, %p76
    %p78 = scmp.ne.s32.totalorder %s69, %s70
    %p79 = scmp.eq.s32.totalorder %s17, 0
    %p80 = por %p78, %p79
    %p81 = scmp.ne.s32.totalorder %s69, %s70
    %p82 = scmp.eq.s32.totalorder %s18, 1
    %p83 = por %p81, %p82
    %p85 = scmp.ne.s32.totalorder %s70, %s84
    %p86 = scmp.eq.s32.totalorder %s18, 0
    %p87 = por %p85, %p86
    %s88 = ssub.s32 %s12, %s19
    %p89 = scmp.eq.s32.totalorder %s88, 0
    %s91 = sadd.s32 %s90, 1
    %s92 = scalar_select %p89, %s90, %s91
    %p95 = pneg %p89
    %p96 = scmp.eq.s32.totalorder %s12, 1
    %p97 = por %p95, %p96
    %p98 = scmp.ne.s32.totalorder %s90, %s93
    %p99 = scmp.eq.s32.totalorder %s12, 0
    %p100 = por %p98, %p99
    %p101 = scmp.ne.s32.totalorder %s90, %s93
    %p102 = scmp.eq.s32.totalorder %s17, 1
    %p103 = por %p101, %p102
    %p104 = scmp.ne.s32.totalorder %s93, %s94
    %p105 = scmp.eq.s32.totalorder %s17, 0
    %p106 = por %p104, %p105
    %p107 = scmp.ne.s32.totalorder %s93, %s94
    %p108 = scmp.eq.s32.totalorder %s18, 1
    %p109 = por %p107, %p108
    %p111 = scmp.ne.s32.totalorder %s94, %s110
    %p112 = scmp.eq.s32.totalorder %s18, 0
    %p113 = por %p111, %p112
    %s115 = sadd.s32 %s114, 1
    %p118 = scmp.eq.s32.totalorder %s12, 1
    %p119 = scmp.ne.s32.totalorder %s114, %s116
    %p120 = scmp.eq.s32.totalorder %s12, 0
    %p121 = por %p119, %p120
    %p122 = scmp.ne.s32.totalorder %s114, %s116
    %p123 = scmp.eq.s32.totalorder %s17, 1
    %p124 = por %p122, %p123
    %p125 = scmp.ne.s32.totalorder %s116, %s117
    %p126 = scmp.eq.s32.totalorder %s17, 0
    %p127 = por %p125, %p126
    %p128 = scmp.ne.s32.totalorder %s116, %s117
    %p129 = scmp.eq.s32.totalorder %s18, 1
    %p130 = por %p128, %p129
    %p132 = scmp.ne.s32.totalorder %s117, %s131
    %p133 = scmp.eq.s32.totalorder %s18, 0
    %p134 = por %p132, %p133
    %s136 = sadd.s32 %s135, 1
    %p139 = scmp.eq.s32.totalorder %s12, 1
    %p140 = scmp.ne.s32.totalorder %s135, %s137
    %p141 = scmp.eq.s32.totalorder %s12, 0
    %p142 = por %p140, %p141
    %p143 = scmp.ne.s32.totalorder %s135, %s137
    %p144 = scmp.eq.s32.totalorder %s17, 1
    %p145 = por %p143, %p144
    %p146 = scmp.ne.s32.totalorder %s137, %s138
    %p147 = scmp.eq.s32.totalorder %s17, 0
    %p148 = por %p146, %p147
    %p149 = scmp.ne.s32.totalorder %s137, %s138
    %p150 = scmp.eq.s32.totalorder %s18, 1
    %p151 = por %p149, %p150
    %p153 = scmp.ne.s32.totalorder %s138, %s152
    %p154 = scmp.eq.s32.totalorder %s18, 0
    %p155 = por %p153, %p154
    %s156 = ssub.s32 %s12, %s19
    %p157 = scmp.eq.s32.totalorder %s156, 0
    %s159 = sadd.s32 %s158, 1
    %s160 = scalar_select %p157, %s158, %s159
    %p163 = pneg %p157
    %p164 = scmp.eq.s32.totalorder %s12, 1
    %p165 = por %p163, %p164
    %p166 = scmp.ne.s32.totalorder %s158, %s161
    %p167 = scmp.eq.s32.totalorder %s12, 0
    %p168 = por %p166, %p167
    %p169 = scmp.ne.s32.totalorder %s158, %s161
    %p170 = scmp.eq.s32.totalorder %s17, 1
    %p171 = por %p169, %p170
    %p172 = scmp.ne.s32.totalorder %s161, %s162
    %p173 = scmp.eq.s32.totalorder %s17, 0
    %p174 = por %p172, %p173
    %p175 = scmp.ne.s32.totalorder %s161, %s162
    %p176 = scmp.eq.s32.totalorder %s18, 1
    %p177 = por %p175, %p176
    %p179 = scmp.ne.s32.totalorder %s162, %s178
    %p180 = scmp.eq.s32.totalorder %s18, 0
    %p181 = por %p179, %p180
    %p182 = scmp.le.s32.totalorder 1, %s12
    %p183 = scmp.lt.s32.totalorder %s12, 3
    %p184 = pnand %p182, %p183
    %p185 = pneg %p184
    // Predicated region
    $region9: #{forward.17} parent=5 // pred_check
      _
    $region10: #{forward.17} parent=5 // pred_check_branch
      %187 = sbr.rel (%p184) target = $region12
    $region11: #{forward.17} parent=5 // pred_region
      %s188 = ssub.s32 %s12, 1
      // Predicated region
      $region13: #{forward.17} parent=11 // pred_check
        %p189 = pneg %p59
      $region14: #{forward.17} parent=11 // pred_check_branch
        %191 = sbr.rel (%p189) target = $region16
      $region15: #{forward.17} parent=11 // pred_region
        _
      $region16: #{forward.17} parent=11 // pred_fallthru
        _
      // Predicated region
      $region17: #{forward.17} parent=11 // pred_check
        %p192 = pneg %p80
      $region18: #{forward.17} parent=11 // pred_check_branch
        %194 = sbr.rel (%p192) target = $region20
      $region19: #{forward.17} parent=11 // pred_region
        _
      $region20: #{forward.17} parent=11 // pred_fallthru
        _
      // Predicated region
      $region21: #{forward.17} parent=11 // pred_check
        %p195 = pneg %p127
      $region22: #{forward.17} parent=11 // pred_check_branch
        %197 = sbr.rel (%p195) target = $region24
      $region23: #{forward.17} parent=11 // pred_region
        _
      $region24: #{forward.17} parent=11 // pred_fallthru
        _
      // Predicated region
      $region25: #{forward.17} parent=11 // pred_check
        %p198 = pneg %p148
      $region26: #{forward.17} parent=11 // pred_check_branch
        %200 = sbr.rel (%p198) target = $region28
      $region27: #{forward.17} parent=11 // pred_region
        _
      $region28: #{forward.17} parent=11 // pred_fallthru
        _
    $region12: #{forward.17} parent=5 // pred_fallthru
      _
    %p201 = scmp.lt.s32.totalorder %s12, 2
    // Predicated region
    $region29: #{forward.17} parent=5 // pred_check
      %p202 = pneg %p201
    $region30: #{forward.17} parent=5 // pred_check_branch
      %204 = sbr.rel (%p202) target = $region32
    $region31: #{forward.17} parent=5 // pred_region
      // Predicated region
      $region33: #{forward.17} parent=31 // pred_check
        %p205 = pneg %p32
      $region34: #{forward.17} parent=31 // pred_check_branch
        %207 = sbr.rel (%p205) target = $region36
      $region35: #{forward.17} parent=31 // pred_region
        %s208 = smul.u32 16, %s12
        %p209 = scmp.lt.s32.totalorder %s208, 31
        %s210 = scalar_select %p209, %s208, 31
        %s211 = smul.addr %s210, 4
        %s212 = scalar_lea.vmem %s0, %s211
        %s213 = smul.u32 16, %s12
      $region36: #{forward.17} parent=31 // pred_fallthru
        _
      // Predicated region
      $region37: #{forward.17} parent=31 // pred_check
        %p214 = pneg %p100
      $region38: #{forward.17} parent=31 // pred_check_branch
        %216 = sbr.rel (%p214) target = $region40
      $region39: #{forward.17} parent=31 // pred_region
        %s217 = smul.u32 16, %s12
        %p218 = scmp.lt.s32.totalorder %s217, 31
        %s219 = scalar_select %p218, %s217, 31
        %s220 = smul.addr %s219, 4
        %s221 = scalar_lea.vmem %s3, %s220
        %s222 = smul.u32 16, %s12
      $region40: #{forward.17} parent=31 // pred_fallthru
        _
    $region32: #{forward.17} parent=5 // pred_fallthru
      _
    %p223 = scmp.le.s32.totalorder 1, %s12
    %p224 = scmp.lt.s32.totalorder %s12, 3
    %p225 = pnand %p223, %p224
    %p226 = pneg %p225
    // Predicated region
    $region41: #{forward.17} parent=5 // pred_check
      _
    $region42: #{forward.17} parent=5 // pred_check_branch
      %228 = sbr.rel (%p225) target = $region44
    $region43: #{forward.17} parent=5 // pred_region
      %s229 = ssub.s32 %s12, 1
      %s230 = smul.u32 16, %s17
      %p231 = scmp.lt.s32.totalorder %s230, 31
      %s232 = scalar_select %p231, %s230, 31
      %s233 = smul.addr %s232, 4
      %s234 = scalar_lea.vmem %s0, %s233
      %p235 = pneg %p38
      %p236 = pneg %p35
      %p237 = pneg %p59
      %p238 = pneg %p56
      %p239 = pneg %p80
      %p240 = pneg %p77
      %s241 = smul.u32 16, %s17
      %p242 = scmp.lt.s32.totalorder %s241, 31
      %s243 = scalar_select %p242, %s241, 31
      %s244 = smul.addr %s243, 4
      %s245 = scalar_lea.vmem %s3, %s244
      %p246 = pneg %p106
      %p247 = pneg %p103
      %p248 = pneg %p127
      %p249 = pneg %p124
      %p250 = pneg %p148
      %p251 = pneg %p145
      %p252 = pneg %p174
      %p253 = pneg %p171
      %s254 = smul.u32 16, %s17
      %p255 = scmp.lt.s32.totalorder %s254, 31
      %s256 = scalar_select %p255, %s254, 31
      %s257 = smul.addr %s256, 4
      %s258 = scalar_lea.vmem %s6, %s257
      %s259 = smul.u32 16, %s17
      %p260 = scmp.lt.s32.totalorder %s259, 31
      %s261 = scalar_select %p260, %s259, 31
      %s262 = smul.addr %s261, 4
      %s263 = scalar_lea.vmem %s0, %s262
      %s264 = smul.u32 16, %s17
      %s265 = smul.u32 16, %s17
      %p266 = scmp.lt.s32.totalorder %s265, 31
      %s267 = scalar_select %p266, %s265, 31
      %s268 = smul.addr %s267, 4
      %s269 = scalar_lea.vmem %s3, %s268
      %s270 = smul.u32 16, %s17
      %s271 = smul.u32 16, %s17
      %p272 = scmp.lt.s32.totalorder %s271, 31
      %s273 = scalar_select %p272, %s271, 31
      %s274 = smul.addr %s273, 4
      %s275 = scalar_lea.vmem %s6, %s274
      %s276 = smul.u32 16, %s17
      %v277 = vld [vmem:[%s263] sm:$0xf]
      %v278 = vld [vmem:[%s263 + $0x4] sm:$0xf]
      %v279 = vld [vmem:[%s263 + $0x8] sm:$0xf]
      %v280 = vld [vmem:[%s263 + $0xc] sm:$0xf]
      %v281 = vld [vmem:[%s263 + $0x10] sm:$0xf]
      %v282 = vld [vmem:[%s263 + $0x14] sm:$0xf]
      %v283 = vld [vmem:[%s263 + $0x18] sm:$0xf]
      %v284 = vld [vmem:[%s263 + $0x1c] sm:$0xf]
      %v285 = vld [vmem:[%s263 + $0x20] sm:$0xf]
      %v286 = vld [vmem:[%s263 + $0x24] sm:$0xf]
      %v287 = vld [vmem:[%s263 + $0x28] sm:$0xf]
      %v288 = vld [vmem:[%s263 + $0x2c] sm:$0xf]
      %v289 = vld [vmem:[%s263 + $0x30] sm:$0xf]
      %v290 = vld [vmem:[%s263 + $0x34] sm:$0xf]
      %v291 = vld [vmem:[%s263 + $0x38] sm:$0xf]
      %v292 = vld [vmem:[%s263 + $0x3c] sm:$0xf]
      %v293 = vld [vmem:[%s1] sm:$0xf]
      %v294 = vld [vmem:[%s1 + $0x4] sm:$0xf]
      %v295 = vld [vmem:[%s1 + $0x8] sm:$0xf]
      %v296 = vld [vmem:[%s1 + $0xc] sm:$0xf]
      %v297 = vld [vmem:[%s1 + $0x10] sm:$0xf]
      %v298 = vld [vmem:[%s1 + $0x14] sm:$0xf]
      %v299 = vld [vmem:[%s1 + $0x18] sm:$0xf]
      %v300 = vld [vmem:[%s1 + $0x1c] sm:$0xf]
      %v301 = vld [vmem:[%s1 + $0x20] sm:$0xf]
      %v302 = vld [vmem:[%s1 + $0x24] sm:$0xf]
      %v303 = vld [vmem:[%s1 + $0x28] sm:$0xf]
      %v304 = vld [vmem:[%s1 + $0x2c] sm:$0xf]
      %v305 = vld [vmem:[%s1 + $0x30] sm:$0xf]
      %v306 = vld [vmem:[%s1 + $0x34] sm:$0xf]
      %v307 = vld [vmem:[%s1 + $0x38] sm:$0xf]
      %v308 = vld [vmem:[%s1 + $0x3c] sm:$0xf]
      %v309 = vld [vmem:[%s2] sm:$0x1]
      %v311 = vperm.slane %v309, 0
      %v329 = vunpack.c.l.b16 %v277
      %v330 = vunpack.c.l.b16 %v278
      %v331 = vunpack.c.l.b16 %v279
      %v332 = vunpack.c.l.b16 %v280
      %v333 = vunpack.c.l.b16 %v281
      %v334 = vunpack.c.l.b16 %v282
      %v335 = vunpack.c.l.b16 %v283
      %v336 = vunpack.c.l.b16 %v284
      %v337 = vunpack.c.l.b16 %v285
      %v338 = vunpack.c.l.b16 %v286
      %v339 = vunpack.c.l.b16 %v287
      %v340 = vunpack.c.l.b16 %v288
      %v341 = vunpack.c.l.b16 %v289
      %v342 = vunpack.c.l.b16 %v290
      %v343 = vunpack.c.l.b16 %v291
      %v344 = vunpack.c.l.b16 %v292
      %v345 = vpack.c.b16 %v330, %v329
      %v346 = vpack.c.b16 %v332, %v331
      %v347 = vpack.c.b16 %v334, %v333
      %v348 = vpack.c.b16 %v336, %v335
      %v349 = vpack.c.b16 %v338, %v337
      %v350 = vpack.c.b16 %v340, %v339
      %v351 = vpack.c.b16 %v342, %v341
      %v352 = vpack.c.b16 %v344, %v343
      %v377 = vunpack.c.l.b16 %v293
      %v378 = vunpack.c.l.b16 %v294
      %v379 = vunpack.c.l.b16 %v295
      %v380 = vunpack.c.l.b16 %v296
      %v381 = vunpack.c.l.b16 %v297
      %v382 = vunpack.c.l.b16 %v298
      %v383 = vunpack.c.l.b16 %v299
      %v384 = vunpack.c.l.b16 %v300
      %v385 = vunpack.c.l.b16 %v301
      %v386 = vunpack.c.l.b16 %v302
      %v387 = vunpack.c.l.b16 %v303
      %v388 = vunpack.c.l.b16 %v304
      %v389 = vunpack.c.l.b16 %v305
      %v390 = vunpack.c.l.b16 %v306
      %v391 = vunpack.c.l.b16 %v307
      %v392 = vunpack.c.l.b16 %v308
      %v393 = vpack.c.b16 %v378, %v377
      %v394 = vpack.c.b16 %v380, %v379
      %v395 = vpack.c.b16 %v382, %v381
      %v396 = vpack.c.b16 %v384, %v383
      %v397 = vpack.c.b16 %v386, %v385
      %v398 = vpack.c.b16 %v388, %v387
      %v399 = vpack.c.b16 %v390, %v389
      %v400 = vpack.c.b16 %v392, %v391
      %409 = vmatpush.bf16.msra.mxu0 %v400
      %410 = vmatpush.bf16.msra.mxu0 %v399
      %411 = vmatpush.bf16.msra.mxu0 %v398
      %412 = vmatpush.bf16.msra.mxu0 %v397
      %413 = vmatpush.bf16.msra.mxu0 %v396
      %414 = vmatpush.bf16.msra.mxu0 %v395
      %415 = vmatpush.bf16.msra.mxu0 %v394
      %416 = vmatpush.bf16.msra.mxu0 %v393
      %417 = vmatmul.bf16.gmra.mxu0 %v345
      %v418 = vpop.f32.mrf.mxu0
      %v419 = vadd.f32 %v311, %v418
      %v420 = vpop.f32.mrf.mxu0
      %v421 = vadd.f32 %v311, %v420
      %422 = vmatmul.bf16.gmra.mxu0 %v346
      %v423 = vpop.f32.mrf.mxu0
      %v424 = vadd.f32 %v311, %v423
      %v425 = vpop.f32.mrf.mxu0
      %v426 = vadd.f32 %v311, %v425
      %427 = vmatmul.bf16.gmra.mxu0 %v347
      %v428 = vpop.f32.mrf.mxu0
      %v429 = vadd.f32 %v311, %v428
      %v430 = vpop.f32.mrf.mxu0
      %v431 = vadd.f32 %v311, %v430
      %432 = vmatmul.bf16.gmra.mxu0 %v348
      %v433 = vpop.f32.mrf.mxu0
      %v434 = vadd.f32 %v311, %v433
      %v435 = vpop.f32.mrf.mxu0
      %v436 = vadd.f32 %v311, %v435
      %437 = vmatmul.bf16.gmra.mxu0 %v349
      %v438 = vpop.f32.mrf.mxu0
      %v439 = vadd.f32 %v311, %v438
      %v440 = vpop.f32.mrf.mxu0
      %v441 = vadd.f32 %v311, %v440
      %442 = vmatmul.bf16.gmra.mxu0 %v350
      %v443 = vpop.f32.mrf.mxu0
      %v444 = vadd.f32 %v311, %v443
      %v445 = vpop.f32.mrf.mxu0
      %v446 = vadd.f32 %v311, %v445
      %447 = vmatmul.bf16.gmra.mxu0 %v351
      %v448 = vpop.f32.mrf.mxu0
      %v449 = vadd.f32 %v311, %v448
      %v450 = vpop.f32.mrf.mxu0
      %v451 = vadd.f32 %v311, %v450
      %452 = vmatmul.bf16.gmra.mxu0 %v352
      %v453 = vpop.f32.mrf.mxu0
      %v454 = vadd.f32 %v311, %v453
      %v455 = vpop.f32.mrf.mxu0
      %v456 = vadd.f32 %v311, %v455
      %457 = vdwg.mxu0
      %v458 = vld [vmem:[%s269] sm:$0xf]
      %v459 = vld [vmem:[%s269 + $0x4] sm:$0xf]
      %v460 = vld [vmem:[%s269 + $0x8] sm:$0xf]
      %v461 = vld [vmem:[%s269 + $0xc] sm:$0xf]
      %v462 = vld [vmem:[%s269 + $0x10] sm:$0xf]
      %v463 = vld [vmem:[%s269 + $0x14] sm:$0xf]
      %v464 = vld [vmem:[%s269 + $0x18] sm:$0xf]
      %v465 = vld [vmem:[%s269 + $0x1c] sm:$0xf]
      %v466 = vld [vmem:[%s269 + $0x20] sm:$0xf]
      %v467 = vld [vmem:[%s269 + $0x24] sm:$0xf]
      %v468 = vld [vmem:[%s269 + $0x28] sm:$0xf]
      %v469 = vld [vmem:[%s269 + $0x2c] sm:$0xf]
      %v470 = vld [vmem:[%s269 + $0x30] sm:$0xf]
      %v471 = vld [vmem:[%s269 + $0x34] sm:$0xf]
      %v472 = vld [vmem:[%s269 + $0x38] sm:$0xf]
      %v473 = vld [vmem:[%s269 + $0x3c] sm:$0xf]
      %v474 = vld [vmem:[%s4] sm:$0xf]
      %v475 = vld [vmem:[%s4 + $0x4] sm:$0xf]
      %v476 = vld [vmem:[%s4 + $0x8] sm:$0xf]
      %v477 = vld [vmem:[%s4 + $0xc] sm:$0xf]
      %v478 = vld [vmem:[%s4 + $0x10] sm:$0xf]
      %v479 = vld [vmem:[%s4 + $0x14] sm:$0xf]
      %v480 = vld [vmem:[%s4 + $0x18] sm:$0xf]
      %v481 = vld [vmem:[%s4 + $0x1c] sm:$0xf]
      %v482 = vld [vmem:[%s4 + $0x20] sm:$0xf]
      %v483 = vld [vmem:[%s4 + $0x24] sm:$0xf]
      %v484 = vld [vmem:[%s4 + $0x28] sm:$0xf]
      %v485 = vld [vmem:[%s4 + $0x2c] sm:$0xf]
      %v486 = vld [vmem:[%s4 + $0x30] sm:$0xf]
      %v487 = vld [vmem:[%s4 + $0x34] sm:$0xf]
      %v488 = vld [vmem:[%s4 + $0x38] sm:$0xf]
      %v489 = vld [vmem:[%s4 + $0x3c] sm:$0xf]
      %v506 = vunpack.c.l.b16 %v458
      %v507 = vunpack.c.l.b16 %v459
      %v508 = vunpack.c.l.b16 %v460
      %v509 = vunpack.c.l.b16 %v461
      %v510 = vunpack.c.l.b16 %v462
      %v511 = vunpack.c.l.b16 %v463
      %v512 = vunpack.c.l.b16 %v464
      %v513 = vunpack.c.l.b16 %v465
      %v514 = vunpack.c.l.b16 %v466
      %v515 = vunpack.c.l.b16 %v467
      %v516 = vunpack.c.l.b16 %v468
      %v517 = vunpack.c.l.b16 %v469
      %v518 = vunpack.c.l.b16 %v470
      %v519 = vunpack.c.l.b16 %v471
      %v520 = vunpack.c.l.b16 %v472
      %v521 = vunpack.c.l.b16 %v473
      %v522 = vpack.c.b16 %v507, %v506
      %v523 = vpack.c.b16 %v509, %v508
      %v524 = vpack.c.b16 %v511, %v510
      %v525 = vpack.c.b16 %v513, %v512
      %v526 = vpack.c.b16 %v515, %v514
      %v527 = vpack.c.b16 %v517, %v516
      %v528 = vpack.c.b16 %v519, %v518
      %v529 = vpack.c.b16 %v521, %v520
      %v554 = vunpack.c.l.b16 %v474
      %v555 = vunpack.c.l.b16 %v475
      %v556 = vunpack.c.l.b16 %v476
      %v557 = vunpack.c.l.b16 %v477
      %v558 = vunpack.c.l.b16 %v478
      %v559 = vunpack.c.l.b16 %v479
      %v560 = vunpack.c.l.b16 %v480
      %v561 = vunpack.c.l.b16 %v481
      %v562 = vunpack.c.l.b16 %v482
      %v563 = vunpack.c.l.b16 %v483
      %v564 = vunpack.c.l.b16 %v484
      %v565 = vunpack.c.l.b16 %v485
      %v566 = vunpack.c.l.b16 %v486
      %v567 = vunpack.c.l.b16 %v487
      %v568 = vunpack.c.l.b16 %v488
      %v569 = vunpack.c.l.b16 %v489
      %v570 = vpack.c.b16 %v555, %v554
      %v571 = vpack.c.b16 %v557, %v556
      %v572 = vpack.c.b16 %v559, %v558
      %v573 = vpack.c.b16 %v561, %v560
      %v574 = vpack.c.b16 %v563, %v562
      %v575 = vpack.c.b16 %v565, %v564
      %v576 = vpack.c.b16 %v567, %v566
      %v577 = vpack.c.b16 %v569, %v568
      %586 = vmatpush.bf16.msra.mxu0 %v577
      %587 = vmatpush.bf16.msra.mxu0 %v576
      %588 = vmatpush.bf16.msra.mxu0 %v575
      %589 = vmatpush.bf16.msra.mxu0 %v574
      %590 = vmatpush.bf16.msra.mxu0 %v573
      %591 = vmatpush.bf16.msra.mxu0 %v572
      %592 = vmatpush.bf16.msra.mxu0 %v571
      %593 = vmatpush.bf16.msra.mxu0 %v570
      %594 = vmatmul.bf16.gmra.mxu0 %v522
      %v595 = vpop.f32.mrf.mxu0
      %v596 = vadd.f32 0.0, %v595
      %v597 = vpop.f32.mrf.mxu0
      %v598 = vadd.f32 0.0, %v597
      %599 = vmatmul.bf16.gmra.mxu0 %v523
      %v600 = vpop.f32.mrf.mxu0
      %v601 = vadd.f32 0.0, %v600
      %v602 = vpop.f32.mrf.mxu0
      %v603 = vadd.f32 0.0, %v602
      %604 = vmatmul.bf16.gmra.mxu0 %v524
      %v605 = vpop.f32.mrf.mxu0
      %v606 = vadd.f32 0.0, %v605
      %v607 = vpop.f32.mrf.mxu0
      %v608 = vadd.f32 0.0, %v607
      %609 = vmatmul.bf16.gmra.mxu0 %v525
      %v610 = vpop.f32.mrf.mxu0
      %v611 = vadd.f32 0.0, %v610
      %v612 = vpop.f32.mrf.mxu0
      %v613 = vadd.f32 0.0, %v612
      %614 = vmatmul.bf16.gmra.mxu0 %v526
      %v615 = vpop.f32.mrf.mxu0
      %v616 = vadd.f32 0.0, %v615
      %v617 = vpop.f32.mrf.mxu0
      %v618 = vadd.f32 0.0, %v617
      %619 = vmatmul.bf16.gmra.mxu0 %v527
      %v620 = vpop.f32.mrf.mxu0
      %v621 = vadd.f32 0.0, %v620
      %v622 = vpop.f32.mrf.mxu0
      %v623 = vadd.f32 0.0, %v622
      %624 = vmatmul.bf16.gmra.mxu0 %v528
      %v625 = vpop.f32.mrf.mxu0
      %v626 = vadd.f32 0.0, %v625
      %v627 = vpop.f32.mrf.mxu0
      %v628 = vadd.f32 0.0, %v627
      %629 = vmatmul.bf16.gmra.mxu0 %v529
      %v630 = vpop.f32.mrf.mxu0
      %v631 = vadd.f32 0.0, %v630
      %v632 = vpop.f32.mrf.mxu0
      %v633 = vadd.f32 0.0, %v632
      %634 = vdwg.mxu0
      %v635 = vadd.f32 %v419, %v596
      %v636 = vadd.f32 %v421, %v598
      %v637 = vadd.f32 %v424, %v601
      %v638 = vadd.f32 %v426, %v603
      %v639 = vadd.f32 %v429, %v606
      %v640 = vadd.f32 %v431, %v608
      %v641 = vadd.f32 %v434, %v611
      %v642 = vadd.f32 %v436, %v613
      %v643 = vadd.f32 %v439, %v616
      %v644 = vadd.f32 %v441, %v618
      %v645 = vadd.f32 %v444, %v621
      %v646 = vadd.f32 %v446, %v623
      %v647 = vadd.f32 %v449, %v626
      %v648 = vadd.f32 %v451, %v628
      %v649 = vadd.f32 %v454, %v631
      %v650 = vadd.f32 %v456, %v633
      %v651 = vld [vmem:[%s5] sm:$0x1]
      %v653 = vperm.slane %v651, 0
      %v655 = vadd.f32 %v635, %v653
      %v656 = vadd.f32 %v636, %v653
      %v657 = vadd.f32 %v637, %v653
      %v658 = vadd.f32 %v638, %v653
      %v659 = vadd.f32 %v639, %v653
      %v660 = vadd.f32 %v640, %v653
      %v661 = vadd.f32 %v641, %v653
      %v662 = vadd.f32 %v642, %v653
      %v663 = vadd.f32 %v643, %v653
      %v664 = vadd.f32 %v644, %v653
      %v665 = vadd.f32 %v645, %v653
      %v666 = vadd.f32 %v646, %v653
      %v667 = vadd.f32 %v647, %v653
      %v668 = vadd.f32 %v648, %v653
      %v669 = vadd.f32 %v649, %v653
      %v670 = vadd.f32 %v650, %v653
      %v671 = vmax.f32 %v655, 0.0
      %v672 = vmax.f32 %v656, 0.0
      %v673 = vmax.f32 %v657, 0.0
      %v674 = vmax.f32 %v658, 0.0
      %v675 = vmax.f32 %v659, 0.0
      %v676 = vmax.f32 %v660, 0.0
      %v677 = vmax.f32 %v661, 0.0
      %v678 = vmax.f32 %v662, 0.0
      %v679 = vmax.f32 %v663, 0.0
      %v680 = vmax.f32 %v664, 0.0
      %v681 = vmax.f32 %v665, 0.0
      %v682 = vmax.f32 %v666, 0.0
      %v683 = vmax.f32 %v667, 0.0
      %v684 = vmax.f32 %v668, 0.0
      %v685 = vmax.f32 %v669, 0.0
      %v686 = vmax.f32 %v670, 0.0
      %v687 = vpack.c.bf16 %v671, %v671
      %v688 = vpack.c.bf16 %v672, %v672
      %v689 = vpack.c.bf16 %v673, %v673
      %v690 = vpack.c.bf16 %v674, %v674
      %v691 = vpack.c.bf16 %v675, %v675
      %v692 = vpack.c.bf16 %v676, %v676
      %v693 = vpack.c.bf16 %v677, %v677
      %v694 = vpack.c.bf16 %v678, %v678
      %v695 = vpack.c.bf16 %v679, %v679
      %v696 = vpack.c.bf16 %v680, %v680
      %v697 = vpack.c.bf16 %v681, %v681
      %v698 = vpack.c.bf16 %v682, %v682
      %v699 = vpack.c.bf16 %v683, %v683
      %v700 = vpack.c.bf16 %v684, %v684
      %v701 = vpack.c.bf16 %v685, %v685
      %v702 = vpack.c.bf16 %v686, %v686
      %703 = vst [vmem:[%s275] sm:$0xf] %v687
      %704 = vst [vmem:[%s275 + $0x4] sm:$0xf] %v688
      %705 = vst [vmem:[%s275 + $0x8] sm:$0xf] %v689
      %706 = vst [vmem:[%s275 + $0xc] sm:$0xf] %v690
      %707 = vst [vmem:[%s275 + $0x10] sm:$0xf] %v691
      %708 = vst [vmem:[%s275 + $0x14] sm:$0xf] %v692
      %709 = vst [vmem:[%s275 + $0x18] sm:$0xf] %v693
      %710 = vst [vmem:[%s275 + $0x1c] sm:$0xf] %v694
      %711 = vst [vmem:[%s275 + $0x20] sm:$0xf] %v695
      %712 = vst [vmem:[%s275 + $0x24] sm:$0xf] %v696
      %713 = vst [vmem:[%s275 + $0x28] sm:$0xf] %v697
      %714 = vst [vmem:[%s275 + $0x2c] sm:$0xf] %v698
      %715 = vst [vmem:[%s275 + $0x30] sm:$0xf] %v699
      %716 = vst [vmem:[%s275 + $0x34] sm:$0xf] %v700
      %717 = vst [vmem:[%s275 + $0x38] sm:$0xf] %v701
      %718 = vst [vmem:[%s275 + $0x3c] sm:$0xf] %v702
      %s719 = smul.u32 16, %s17
      %p720 = scmp.lt.s32.totalorder %s719, 31
      %s721 = scalar_select %p720, %s719, 31
      %s722 = smul.addr %s721, 4
      %s723 = scalar_lea.vmem %s6, %s722
      // Predicated region
      $region45: #{forward.17} parent=43 // pred_check
        %p724 = pneg %p171
      $region46: #{forward.17} parent=43 // pred_check_branch
        %726 = sbr.rel (%p724) target = $region48
      $region47: #{forward.17} parent=43 // pred_region
        %s727 = smul.u32 16, %s17
      $region48: #{forward.17} parent=43 // pred_fallthru
        _
    $region44: #{forward.17} parent=5 // pred_fallthru
      _
    %p728 = scmp.le.s32.totalorder 2, %s12
    // Predicated region
    $region49: #{forward.17} parent=5 // pred_check
      %p729 = pneg %p728
    $region50: #{forward.17} parent=5 // pred_check_branch
      %731 = sbr.rel (%p729) target = $region52
    $region51: #{forward.17} parent=5 // pred_region
      %s732 = ssub.s32 %s12, 2
      // Predicated region
      $region53: #{forward.17} parent=51 // pred_check
        %p733 = pneg %p177
      $region54: #{forward.17} parent=51 // pred_check_branch
        %735 = sbr.rel (%p733) target = $region56
      $region55: #{forward.17} parent=51 // pred_region
        %s736 = smul.u32 16, %s18
        %p737 = scmp.lt.s32.totalorder %s736, 31
        %s738 = scalar_select %p737, %s736, 31
        %s739 = smul.addr %s738, 4
        %s740 = scalar_lea.vmem %s6, %s739
      $region56: #{forward.17} parent=51 // pred_fallthru
        _
    $region52: #{forward.17} parent=5 // pred_fallthru
      _
  $region6: #{forward.17} parent=0 // loop_footer
    %s16 = sadd.s32 1, %s12
  $region7: #{forward.17} parent=0 // loop_footer_branch
    %11 = sbr.rel target = $region3
  $region8: #{forward.17} parent=0 // loop_exit
    _

// kernel: forward.16
$region0: #{forward.16}
  #allocation0 [shape = 'u32[]', space=smem, size = 0x4, offset = 0x4, fixed_abs, tag = 'smem constant byte address 0x4 - core index']
  #allocation1 [shape = 'u32[72,128]{1,0:T(1,128)}', space=vmem, size = 0x9000, scoped, tag = 'internal scratch']
  %s0 = inlined_call_operand.vmem [shape: bf16[256,1152], index: 0, kind: input, shape index: {}]
  %s1 = inlined_call_operand.vmem [shape: bf16[1152,128], index: 1, kind: input, shape index: {}]
  %s2 = inlined_call_operand.vmem [shape: f32[1,128], index: 2, kind: input, shape index: {}]
  %s3 = inlined_call_operand.vmem [shape: bf16[256,128], index: 3, kind: output, shape index: {}]
  %s4 = sld [smem:[#allocation0]]
  $region45: #{forward.16} parent=0
    _
  %s6 = ssub.s32 1, %s4
  %s7 = scalar_select 0, %s6, %s4
  loop: start=0, step=1, limit=4
  $region2: #{forward.16} parent=0 // loop_pre_header
    _
  $region3: #{forward.16} parent=0 // loop_header
    %s9 = sphi 0, %s13
    %p10 = scmp.ge.s32.totalorder %s9, 4
    %s19 = sphi 0, %s21
    %s22 = sphi 0, %s19
    %s23 = sphi 0, %s22
    %s39 = sphi 0, %s23
    %s43 = sphi 0, %s43
    %s45 = sphi 0, %s43
    %s46 = sphi 0, %s45
    %s60 = sphi 0, %s46
    %s64 = sphi 0, %s64
    %s66 = sphi 0, %s64
    %s67 = sphi 0, %s66
    %s81 = sphi 0, %s67
    %s87 = sphi 0, %s89
    %s90 = sphi 0, %s87
    %s91 = sphi 0, %s90
    %s107 = sphi 0, %s91
  $region4: #{forward.16} parent=0 // loop_header_branch
    %12 = sbr.rel (%p10) target = $region8
  $region5: #{forward.16} parent=0 // loop_body
    %s14 = ssub.s32 %s9, 1
    %s15 = ssub.s32 %s9, 2
    %s16 = sadd.s32 %s9, 1
    %s17 = ssub.s32 %s9, %s16
    %p18 = scmp.eq.s32.totalorder %s17, 0
    %s20 = sadd.s32 %s19, 1
    %s21 = scalar_select %p18, %s19, %s20
    %p24 = pneg %p18
    %p25 = scmp.eq.s32.totalorder %s9, 1
    %p26 = por %p24, %p25
    %p27 = scmp.ne.s32.totalorder %s19, %s22
    %p28 = scmp.eq.s32.totalorder %s9, 0
    %p29 = por %p27, %p28
    %p30 = scmp.ne.s32.totalorder %s19, %s22
    %p31 = scmp.eq.s32.totalorder %s14, 1
    %p32 = por %p30, %p31
    %p33 = scmp.ne.s32.totalorder %s22, %s23
    %p34 = scmp.eq.s32.totalorder %s14, 0
    %p35 = por %p33, %p34
    %p36 = scmp.ne.s32.totalorder %s22, %s23
    %p37 = scmp.eq.s32.totalorder %s15, 1
    %p38 = por %p36, %p37
    %p40 = scmp.ne.s32.totalorder %s23, %s39
    %p41 = scmp.eq.s32.totalorder %s15, 0
    %p42 = por %p40, %p41
    %s44 = sadd.s32 %s43, 1
    %p47 = scmp.eq.s32.totalorder %s9, 1
    %p48 = scmp.ne.s32.totalorder %s43, %s45
    %p49 = scmp.eq.s32.totalorder %s9, 0
    %p50 = por %p48, %p49
    %p51 = scmp.ne.s32.totalorder %s43, %s45
    %p52 = scmp.eq.s32.totalorder %s14, 1
    %p53 = por %p51, %p52
    %p54 = scmp.ne.s32.totalorder %s45, %s46
    %p55 = scmp.eq.s32.totalorder %s14, 0
    %p56 = por %p54, %p55
    %p57 = scmp.ne.s32.totalorder %s45, %s46
    %p58 = scmp.eq.s32.totalorder %s15, 1
    %p59 = por %p57, %p58
    %p61 = scmp.ne.s32.totalorder %s46, %s60
    %p62 = scmp.eq.s32.totalorder %s15, 0
    %p63 = por %p61, %p62
    %s65 = sadd.s32 %s64, 1
    %p68 = scmp.eq.s32.totalorder %s9, 1
    %p69 = scmp.ne.s32.totalorder %s64, %s66
    %p70 = scmp.eq.s32.totalorder %s9, 0
    %p71 = por %p69, %p70
    %p72 = scmp.ne.s32.totalorder %s64, %s66
    %p73 = scmp.eq.s32.totalorder %s14, 1
    %p74 = por %p72, %p73
    %p75 = scmp.ne.s32.totalorder %s66, %s67
    %p76 = scmp.eq.s32.totalorder %s14, 0
    %p77 = por %p75, %p76
    %p78 = scmp.ne.s32.totalorder %s66, %s67
    %p79 = scmp.eq.s32.totalorder %s15, 1
    %p80 = por %p78, %p79
    %p82 = scmp.ne.s32.totalorder %s67, %s81
    %p83 = scmp.eq.s32.totalorder %s15, 0
    %p84 = por %p82, %p83
    %s85 = ssub.s32 %s9, %s16
    %p86 = scmp.eq.s32.totalorder %s85, 0
    %s88 = sadd.s32 %s87, 1
    %s89 = scalar_select %p86, %s87, %s88
    %p92 = pneg %p86
    %p93 = scmp.eq.s32.totalorder %s9, 1
    %p94 = por %p92, %p93
    %p95 = scmp.ne.s32.totalorder %s87, %s90
    %p96 = scmp.eq.s32.totalorder %s9, 0
    %p97 = por %p95, %p96
    %p98 = scmp.ne.s32.totalorder %s87, %s90
    %p99 = scmp.eq.s32.totalorder %s14, 1
    %p100 = por %p98, %p99
    %p101 = scmp.ne.s32.totalorder %s90, %s91
    %p102 = scmp.eq.s32.totalorder %s14, 0
    %p103 = por %p101, %p102
    %p104 = scmp.ne.s32.totalorder %s90, %s91
    %p105 = scmp.eq.s32.totalorder %s15, 1
    %p106 = por %p104, %p105
    %p108 = scmp.ne.s32.totalorder %s91, %s107
    %p109 = scmp.eq.s32.totalorder %s15, 0
    %p110 = por %p108, %p109
    %p111 = scmp.le.s32.totalorder 1, %s9
    %p112 = scmp.lt.s32.totalorder %s9, 3
    %p113 = pnand %p111, %p112
    %p114 = pneg %p113
    // Predicated region
    $region9: #{forward.16} parent=5 // pred_check
      _
    $region10: #{forward.16} parent=5 // pred_check_branch
      %116 = sbr.rel (%p113) target = $region12
    $region11: #{forward.16} parent=5 // pred_region
      %s117 = ssub.s32 %s9, 1
      // Predicated region
      $region13: #{forward.16} parent=11 // pred_check
        %p118 = pneg %p56
      $region14: #{forward.16} parent=11 // pred_check_branch
        %120 = sbr.rel (%p118) target = $region16
      $region15: #{forward.16} parent=11 // pred_region
        _
      $region16: #{forward.16} parent=11 // pred_fallthru
        _
      // Predicated region
      $region17: #{forward.16} parent=11 // pred_check
        %p121 = pneg %p77
      $region18: #{forward.16} parent=11 // pred_check_branch
        %123 = sbr.rel (%p121) target = $region20
      $region19: #{forward.16} parent=11 // pred_region
        _
      $region20: #{forward.16} parent=11 // pred_fallthru
        _
    $region12: #{forward.16} parent=5 // pred_fallthru
      _
    %p124 = scmp.lt.s32.totalorder %s9, 2
    // Predicated region
    $region21: #{forward.16} parent=5 // pred_check
      %p125 = pneg %p124
    $region22: #{forward.16} parent=5 // pred_check_branch
      %127 = sbr.rel (%p125) target = $region24
    $region23: #{forward.16} parent=5 // pred_region
      // Predicated region
      $region25: #{forward.16} parent=23 // pred_check
        %p128 = pneg %p29
      $region26: #{forward.16} parent=23 // pred_check_branch
        %130 = sbr.rel (%p128) target = $region28
      $region27: #{forward.16} parent=23 // pred_region
        %s131 = smul.u32 16, %s9
        %p132 = scmp.lt.s32.totalorder %s131, 31
        %s133 = scalar_select %p132, %s131, 31
        %s134 = smul.addr %s133, 9
        %s135 = smul.addr %s134, 4
        %s136 = scalar_lea.vmem %s0, %s135
        %s137 = smul.u32 16, %s9
      $region28: #{forward.16} parent=23 // pred_fallthru
        _
    $region24: #{forward.16} parent=5 // pred_fallthru
      _
    %p138 = scmp.le.s32.totalorder 1, %s9
    %p139 = scmp.lt.s32.totalorder %s9, 3
    %p140 = pnand %p138, %p139
    %p141 = pneg %p140
    // Predicated region
    $region29: #{forward.16} parent=5 // pred_check
      _
    $region30: #{forward.16} parent=5 // pred_check_branch
      %143 = sbr.rel (%p140) target = $region32
    $region31: #{forward.16} parent=5 // pred_region
      %s144 = ssub.s32 %s9, 1
      %s145 = smul.u32 16, %s14
      %p146 = scmp.lt.s32.totalorder %s145, 31
      %s147 = scalar_select %p146, %s145, 31
      %s148 = smul.addr %s147, 9
      %s149 = smul.addr %s148, 4
      %s150 = scalar_lea.vmem %s0, %s149
      %p151 = pneg %p35
      %p152 = pneg %p32
      %p153 = pneg %p56
      %p154 = pneg %p53
      %p155 = pneg %p77
      %p156 = pneg %p74
      %p157 = pneg %p103
      %p158 = pneg %p100
      %s159 = smul.u32 16, %s14
      %p160 = scmp.lt.s32.totalorder %s159, 31
      %s161 = scalar_select %p160, %s159, 31
      %s162 = smul.addr %s161, 4
      %s163 = scalar_lea.vmem %s3, %s162
      %s164 = smul.u32 16, %s14
      %p165 = scmp.lt.s32.totalorder %s164, 31
      %s166 = scalar_select %p165, %s164, 31
      %s167 = smul.addr %s166, 9
      %s168 = smul.addr %s167, 4
      %s169 = scalar_lea.vmem %s0, %s168
      %s170 = smul.u32 16, %s14
      %s171 = smul.u32 16, %s14
      %p172 = scmp.lt.s32.totalorder %s171, 31
      %s173 = scalar_select %p172, %s171, 31
      %s174 = smul.addr %s173, 4
      %s175 = scalar_lea.vmem %s3, %s174
      %s176 = smul.u32 16, %s14
      %v177 = vld [vmem:[%s169] sm:$0xff]
      %v178 = vld [vmem:[%s169 + $0x8] sm:$0xff]
      %v179 = vld [vmem:[%s169 + $0x10] sm:$0xff]
      %v180 = vld [vmem:[%s169 + $0x18] sm:$0xff]
      %v181 = vld [vmem:[%s169 + $0x20] sm:$0xf]
      %v182 = vld [vmem:[%s169 + $0x24] sm:$0xff]
      %v183 = vld [vmem:[%s169 + $0x2c] sm:$0xff]
      %v184 = vld [vmem:[%s169 + $0x34] sm:$0xff]
      %v185 = vld [vmem:[%s169 + $0x3c] sm:$0xff]
      %v186 = vld [vmem:[%s169 + $0x44] sm:$0xf]
      %v187 = vld [vmem:[%s169 + $0x48] sm:$0xff]
      %v188 = vld [vmem:[%s169 + $0x50] sm:$0xff]
      %v189 = vld [vmem:[%s169 + $0x58] sm:$0xff]
      %v190 = vld [vmem:[%s169 + $0x60] sm:$0xff]
      %v191 = vld [vmem:[%s169 + $0x68] sm:$0xf]
      %v192 = vld [vmem:[%s169 + $0x6c] sm:$0xff]
      %v193 = vld [vmem:[%s169 + $0x74] sm:$0xff]
      %v194 = vld [vmem:[%s169 + $0x7c] sm:$0xff]
      %v195 = vld [vmem:[%s169 + $0x84] sm:$0xff]
      %v196 = vld [vmem:[%s169 + $0x8c] sm:$0xf]
      %v197 = vld [vmem:[%s169 + $0x90] sm:$0xff]
      %v198 = vld [vmem:[%s169 + $0x98] sm:$0xff]
      %v199 = vld [vmem:[%s169 + $0xa0] sm:$0xff]
      %v200 = vld [vmem:[%s169 + $0xa8] sm:$0xff]
      %v201 = vld [vmem:[%s169 + $0xb0] sm:$0xf]
      %v202 = vld [vmem:[%s169 + $0xb4] sm:$0xff]
      %v203 = vld [vmem:[%s169 + $0xbc] sm:$0xff]
      %v204 = vld [vmem:[%s169 + $0xc4] sm:$0xff]
      %v205 = vld [vmem:[%s169 + $0xcc] sm:$0xff]
      %v206 = vld [vmem:[%s169 + $0xd4] sm:$0xf]
      %v207 = vld [vmem:[%s169 + $0xd8] sm:$0xff]
      %v208 = vld [vmem:[%s169 + $0xe0] sm:$0xff]
      %v209 = vld [vmem:[%s169 + $0xe8] sm:$0xff]
      %v210 = vld [vmem:[%s169 + $0xf0] sm:$0xff]
      %v211 = vld [vmem:[%s169 + $0xf8] sm:$0xf]
      %v212 = vld [vmem:[%s169 + $0xfc] sm:$0xff]
      %v213 = vld [vmem:[%s169 + $0x104] sm:$0xff]
      %v214 = vld [vmem:[%s169 + $0x10c] sm:$0xff]
      %v215 = vld [vmem:[%s169 + $0x114] sm:$0xff]
      %v216 = vld [vmem:[%s169 + $0x11c] sm:$0xf]
      %v217 = vld [vmem:[%s169 + $0x120] sm:$0xff]
      %v218 = vld [vmem:[%s169 + $0x128] sm:$0xff]
      %v219 = vld [vmem:[%s169 + $0x130] sm:$0xff]
      %v220 = vld [vmem:[%s169 + $0x138] sm:$0xff]
      %v221 = vld [vmem:[%s169 + $0x140] sm:$0xf]
      %v222 = vld [vmem:[%s169 + $0x144] sm:$0xff]
      %v223 = vld [vmem:[%s169 + $0x14c] sm:$0xff]
      %v224 = vld [vmem:[%s169 + $0x154] sm:$0xff]
      %v225 = vld [vmem:[%s169 + $0x15c] sm:$0xff]
      %v226 = vld [vmem:[%s169 + $0x164] sm:$0xf]
      %v227 = vld [vmem:[%s169 + $0x168] sm:$0xff]
      %v228 = vld [vmem:[%s169 + $0x170] sm:$0xff]
      %v229 = vld [vmem:[%s169 + $0x178] sm:$0xff]
      %v230 = vld [vmem:[%s169 + $0x180] sm:$0xff]
      %v231 = vld [vmem:[%s169 + $0x188] sm:$0xf]
      %v232 = vld [vmem:[%s169 + $0x18c] sm:$0xff]
      %v233 = vld [vmem:[%s169 + $0x194] sm:$0xff]
      %v234 = vld [vmem:[%s169 + $0x19c] sm:$0xff]
      %v235 = vld [vmem:[%s169 + $0x1a4] sm:$0xff]
      %v236 = vld [vmem:[%s169 + $0x1ac] sm:$0xf]
      %v237 = vld [vmem:[%s169 + $0x1b0] sm:$0xff]
      %v238 = vld [vmem:[%s169 + $0x1b8] sm:$0xff]
      %v239 = vld [vmem:[%s169 + $0x1c0] sm:$0xff]
      %v240 = vld [vmem:[%s169 + $0x1c8] sm:$0xff]
      %v241 = vld [vmem:[%s169 + $0x1d0] sm:$0xf]
      %v242 = vld [vmem:[%s169 + $0x1d4] sm:$0xff]
      %v243 = vld [vmem:[%s169 + $0x1dc] sm:$0xff]
      %v244 = vld [vmem:[%s169 + $0x1e4] sm:$0xff]
      %v245 = vld [vmem:[%s169 + $0x1ec] sm:$0xff]
      %v246 = vld [vmem:[%s169 + $0x1f4] sm:$0xf]
      %v247 = vld [vmem:[%s169 + $0x1f8] sm:$0xff]
      %v248 = vld [vmem:[%s169 + $0x200] sm:$0xff]
      %v249 = vld [vmem:[%s169 + $0x208] sm:$0xff]
      %v250 = vld [vmem:[%s169 + $0x210] sm:$0xff]
      %v251 = vld [vmem:[%s169 + $0x218] sm:$0xf]
      %v252 = vld [vmem:[%s169 + $0x21c] sm:$0xff]
      %v253 = vld [vmem:[%s169 + $0x224] sm:$0xff]
      %v254 = vld [vmem:[%s169 + $0x22c] sm:$0xff]
      %v255 = vld [vmem:[%s169 + $0x234] sm:$0xff]
      %v256 = vld [vmem:[%s169 + $0x23c] sm:$0xf]
      %v257 = vld [vmem:[%s1] sm:$0xf]
      %v258 = vld [vmem:[%s1 + $0x4] sm:$0xf]
      %v259 = vld [vmem:[%s1 + $0x8] sm:$0xf]
      %v260 = vld [vmem:[%s1 + $0xc] sm:$0xf]
      %v261 = vld [vmem:[%s1 + $0x10] sm:$0xf]
      %v262 = vld [vmem:[%s1 + $0x14] sm:$0xf]
      %v263 = vld [vmem:[%s1 + $0x18] sm:$0xf]
      %v264 = vld [vmem:[%s1 + $0x1c] sm:$0xf]
      %v265 = vld [vmem:[%s1 + $0x20] sm:$0xf]
      %v266 = vld [vmem:[%s1 + $0x24] sm:$0xf]
      %v267 = vld [vmem:[%s1 + $0x28] sm:$0xf]
      %v268 = vld [vmem:[%s1 + $0x2c] sm:$0xf]
      %v269 = vld [vmem:[%s1 + $0x30] sm:$0xf]
      %v270 = vld [vmem:[%s1 + $0x34] sm:$0xf]
      %v271 = vld [vmem:[%s1 + $0x38] sm:$0xf]
      %v272 = vld [vmem:[%s1 + $0x3c] sm:$0xf]
      %v273 = vld [vmem:[%s1 + $0x40] sm:$0xf]
      %v274 = vld [vmem:[%s1 + $0x44] sm:$0xf]
      %v275 = vld [vmem:[%s1 + $0x48] sm:$0xf]
      %v276 = vld [vmem:[%s1 + $0x4c] sm:$0xf]
      %v277 = vld [vmem:[%s1 + $0x50] sm:$0xf]
      %v278 = vld [vmem:[%s1 + $0x54] sm:$0xf]
      %v279 = vld [vmem:[%s1 + $0x58] sm:$0xf]
      %v280 = vld [vmem:[%s1 + $0x5c] sm:$0xf]
      %v281 = vld [vmem:[%s1 + $0x60] sm:$0xf]
      %v282 = vld [vmem:[%s1 + $0x64] sm:$0xf]
      %v283 = vld [vmem:[%s1 + $0x68] sm:$0xf]
      %v284 = vld [vmem:[%s1 + $0x6c] sm:$0xf]
      %v285 = vld [vmem:[%s1 + $0x70] sm:$0xf]
      %v286 = vld [vmem:[%s1 + $0x74] sm:$0xf]
      %v287 = vld [vmem:[%s1 + $0x78] sm:$0xf]
      %v288 = vld [vmem:[%s1 + $0x7c] sm:$0xf]
      %v289 = vld [vmem:[%s1 + $0x80] sm:$0xf]
      %v290 = vld [vmem:[%s1 + $0x84] sm:$0xf]
      %v291 = vld [vmem:[%s1 + $0x88] sm:$0xf]
      %v292 = vld [vmem:[%s1 + $0x8c] sm:$0xf]
      %v293 = vld [vmem:[%s1 + $0x90] sm:$0xf]
      %v294 = vld [vmem:[%s1 + $0x94] sm:$0xf]
      %v295 = vld [vmem:[%s1 + $0x98] sm:$0xf]
      %v296 = vld [vmem:[%s1 + $0x9c] sm:$0xf]
      %v297 = vld [vmem:[%s1 + $0xa0] sm:$0xf]
      %v298 = vld [vmem:[%s1 + $0xa4] sm:$0xf]
      %v299 = vld [vmem:[%s1 + $0xa8] sm:$0xf]
      %v300 = vld [vmem:[%s1 + $0xac] sm:$0xf]
      %v301 = vld [vmem:[%s1 + $0xb0] sm:$0xf]
      %v302 = vld [vmem:[%s1 + $0xb4] sm:$0xf]
      %v303 = vld [vmem:[%s1 + $0xb8] sm:$0xf]
      %v304 = vld [vmem:[%s1 + $0xbc] sm:$0xf]
      %v305 = vld [vmem:[%s1 + $0xc0] sm:$0xf]
      %v306 = vld [vmem:[%s1 + $0xc4] sm:$0xf]
      %v307 = vld [vmem:[%s1 + $0xc8] sm:$0xf]
      %v308 = vld [vmem:[%s1 + $0xcc] sm:$0xf]
      %v309 = vld [vmem:[%s1 + $0xd0] sm:$0xf]
      %v310 = vld [vmem:[%s1 + $0xd4] sm:$0xf]
      %v311 = vld [vmem:[%s1 + $0xd8] sm:$0xf]
      %v312 = vld [vmem:[%s1 + $0xdc] sm:$0xf]
      %v313 = vld [vmem:[%s1 + $0xe0] sm:$0xf]
      %v314 = vld [vmem:[%s1 + $0xe4] sm:$0xf]
      %v315 = vld [vmem:[%s1 + $0xe8] sm:$0xf]
      %v316 = vld [vmem:[%s1 + $0xec] sm:$0xf]
      %v317 = vld [vmem:[%s1 + $0xf0] sm:$0xf]
      %v318 = vld [vmem:[%s1 + $0xf4] sm:$0xf]
      %v319 = vld [vmem:[%s1 + $0xf8] sm:$0xf]
      %v320 = vld [vmem:[%s1 + $0xfc] sm:$0xf]
      %v321 = vld [vmem:[%s1 + $0x100] sm:$0xf]
      %v322 = vld [vmem:[%s1 + $0x104] sm:$0xf]
      %v323 = vld [vmem:[%s1 + $0x108] sm:$0xf]
      %v324 = vld [vmem:[%s1 + $0x10c] sm:$0xf]
      %v325 = vld [vmem:[%s1 + $0x110] sm:$0xf]
      %v326 = vld [vmem:[%s1 + $0x114] sm:$0xf]
      %v327 = vld [vmem:[%s1 + $0x118] sm:$0xf]
      %v328 = vld [vmem:[%s1 + $0x11c] sm:$0xf]
      %v329 = vld [vmem:[%s1 + $0x120] sm:$0xf]
      %v330 = vld [vmem:[%s1 + $0x124] sm:$0xf]
      %v331 = vld [vmem:[%s1 + $0x128] sm:$0xf]
      %v332 = vld [vmem:[%s1 + $0x12c] sm:$0xf]
      %v333 = vld [vmem:[%s1 + $0x130] sm:$0xf]
      %v334 = vld [vmem:[%s1 + $0x134] sm:$0xf]
      %v335 = vld [vmem:[%s1 + $0x138] sm:$0xf]
      %v336 = vld [vmem:[%s1 + $0x13c] sm:$0xf]
      %v337 = vld [vmem:[%s1 + $0x140] sm:$0xf]
      %v338 = vld [vmem:[%s1 + $0x144] sm:$0xf]
      %v339 = vld [vmem:[%s1 + $0x148] sm:$0xf]
      %v340 = vld [vmem:[%s1 + $0x14c] sm:$0xf]
      %v341 = vld [vmem:[%s1 + $0x150] sm:$0xf]
      %v342 = vld [vmem:[%s1 + $0x154] sm:$0xf]
      %v343 = vld [vmem:[%s1 + $0x158] sm:$0xf]
      %v344 = vld [vmem:[%s1 + $0x15c] sm:$0xf]
      %v345 = vld [vmem:[%s1 + $0x160] sm:$0xf]
      %v346 = vld [vmem:[%s1 + $0x164] sm:$0xf]
      %v347 = vld [vmem:[%s1 + $0x168] sm:$0xf]
      %v348 = vld [vmem:[%s1 + $0x16c] sm:$0xf]
      %v349 = vld [vmem:[%s1 + $0x170] sm:$0xf]
      %v350 = vld [vmem:[%s1 + $0x174] sm:$0xf]
      %v351 = vld [vmem:[%s1 + $0x178] sm:$0xf]
      %v352 = vld [vmem:[%s1 + $0x17c] sm:$0xf]
      %v353 = vld [vmem:[%s1 + $0x180] sm:$0xf]
      %v354 = vld [vmem:[%s1 + $0x184] sm:$0xf]
      %v355 = vld [vmem:[%s1 + $0x188] sm:$0xf]
      %v356 = vld [vmem:[%s1 + $0x18c] sm:$0xf]
      %v357 = vld [vmem:[%s1 + $0x190] sm:$0xf]
      %v358 = vld [vmem:[%s1 + $0x194] sm:$0xf]
      %v359 = vld [vmem:[%s1 + $0x198] sm:$0xf]
      %v360 = vld [vmem:[%s1 + $0x19c] sm:$0xf]
      %v361 = vld [vmem:[%s1 + $0x1a0] sm:$0xf]
      %v362 = vld [vmem:[%s1 + $0x1a4] sm:$0xf]
      %v363 = vld [vmem:[%s1 + $0x1a8] sm:$0xf]
      %v364 = vld [vmem:[%s1 + $0x1ac] sm:$0xf]
      %v365 = vld [vmem:[%s1 + $0x1b0] sm:$0xf]
      %v366 = vld [vmem:[%s1 + $0x1b4] sm:$0xf]
      %v367 = vld [vmem:[%s1 + $0x1b8] sm:$0xf]
      %v368 = vld [vmem:[%s1 + $0x1bc] sm:$0xf]
      %v369 = vld [vmem:[%s1 + $0x1c0] sm:$0xf]
      %v370 = vld [vmem:[%s1 + $0x1c4] sm:$0xf]
      %v371 = vld [vmem:[%s1 + $0x1c8] sm:$0xf]
      %v372 = vld [vmem:[%s1 + $0x1cc] sm:$0xf]
      %v373 = vld [vmem:[%s1 + $0x1d0] sm:$0xf]
      %v374 = vld [vmem:[%s1 + $0x1d4] sm:$0xf]
      %v375 = vld [vmem:[%s1 + $0x1d8] sm:$0xf]
      %v376 = vld [vmem:[%s1 + $0x1dc] sm:$0xf]
      %v377 = vld [vmem:[%s1 + $0x1e0] sm:$0xf]
      %v378 = vld [vmem:[%s1 + $0x1e4] sm:$0xf]
      %v379 = vld [vmem:[%s1 + $0x1e8] sm:$0xf]
      %v380 = vld [vmem:[%s1 + $0x1ec] sm:$0xf]
      %v381 = vld [vmem:[%s1 + $0x1f0] sm:$0xf]
      %v382 = vld [vmem:[%s1 + $0x1f4] sm:$0xf]
      %v383 = vld [vmem:[%s1 + $0x1f8] sm:$0xf]
      %v384 = vld [vmem:[%s1 + $0x1fc] sm:$0xf]
      %v385 = vld [vmem:[%s1 + $0x200] sm:$0xf]
      %v386 = vld [vmem:[%s1 + $0x204] sm:$0xf]
      %v387 = vld [vmem:[%s1 + $0x208] sm:$0xf]
      %v388 = vld [vmem:[%s1 + $0x20c] sm:$0xf]
      %v389 = vld [vmem:[%s1 + $0x210] sm:$0xf]
      %v390 = vld [vmem:[%s1 + $0x214] sm:$0xf]
      %v391 = vld [vmem:[%s1 + $0x218] sm:$0xf]
      %v392 = vld [vmem:[%s1 + $0x21c] sm:$0xf]
      %v393 = vld [vmem:[%s1 + $0x220] sm:$0xf]
      %v394 = vld [vmem:[%s1 + $0x224] sm:$0xf]
      %v395 = vld [vmem:[%s1 + $0x228] sm:$0xf]
      %v396 = vld [vmem:[%s1 + $0x22c] sm:$0xf]
      %v397 = vld [vmem:[%s1 + $0x230] sm:$0xf]
      %v398 = vld [vmem:[%s1 + $0x234] sm:$0xf]
      %v399 = vld [vmem:[%s1 + $0x238] sm:$0xf]
      %v400 = vld [vmem:[%s1 + $0x23c] sm:$0xf]
      %v401 = vld [vmem:[%s2] sm:$0x1]
      %v403 = vperm.slane %v401, 0
      %v485 = vunpack.c.l.b16 %v177
      %v486 = vunpack.c.h.b16 %v177
      %v487 = vunpack.c.l.b16 %v178
      %v488 = vunpack.c.h.b16 %v178
      %v489 = vunpack.c.l.b16 %v179
      %v490 = vunpack.c.h.b16 %v179
      %v491 = vunpack.c.l.b16 %v180
      %v492 = vunpack.c.h.b16 %v180
      %v493 = vunpack.c.l.b16 %v181
      %v494 = vunpack.c.l.b16 %v182
      %v495 = vunpack.c.h.b16 %v182
      %v496 = vunpack.c.l.b16 %v183
      %v497 = vunpack.c.h.b16 %v183
      %v498 = vunpack.c.l.b16 %v184
      %v499 = vunpack.c.h.b16 %v184
      %v500 = vunpack.c.l.b16 %v185
      %v501 = vunpack.c.h.b16 %v185
      %v502 = vunpack.c.l.b16 %v186
      %v503 = vunpack.c.l.b16 %v187
      %v504 = vunpack.c.h.b16 %v187
      %v505 = vunpack.c.l.b16 %v188
      %v506 = vunpack.c.h.b16 %v188
      %v507 = vunpack.c.l.b16 %v189
      %v508 = vunpack.c.h.b16 %v189
      %v509 = vunpack.c.l.b16 %v190
      %v510 = vunpack.c.h.b16 %v190
      %v511 = vunpack.c.l.b16 %v191
      %v512 = vunpack.c.l.b16 %v192
      %v513 = vunpack.c.h.b16 %v192
      %v514 = vunpack.c.l.b16 %v193
      %v515 = vunpack.c.h.b16 %v193
      %v516 = vunpack.c.l.b16 %v194
      %v517 = vunpack.c.h.b16 %v194
      %v518 = vunpack.c.l.b16 %v195
      %v519 = vunpack.c.h.b16 %v195
      %v520 = vunpack.c.l.b16 %v196
      %v521 = vunpack.c.l.b16 %v197
      %v522 = vunpack.c.h.b16 %v197
      %v523 = vunpack.c.l.b16 %v198
      %v524 = vunpack.c.h.b16 %v198
      %v525 = vunpack.c.l.b16 %v199
      %v526 = vunpack.c.h.b16 %v199
      %v527 = vunpack.c.l.b16 %v200
      %v528 = vunpack.c.h.b16 %v200
      %v529 = vunpack.c.l.b16 %v201
      %v530 = vunpack.c.l.b16 %v202
      %v531 = vunpack.c.h.b16 %v202
      %v532 = vunpack.c.l.b16 %v203
      %v533 = vunpack.c.h.b16 %v203
      %v534 = vunpack.c.l.b16 %v204
      %v535 = vunpack.c.h.b16 %v204
      %v536 = vunpack.c.l.b16 %v205
      %v537 = vunpack.c.h.b16 %v205
      %v538 = vunpack.c.l.b16 %v206
      %v539 = vunpack.c.l.b16 %v207
      %v540 = vunpack.c.h.b16 %v207
      %v541 = vunpack.c.l.b16 %v208
      %v542 = vunpack.c.h.b16 %v208
      %v543 = vunpack.c.l.b16 %v209
      %v544 = vunpack.c.h.b16 %v209
      %v545 = vunpack.c.l.b16 %v210
      %v546 = vunpack.c.h.b16 %v210
      %v547 = vunpack.c.l.b16 %v211
      %v548 = vunpack.c.l.b16 %v212
      %v549 = vunpack.c.h.b16 %v212
      %v550 = vunpack.c.l.b16 %v213
      %v551 = vunpack.c.h.b16 %v213
      %v552 = vunpack.c.l.b16 %v214
      %v553 = vunpack.c.h.b16 %v214
      %v554 = vunpack.c.l.b16 %v215
      %v555 = vunpack.c.h.b16 %v215
      %v556 = vunpack.c.l.b16 %v216
      %v557 = vunpack.c.l.b16 %v217
      %v558 = vunpack.c.h.b16 %v217
      %v559 = vunpack.c.l.b16 %v218
      %v560 = vunpack.c.h.b16 %v218
      %v561 = vunpack.c.l.b16 %v219
      %v562 = vunpack.c.h.b16 %v219
      %v563 = vunpack.c.l.b16 %v220
      %v564 = vunpack.c.h.b16 %v220
      %v565 = vunpack.c.l.b16 %v221
      %v566 = vunpack.c.l.b16 %v222
      %v567 = vunpack.c.h.b16 %v222
      %v568 = vunpack.c.l.b16 %v223
      %v569 = vunpack.c.h.b16 %v223
      %v570 = vunpack.c.l.b16 %v224
      %v571 = vunpack.c.h.b16 %v224
      %v572 = vunpack.c.l.b16 %v225
      %v573 = vunpack.c.h.b16 %v225
      %v574 = vunpack.c.l.b16 %v226
      %v575 = vunpack.c.l.b16 %v227
      %v576 = vunpack.c.h.b16 %v227
      %v577 = vunpack.c.l.b16 %v228
      %v578 = vunpack.c.h.b16 %v228
      %v579 = vunpack.c.l.b16 %v229
      %v580 = vunpack.c.h.b16 %v229
      %v581 = vunpack.c.l.b16 %v230
      %v582 = vunpack.c.h.b16 %v230
      %v583 = vunpack.c.l.b16 %v231
      %v584 = vunpack.c.l.b16 %v232
      %v585 = vunpack.c.h.b16 %v232
      %v586 = vunpack.c.l.b16 %v233
      %v587 = vunpack.c.h.b16 %v233
      %v588 = vunpack.c.l.b16 %v234
      %v589 = vunpack.c.h.b16 %v234
      %v590 = vunpack.c.l.b16 %v235
      %v591 = vunpack.c.h.b16 %v235
      %v592 = vunpack.c.l.b16 %v236
      %v593 = vunpack.c.l.b16 %v237
      %v594 = vunpack.c.h.b16 %v237
      %v595 = vunpack.c.l.b16 %v238
      %v596 = vunpack.c.h.b16 %v238
      %v597 = vunpack.c.l.b16 %v239
      %v598 = vunpack.c.h.b16 %v239
      %v599 = vunpack.c.l.b16 %v240
      %v600 = vunpack.c.h.b16 %v240
      %v601 = vunpack.c.l.b16 %v241
      %v602 = vunpack.c.l.b16 %v242
      %v603 = vunpack.c.h.b16 %v242
      %v604 = vunpack.c.l.b16 %v243
      %v605 = vunpack.c.h.b16 %v243
      %v606 = vunpack.c.l.b16 %v244
      %v607 = vunpack.c.h.b16 %v244
      %v608 = vunpack.c.l.b16 %v245
      %v609 = vunpack.c.h.b16 %v245
      %v610 = vunpack.c.l.b16 %v246
      %v611 = vunpack.c.l.b16 %v247
      %v612 = vunpack.c.h.b16 %v247
      %v613 = vunpack.c.l.b16 %v248
      %v614 = vunpack.c.h.b16 %v248
      %v615 = vunpack.c.l.b16 %v249
      %v616 = vunpack.c.h.b16 %v249
      %v617 = vunpack.c.l.b16 %v250
      %v618 = vunpack.c.h.b16 %v250
      %v619 = vunpack.c.l.b16 %v251
      %v620 = vunpack.c.l.b16 %v252
      %v621 = vunpack.c.h.b16 %v252
      %v622 = vunpack.c.l.b16 %v253
      %v623 = vunpack.c.h.b16 %v253
      %v624 = vunpack.c.l.b16 %v254
      %v625 = vunpack.c.h.b16 %v254
      %v626 = vunpack.c.l.b16 %v255
      %v627 = vunpack.c.h.b16 %v255
      %v628 = vunpack.c.l.b16 %v256
      %v629 = vpack.c.b16 %v494, %v485
      %v630 = vpack.c.b16 %v495, %v486
      %v631 = vpack.c.b16 %v496, %v487
      %v632 = vpack.c.b16 %v497, %v488
      %v633 = vpack.c.b16 %v498, %v489
      %v634 = vpack.c.b16 %v499, %v490
      %v635 = vpack.c.b16 %v500, %v491
      %v636 = vpack.c.b16 %v501, %v492
      %v637 = vpack.c.b16 %v502, %v493
      %v638 = vpack.c.b16 %v512, %v503
      %v639 = vpack.c.b16 %v513, %v504
      %v640 = vpack.c.b16 %v514, %v505
      %v641 = vpack.c.b16 %v515, %v506
      %v642 = vpack.c.b16 %v516, %v507
      %v643 = vpack.c.b16 %v517, %v508
      %v644 = vpack.c.b16 %v518, %v509
      %v645 = vpack.c.b16 %v519, %v510
      %v646 = vpack.c.b16 %v520, %v511
      %v647 = vpack.c.b16 %v530, %v521
      %v648 = vpack.c.b16 %v531, %v522
      %v649 = vpack.c.b16 %v532, %v523
      %v650 = vpack.c.b16 %v533, %v524
      %v651 = vpack.c.b16 %v534, %v525
      %v652 = vpack.c.b16 %v535, %v526
      %v653 = vpack.c.b16 %v536, %v527
      %v654 = vpack.c.b16 %v537, %v528
      %v655 = vpack.c.b16 %v538, %v529
      %v656 = vpack.c.b16 %v548, %v539
      %v657 = vpack.c.b16 %v549, %v540
      %v658 = vpack.c.b16 %v550, %v541
      %v659 = vpack.c.b16 %v551, %v542
      %v660 = vpack.c.b16 %v552, %v543
      %v661 = vpack.c.b16 %v553, %v544
      %v662 = vpack.c.b16 %v554, %v545
      %v663 = vpack.c.b16 %v555, %v546
      %v664 = vpack.c.b16 %v556, %v547
      %v665 = vpack.c.b16 %v566, %v557
      %v666 = vpack.c.b16 %v567, %v558
      %v667 = vpack.c.b16 %v568, %v559
      %v668 = vpack.c.b16 %v569, %v560
      %v669 = vpack.c.b16 %v570, %v561
      %v670 = vpack.c.b16 %v571, %v562
      %v671 = vpack.c.b16 %v572, %v563
      %v672 = vpack.c.b16 %v573, %v564
      %v673 = vpack.c.b16 %v574, %v565
      %v674 = vpack.c.b16 %v584, %v575
      %v675 = vpack.c.b16 %v585, %v576
      %v676 = vpack.c.b16 %v586, %v577
      %v677 = vpack.c.b16 %v587, %v578
      %v678 = vpack.c.b16 %v588, %v579
      %v679 = vpack.c.b16 %v589, %v580
      %v680 = vpack.c.b16 %v590, %v581
      %v681 = vpack.c.b16 %v591, %v582
      %v682 = vpack.c.b16 %v592, %v583
      %v683 = vpack.c.b16 %v602, %v593
      %v684 = vpack.c.b16 %v603, %v594
      %v685 = vpack.c.b16 %v604, %v595
      %v686 = vpack.c.b16 %v605, %v596
      %v687 = vpack.c.b16 %v606, %v597
      %v688 = vpack.c.b16 %v607, %v598
      %v689 = vpack.c.b16 %v608, %v599
      %v690 = vpack.c.b16 %v609, %v600
      %v691 = vpack.c.b16 %v610, %v601
      %v692 = vpack.c.b16 %v620, %v611
      %v693 = vpack.c.b16 %v621, %v612
      %v694 = vpack.c.b16 %v622, %v613
      %v695 = vpack.c.b16 %v623, %v614
      %v696 = vpack.c.b16 %v624, %v615
      %v697 = vpack.c.b16 %v625, %v616
      %v698 = vpack.c.b16 %v626, %v617
      %v699 = vpack.c.b16 %v627, %v618
      %v700 = vpack.c.b16 %v628, %v619
      %v917 = vunpack.c.l.b16 %v257
      %v918 = vunpack.c.l.b16 %v258
      %v919 = vunpack.c.l.b16 %v259
      %v920 = vunpack.c.l.b16 %v260
      %v921 = vunpack.c.l.b16 %v261
      %v922 = vunpack.c.l.b16 %v262
      %v923 = vunpack.c.l.b16 %v263
      %v924 = vunpack.c.l.b16 %v264
      %v925 = vunpack.c.l.b16 %v265
      %v926 = vunpack.c.l.b16 %v266
      %v927 = vunpack.c.l.b16 %v267
      %v928 = vunpack.c.l.b16 %v268
      %v929 = vunpack.c.l.b16 %v269
      %v930 = vunpack.c.l.b16 %v270
      %v931 = vunpack.c.l.b16 %v271
      %v932 = vunpack.c.l.b16 %v272
      %v933 = vunpack.c.l.b16 %v273
      %v934 = vunpack.c.l.b16 %v274
      %v935 = vunpack.c.l.b16 %v275
      %v936 = vunpack.c.l.b16 %v276
      %v937 = vunpack.c.l.b16 %v277
      %v938 = vunpack.c.l.b16 %v278
      %v939 = vunpack.c.l.b16 %v279
      %v940 = vunpack.c.l.b16 %v280
      %v941 = vunpack.c.l.b16 %v281
      %v942 = vunpack.c.l.b16 %v282
      %v943 = vunpack.c.l.b16 %v283
      %v944 = vunpack.c.l.b16 %v284
      %v945 = vunpack.c.l.b16 %v285
      %v946 = vunpack.c.l.b16 %v286
      %v947 = vunpack.c.l.b16 %v287
      %v948 = vunpack.c.l.b16 %v288
      %v949 = vunpack.c.l.b16 %v289
      %v950 = vunpack.c.l.b16 %v290
      %v951 = vunpack.c.l.b16 %v291
      %v952 = vunpack.c.l.b16 %v292
      %v953 = vunpack.c.l.b16 %v293
      %v954 = vunpack.c.l.b16 %v294
      %v955 = vunpack.c.l.b16 %v295
      %v956 = vunpack.c.l.b16 %v296
      %v957 = vunpack.c.l.b16 %v297
      %v958 = vunpack.c.l.b16 %v298
      %v959 = vunpack.c.l.b16 %v299
      %v960 = vunpack.c.l.b16 %v300
      %v961 = vunpack.c.l.b16 %v301
      %v962 = vunpack.c.l.b16 %v302
      %v963 = vunpack.c.l.b16 %v303
      %v964 = vunpack.c.l.b16 %v304
      %v965 = vunpack.c.l.b16 %v305
      %v966 = vunpack.c.l.b16 %v306
      %v967 = vunpack.c.l.b16 %v307
      %v968 = vunpack.c.l.b16 %v308
      %v969 = vunpack.c.l.b16 %v309
      %v970 = vunpack.c.l.b16 %v310
      %v971 = vunpack.c.l.b16 %v311
      %v972 = vunpack.c.l.b16 %v312
      %v973 = vunpack.c.l.b16 %v313
      %v974 = vunpack.c.l.b16 %v314
      %v975 = vunpack.c.l.b16 %v315
      %v976 = vunpack.c.l.b16 %v316
      %v977 = vunpack.c.l.b16 %v317
      %v978 = vunpack.c.l.b16 %v318
      %v979 = vunpack.c.l.b16 %v319
      %v980 = vunpack.c.l.b16 %v320
      %v981 = vunpack.c.l.b16 %v321
      %v982 = vunpack.c.l.b16 %v322
      %v983 = vunpack.c.l.b16 %v323
      %v984 = vunpack.c.l.b16 %v324
      %v985 = vunpack.c.l.b16 %v325
      %v986 = vunpack.c.l.b16 %v326
      %v987 = vunpack.c.l.b16 %v327
      %v988 = vunpack.c.l.b16 %v328
      %v989 = vunpack.c.l.b16 %v329
      %v990 = vunpack.c.l.b16 %v330
      %v991 = vunpack.c.l.b16 %v331
      %v992 = vunpack.c.l.b16 %v332
      %v993 = vunpack.c.l.b16 %v333
      %v994 = vunpack.c.l.b16 %v334
      %v995 = vunpack.c.l.b16 %v335
      %v996 = vunpack.c.l.b16 %v336
      %v997 = vunpack.c.l.b16 %v337
      %v998 = vunpack.c.l.b16 %v338
      %v999 = vunpack.c.l.b16 %v339
      %v1000 = vunpack.c.l.b16 %v340
      %v1001 = vunpack.c.l.b16 %v341
      %v1002 = vunpack.c.l.b16 %v342
      %v1003 = vunpack.c.l.b16 %v343
      %v1004 = vunpack.c.l.b16 %v344
      %v1005 = vunpack.c.l.b16 %v345
      %v1006 = vunpack.c.l.b16 %v346
      %v1007 = vunpack.c.l.b16 %v347
      %v1008 = vunpack.c.l.b16 %v348
      %v1009 = vunpack.c.l.b16 %v349
      %v1010 = vunpack.c.l.b16 %v350
      %v1011 = vunpack.c.l.b16 %v351
      %v1012 = vunpack.c.l.b16 %v352
      %v1013 = vunpack.c.l.b16 %v353
      %v1014 = vunpack.c.l.b16 %v354
      %v1015 = vunpack.c.l.b16 %v355
      %v1016 = vunpack.c.l.b16 %v356
      %v1017 = vunpack.c.l.b16 %v357
      %v1018 = vunpack.c.l.b16 %v358
      %v1019 = vunpack.c.l.b16 %v359
      %v1020 = vunpack.c.l.b16 %v360
      %v1021 = vunpack.c.l.b16 %v361
      %v1022 = vunpack.c.l.b16 %v362
      %v1023 = vunpack.c.l.b16 %v363
      %v1024 = vunpack.c.l.b16 %v364
      %v1025 = vunpack.c.l.b16 %v365
      %v1026 = vunpack.c.l.b16 %v366
      %v1027 = vunpack.c.l.b16 %v367
      %v1028 = vunpack.c.l.b16 %v368
      %v1029 = vunpack.c.l.b16 %v369
      %v1030 = vunpack.c.l.b16 %v370
      %v1031 = vunpack.c.l.b16 %v371
      %v1032 = vunpack.c.l.b16 %v372
      %v1033 = vunpack.c.l.b16 %v373
      %v1034 = vunpack.c.l.b16 %v374
      %v1035 = vunpack.c.l.b16 %v375
      %v1036 = vunpack.c.l.b16 %v376
      %v1037 = vunpack.c.l.b16 %v377
      %v1038 = vunpack.c.l.b16 %v378
      %v1039 = vunpack.c.l.b16 %v379
      %v1040 = vunpack.c.l.b16 %v380
      %v1041 = vunpack.c.l.b16 %v381
      %v1042 = vunpack.c.l.b16 %v382
      %v1043 = vunpack.c.l.b16 %v383
      %v1044 = vunpack.c.l.b16 %v384
      %v1045 = vunpack.c.l.b16 %v385
      %v1046 = vunpack.c.l.b16 %v386
      %v1047 = vunpack.c.l.b16 %v387
      %v1048 = vunpack.c.l.b16 %v388
      %v1049 = vunpack.c.l.b16 %v389
      %v1050 = vunpack.c.l.b16 %v390
      %v1051 = vunpack.c.l.b16 %v391
      %v1052 = vunpack.c.l.b16 %v392
      %v1053 = vunpack.c.l.b16 %v393
      %v1054 = vunpack.c.l.b16 %v394
      %v1055 = vunpack.c.l.b16 %v395
      %v1056 = vunpack.c.l.b16 %v396
      %v1057 = vunpack.c.l.b16 %v397
      %v1058 = vunpack.c.l.b16 %v398
      %v1059 = vunpack.c.l.b16 %v399
      %v1060 = vunpack.c.l.b16 %v400
      %v1061 = vpack.c.b16 %v918, %v917
      %v1062 = vpack.c.b16 %v920, %v919
      %v1063 = vpack.c.b16 %v922, %v921
      %v1064 = vpack.c.b16 %v924, %v923
      %v1065 = vpack.c.b16 %v926, %v925
      %v1066 = vpack.c.b16 %v928, %v927
      %v1067 = vpack.c.b16 %v930, %v929
      %v1068 = vpack.c.b16 %v932, %v931
      %v1069 = vpack.c.b16 %v934, %v933
      %v1070 = vpack.c.b16 %v936, %v935
      %v1071 = vpack.c.b16 %v938, %v937
      %v1072 = vpack.c.b16 %v940, %v939
      %v1073 = vpack.c.b16 %v942, %v941
      %v1074 = vpack.c.b16 %v944, %v943
      %v1075 = vpack.c.b16 %v946, %v945
      %v1076 = vpack.c.b16 %v948, %v947
      %v1077 = vpack.c.b16 %v950, %v949
      %v1078 = vpack.c.b16 %v952, %v951
      %v1079 = vpack.c.b16 %v954, %v953
      %v1080 = vpack.c.b16 %v956, %v955
      %v1081 = vpack.c.b16 %v958, %v957
      %v1082 = vpack.c.b16 %v960, %v959
      %v1083 = vpack.c.b16 %v962, %v961
      %v1084 = vpack.c.b16 %v964, %v963
      %v1085 = vpack.c.b16 %v966, %v965
      %v1086 = vpack.c.b16 %v968, %v967
      %v1087 = vpack.c.b16 %v970, %v969
      %v1088 = vpack.c.b16 %v972, %v971
      %v1089 = vpack.c.b16 %v974, %v973
      %v1090 = vpack.c.b16 %v976, %v975
      %v1091 = vpack.c.b16 %v978, %v977
      %v1092 = vpack.c.b16 %v980, %v979
      %v1093 = vpack.c.b16 %v982, %v981
      %v1094 = vpack.c.b16 %v984, %v983
      %v1095 = vpack.c.b16 %v986, %v985
      %v1096 = vpack.c.b16 %v988, %v987
      %v1097 = vpack.c.b16 %v990, %v989
      %v1098 = vpack.c.b16 %v992, %v991
      %v1099 = vpack.c.b16 %v994, %v993
      %v1100 = vpack.c.b16 %v996, %v995
      %v1101 = vpack.c.b16 %v998, %v997
      %v1102 = vpack.c.b16 %v1000, %v999
      %v1103 = vpack.c.b16 %v1002, %v1001
      %v1104 = vpack.c.b16 %v1004, %v1003
      %v1105 = vpack.c.b16 %v1006, %v1005
      %v1106 = vpack.c.b16 %v1008, %v1007
      %v1107 = vpack.c.b16 %v1010, %v1009
      %v1108 = vpack.c.b16 %v1012, %v1011
      %v1109 = vpack.c.b16 %v1014, %v1013
      %v1110 = vpack.c.b16 %v1016, %v1015
      %v1111 = vpack.c.b16 %v1018, %v1017
      %v1112 = vpack.c.b16 %v1020, %v1019
      %v1113 = vpack.c.b16 %v1022, %v1021
      %v1114 = vpack.c.b16 %v1024, %v1023
      %v1115 = vpack.c.b16 %v1026, %v1025
      %v1116 = vpack.c.b16 %v1028, %v1027
      %v1117 = vpack.c.b16 %v1030, %v1029
      %v1118 = vpack.c.b16 %v1032, %v1031
      %v1119 = vpack.c.b16 %v1034, %v1033
      %v1120 = vpack.c.b16 %v1036, %v1035
      %v1121 = vpack.c.b16 %v1038, %v1037
      %v1122 = vpack.c.b16 %v1040, %v1039
      %v1123 = vpack.c.b16 %v1042, %v1041
      %v1124 = vpack.c.b16 %v1044, %v1043
      %v1125 = vpack.c.b16 %v1046, %v1045
      %v1126 = vpack.c.b16 %v1048, %v1047
      %v1127 = vpack.c.b16 %v1050, %v1049
      %v1128 = vpack.c.b16 %v1052, %v1051
      %v1129 = vpack.c.b16 %v1054, %v1053
      %v1130 = vpack.c.b16 %v1056, %v1055
      %v1131 = vpack.c.b16 %v1058, %v1057
      %v1132 = vpack.c.b16 %v1060, %v1059
      %1205 = vmatpush.bf16.msra.mxu0 %v1068
      %1206 = vmatpush.bf16.msra.mxu0 %v1067
      %1207 = vmatpush.bf16.msra.mxu0 %v1066
      %1208 = vmatpush.bf16.msra.mxu0 %v1065
      %1209 = vmatpush.bf16.msra.mxu0 %v1064
      %1210 = vmatpush.bf16.msra.mxu0 %v1063
      %1211 = vmatpush.bf16.msra.mxu0 %v1062
      %1212 = vmatpush.bf16.msra.mxu0 %v1061
      %1213 = vmatmul.bf16.gmra.mxu0 %v629
      %v1214 = vpop.f32.mrf.mxu0
      %v1215 = vadd.f32 %v403, %v1214
      %v1216 = vpop.f32.mrf.mxu0
      %v1217 = vadd.f32 %v403, %v1216
      %1218 = vmatmul.bf16.gmra.mxu0 %v638
      %v1219 = vpop.f32.mrf.mxu0
      %v1220 = vadd.f32 %v403, %v1219
      %v1221 = vpop.f32.mrf.mxu0
      %v1222 = vadd.f32 %v403, %v1221
      %1223 = vmatmul.bf16.gmra.mxu0 %v647
      %v1224 = vpop.f32.mrf.mxu0
      %v1225 = vadd.f32 %v403, %v1224
      %v1226 = vpop.f32.mrf.mxu0
      %v1227 = vadd.f32 %v403, %v1226
      %1228 = vmatmul.bf16.gmra.mxu0 %v656
      %v1229 = vpop.f32.mrf.mxu0
      %v1230 = vadd.f32 %v403, %v1229
      %v1231 = vpop.f32.mrf.mxu0
      %v1232 = vadd.f32 %v403, %v1231
      %1233 = vmatmul.bf16.gmra.mxu0 %v665
      %v1234 = vpop.f32.mrf.mxu0
      %v1235 = vadd.f32 %v403, %v1234
      %v1236 = vpop.f32.mrf.mxu0
      %v1237 = vadd.f32 %v403, %v1236
      %1238 = vmatmul.bf16.gmra.mxu0 %v674
      %v1239 = vpop.f32.mrf.mxu0
      %v1240 = vadd.f32 %v403, %v1239
      %v1241 = vpop.f32.mrf.mxu0
      %v1242 = vadd.f32 %v403, %v1241
      %1243 = vmatmul.bf16.gmra.mxu0 %v683
      %v1244 = vpop.f32.mrf.mxu0
      %v1245 = vadd.f32 %v403, %v1244
      %v1246 = vpop.f32.mrf.mxu0
      %v1247 = vadd.f32 %v403, %v1246
      %1248 = vmatmul.bf16.gmra.mxu0 %v692
      %v1249 = vpop.f32.mrf.mxu0
      %v1250 = vadd.f32 %v403, %v1249
      %v1251 = vpop.f32.mrf.mxu0
      %v1252 = vadd.f32 %v403, %v1251
      %1253 = vdwg.mxu0
      %1254 = vmatpush.bf16.msra.mxu0 %v1076
      %1255 = vmatpush.bf16.msra.mxu0 %v1075
      %1256 = vmatpush.bf16.msra.mxu0 %v1074
      %1257 = vmatpush.bf16.msra.mxu0 %v1073
      %1258 = vmatpush.bf16.msra.mxu0 %v1072
      %1259 = vmatpush.bf16.msra.mxu0 %v1071
      %1260 = vmatpush.bf16.msra.mxu0 %v1070
      %1261 = vmatpush.bf16.msra.mxu0 %v1069
      %1262 = vmatmul.bf16.gmra.mxu0 %v630
      %v1263 = vpop.f32.mrf.mxu0
      %v1264 = vadd.f32 %v1215, %v1263
      %v1265 = vpop.f32.mrf.mxu0
      %v1266 = vadd.f32 %v1217, %v1265
      %1267 = vmatmul.bf16.gmra.mxu0 %v639
      %v1268 = vpop.f32.mrf.mxu0
      %v1269 = vadd.f32 %v1220, %v1268
      %v1270 = vpop.f32.mrf.mxu0
      %v1271 = vadd.f32 %v1222, %v1270
      %1272 = vmatmul.bf16.gmra.mxu0 %v648
      %v1273 = vpop.f32.mrf.mxu0
      %v1274 = vadd.f32 %v1225, %v1273
      %v1275 = vpop.f32.mrf.mxu0
      %v1276 = vadd.f32 %v1227, %v1275
      %1277 = vmatmul.bf16.gmra.mxu0 %v657
      %v1278 = vpop.f32.mrf.mxu0
      %v1279 = vadd.f32 %v1230, %v1278
      %v1280 = vpop.f32.mrf.mxu0
      %v1281 = vadd.f32 %v1232, %v1280
      %1282 = vmatmul.bf16.gmra.mxu0 %v666
      %v1283 = vpop.f32.mrf.mxu0
      %v1284 = vadd.f32 %v1235, %v1283
      %v1285 = vpop.f32.mrf.mxu0
      %v1286 = vadd.f32 %v1237, %v1285
      %1287 = vmatmul.bf16.gmra.mxu0 %v675
      %v1288 = vpop.f32.mrf.mxu0
      %v1289 = vadd.f32 %v1240, %v1288
      %v1290 = vpop.f32.mrf.mxu0
      %v1291 = vadd.f32 %v1242, %v1290
      %1292 = vmatmul.bf16.gmra.mxu0 %v684
      %v1293 = vpop.f32.mrf.mxu0
      %v1294 = vadd.f32 %v1245, %v1293
      %v1295 = vpop.f32.mrf.mxu0
      %v1296 = vadd.f32 %v1247, %v1295
      %1297 = vmatmul.bf16.gmra.mxu0 %v693
      %v1298 = vpop.f32.mrf.mxu0
      %v1299 = vadd.f32 %v1250, %v1298
      %v1300 = vpop.f32.mrf.mxu0
      %v1301 = vadd.f32 %v1252, %v1300
      %1302 = vdwg.mxu0
      %1303 = vmatpush.bf16.msra.mxu0 %v1084
      %1304 = vmatpush.bf16.msra.mxu0 %v1083
      %1305 = vmatpush.bf16.msra.mxu0 %v1082
      %1306 = vmatpush.bf16.msra.mxu0 %v1081
      %1307 = vmatpush.bf16.msra.mxu0 %v1080
      %1308 = vmatpush.bf16.msra.mxu0 %v1079
      %1309 = vmatpush.bf16.msra.mxu0 %v1078
      %1310 = vmatpush.bf16.msra.mxu0 %v1077
      %1311 = vmatmul.bf16.gmra.mxu0 %v631
      %v1312 = vpop.f32.mrf.mxu0
      %v1313 = vadd.f32 %v1264, %v1312
      %v1314 = vpop.f32.mrf.mxu0
      %v1315 = vadd.f32 %v1266, %v1314
      %1316 = vmatmul.bf16.gmra.mxu0 %v640
      %v1317 = vpop.f32.mrf.mxu0
      %v1318 = vadd.f32 %v1269, %v1317
      %v1319 = vpop.f32.mrf.mxu0
      %v1320 = vadd.f32 %v1271, %v1319
      %1321 = vmatmul.bf16.gmra.mxu0 %v649
      %v1322 = vpop.f32.mrf.mxu0
      %v1323 = vadd.f32 %v1274, %v1322
      %v1324 = vpop.f32.mrf.mxu0
      %v1325 = vadd.f32 %v1276, %v1324
      %1326 = vmatmul.bf16.gmra.mxu0 %v658
      %v1327 = vpop.f32.mrf.mxu0
      %v1328 = vadd.f32 %v1279, %v1327
      %v1329 = vpop.f32.mrf.mxu0
      %v1330 = vadd.f32 %v1281, %v1329
      %1331 = vmatmul.bf16.gmra.mxu0 %v667
      %v1332 = vpop.f32.mrf.mxu0
      %v1333 = vadd.f32 %v1284, %v1332
      %v1334 = vpop.f32.mrf.mxu0
      %v1335 = vadd.f32 %v1286, %v1334
      %1336 = vmatmul.bf16.gmra.mxu0 %v676
      %v1337 = vpop.f32.mrf.mxu0
      %v1338 = vadd.f32 %v1289, %v1337
      %v1339 = vpop.f32.mrf.mxu0
      %v1340 = vadd.f32 %v1291, %v1339
      %1341 = vmatmul.bf16.gmra.mxu0 %v685
      %v1342 = vpop.f32.mrf.mxu0
      %v1343 = vadd.f32 %v1294, %v1342
      %v1344 = vpop.f32.mrf.mxu0
      %v1345 = vadd.f32 %v1296, %v1344
      %1346 = vmatmul.bf16.gmra.mxu0 %v694
      %v1347 = vpop.f32.mrf.mxu0
      %v1348 = vadd.f32 %v1299, %v1347
      %v1349 = vpop.f32.mrf.mxu0
      %v1350 = vadd.f32 %v1301, %v1349
      %1351 = vdwg.mxu0
      %1352 = vmatpush.bf16.msra.mxu0 %v1092
      %1353 = vmatpush.bf16.msra.mxu0 %v1091
      %1354 = vmatpush.bf16.msra.mxu0 %v1090
      %1355 = vmatpush.bf16.msra.mxu0 %v1089
      %1356 = vmatpush.bf16.msra.mxu0 %v1088
      %1357 = vmatpush.bf16.msra.mxu0 %v1087
      %1358 = vmatpush.bf16.msra.mxu0 %v1086
      %1359 = vmatpush.bf16.msra.mxu0 %v1085
      %1360 = vmatmul.bf16.gmra.mxu0 %v632
      %v1361 = vpop.f32.mrf.mxu0
      %v1362 = vadd.f32 %v1313, %v1361
      %v1363 = vpop.f32.mrf.mxu0
      %v1364 = vadd.f32 %v1315, %v1363
      %1365 = vmatmul.bf16.gmra.mxu0 %v641
      %v1366 = vpop.f32.mrf.mxu0
      %v1367 = vadd.f32 %v1318, %v1366
      %v1368 = vpop.f32.mrf.mxu0
      %v1369 = vadd.f32 %v1320, %v1368
      %1370 = vmatmul.bf16.gmra.mxu0 %v650
      %v1371 = vpop.f32.mrf.mxu0
      %v1372 = vadd.f32 %v1323, %v1371
      %v1373 = vpop.f32.mrf.mxu0
      %v1374 = vadd.f32 %v1325, %v1373
      %1375 = vmatmul.bf16.gmra.mxu0 %v659
      %v1376 = vpop.f32.mrf.mxu0
      %v1377 = vadd.f32 %v1328, %v1376
      %v1378 = vpop.f32.mrf.mxu0
      %v1379 = vadd.f32 %v1330, %v1378
      %1380 = vmatmul.bf16.gmra.mxu0 %v668
      %v1381 = vpop.f32.mrf.mxu0
      %v1382 = vadd.f32 %v1333, %v1381
      %v1383 = vpop.f32.mrf.mxu0
      %v1384 = vadd.f32 %v1335, %v1383
      %1385 = vmatmul.bf16.gmra.mxu0 %v677
      %v1386 = vpop.f32.mrf.mxu0
      %v1387 = vadd.f32 %v1338, %v1386
      %v1388 = vpop.f32.mrf.mxu0
      %v1389 = vadd.f32 %v1340, %v1388
      %1390 = vmatmul.bf16.gmra.mxu0 %v686
      %v1391 = vpop.f32.mrf.mxu0
      %v1392 = vadd.f32 %v1343, %v1391
      %v1393 = vpop.f32.mrf.mxu0
      %v1394 = vadd.f32 %v1345, %v1393
      %1395 = vmatmul.bf16.gmra.mxu0 %v695
      %v1396 = vpop.f32.mrf.mxu0
      %v1397 = vadd.f32 %v1348, %v1396
      %v1398 = vpop.f32.mrf.mxu0
      %v1399 = vadd.f32 %v1350, %v1398
      %1400 = vdwg.mxu0
      %1401 = vmatpush.bf16.msra.mxu0 %v1100
      %1402 = vmatpush.bf16.msra.mxu0 %v1099
      %1403 = vmatpush.bf16.msra.mxu0 %v1098
      %1404 = vmatpush.bf16.msra.mxu0 %v1097
      %1405 = vmatpush.bf16.msra.mxu0 %v1096
      %1406 = vmatpush.bf16.msra.mxu0 %v1095
      %1407 = vmatpush.bf16.msra.mxu0 %v1094
      %1408 = vmatpush.bf16.msra.mxu0 %v1093
      %1409 = vmatmul.bf16.gmra.mxu0 %v633
      %v1410 = vpop.f32.mrf.mxu0
      %v1411 = vadd.f32 %v1362, %v1410
      %v1412 = vpop.f32.mrf.mxu0
      %v1413 = vadd.f32 %v1364, %v1412
      %1414 = vmatmul.bf16.gmra.mxu0 %v642
      %v1415 = vpop.f32.mrf.mxu0
      %v1416 = vadd.f32 %v1367, %v1415
      %v1417 = vpop.f32.mrf.mxu0
      %v1418 = vadd.f32 %v1369, %v1417
      %1419 = vmatmul.bf16.gmra.mxu0 %v651
      %v1420 = vpop.f32.mrf.mxu0
      %v1421 = vadd.f32 %v1372, %v1420
      %v1422 = vpop.f32.mrf.mxu0
      %v1423 = vadd.f32 %v1374, %v1422
      %1424 = vmatmul.bf16.gmra.mxu0 %v660
      %v1425 = vpop.f32.mrf.mxu0
      %v1426 = vadd.f32 %v1377, %v1425
      %v1427 = vpop.f32.mrf.mxu0
      %v1428 = vadd.f32 %v1379, %v1427
      %1429 = vmatmul.bf16.gmra.mxu0 %v669
      %v1430 = vpop.f32.mrf.mxu0
      %v1431 = vadd.f32 %v1382, %v1430
      %v1432 = vpop.f32.mrf.mxu0
      %v1433 = vadd.f32 %v1384, %v1432
      %1434 = vmatmul.bf16.gmra.mxu0 %v678
      %v1435 = vpop.f32.mrf.mxu0
      %v1436 = vadd.f32 %v1387, %v1435
      %v1437 = vpop.f32.mrf.mxu0
      %v1438 = vadd.f32 %v1389, %v1437
      %1439 = vmatmul.bf16.gmra.mxu0 %v687
      %v1440 = vpop.f32.mrf.mxu0
      %v1441 = vadd.f32 %v1392, %v1440
      %v1442 = vpop.f32.mrf.mxu0
      %v1443 = vadd.f32 %v1394, %v1442
      %1444 = vmatmul.bf16.gmra.mxu0 %v696
      %v1445 = vpop.f32.mrf.mxu0
      %v1446 = vadd.f32 %v1397, %v1445
      %v1447 = vpop.f32.mrf.mxu0
      %v1448 = vadd.f32 %v1399, %v1447
      %1449 = vdwg.mxu0
      %1450 = vmatpush.bf16.msra.mxu0 %v1108
      %1451 = vmatpush.bf16.msra.mxu0 %v1107
      %1452 = vmatpush.bf16.msra.mxu0 %v1106
      %1453 = vmatpush.bf16.msra.mxu0 %v1105
      %1454 = vmatpush.bf16.msra.mxu0 %v1104
      %1455 = vmatpush.bf16.msra.mxu0 %v1103
      %1456 = vmatpush.bf16.msra.mxu0 %v1102
      %1457 = vmatpush.bf16.msra.mxu0 %v1101
      %1458 = vmatmul.bf16.gmra.mxu0 %v634
      %v1459 = vpop.f32.mrf.mxu0
      %v1460 = vadd.f32 %v1411, %v1459
      %v1461 = vpop.f32.mrf.mxu0
      %v1462 = vadd.f32 %v1413, %v1461
      %1463 = vmatmul.bf16.gmra.mxu0 %v643
      %v1464 = vpop.f32.mrf.mxu0
      %v1465 = vadd.f32 %v1416, %v1464
      %v1466 = vpop.f32.mrf.mxu0
      %v1467 = vadd.f32 %v1418, %v1466
      %1468 = vmatmul.bf16.gmra.mxu0 %v652
      %v1469 = vpop.f32.mrf.mxu0
      %v1470 = vadd.f32 %v1421, %v1469
      %v1471 = vpop.f32.mrf.mxu0
      %v1472 = vadd.f32 %v1423, %v1471
      %1473 = vmatmul.bf16.gmra.mxu0 %v661
      %v1474 = vpop.f32.mrf.mxu0
      %v1475 = vadd.f32 %v1426, %v1474
      %v1476 = vpop.f32.mrf.mxu0
      %v1477 = vadd.f32 %v1428, %v1476
      %1478 = vmatmul.bf16.gmra.mxu0 %v670
      %v1479 = vpop.f32.mrf.mxu0
      %v1480 = vadd.f32 %v1431, %v1479
      %v1481 = vpop.f32.mrf.mxu0
      %v1482 = vadd.f32 %v1433, %v1481
      %1483 = vmatmul.bf16.gmra.mxu0 %v679
      %v1484 = vpop.f32.mrf.mxu0
      %v1485 = vadd.f32 %v1436, %v1484
      %v1486 = vpop.f32.mrf.mxu0
      %v1487 = vadd.f32 %v1438, %v1486
      %1488 = vmatmul.bf16.gmra.mxu0 %v688
      %v1489 = vpop.f32.mrf.mxu0
      %v1490 = vadd.f32 %v1441, %v1489
      %v1491 = vpop.f32.mrf.mxu0
      %v1492 = vadd.f32 %v1443, %v1491
      %1493 = vmatmul.bf16.gmra.mxu0 %v697
      %v1494 = vpop.f32.mrf.mxu0
      %v1495 = vadd.f32 %v1446, %v1494
      %v1496 = vpop.f32.mrf.mxu0
      %v1497 = vadd.f32 %v1448, %v1496
      %1498 = vdwg.mxu0
      %1499 = vmatpush.bf16.msra.mxu0 %v1116
      %1500 = vmatpush.bf16.msra.mxu0 %v1115
      %1501 = vmatpush.bf16.msra.mxu0 %v1114
      %1502 = vmatpush.bf16.msra.mxu0 %v1113
      %1503 = vmatpush.bf16.msra.mxu0 %v1112
      %1504 = vmatpush.bf16.msra.mxu0 %v1111
      %1505 = vmatpush.bf16.msra.mxu0 %v1110
      %1506 = vmatpush.bf16.msra.mxu0 %v1109
      %1507 = vmatmul.bf16.gmra.mxu0 %v635
      %v1508 = vpop.f32.mrf.mxu0
      %v1509 = vadd.f32 %v1460, %v1508
      %v1510 = vpop.f32.mrf.mxu0
      %v1511 = vadd.f32 %v1462, %v1510
      %1512 = vmatmul.bf16.gmra.mxu0 %v644
      %v1513 = vpop.f32.mrf.mxu0
      %v1514 = vadd.f32 %v1465, %v1513
      %v1515 = vpop.f32.mrf.mxu0
      %v1516 = vadd.f32 %v1467, %v1515
      %1517 = vmatmul.bf16.gmra.mxu0 %v653
      %v1518 = vpop.f32.mrf.mxu0
      %v1519 = vadd.f32 %v1470, %v1518
      %v1520 = vpop.f32.mrf.mxu0
      %v1521 = vadd.f32 %v1472, %v1520
      %1522 = vmatmul.bf16.gmra.mxu0 %v662
      %v1523 = vpop.f32.mrf.mxu0
      %v1524 = vadd.f32 %v1475, %v1523
      %v1525 = vpop.f32.mrf.mxu0
      %v1526 = vadd.f32 %v1477, %v1525
      %1527 = vmatmul.bf16.gmra.mxu0 %v671
      %v1528 = vpop.f32.mrf.mxu0
      %v1529 = vadd.f32 %v1480, %v1528
      %v1530 = vpop.f32.mrf.mxu0
      %v1531 = vadd.f32 %v1482, %v1530
      %1532 = vmatmul.bf16.gmra.mxu0 %v680
      %v1533 = vpop.f32.mrf.mxu0
      %v1534 = vadd.f32 %v1485, %v1533
      %v1535 = vpop.f32.mrf.mxu0
      %v1536 = vadd.f32 %v1487, %v1535
      %1537 = vmatmul.bf16.gmra.mxu0 %v689
      %v1538 = vpop.f32.mrf.mxu0
      %v1539 = vadd.f32 %v1490, %v1538
      %v1540 = vpop.f32.mrf.mxu0
      %v1541 = vadd.f32 %v1492, %v1540
      %1542 = vmatmul.bf16.gmra.mxu0 %v698
      %v1543 = vpop.f32.mrf.mxu0
      %v1544 = vadd.f32 %v1495, %v1543
      %v1545 = vpop.f32.mrf.mxu0
      %v1546 = vadd.f32 %v1497, %v1545
      %1547 = vdwg.mxu0
      %1548 = vmatpush.bf16.msra.mxu0 %v1124
      %1549 = vmatpush.bf16.msra.mxu0 %v1123
      %1550 = vmatpush.bf16.msra.mxu0 %v1122
      %1551 = vmatpush.bf16.msra.mxu0 %v1121
      %1552 = vmatpush.bf16.msra.mxu0 %v1120
      %1553 = vmatpush.bf16.msra.mxu0 %v1119
      %1554 = vmatpush.bf16.msra.mxu0 %v1118
      %1555 = vmatpush.bf16.msra.mxu0 %v1117
      %1556 = vmatmul.bf16.gmra.mxu0 %v636
      %v1557 = vpop.f32.mrf.mxu0
      %v1558 = vadd.f32 %v1509, %v1557
      %v1559 = vpop.f32.mrf.mxu0
      %v1560 = vadd.f32 %v1511, %v1559
      %1561 = vmatmul.bf16.gmra.mxu0 %v645
      %v1562 = vpop.f32.mrf.mxu0
      %v1563 = vadd.f32 %v1514, %v1562
      %v1564 = vpop.f32.mrf.mxu0
      %v1565 = vadd.f32 %v1516, %v1564
      %1566 = vmatmul.bf16.gmra.mxu0 %v654
      %v1567 = vpop.f32.mrf.mxu0
      %v1568 = vadd.f32 %v1519, %v1567
      %v1569 = vpop.f32.mrf.mxu0
      %v1570 = vadd.f32 %v1521, %v1569
      %1571 = vmatmul.bf16.gmra.mxu0 %v663
      %v1572 = vpop.f32.mrf.mxu0
      %v1573 = vadd.f32 %v1524, %v1572
      %v1574 = vpop.f32.mrf.mxu0
      %v1575 = vadd.f32 %v1526, %v1574
      %1576 = vmatmul.bf16.gmra.mxu0 %v672
      %v1577 = vpop.f32.mrf.mxu0
      %v1578 = vadd.f32 %v1529, %v1577
      %v1579 = vpop.f32.mrf.mxu0
      %v1580 = vadd.f32 %v1531, %v1579
      %1581 = vmatmul.bf16.gmra.mxu0 %v681
      %v1582 = vpop.f32.mrf.mxu0
      %v1583 = vadd.f32 %v1534, %v1582
      %v1584 = vpop.f32.mrf.mxu0
      %v1585 = vadd.f32 %v1536, %v1584
      %1586 = vmatmul.bf16.gmra.mxu0 %v690
      %v1587 = vpop.f32.mrf.mxu0
      %v1588 = vadd.f32 %v1539, %v1587
      %v1589 = vpop.f32.mrf.mxu0
      %v1590 = vadd.f32 %v1541, %v1589
      %1591 = vmatmul.bf16.gmra.mxu0 %v699
      %v1592 = vpop.f32.mrf.mxu0
      %v1593 = vadd.f32 %v1544, %v1592
      %v1594 = vpop.f32.mrf.mxu0
      %v1595 = vadd.f32 %v1546, %v1594
      %1596 = vdwg.mxu0
      %1597 = vmatpush.bf16.msra.mxu0 %v1132
      %1598 = vmatpush.bf16.msra.mxu0 %v1131
      %1599 = vmatpush.bf16.msra.mxu0 %v1130
      %1600 = vmatpush.bf16.msra.mxu0 %v1129
      %1601 = vmatpush.bf16.msra.mxu0 %v1128
      %1602 = vmatpush.bf16.msra.mxu0 %v1127
      %1603 = vmatpush.bf16.msra.mxu0 %v1126
      %1604 = vmatpush.bf16.msra.mxu0 %v1125
      %1605 = vmatmul.bf16.gmra.mxu0 %v637
      %v1606 = vpop.f32.mrf.mxu0
      %v1607 = vadd.f32 %v1558, %v1606
      %v1608 = vpop.f32.mrf.mxu0
      %v1609 = vadd.f32 %v1560, %v1608
      %1610 = vmatmul.bf16.gmra.mxu0 %v646
      %v1611 = vpop.f32.mrf.mxu0
      %v1612 = vadd.f32 %v1563, %v1611
      %v1613 = vpop.f32.mrf.mxu0
      %v1614 = vadd.f32 %v1565, %v1613
      %1615 = vmatmul.bf16.gmra.mxu0 %v655
      %v1616 = vpop.f32.mrf.mxu0
      %v1617 = vadd.f32 %v1568, %v1616
      %v1618 = vpop.f32.mrf.mxu0
      %v1619 = vadd.f32 %v1570, %v1618
      %1620 = vmatmul.bf16.gmra.mxu0 %v664
      %v1621 = vpop.f32.mrf.mxu0
      %v1622 = vadd.f32 %v1573, %v1621
      %v1623 = vpop.f32.mrf.mxu0
      %v1624 = vadd.f32 %v1575, %v1623
      %1625 = vmatmul.bf16.gmra.mxu0 %v673
      %v1626 = vpop.f32.mrf.mxu0
      %v1627 = vadd.f32 %v1578, %v1626
      %v1628 = vpop.f32.mrf.mxu0
      %v1629 = vadd.f32 %v1580, %v1628
      %1630 = vmatmul.bf16.gmra.mxu0 %v682
      %v1631 = vpop.f32.mrf.mxu0
      %v1632 = vadd.f32 %v1583, %v1631
      %v1633 = vpop.f32.mrf.mxu0
      %v1634 = vadd.f32 %v1585, %v1633
      %1635 = vmatmul.bf16.gmra.mxu0 %v691
      %v1636 = vpop.f32.mrf.mxu0
      %v1637 = vadd.f32 %v1588, %v1636
      %v1638 = vpop.f32.mrf.mxu0
      %v1639 = vadd.f32 %v1590, %v1638
      %1640 = vmatmul.bf16.gmra.mxu0 %v700
      %v1641 = vpop.f32.mrf.mxu0
      %v1642 = vadd.f32 %v1593, %v1641
      %v1643 = vpop.f32.mrf.mxu0
      %v1644 = vadd.f32 %v1595, %v1643
      %1645 = vdwg.mxu0
      %v1646 = vmax.f32 %v1607, 0.0
      %v1647 = vmax.f32 %v1609, 0.0
      %v1648 = vmax.f32 %v1612, 0.0
      %v1649 = vmax.f32 %v1614, 0.0
      %v1650 = vmax.f32 %v1617, 0.0
      %v1651 = vmax.f32 %v1619, 0.0
      %v1652 = vmax.f32 %v1622, 0.0
      %v1653 = vmax.f32 %v1624, 0.0
      %v1654 = vmax.f32 %v1627, 0.0
      %v1655 = vmax.f32 %v1629, 0.0
      %v1656 = vmax.f32 %v1632, 0.0
      %v1657 = vmax.f32 %v1634, 0.0
      %v1658 = vmax.f32 %v1637, 0.0
      %v1659 = vmax.f32 %v1639, 0.0
      %v1660 = vmax.f32 %v1642, 0.0
      %v1661 = vmax.f32 %v1644, 0.0
      %v1662 = vpack.c.bf16 %v1646, %v1646
      %v1663 = vpack.c.bf16 %v1647, %v1647
      %v1664 = vpack.c.bf16 %v1648, %v1648
      %v1665 = vpack.c.bf16 %v1649, %v1649
      %v1666 = vpack.c.bf16 %v1650, %v1650
      %v1667 = vpack.c.bf16 %v1651, %v1651
      %v1668 = vpack.c.bf16 %v1652, %v1652
      %v1669 = vpack.c.bf16 %v1653, %v1653
      %v1670 = vpack.c.bf16 %v1654, %v1654
      %v1671 = vpack.c.bf16 %v1655, %v1655
      %v1672 = vpack.c.bf16 %v1656, %v1656
      %v1673 = vpack.c.bf16 %v1657, %v1657
      %v1674 = vpack.c.bf16 %v1658, %v1658
      %v1675 = vpack.c.bf16 %v1659, %v1659
      %v1676 = vpack.c.bf16 %v1660, %v1660
      %v1677 = vpack.c.bf16 %v1661, %v1661
      %1678 = vst [vmem:[%s175] sm:$0xf] %v1662
      %1679 = vst [vmem:[%s175 + $0x4] sm:$0xf] %v1663
      %1680 = vst [vmem:[%s175 + $0x8] sm:$0xf] %v1664
      %1681 = vst [vmem:[%s175 + $0xc] sm:$0xf] %v1665
      %1682 = vst [vmem:[%s175 + $0x10] sm:$0xf] %v1666
      %1683 = vst [vmem:[%s175 + $0x14] sm:$0xf] %v1667
      %1684 = vst [vmem:[%s175 + $0x18] sm:$0xf] %v1668
      %1685 = vst [vmem:[%s175 + $0x1c] sm:$0xf] %v1669
      %1686 = vst [vmem:[%s175 + $0x20] sm:$0xf] %v1670
      %1687 = vst [vmem:[%s175 + $0x24] sm:$0xf] %v1671
      %1688 = vst [vmem:[%s175 + $0x28] sm:$0xf] %v1672
      %1689 = vst [vmem:[%s175 + $0x2c] sm:$0xf] %v1673
      %1690 = vst [vmem:[%s175 + $0x30] sm:$0xf] %v1674
      %1691 = vst [vmem:[%s175 + $0x34] sm:$0xf] %v1675
      %1692 = vst [vmem:[%s175 + $0x38] sm:$0xf] %v1676
      %1693 = vst [vmem:[%s175 + $0x3c] sm:$0xf] %v1677
      %s1694 = smul.u32 16, %s14
      %p1695 = scmp.lt.s32.totalorder %s1694, 31
      %s1696 = scalar_select %p1695, %s1694, 31
      %s1697 = smul.addr %s1696, 4
      %s1698 = scalar_lea.vmem %s3, %s1697
      // Predicated region
      $region33: #{forward.16} parent=31 // pred_check
        %p1699 = pneg %p100
      $region34: #{forward.16} parent=31 // pred_check_branch
        %1701 = sbr.rel (%p1699) target = $region36
      $region35: #{forward.16} parent=31 // pred_region
        %s1702 = smul.u32 16, %s14
      $region36: #{forward.16} parent=31 // pred_fallthru
        _
    $region32: #{forward.16} parent=5 // pred_fallthru
      _
    %p1703 = scmp.le.s32.totalorder 2, %s9
    // Predicated region
    $region37: #{forward.16} parent=5 // pred_check
      %p1704 = pneg %p1703
    $region38: #{forward.16} parent=5 // pred_check_branch
      %1706 = sbr.rel (%p1704) target = $region40
    $region39: #{forward.16} parent=5 // pred_region
      %s1707 = ssub.s32 %s9, 2
      // Predicated region
      $region41: #{forward.16} parent=39 // pred_check
        %p1708 = pneg %p106
      $region42: #{forward.16} parent=39 // pred_check_branch
        %1710 = sbr.rel (%p1708) target = $region44
      $region43: #{forward.16} parent=39 // pred_region
        %s1711 = smul.u32 16, %s15
        %p1712 = scmp.lt.s32.totalorder %s1711, 31
        %s1713 = scalar_select %p1712, %s1711, 31
        %s1714 = smul.addr %s1713, 4
        %s1715 = scalar_lea.vmem %s3, %s1714
      $region44: #{forward.16} parent=39 // pred_fallthru
        _
    $region40: #{forward.16} parent=5 // pred_fallthru
      _
  $region6: #{forward.16} parent=0 // loop_footer
    %s13 = sadd.s32 1, %s9
  $region7: #{forward.16} parent=0 // loop_footer_branch
    %8 = sbr.rel target = $region3
  $region8: #{forward.16} parent=0 // loop_exit
    _

// kernel: forward.20
$region0: #{forward.20}
  #allocation0 [shape = 'u32[]', space=smem, size = 0x4, offset = 0x4, fixed_abs, tag = 'smem constant byte address 0x4 - core index']
  #allocation1 [shape = 'u32[72,128]{1,0:T(1,128)}', space=vmem, size = 0x9000, scoped, tag = 'internal scratch']
  %s0 = inlined_call_operand.vmem [shape: bf16[64,128], index: 0, kind: input, shape index: {}]
  %s1 = inlined_call_operand.vmem [shape: bf16[128,128], index: 1, kind: input, shape index: {}]
  %s2 = inlined_call_operand.vmem [shape: f32[1,128], index: 2, kind: input, shape index: {}]
  %s3 = inlined_call_operand.vmem [shape: bf16[64,128], index: 3, kind: input, shape index: {}]
  %s4 = inlined_call_operand.vmem [shape: bf16[128,128], index: 4, kind: input, shape index: {}]
  %s5 = inlined_call_operand.vmem [shape: f32[1,128], index: 5, kind: input, shape index: {}]
  %s6 = inlined_call_operand.vmem [shape: bf16[64,128], index: 6, kind: output, shape index: {}]
  %s7 = sld [smem:[#allocation0]]
  $region34: #{forward.20} parent=0
    _
  %s9 = ssub.s32 1, %s7
  %s10 = scalar_select 0, %s9, %s7
  // Predicated region
  $region2: #{forward.20} parent=0 // pred_check
    _
  $region3: #{forward.20} parent=0 // pred_check_branch
    %12 = sbr.rel (0) target = $region5
  $region4: #{forward.20} parent=0 // pred_region
    _
  $region5: #{forward.20} parent=0 // pred_fallthru
    _
  // Predicated region
  $region6: #{forward.20} parent=0 // pred_check
    _
  $region7: #{forward.20} parent=0 // pred_check_branch
    %14 = sbr.rel (0) target = $region9
  $region8: #{forward.20} parent=0 // pred_region
    _
  $region9: #{forward.20} parent=0 // pred_fallthru
    _
  // Predicated region
  $region10: #{forward.20} parent=0 // pred_check
    _
  $region11: #{forward.20} parent=0 // pred_check_branch
    %16 = sbr.rel (0) target = $region13
  $region12: #{forward.20} parent=0 // pred_region
    _
  $region13: #{forward.20} parent=0 // pred_fallthru
    _
  // Predicated region
  $region14: #{forward.20} parent=0 // pred_check
    _
  $region15: #{forward.20} parent=0 // pred_check_branch
    %18 = sbr.rel (0) target = $region17
  $region16: #{forward.20} parent=0 // pred_region
    _
  $region17: #{forward.20} parent=0 // pred_fallthru
    _
  // Predicated region
  $region18: #{forward.20} parent=0 // pred_check
    _
  $region19: #{forward.20} parent=0 // pred_check_branch
    %20 = sbr.rel (0) target = $region21
  $region20: #{forward.20} parent=0 // pred_region
    _
  $region21: #{forward.20} parent=0 // pred_fallthru
    _
  // Predicated region
  $region22: #{forward.20} parent=0 // pred_check
    _
  $region23: #{forward.20} parent=0 // pred_check_branch
    %22 = sbr.rel (0) target = $region25
  $region24: #{forward.20} parent=0 // pred_region
    _
  $region25: #{forward.20} parent=0 // pred_fallthru
    _
  %v23 = vld [vmem:[%s0] sm:$0xf]
  %v24 = vld [vmem:[%s0 + $0x4] sm:$0xf]
  %v25 = vld [vmem:[%s0 + $0x8] sm:$0xf]
  %v26 = vld [vmem:[%s0 + $0xc] sm:$0xf]
  %v27 = vld [vmem:[%s0 + $0x10] sm:$0xf]
  %v28 = vld [vmem:[%s0 + $0x14] sm:$0xf]
  %v29 = vld [vmem:[%s0 + $0x18] sm:$0xf]
  %v30 = vld [vmem:[%s0 + $0x1c] sm:$0xf]
  %v31 = vld [vmem:[%s1] sm:$0xf]
  %v32 = vld [vmem:[%s1 + $0x4] sm:$0xf]
  %v33 = vld [vmem:[%s1 + $0x8] sm:$0xf]
  %v34 = vld [vmem:[%s1 + $0xc] sm:$0xf]
  %v35 = vld [vmem:[%s1 + $0x10] sm:$0xf]
  %v36 = vld [vmem:[%s1 + $0x14] sm:$0xf]
  %v37 = vld [vmem:[%s1 + $0x18] sm:$0xf]
  %v38 = vld [vmem:[%s1 + $0x1c] sm:$0xf]
  %v39 = vld [vmem:[%s1 + $0x20] sm:$0xf]
  %v40 = vld [vmem:[%s1 + $0x24] sm:$0xf]
  %v41 = vld [vmem:[%s1 + $0x28] sm:$0xf]
  %v42 = vld [vmem:[%s1 + $0x2c] sm:$0xf]
  %v43 = vld [vmem:[%s1 + $0x30] sm:$0xf]
  %v44 = vld [vmem:[%s1 + $0x34] sm:$0xf]
  %v45 = vld [vmem:[%s1 + $0x38] sm:$0xf]
  %v46 = vld [vmem:[%s1 + $0x3c] sm:$0xf]
  %v47 = vld [vmem:[%s2] sm:$0x1]
  %v49 = vperm.slane %v47, 0
  %v59 = vunpack.c.l.b16 %v23
  %v60 = vunpack.c.l.b16 %v24
  %v61 = vunpack.c.l.b16 %v25
  %v62 = vunpack.c.l.b16 %v26
  %v63 = vunpack.c.l.b16 %v27
  %v64 = vunpack.c.l.b16 %v28
  %v65 = vunpack.c.l.b16 %v29
  %v66 = vunpack.c.l.b16 %v30
  %v67 = vpack.c.b16 %v60, %v59
  %v68 = vpack.c.b16 %v62, %v61
  %v69 = vpack.c.b16 %v64, %v63
  %v70 = vpack.c.b16 %v66, %v65
  %v91 = vunpack.c.l.b16 %v31
  %v92 = vunpack.c.l.b16 %v32
  %v93 = vunpack.c.l.b16 %v33
  %v94 = vunpack.c.l.b16 %v34
  %v95 = vunpack.c.l.b16 %v35
  %v96 = vunpack.c.l.b16 %v36
  %v97 = vunpack.c.l.b16 %v37
  %v98 = vunpack.c.l.b16 %v38
  %v99 = vunpack.c.l.b16 %v39
  %v100 = vunpack.c.l.b16 %v40
  %v101 = vunpack.c.l.b16 %v41
  %v102 = vunpack.c.l.b16 %v42
  %v103 = vunpack.c.l.b16 %v43
  %v104 = vunpack.c.l.b16 %v44
  %v105 = vunpack.c.l.b16 %v45
  %v106 = vunpack.c.l.b16 %v46
  %v107 = vpack.c.b16 %v92, %v91
  %v108 = vpack.c.b16 %v94, %v93
  %v109 = vpack.c.b16 %v96, %v95
  %v110 = vpack.c.b16 %v98, %v97
  %v111 = vpack.c.b16 %v100, %v99
  %v112 = vpack.c.b16 %v102, %v101
  %v113 = vpack.c.b16 %v104, %v103
  %v114 = vpack.c.b16 %v106, %v105
  %123 = vmatpush.bf16.msra.mxu0 %v114
  %124 = vmatpush.bf16.msra.mxu0 %v113
  %125 = vmatpush.bf16.msra.mxu0 %v112
  %126 = vmatpush.bf16.msra.mxu0 %v111
  %127 = vmatpush.bf16.msra.mxu0 %v110
  %128 = vmatpush.bf16.msra.mxu0 %v109
  %129 = vmatpush.bf16.msra.mxu0 %v108
  %130 = vmatpush.bf16.msra.mxu0 %v107
  %131 = vmatmul.bf16.gmra.mxu0 %v67
  %v132 = vpop.f32.mrf.mxu0
  %v133 = vadd.f32 %v49, %v132
  %v134 = vpop.f32.mrf.mxu0
  %v135 = vadd.f32 %v49, %v134
  %136 = vmatmul.bf16.gmra.mxu0 %v68
  %v137 = vpop.f32.mrf.mxu0
  %v138 = vadd.f32 %v49, %v137
  %v139 = vpop.f32.mrf.mxu0
  %v140 = vadd.f32 %v49, %v139
  %141 = vmatmul.bf16.gmra.mxu0 %v69
  %v142 = vpop.f32.mrf.mxu0
  %v143 = vadd.f32 %v49, %v142
  %v144 = vpop.f32.mrf.mxu0
  %v145 = vadd.f32 %v49, %v144
  %146 = vmatmul.bf16.gmra.mxu0 %v70
  %v147 = vpop.f32.mrf.mxu0
  %v148 = vadd.f32 %v49, %v147
  %v149 = vpop.f32.mrf.mxu0
  %v150 = vadd.f32 %v49, %v149
  %151 = vdwg.mxu0
  %v152 = vld [vmem:[%s3] sm:$0xf]
  %v153 = vld [vmem:[%s3 + $0x4] sm:$0xf]
  %v154 = vld [vmem:[%s3 + $0x8] sm:$0xf]
  %v155 = vld [vmem:[%s3 + $0xc] sm:$0xf]
  %v156 = vld [vmem:[%s3 + $0x10] sm:$0xf]
  %v157 = vld [vmem:[%s3 + $0x14] sm:$0xf]
  %v158 = vld [vmem:[%s3 + $0x18] sm:$0xf]
  %v159 = vld [vmem:[%s3 + $0x1c] sm:$0xf]
  %v160 = vld [vmem:[%s4] sm:$0xf]
  %v161 = vld [vmem:[%s4 + $0x4] sm:$0xf]
  %v162 = vld [vmem:[%s4 + $0x8] sm:$0xf]
  %v163 = vld [vmem:[%s4 + $0xc] sm:$0xf]
  %v164 = vld [vmem:[%s4 + $0x10] sm:$0xf]
  %v165 = vld [vmem:[%s4 + $0x14] sm:$0xf]
  %v166 = vld [vmem:[%s4 + $0x18] sm:$0xf]
  %v167 = vld [vmem:[%s4 + $0x1c] sm:$0xf]
  %v168 = vld [vmem:[%s4 + $0x20] sm:$0xf]
  %v169 = vld [vmem:[%s4 + $0x24] sm:$0xf]
  %v170 = vld [vmem:[%s4 + $0x28] sm:$0xf]
  %v171 = vld [vmem:[%s4 + $0x2c] sm:$0xf]
  %v172 = vld [vmem:[%s4 + $0x30] sm:$0xf]
  %v173 = vld [vmem:[%s4 + $0x34] sm:$0xf]
  %v174 = vld [vmem:[%s4 + $0x38] sm:$0xf]
  %v175 = vld [vmem:[%s4 + $0x3c] sm:$0xf]
  %v184 = vunpack.c.l.b16 %v152
  %v185 = vunpack.c.l.b16 %v153
  %v186 = vunpack.c.l.b16 %v154
  %v187 = vunpack.c.l.b16 %v155
  %v188 = vunpack.c.l.b16 %v156
  %v189 = vunpack.c.l.b16 %v157
  %v190 = vunpack.c.l.b16 %v158
  %v191 = vunpack.c.l.b16 %v159
  %v192 = vpack.c.b16 %v185, %v184
  %v193 = vpack.c.b16 %v187, %v186
  %v194 = vpack.c.b16 %v189, %v188
  %v195 = vpack.c.b16 %v191, %v190
  %v216 = vunpack.c.l.b16 %v160
  %v217 = vunpack.c.l.b16 %v161
  %v218 = vunpack.c.l.b16 %v162
  %v219 = vunpack.c.l.b16 %v163
  %v220 = vunpack.c.l.b16 %v164
  %v221 = vunpack.c.l.b16 %v165
  %v222 = vunpack.c.l.b16 %v166
  %v223 = vunpack.c.l.b16 %v167
  %v224 = vunpack.c.l.b16 %v168
  %v225 = vunpack.c.l.b16 %v169
  %v226 = vunpack.c.l.b16 %v170
  %v227 = vunpack.c.l.b16 %v171
  %v228 = vunpack.c.l.b16 %v172
  %v229 = vunpack.c.l.b16 %v173
  %v230 = vunpack.c.l.b16 %v174
  %v231 = vunpack.c.l.b16 %v175
  %v232 = vpack.c.b16 %v217, %v216
  %v233 = vpack.c.b16 %v219, %v218
  %v234 = vpack.c.b16 %v221, %v220
  %v235 = vpack.c.b16 %v223, %v222
  %v236 = vpack.c.b16 %v225, %v224
  %v237 = vpack.c.b16 %v227, %v226
  %v238 = vpack.c.b16 %v229, %v228
  %v239 = vpack.c.b16 %v231, %v230
  %248 = vmatpush.bf16.msra.mxu0 %v239
  %249 = vmatpush.bf16.msra.mxu0 %v238
  %250 = vmatpush.bf16.msra.mxu0 %v237
  %251 = vmatpush.bf16.msra.mxu0 %v236
  %252 = vmatpush.bf16.msra.mxu0 %v235
  %253 = vmatpush.bf16.msra.mxu0 %v234
  %254 = vmatpush.bf16.msra.mxu0 %v233
  %255 = vmatpush.bf16.msra.mxu0 %v232
  %256 = vmatmul.bf16.gmra.mxu0 %v192
  %v257 = vpop.f32.mrf.mxu0
  %v258 = vadd.f32 0.0, %v257
  %v259 = vpop.f32.mrf.mxu0
  %v260 = vadd.f32 0.0, %v259
  %261 = vmatmul.bf16.gmra.mxu0 %v193
  %v262 = vpop.f32.mrf.mxu0
  %v263 = vadd.f32 0.0, %v262
  %v264 = vpop.f32.mrf.mxu0
  %v265 = vadd.f32 0.0, %v264
  %266 = vmatmul.bf16.gmra.mxu0 %v194
  %v267 = vpop.f32.mrf.mxu0
  %v268 = vadd.f32 0.0, %v267
  %v269 = vpop.f32.mrf.mxu0
  %v270 = vadd.f32 0.0, %v269
  %271 = vmatmul.bf16.gmra.mxu0 %v195
  %v272 = vpop.f32.mrf.mxu0
  %v273 = vadd.f32 0.0, %v272
  %v274 = vpop.f32.mrf.mxu0
  %v275 = vadd.f32 0.0, %v274
  %276 = vdwg.mxu0
  %v277 = vadd.f32 %v133, %v258
  %v278 = vadd.f32 %v135, %v260
  %v279 = vadd.f32 %v138, %v263
  %v280 = vadd.f32 %v140, %v265
  %v281 = vadd.f32 %v143, %v268
  %v282 = vadd.f32 %v145, %v270
  %v283 = vadd.f32 %v148, %v273
  %v284 = vadd.f32 %v150, %v275
  %v285 = vld [vmem:[%s5] sm:$0x1]
  %v287 = vperm.slane %v285, 0
  %v289 = vadd.f32 %v277, %v287
  %v290 = vadd.f32 %v278, %v287
  %v291 = vadd.f32 %v279, %v287
  %v292 = vadd.f32 %v280, %v287
  %v293 = vadd.f32 %v281, %v287
  %v294 = vadd.f32 %v282, %v287
  %v295 = vadd.f32 %v283, %v287
  %v296 = vadd.f32 %v284, %v287
  %v297 = vmax.f32 %v289, 0.0
  %v298 = vmax.f32 %v290, 0.0
  %v299 = vmax.f32 %v291, 0.0
  %v300 = vmax.f32 %v292, 0.0
  %v301 = vmax.f32 %v293, 0.0
  %v302 = vmax.f32 %v294, 0.0
  %v303 = vmax.f32 %v295, 0.0
  %v304 = vmax.f32 %v296, 0.0
  %v305 = vpack.c.bf16 %v297, %v297
  %v306 = vpack.c.bf16 %v298, %v298
  %v307 = vpack.c.bf16 %v299, %v299
  %v308 = vpack.c.bf16 %v300, %v300
  %v309 = vpack.c.bf16 %v301, %v301
  %v310 = vpack.c.bf16 %v302, %v302
  %v311 = vpack.c.bf16 %v303, %v303
  %v312 = vpack.c.bf16 %v304, %v304
  %313 = vst [vmem:[%s6] sm:$0xf] %v305
  %314 = vst [vmem:[%s6 + $0x4] sm:$0xf] %v306
  %315 = vst [vmem:[%s6 + $0x8] sm:$0xf] %v307
  %316 = vst [vmem:[%s6 + $0xc] sm:$0xf] %v308
  %317 = vst [vmem:[%s6 + $0x10] sm:$0xf] %v309
  %318 = vst [vmem:[%s6 + $0x14] sm:$0xf] %v310
  %319 = vst [vmem:[%s6 + $0x18] sm:$0xf] %v311
  %320 = vst [vmem:[%s6 + $0x1c] sm:$0xf] %v312
  // Predicated region
  $region26: #{forward.20} parent=0 // pred_check
    _
  $region27: #{forward.20} parent=0 // pred_check_branch
    %322 = sbr.rel (0) target = $region29
  $region28: #{forward.20} parent=0 // pred_region
    _
  $region29: #{forward.20} parent=0 // pred_fallthru
    _
  // Predicated region
  $region30: #{forward.20} parent=0 // pred_check
    _
  $region31: #{forward.20} parent=0 // pred_check_branch
    %324 = sbr.rel (0) target = $region33
  $region32: #{forward.20} parent=0 // pred_region
    _
  $region33: #{forward.20} parent=0 // pred_fallthru
    _

// kernel: forward.21
$region0: #{forward.21}
  #allocation0 [shape = 'u32[]', space=smem, size = 0x4, offset = 0x4, fixed_abs, tag = 'smem constant byte address 0x4 - core index']
  #allocation1 [shape = 'u32[72,128]{1,0:T(1,128)}', space=vmem, size = 0x9000, scoped, tag = 'internal scratch']
  %s0 = inlined_call_operand.vmem [shape: bf16[64,128], index: 0, kind: input, shape index: {}]
  %s1 = inlined_call_operand.vmem [shape: bf16[128,128], index: 1, kind: input, shape index: {}]
  %s2 = inlined_call_operand.vmem [shape: f32[1,128], index: 2, kind: input, shape index: {}]
  %s3 = inlined_call_operand.vmem [shape: bf16[64,128], index: 3, kind: output, shape index: {}]
  %s4 = sld [smem:[#allocation0]]
  $region22: #{forward.21} parent=0
    _
  %s6 = ssub.s32 1, %s4
  %s7 = scalar_select 0, %s6, %s4
  // Predicated region
  $region2: #{forward.21} parent=0 // pred_check
    _
  $region3: #{forward.21} parent=0 // pred_check_branch
    %9 = sbr.rel (0) target = $region5
  $region4: #{forward.21} parent=0 // pred_region
    _
  $region5: #{forward.21} parent=0 // pred_fallthru
    _
  // Predicated region
  $region6: #{forward.21} parent=0 // pred_check
    _
  $region7: #{forward.21} parent=0 // pred_check_branch
    %11 = sbr.rel (0) target = $region9
  $region8: #{forward.21} parent=0 // pred_region
    _
  $region9: #{forward.21} parent=0 // pred_fallthru
    _
  // Predicated region
  $region10: #{forward.21} parent=0 // pred_check
    _
  $region11: #{forward.21} parent=0 // pred_check_branch
    %13 = sbr.rel (0) target = $region13
  $region12: #{forward.21} parent=0 // pred_region
    _
  $region13: #{forward.21} parent=0 // pred_fallthru
    _
  %v14 = vld [vmem:[%s0] sm:$0xf]
  %v15 = vld [vmem:[%s0 + $0x4] sm:$0xf]
  %v16 = vld [vmem:[%s0 + $0x8] sm:$0xf]
  %v17 = vld [vmem:[%s0 + $0xc] sm:$0xf]
  %v18 = vld [vmem:[%s0 + $0x10] sm:$0xf]
  %v19 = vld [vmem:[%s0 + $0x14] sm:$0xf]
  %v20 = vld [vmem:[%s0 + $0x18] sm:$0xf]
  %v21 = vld [vmem:[%s0 + $0x1c] sm:$0xf]
  %v22 = vld [vmem:[%s1] sm:$0xf]
  %v23 = vld [vmem:[%s1 + $0x4] sm:$0xf]
  %v24 = vld [vmem:[%s1 + $0x8] sm:$0xf]
  %v25 = vld [vmem:[%s1 + $0xc] sm:$0xf]
  %v26 = vld [vmem:[%s1 + $0x10] sm:$0xf]
  %v27 = vld [vmem:[%s1 + $0x14] sm:$0xf]
  %v28 = vld [vmem:[%s1 + $0x18] sm:$0xf]
  %v29 = vld [vmem:[%s1 + $0x1c] sm:$0xf]
  %v30 = vld [vmem:[%s1 + $0x20] sm:$0xf]
  %v31 = vld [vmem:[%s1 + $0x24] sm:$0xf]
  %v32 = vld [vmem:[%s1 + $0x28] sm:$0xf]
  %v33 = vld [vmem:[%s1 + $0x2c] sm:$0xf]
  %v34 = vld [vmem:[%s1 + $0x30] sm:$0xf]
  %v35 = vld [vmem:[%s1 + $0x34] sm:$0xf]
  %v36 = vld [vmem:[%s1 + $0x38] sm:$0xf]
  %v37 = vld [vmem:[%s1 + $0x3c] sm:$0xf]
  %v38 = vld [vmem:[%s2] sm:$0x1]
  %v40 = vperm.slane %v38, 0
  %v50 = vunpack.c.l.b16 %v14
  %v51 = vunpack.c.l.b16 %v15
  %v52 = vunpack.c.l.b16 %v16
  %v53 = vunpack.c.l.b16 %v17
  %v54 = vunpack.c.l.b16 %v18
  %v55 = vunpack.c.l.b16 %v19
  %v56 = vunpack.c.l.b16 %v20
  %v57 = vunpack.c.l.b16 %v21
  %v58 = vpack.c.b16 %v51, %v50
  %v59 = vpack.c.b16 %v53, %v52
  %v60 = vpack.c.b16 %v55, %v54
  %v61 = vpack.c.b16 %v57, %v56
  %v82 = vunpack.c.l.b16 %v22
  %v83 = vunpack.c.l.b16 %v23
  %v84 = vunpack.c.l.b16 %v24
  %v85 = vunpack.c.l.b16 %v25
  %v86 = vunpack.c.l.b16 %v26
  %v87 = vunpack.c.l.b16 %v27
  %v88 = vunpack.c.l.b16 %v28
  %v89 = vunpack.c.l.b16 %v29
  %v90 = vunpack.c.l.b16 %v30
  %v91 = vunpack.c.l.b16 %v31
  %v92 = vunpack.c.l.b16 %v32
  %v93 = vunpack.c.l.b16 %v33
  %v94 = vunpack.c.l.b16 %v34
  %v95 = vunpack.c.l.b16 %v35
  %v96 = vunpack.c.l.b16 %v36
  %v97 = vunpack.c.l.b16 %v37
  %v98 = vpack.c.b16 %v83, %v82
  %v99 = vpack.c.b16 %v85, %v84
  %v100 = vpack.c.b16 %v87, %v86
  %v101 = vpack.c.b16 %v89, %v88
  %v102 = vpack.c.b16 %v91, %v90
  %v103 = vpack.c.b16 %v93, %v92
  %v104 = vpack.c.b16 %v95, %v94
  %v105 = vpack.c.b16 %v97, %v96
  %114 = vmatpush.bf16.msra.mxu0 %v105
  %115 = vmatpush.bf16.msra.mxu0 %v104
  %116 = vmatpush.bf16.msra.mxu0 %v103
  %117 = vmatpush.bf16.msra.mxu0 %v102
  %118 = vmatpush.bf16.msra.mxu0 %v101
  %119 = vmatpush.bf16.msra.mxu0 %v100
  %120 = vmatpush.bf16.msra.mxu0 %v99
  %121 = vmatpush.bf16.msra.mxu0 %v98
  %122 = vmatmul.bf16.gmra.mxu0 %v58
  %v123 = vpop.f32.mrf.mxu0
  %v124 = vadd.f32 %v40, %v123
  %v125 = vpop.f32.mrf.mxu0
  %v126 = vadd.f32 %v40, %v125
  %127 = vmatmul.bf16.gmra.mxu0 %v59
  %v128 = vpop.f32.mrf.mxu0
  %v129 = vadd.f32 %v40, %v128
  %v130 = vpop.f32.mrf.mxu0
  %v131 = vadd.f32 %v40, %v130
  %132 = vmatmul.bf16.gmra.mxu0 %v60
  %v133 = vpop.f32.mrf.mxu0
  %v134 = vadd.f32 %v40, %v133
  %v135 = vpop.f32.mrf.mxu0
  %v136 = vadd.f32 %v40, %v135
  %137 = vmatmul.bf16.gmra.mxu0 %v61
  %v138 = vpop.f32.mrf.mxu0
  %v139 = vadd.f32 %v40, %v138
  %v140 = vpop.f32.mrf.mxu0
  %v141 = vadd.f32 %v40, %v140
  %142 = vdwg.mxu0
  %v143 = vmax.f32 %v124, 0.0
  %v144 = vmax.f32 %v126, 0.0
  %v145 = vmax.f32 %v129, 0.0
  %v146 = vmax.f32 %v131, 0.0
  %v147 = vmax.f32 %v134, 0.0
  %v148 = vmax.f32 %v136, 0.0
  %v149 = vmax.f32 %v139, 0.0
  %v150 = vmax.f32 %v141, 0.0
  %v151 = vpack.c.bf16 %v143, %v143
  %v152 = vpack.c.bf16 %v144, %v144
  %v153 = vpack.c.bf16 %v145, %v145
  %v154 = vpack.c.bf16 %v146, %v146
  %v155 = vpack.c.bf16 %v147, %v147
  %v156 = vpack.c.bf16 %v148, %v148
  %v157 = vpack.c.bf16 %v149, %v149
  %v158 = vpack.c.bf16 %v150, %v150
  %159 = vst [vmem:[%s3] sm:$0xf] %v151
  %160 = vst [vmem:[%s3 + $0x4] sm:$0xf] %v152
  %161 = vst [vmem:[%s3 + $0x8] sm:$0xf] %v153
  %162 = vst [vmem:[%s3 + $0xc] sm:$0xf] %v154
  %163 = vst [vmem:[%s3 + $0x10] sm:$0xf] %v155
  %164 = vst [vmem:[%s3 + $0x14] sm:$0xf] %v156
  %165 = vst [vmem:[%s3 + $0x18] sm:$0xf] %v157
  %166 = vst [vmem:[%s3 + $0x1c] sm:$0xf] %v158
  // Predicated region
  $region14: #{forward.21} parent=0 // pred_check
    _
  $region15: #{forward.21} parent=0 // pred_check_branch
    %168 = sbr.rel (0) target = $region17
  $region16: #{forward.21} parent=0 // pred_region
    _
  $region17: #{forward.21} parent=0 // pred_fallthru
    _
  // Predicated region
  $region18: #{forward.21} parent=0 // pred_check
    _
  $region19: #{forward.21} parent=0 // pred_check_branch
    %170 = sbr.rel (0) target = $region21
  $region20: #{forward.21} parent=0 // pred_region
    _
  $region21: #{forward.21} parent=0 // pred_fallthru
    _

// kernel: forward.19
$region0: #{forward.19}
  #allocation0 [shape = 'u32[]', space=smem, size = 0x4, offset = 0x4, fixed_abs, tag = 'smem constant byte address 0x4 - core index']
  #allocation1 [shape = 'u32[72,128]{1,0:T(1,128)}', space=vmem, size = 0x9000, scoped, tag = 'internal scratch']
  %s0 = inlined_call_operand.vmem [shape: bf16[64,1152], index: 0, kind: input, shape index: {}]
  %s1 = inlined_call_operand.vmem [shape: bf16[1152,128], index: 1, kind: input, shape index: {}]
  %s2 = inlined_call_operand.vmem [shape: f32[1,128], index: 2, kind: input, shape index: {}]
  %s3 = inlined_call_operand.vmem [shape: bf16[64,128], index: 3, kind: output, shape index: {}]
  %s4 = sld [smem:[#allocation0]]
  $region22: #{forward.19} parent=0
    _
  %s6 = ssub.s32 1, %s4
  %s7 = scalar_select 0, %s6, %s4
  // Predicated region
  $region2: #{forward.19} parent=0 // pred_check
    _
  $region3: #{forward.19} parent=0 // pred_check_branch
    %9 = sbr.rel (0) target = $region5
  $region4: #{forward.19} parent=0 // pred_region
    _
  $region5: #{forward.19} parent=0 // pred_fallthru
    _
  // Predicated region
  $region6: #{forward.19} parent=0 // pred_check
    _
  $region7: #{forward.19} parent=0 // pred_check_branch
    %11 = sbr.rel (0) target = $region9
  $region8: #{forward.19} parent=0 // pred_region
    _
  $region9: #{forward.19} parent=0 // pred_fallthru
    _
  // Predicated region
  $region10: #{forward.19} parent=0 // pred_check
    _
  $region11: #{forward.19} parent=0 // pred_check_branch
    %13 = sbr.rel (0) target = $region13
  $region12: #{forward.19} parent=0 // pred_region
    _
  $region13: #{forward.19} parent=0 // pred_fallthru
    _
  %v14 = vld [vmem:[%s0] sm:$0xff]
  %v15 = vld [vmem:[%s0 + $0x8] sm:$0xff]
  %v16 = vld [vmem:[%s0 + $0x10] sm:$0xff]
  %v17 = vld [vmem:[%s0 + $0x18] sm:$0xff]
  %v18 = vld [vmem:[%s0 + $0x20] sm:$0xf]
  %v19 = vld [vmem:[%s0 + $0x24] sm:$0xff]
  %v20 = vld [vmem:[%s0 + $0x2c] sm:$0xff]
  %v21 = vld [vmem:[%s0 + $0x34] sm:$0xff]
  %v22 = vld [vmem:[%s0 + $0x3c] sm:$0xff]
  %v23 = vld [vmem:[%s0 + $0x44] sm:$0xf]
  %v24 = vld [vmem:[%s0 + $0x48] sm:$0xff]
  %v25 = vld [vmem:[%s0 + $0x50] sm:$0xff]
  %v26 = vld [vmem:[%s0 + $0x58] sm:$0xff]
  %v27 = vld [vmem:[%s0 + $0x60] sm:$0xff]
  %v28 = vld [vmem:[%s0 + $0x68] sm:$0xf]
  %v29 = vld [vmem:[%s0 + $0x6c] sm:$0xff]
  %v30 = vld [vmem:[%s0 + $0x74] sm:$0xff]
  %v31 = vld [vmem:[%s0 + $0x7c] sm:$0xff]
  %v32 = vld [vmem:[%s0 + $0x84] sm:$0xff]
  %v33 = vld [vmem:[%s0 + $0x8c] sm:$0xf]
  %v34 = vld [vmem:[%s0 + $0x90] sm:$0xff]
  %v35 = vld [vmem:[%s0 + $0x98] sm:$0xff]
  %v36 = vld [vmem:[%s0 + $0xa0] sm:$0xff]
  %v37 = vld [vmem:[%s0 + $0xa8] sm:$0xff]
  %v38 = vld [vmem:[%s0 + $0xb0] sm:$0xf]
  %v39 = vld [vmem:[%s0 + $0xb4] sm:$0xff]
  %v40 = vld [vmem:[%s0 + $0xbc] sm:$0xff]
  %v41 = vld [vmem:[%s0 + $0xc4] sm:$0xff]
  %v42 = vld [vmem:[%s0 + $0xcc] sm:$0xff]
  %v43 = vld [vmem:[%s0 + $0xd4] sm:$0xf]
  %v44 = vld [vmem:[%s0 + $0xd8] sm:$0xff]
  %v45 = vld [vmem:[%s0 + $0xe0] sm:$0xff]
  %v46 = vld [vmem:[%s0 + $0xe8] sm:$0xff]
  %v47 = vld [vmem:[%s0 + $0xf0] sm:$0xff]
  %v48 = vld [vmem:[%s0 + $0xf8] sm:$0xf]
  %v49 = vld [vmem:[%s0 + $0xfc] sm:$0xff]
  %v50 = vld [vmem:[%s0 + $0x104] sm:$0xff]
  %v51 = vld [vmem:[%s0 + $0x10c] sm:$0xff]
  %v52 = vld [vmem:[%s0 + $0x114] sm:$0xff]
  %v53 = vld [vmem:[%s0 + $0x11c] sm:$0xf]
  %v54 = vld [vmem:[%s1] sm:$0xf]
  %v55 = vld [vmem:[%s1 + $0x4] sm:$0xf]
  %v56 = vld [vmem:[%s1 + $0x8] sm:$0xf]
  %v57 = vld [vmem:[%s1 + $0xc] sm:$0xf]
  %v58 = vld [vmem:[%s1 + $0x10] sm:$0xf]
  %v59 = vld [vmem:[%s1 + $0x14] sm:$0xf]
  %v60 = vld [vmem:[%s1 + $0x18] sm:$0xf]
  %v61 = vld [vmem:[%s1 + $0x1c] sm:$0xf]
  %v62 = vld [vmem:[%s1 + $0x20] sm:$0xf]
  %v63 = vld [vmem:[%s1 + $0x24] sm:$0xf]
  %v64 = vld [vmem:[%s1 + $0x28] sm:$0xf]
  %v65 = vld [vmem:[%s1 + $0x2c] sm:$0xf]
  %v66 = vld [vmem:[%s1 + $0x30] sm:$0xf]
  %v67 = vld [vmem:[%s1 + $0x34] sm:$0xf]
  %v68 = vld [vmem:[%s1 + $0x38] sm:$0xf]
  %v69 = vld [vmem:[%s1 + $0x3c] sm:$0xf]
  %v70 = vld [vmem:[%s1 + $0x40] sm:$0xf]
  %v71 = vld [vmem:[%s1 + $0x44] sm:$0xf]
  %v72 = vld [vmem:[%s1 + $0x48] sm:$0xf]
  %v73 = vld [vmem:[%s1 + $0x4c] sm:$0xf]
  %v74 = vld [vmem:[%s1 + $0x50] sm:$0xf]
  %v75 = vld [vmem:[%s1 + $0x54] sm:$0xf]
  %v76 = vld [vmem:[%s1 + $0x58] sm:$0xf]
  %v77 = vld [vmem:[%s1 + $0x5c] sm:$0xf]
  %v78 = vld [vmem:[%s1 + $0x60] sm:$0xf]
  %v79 = vld [vmem:[%s1 + $0x64] sm:$0xf]
  %v80 = vld [vmem:[%s1 + $0x68] sm:$0xf]
  %v81 = vld [vmem:[%s1 + $0x6c] sm:$0xf]
  %v82 = vld [vmem:[%s1 + $0x70] sm:$0xf]
  %v83 = vld [vmem:[%s1 + $0x74] sm:$0xf]
  %v84 = vld [vmem:[%s1 + $0x78] sm:$0xf]
  %v85 = vld [vmem:[%s1 + $0x7c] sm:$0xf]
  %v86 = vld [vmem:[%s1 + $0x80] sm:$0xf]
  %v87 = vld [vmem:[%s1 + $0x84] sm:$0xf]
  %v88 = vld [vmem:[%s1 + $0x88] sm:$0xf]
  %v89 = vld [vmem:[%s1 + $0x8c] sm:$0xf]
  %v90 = vld [vmem:[%s1 + $0x90] sm:$0xf]
  %v91 = vld [vmem:[%s1 + $0x94] sm:$0xf]
  %v92 = vld [vmem:[%s1 + $0x98] sm:$0xf]
  %v93 = vld [vmem:[%s1 + $0x9c] sm:$0xf]
  %v94 = vld [vmem:[%s1 + $0xa0] sm:$0xf]
  %v95 = vld [vmem:[%s1 + $0xa4] sm:$0xf]
  %v96 = vld [vmem:[%s1 + $0xa8] sm:$0xf]
  %v97 = vld [vmem:[%s1 + $0xac] sm:$0xf]
  %v98 = vld [vmem:[%s1 + $0xb0] sm:$0xf]
  %v99 = vld [vmem:[%s1 + $0xb4] sm:$0xf]
  %v100 = vld [vmem:[%s1 + $0xb8] sm:$0xf]
  %v101 = vld [vmem:[%s1 + $0xbc] sm:$0xf]
  %v102 = vld [vmem:[%s1 + $0xc0] sm:$0xf]
  %v103 = vld [vmem:[%s1 + $0xc4] sm:$0xf]
  %v104 = vld [vmem:[%s1 + $0xc8] sm:$0xf]
  %v105 = vld [vmem:[%s1 + $0xcc] sm:$0xf]
  %v106 = vld [vmem:[%s1 + $0xd0] sm:$0xf]
  %v107 = vld [vmem:[%s1 + $0xd4] sm:$0xf]
  %v108 = vld [vmem:[%s1 + $0xd8] sm:$0xf]
  %v109 = vld [vmem:[%s1 + $0xdc] sm:$0xf]
  %v110 = vld [vmem:[%s1 + $0xe0] sm:$0xf]
  %v111 = vld [vmem:[%s1 + $0xe4] sm:$0xf]
  %v112 = vld [vmem:[%s1 + $0xe8] sm:$0xf]
  %v113 = vld [vmem:[%s1 + $0xec] sm:$0xf]
  %v114 = vld [vmem:[%s1 + $0xf0] sm:$0xf]
  %v115 = vld [vmem:[%s1 + $0xf4] sm:$0xf]
  %v116 = vld [vmem:[%s1 + $0xf8] sm:$0xf]
  %v117 = vld [vmem:[%s1 + $0xfc] sm:$0xf]
  %v118 = vld [vmem:[%s1 + $0x100] sm:$0xf]
  %v119 = vld [vmem:[%s1 + $0x104] sm:$0xf]
  %v120 = vld [vmem:[%s1 + $0x108] sm:$0xf]
  %v121 = vld [vmem:[%s1 + $0x10c] sm:$0xf]
  %v122 = vld [vmem:[%s1 + $0x110] sm:$0xf]
  %v123 = vld [vmem:[%s1 + $0x114] sm:$0xf]
  %v124 = vld [vmem:[%s1 + $0x118] sm:$0xf]
  %v125 = vld [vmem:[%s1 + $0x11c] sm:$0xf]
  %v126 = vld [vmem:[%s1 + $0x120] sm:$0xf]
  %v127 = vld [vmem:[%s1 + $0x124] sm:$0xf]
  %v128 = vld [vmem:[%s1 + $0x128] sm:$0xf]
  %v129 = vld [vmem:[%s1 + $0x12c] sm:$0xf]
  %v130 = vld [vmem:[%s1 + $0x130] sm:$0xf]
  %v131 = vld [vmem:[%s1 + $0x134] sm:$0xf]
  %v132 = vld [vmem:[%s1 + $0x138] sm:$0xf]
  %v133 = vld [vmem:[%s1 + $0x13c] sm:$0xf]
  %v134 = vld [vmem:[%s1 + $0x140] sm:$0xf]
  %v135 = vld [vmem:[%s1 + $0x144] sm:$0xf]
  %v136 = vld [vmem:[%s1 + $0x148] sm:$0xf]
  %v137 = vld [vmem:[%s1 + $0x14c] sm:$0xf]
  %v138 = vld [vmem:[%s1 + $0x150] sm:$0xf]
  %v139 = vld [vmem:[%s1 + $0x154] sm:$0xf]
  %v140 = vld [vmem:[%s1 + $0x158] sm:$0xf]
  %v141 = vld [vmem:[%s1 + $0x15c] sm:$0xf]
  %v142 = vld [vmem:[%s1 + $0x160] sm:$0xf]
  %v143 = vld [vmem:[%s1 + $0x164] sm:$0xf]
  %v144 = vld [vmem:[%s1 + $0x168] sm:$0xf]
  %v145 = vld [vmem:[%s1 + $0x16c] sm:$0xf]
  %v146 = vld [vmem:[%s1 + $0x170] sm:$0xf]
  %v147 = vld [vmem:[%s1 + $0x174] sm:$0xf]
  %v148 = vld [vmem:[%s1 + $0x178] sm:$0xf]
  %v149 = vld [vmem:[%s1 + $0x17c] sm:$0xf]
  %v150 = vld [vmem:[%s1 + $0x180] sm:$0xf]
  %v151 = vld [vmem:[%s1 + $0x184] sm:$0xf]
  %v152 = vld [vmem:[%s1 + $0x188] sm:$0xf]
  %v153 = vld [vmem:[%s1 + $0x18c] sm:$0xf]
  %v154 = vld [vmem:[%s1 + $0x190] sm:$0xf]
  %v155 = vld [vmem:[%s1 + $0x194] sm:$0xf]
  %v156 = vld [vmem:[%s1 + $0x198] sm:$0xf]
  %v157 = vld [vmem:[%s1 + $0x19c] sm:$0xf]
  %v158 = vld [vmem:[%s1 + $0x1a0] sm:$0xf]
  %v159 = vld [vmem:[%s1 + $0x1a4] sm:$0xf]
  %v160 = vld [vmem:[%s1 + $0x1a8] sm:$0xf]
  %v161 = vld [vmem:[%s1 + $0x1ac] sm:$0xf]
  %v162 = vld [vmem:[%s1 + $0x1b0] sm:$0xf]
  %v163 = vld [vmem:[%s1 + $0x1b4] sm:$0xf]
  %v164 = vld [vmem:[%s1 + $0x1b8] sm:$0xf]
  %v165 = vld [vmem:[%s1 + $0x1bc] sm:$0xf]
  %v166 = vld [vmem:[%s1 + $0x1c0] sm:$0xf]
  %v167 = vld [vmem:[%s1 + $0x1c4] sm:$0xf]
  %v168 = vld [vmem:[%s1 + $0x1c8] sm:$0xf]
  %v169 = vld [vmem:[%s1 + $0x1cc] sm:$0xf]
  %v170 = vld [vmem:[%s1 + $0x1d0] sm:$0xf]
  %v171 = vld [vmem:[%s1 + $0x1d4] sm:$0xf]
  %v172 = vld [vmem:[%s1 + $0x1d8] sm:$0xf]
  %v173 = vld [vmem:[%s1 + $0x1dc] sm:$0xf]
  %v174 = vld [vmem:[%s1 + $0x1e0] sm:$0xf]
  %v175 = vld [vmem:[%s1 + $0x1e4] sm:$0xf]
  %v176 = vld [vmem:[%s1 + $0x1e8] sm:$0xf]
  %v177 = vld [vmem:[%s1 + $0x1ec] sm:$0xf]
  %v178 = vld [vmem:[%s1 + $0x1f0] sm:$0xf]
  %v179 = vld [vmem:[%s1 + $0x1f4] sm:$0xf]
  %v180 = vld [vmem:[%s1 + $0x1f8] sm:$0xf]
  %v181 = vld [vmem:[%s1 + $0x1fc] sm:$0xf]
  %v182 = vld [vmem:[%s1 + $0x200] sm:$0xf]
  %v183 = vld [vmem:[%s1 + $0x204] sm:$0xf]
  %v184 = vld [vmem:[%s1 + $0x208] sm:$0xf]
  %v185 = vld [vmem:[%s1 + $0x20c] sm:$0xf]
  %v186 = vld [vmem:[%s1 + $0x210] sm:$0xf]
  %v187 = vld [vmem:[%s1 + $0x214] sm:$0xf]
  %v188 = vld [vmem:[%s1 + $0x218] sm:$0xf]
  %v189 = vld [vmem:[%s1 + $0x21c] sm:$0xf]
  %v190 = vld [vmem:[%s1 + $0x220] sm:$0xf]
  %v191 = vld [vmem:[%s1 + $0x224] sm:$0xf]
  %v192 = vld [vmem:[%s1 + $0x228] sm:$0xf]
  %v193 = vld [vmem:[%s1 + $0x22c] sm:$0xf]
  %v194 = vld [vmem:[%s1 + $0x230] sm:$0xf]
  %v195 = vld [vmem:[%s1 + $0x234] sm:$0xf]
  %v196 = vld [vmem:[%s1 + $0x238] sm:$0xf]
  %v197 = vld [vmem:[%s1 + $0x23c] sm:$0xf]
  %v198 = vld [vmem:[%s2] sm:$0x1]
  %v200 = vperm.slane %v198, 0
  %v242 = vunpack.c.l.b16 %v14
  %v243 = vunpack.c.h.b16 %v14
  %v244 = vunpack.c.l.b16 %v15
  %v245 = vunpack.c.h.b16 %v15
  %v246 = vunpack.c.l.b16 %v16
  %v247 = vunpack.c.h.b16 %v16
  %v248 = vunpack.c.l.b16 %v17
  %v249 = vunpack.c.h.b16 %v17
  %v250 = vunpack.c.l.b16 %v18
  %v251 = vunpack.c.l.b16 %v19
  %v252 = vunpack.c.h.b16 %v19
  %v253 = vunpack.c.l.b16 %v20
  %v254 = vunpack.c.h.b16 %v20
  %v255 = vunpack.c.l.b16 %v21
  %v256 = vunpack.c.h.b16 %v21
  %v257 = vunpack.c.l.b16 %v22
  %v258 = vunpack.c.h.b16 %v22
  %v259 = vunpack.c.l.b16 %v23
  %v260 = vunpack.c.l.b16 %v24
  %v261 = vunpack.c.h.b16 %v24
  %v262 = vunpack.c.l.b16 %v25
  %v263 = vunpack.c.h.b16 %v25
  %v264 = vunpack.c.l.b16 %v26
  %v265 = vunpack.c.h.b16 %v26
  %v266 = vunpack.c.l.b16 %v27
  %v267 = vunpack.c.h.b16 %v27
  %v268 = vunpack.c.l.b16 %v28
  %v269 = vunpack.c.l.b16 %v29
  %v270 = vunpack.c.h.b16 %v29
  %v271 = vunpack.c.l.b16 %v30
  %v272 = vunpack.c.h.b16 %v30
  %v273 = vunpack.c.l.b16 %v31
  %v274 = vunpack.c.h.b16 %v31
  %v275 = vunpack.c.l.b16 %v32
  %v276 = vunpack.c.h.b16 %v32
  %v277 = vunpack.c.l.b16 %v33
  %v278 = vunpack.c.l.b16 %v34
  %v279 = vunpack.c.h.b16 %v34
  %v280 = vunpack.c.l.b16 %v35
  %v281 = vunpack.c.h.b16 %v35
  %v282 = vunpack.c.l.b16 %v36
  %v283 = vunpack.c.h.b16 %v36
  %v284 = vunpack.c.l.b16 %v37
  %v285 = vunpack.c.h.b16 %v37
  %v286 = vunpack.c.l.b16 %v38
  %v287 = vunpack.c.l.b16 %v39
  %v288 = vunpack.c.h.b16 %v39
  %v289 = vunpack.c.l.b16 %v40
  %v290 = vunpack.c.h.b16 %v40
  %v291 = vunpack.c.l.b16 %v41
  %v292 = vunpack.c.h.b16 %v41
  %v293 = vunpack.c.l.b16 %v42
  %v294 = vunpack.c.h.b16 %v42
  %v295 = vunpack.c.l.b16 %v43
  %v296 = vunpack.c.l.b16 %v44
  %v297 = vunpack.c.h.b16 %v44
  %v298 = vunpack.c.l.b16 %v45
  %v299 = vunpack.c.h.b16 %v45
  %v300 = vunpack.c.l.b16 %v46
  %v301 = vunpack.c.h.b16 %v46
  %v302 = vunpack.c.l.b16 %v47
  %v303 = vunpack.c.h.b16 %v47
  %v304 = vunpack.c.l.b16 %v48
  %v305 = vunpack.c.l.b16 %v49
  %v306 = vunpack.c.h.b16 %v49
  %v307 = vunpack.c.l.b16 %v50
  %v308 = vunpack.c.h.b16 %v50
  %v309 = vunpack.c.l.b16 %v51
  %v310 = vunpack.c.h.b16 %v51
  %v311 = vunpack.c.l.b16 %v52
  %v312 = vunpack.c.h.b16 %v52
  %v313 = vunpack.c.l.b16 %v53
  %v314 = vpack.c.b16 %v251, %v242
  %v315 = vpack.c.b16 %v252, %v243
  %v316 = vpack.c.b16 %v253, %v244
  %v317 = vpack.c.b16 %v254, %v245
  %v318 = vpack.c.b16 %v255, %v246
  %v319 = vpack.c.b16 %v256, %v247
  %v320 = vpack.c.b16 %v257, %v248
  %v321 = vpack.c.b16 %v258, %v249
  %v322 = vpack.c.b16 %v259, %v250
  %v323 = vpack.c.b16 %v269, %v260
  %v324 = vpack.c.b16 %v270, %v261
  %v325 = vpack.c.b16 %v271, %v262
  %v326 = vpack.c.b16 %v272, %v263
  %v327 = vpack.c.b16 %v273, %v264
  %v328 = vpack.c.b16 %v274, %v265
  %v329 = vpack.c.b16 %v275, %v266
  %v330 = vpack.c.b16 %v276, %v267
  %v331 = vpack.c.b16 %v277, %v268
  %v332 = vpack.c.b16 %v287, %v278
  %v333 = vpack.c.b16 %v288, %v279
  %v334 = vpack.c.b16 %v289, %v280
  %v335 = vpack.c.b16 %v290, %v281
  %v336 = vpack.c.b16 %v291, %v282
  %v337 = vpack.c.b16 %v292, %v283
  %v338 = vpack.c.b16 %v293, %v284
  %v339 = vpack.c.b16 %v294, %v285
  %v340 = vpack.c.b16 %v295, %v286
  %v341 = vpack.c.b16 %v305, %v296
  %v342 = vpack.c.b16 %v306, %v297
  %v343 = vpack.c.b16 %v307, %v298
  %v344 = vpack.c.b16 %v308, %v299
  %v345 = vpack.c.b16 %v309, %v300
  %v346 = vpack.c.b16 %v310, %v301
  %v347 = vpack.c.b16 %v311, %v302
  %v348 = vpack.c.b16 %v312, %v303
  %v349 = vpack.c.b16 %v313, %v304
  %v530 = vunpack.c.l.b16 %v54
  %v531 = vunpack.c.l.b16 %v55
  %v532 = vunpack.c.l.b16 %v56
  %v533 = vunpack.c.l.b16 %v57
  %v534 = vunpack.c.l.b16 %v58
  %v535 = vunpack.c.l.b16 %v59
  %v536 = vunpack.c.l.b16 %v60
  %v537 = vunpack.c.l.b16 %v61
  %v538 = vunpack.c.l.b16 %v62
  %v539 = vunpack.c.l.b16 %v63
  %v540 = vunpack.c.l.b16 %v64
  %v541 = vunpack.c.l.b16 %v65
  %v542 = vunpack.c.l.b16 %v66
  %v543 = vunpack.c.l.b16 %v67
  %v544 = vunpack.c.l.b16 %v68
  %v545 = vunpack.c.l.b16 %v69
  %v546 = vunpack.c.l.b16 %v70
  %v547 = vunpack.c.l.b16 %v71
  %v548 = vunpack.c.l.b16 %v72
  %v549 = vunpack.c.l.b16 %v73
  %v550 = vunpack.c.l.b16 %v74
  %v551 = vunpack.c.l.b16 %v75
  %v552 = vunpack.c.l.b16 %v76
  %v553 = vunpack.c.l.b16 %v77
  %v554 = vunpack.c.l.b16 %v78
  %v555 = vunpack.c.l.b16 %v79
  %v556 = vunpack.c.l.b16 %v80
  %v557 = vunpack.c.l.b16 %v81
  %v558 = vunpack.c.l.b16 %v82
  %v559 = vunpack.c.l.b16 %v83
  %v560 = vunpack.c.l.b16 %v84
  %v561 = vunpack.c.l.b16 %v85
  %v562 = vunpack.c.l.b16 %v86
  %v563 = vunpack.c.l.b16 %v87
  %v564 = vunpack.c.l.b16 %v88
  %v565 = vunpack.c.l.b16 %v89
  %v566 = vunpack.c.l.b16 %v90
  %v567 = vunpack.c.l.b16 %v91
  %v568 = vunpack.c.l.b16 %v92
  %v569 = vunpack.c.l.b16 %v93
  %v570 = vunpack.c.l.b16 %v94
  %v571 = vunpack.c.l.b16 %v95
  %v572 = vunpack.c.l.b16 %v96
  %v573 = vunpack.c.l.b16 %v97
  %v574 = vunpack.c.l.b16 %v98
  %v575 = vunpack.c.l.b16 %v99
  %v576 = vunpack.c.l.b16 %v100
  %v577 = vunpack.c.l.b16 %v101
  %v578 = vunpack.c.l.b16 %v102
  %v579 = vunpack.c.l.b16 %v103
  %v580 = vunpack.c.l.b16 %v104
  %v581 = vunpack.c.l.b16 %v105
  %v582 = vunpack.c.l.b16 %v106
  %v583 = vunpack.c.l.b16 %v107
  %v584 = vunpack.c.l.b16 %v108
  %v585 = vunpack.c.l.b16 %v109
  %v586 = vunpack.c.l.b16 %v110
  %v587 = vunpack.c.l.b16 %v111
  %v588 = vunpack.c.l.b16 %v112
  %v589 = vunpack.c.l.b16 %v113
  %v590 = vunpack.c.l.b16 %v114
  %v591 = vunpack.c.l.b16 %v115
  %v592 = vunpack.c.l.b16 %v116
  %v593 = vunpack.c.l.b16 %v117
  %v594 = vunpack.c.l.b16 %v118
  %v595 = vunpack.c.l.b16 %v119
  %v596 = vunpack.c.l.b16 %v120
  %v597 = vunpack.c.l.b16 %v121
  %v598 = vunpack.c.l.b16 %v122
  %v599 = vunpack.c.l.b16 %v123
  %v600 = vunpack.c.l.b16 %v124
  %v601 = vunpack.c.l.b16 %v125
  %v602 = vunpack.c.l.b16 %v126
  %v603 = vunpack.c.l.b16 %v127
  %v604 = vunpack.c.l.b16 %v128
  %v605 = vunpack.c.l.b16 %v129
  %v606 = vunpack.c.l.b16 %v130
  %v607 = vunpack.c.l.b16 %v131
  %v608 = vunpack.c.l.b16 %v132
  %v609 = vunpack.c.l.b16 %v133
  %v610 = vunpack.c.l.b16 %v134
  %v611 = vunpack.c.l.b16 %v135
  %v612 = vunpack.c.l.b16 %v136
  %v613 = vunpack.c.l.b16 %v137
  %v614 = vunpack.c.l.b16 %v138
  %v615 = vunpack.c.l.b16 %v139
  %v616 = vunpack.c.l.b16 %v140
  %v617 = vunpack.c.l.b16 %v141
  %v618 = vunpack.c.l.b16 %v142
  %v619 = vunpack.c.l.b16 %v143
  %v620 = vunpack.c.l.b16 %v144
  %v621 = vunpack.c.l.b16 %v145
  %v622 = vunpack.c.l.b16 %v146
  %v623 = vunpack.c.l.b16 %v147
  %v624 = vunpack.c.l.b16 %v148
  %v625 = vunpack.c.l.b16 %v149
  %v626 = vunpack.c.l.b16 %v150
  %v627 = vunpack.c.l.b16 %v151
  %v628 = vunpack.c.l.b16 %v152
  %v629 = vunpack.c.l.b16 %v153
  %v630 = vunpack.c.l.b16 %v154
  %v631 = vunpack.c.l.b16 %v155
  %v632 = vunpack.c.l.b16 %v156
  %v633 = vunpack.c.l.b16 %v157
  %v634 = vunpack.c.l.b16 %v158
  %v635 = vunpack.c.l.b16 %v159
  %v636 = vunpack.c.l.b16 %v160
  %v637 = vunpack.c.l.b16 %v161
  %v638 = vunpack.c.l.b16 %v162
  %v639 = vunpack.c.l.b16 %v163
  %v640 = vunpack.c.l.b16 %v164
  %v641 = vunpack.c.l.b16 %v165
  %v642 = vunpack.c.l.b16 %v166
  %v643 = vunpack.c.l.b16 %v167
  %v644 = vunpack.c.l.b16 %v168
  %v645 = vunpack.c.l.b16 %v169
  %v646 = vunpack.c.l.b16 %v170
  %v647 = vunpack.c.l.b16 %v171
  %v648 = vunpack.c.l.b16 %v172
  %v649 = vunpack.c.l.b16 %v173
  %v650 = vunpack.c.l.b16 %v174
  %v651 = vunpack.c.l.b16 %v175
  %v652 = vunpack.c.l.b16 %v176
  %v653 = vunpack.c.l.b16 %v177
  %v654 = vunpack.c.l.b16 %v178
  %v655 = vunpack.c.l.b16 %v179
  %v656 = vunpack.c.l.b16 %v180
  %v657 = vunpack.c.l.b16 %v181
  %v658 = vunpack.c.l.b16 %v182
  %v659 = vunpack.c.l.b16 %v183
  %v660 = vunpack.c.l.b16 %v184
  %v661 = vunpack.c.l.b16 %v185
  %v662 = vunpack.c.l.b16 %v186
  %v663 = vunpack.c.l.b16 %v187
  %v664 = vunpack.c.l.b16 %v188
  %v665 = vunpack.c.l.b16 %v189
  %v666 = vunpack.c.l.b16 %v190
  %v667 = vunpack.c.l.b16 %v191
  %v668 = vunpack.c.l.b16 %v192
  %v669 = vunpack.c.l.b16 %v193
  %v670 = vunpack.c.l.b16 %v194
  %v671 = vunpack.c.l.b16 %v195
  %v672 = vunpack.c.l.b16 %v196
  %v673 = vunpack.c.l.b16 %v197
  %v674 = vpack.c.b16 %v531, %v530
  %v675 = vpack.c.b16 %v533, %v532
  %v676 = vpack.c.b16 %v535, %v534
  %v677 = vpack.c.b16 %v537, %v536
  %v678 = vpack.c.b16 %v539, %v538
  %v679 = vpack.c.b16 %v541, %v540
  %v680 = vpack.c.b16 %v543, %v542
  %v681 = vpack.c.b16 %v545, %v544
  %v682 = vpack.c.b16 %v547, %v546
  %v683 = vpack.c.b16 %v549, %v548
  %v684 = vpack.c.b16 %v551, %v550
  %v685 = vpack.c.b16 %v553, %v552
  %v686 = vpack.c.b16 %v555, %v554
  %v687 = vpack.c.b16 %v557, %v556
  %v688 = vpack.c.b16 %v559, %v558
  %v689 = vpack.c.b16 %v561, %v560
  %v690 = vpack.c.b16 %v563, %v562
  %v691 = vpack.c.b16 %v565, %v564
  %v692 = vpack.c.b16 %v567, %v566
  %v693 = vpack.c.b16 %v569, %v568
  %v694 = vpack.c.b16 %v571, %v570
  %v695 = vpack.c.b16 %v573, %v572
  %v696 = vpack.c.b16 %v575, %v574
  %v697 = vpack.c.b16 %v577, %v576
  %v698 = vpack.c.b16 %v579, %v578
  %v699 = vpack.c.b16 %v581, %v580
  %v700 = vpack.c.b16 %v583, %v582
  %v701 = vpack.c.b16 %v585, %v584
  %v702 = vpack.c.b16 %v587, %v586
  %v703 = vpack.c.b16 %v589, %v588
  %v704 = vpack.c.b16 %v591, %v590
  %v705 = vpack.c.b16 %v593, %v592
  %v706 = vpack.c.b16 %v595, %v594
  %v707 = vpack.c.b16 %v597, %v596
  %v708 = vpack.c.b16 %v599, %v598
  %v709 = vpack.c.b16 %v601, %v600
  %v710 = vpack.c.b16 %v603, %v602
  %v711 = vpack.c.b16 %v605, %v604
  %v712 = vpack.c.b16 %v607, %v606
  %v713 = vpack.c.b16 %v609, %v608
  %v714 = vpack.c.b16 %v611, %v610
  %v715 = vpack.c.b16 %v613, %v612
  %v716 = vpack.c.b16 %v615, %v614
  %v717 = vpack.c.b16 %v617, %v616
  %v718 = vpack.c.b16 %v619, %v618
  %v719 = vpack.c.b16 %v621, %v620
  %v720 = vpack.c.b16 %v623, %v622
  %v721 = vpack.c.b16 %v625, %v624
  %v722 = vpack.c.b16 %v627, %v626
  %v723 = vpack.c.b16 %v629, %v628
  %v724 = vpack.c.b16 %v631, %v630
  %v725 = vpack.c.b16 %v633, %v632
  %v726 = vpack.c.b16 %v635, %v634
  %v727 = vpack.c.b16 %v637, %v636
  %v728 = vpack.c.b16 %v639, %v638
  %v729 = vpack.c.b16 %v641, %v640
  %v730 = vpack.c.b16 %v643, %v642
  %v731 = vpack.c.b16 %v645, %v644
  %v732 = vpack.c.b16 %v647, %v646
  %v733 = vpack.c.b16 %v649, %v648
  %v734 = vpack.c.b16 %v651, %v650
  %v735 = vpack.c.b16 %v653, %v652
  %v736 = vpack.c.b16 %v655, %v654
  %v737 = vpack.c.b16 %v657, %v656
  %v738 = vpack.c.b16 %v659, %v658
  %v739 = vpack.c.b16 %v661, %v660
  %v740 = vpack.c.b16 %v663, %v662
  %v741 = vpack.c.b16 %v665, %v664
  %v742 = vpack.c.b16 %v667, %v666
  %v743 = vpack.c.b16 %v669, %v668
  %v744 = vpack.c.b16 %v671, %v670
  %v745 = vpack.c.b16 %v673, %v672
  %818 = vmatpush.bf16.msra.mxu0 %v681
  %819 = vmatpush.bf16.msra.mxu0 %v680
  %820 = vmatpush.bf16.msra.mxu0 %v679
  %821 = vmatpush.bf16.msra.mxu0 %v678
  %822 = vmatpush.bf16.msra.mxu0 %v677
  %823 = vmatpush.bf16.msra.mxu0 %v676
  %824 = vmatpush.bf16.msra.mxu0 %v675
  %825 = vmatpush.bf16.msra.mxu0 %v674
  %826 = vmatmul.bf16.gmra.mxu0 %v314
  %v827 = vpop.f32.mrf.mxu0
  %v828 = vadd.f32 %v200, %v827
  %v829 = vpop.f32.mrf.mxu0
  %v830 = vadd.f32 %v200, %v829
  %831 = vmatmul.bf16.gmra.mxu0 %v323
  %v832 = vpop.f32.mrf.mxu0
  %v833 = vadd.f32 %v200, %v832
  %v834 = vpop.f32.mrf.mxu0
  %v835 = vadd.f32 %v200, %v834
  %836 = vmatmul.bf16.gmra.mxu0 %v332
  %v837 = vpop.f32.mrf.mxu0
  %v838 = vadd.f32 %v200, %v837
  %v839 = vpop.f32.mrf.mxu0
  %v840 = vadd.f32 %v200, %v839
  %841 = vmatmul.bf16.gmra.mxu0 %v341
  %v842 = vpop.f32.mrf.mxu0
  %v843 = vadd.f32 %v200, %v842
  %v844 = vpop.f32.mrf.mxu0
  %v845 = vadd.f32 %v200, %v844
  %846 = vdwg.mxu0
  %847 = vmatpush.bf16.msra.mxu0 %v689
  %848 = vmatpush.bf16.msra.mxu0 %v688
  %849 = vmatpush.bf16.msra.mxu0 %v687
  %850 = vmatpush.bf16.msra.mxu0 %v686
  %851 = vmatpush.bf16.msra.mxu0 %v685
  %852 = vmatpush.bf16.msra.mxu0 %v684
  %853 = vmatpush.bf16.msra.mxu0 %v683
  %854 = vmatpush.bf16.msra.mxu0 %v682
  %855 = vmatmul.bf16.gmra.mxu0 %v315
  %v856 = vpop.f32.mrf.mxu0
  %v857 = vadd.f32 %v828, %v856
  %v858 = vpop.f32.mrf.mxu0
  %v859 = vadd.f32 %v830, %v858
  %860 = vmatmul.bf16.gmra.mxu0 %v324
  %v861 = vpop.f32.mrf.mxu0
  %v862 = vadd.f32 %v833, %v861
  %v863 = vpop.f32.mrf.mxu0
  %v864 = vadd.f32 %v835, %v863
  %865 = vmatmul.bf16.gmra.mxu0 %v333
  %v866 = vpop.f32.mrf.mxu0
  %v867 = vadd.f32 %v838, %v866
  %v868 = vpop.f32.mrf.mxu0
  %v869 = vadd.f32 %v840, %v868
  %870 = vmatmul.bf16.gmra.mxu0 %v342
  %v871 = vpop.f32.mrf.mxu0
  %v872 = vadd.f32 %v843, %v871
  %v873 = vpop.f32.mrf.mxu0
  %v874 = vadd.f32 %v845, %v873
  %875 = vdwg.mxu0
  %876 = vmatpush.bf16.msra.mxu0 %v697
  %877 = vmatpush.bf16.msra.mxu0 %v696
  %878 = vmatpush.bf16.msra.mxu0 %v695
  %879 = vmatpush.bf16.msra.mxu0 %v694
  %880 = vmatpush.bf16.msra.mxu0 %v693
  %881 = vmatpush.bf16.msra.mxu0 %v692
  %882 = vmatpush.bf16.msra.mxu0 %v691
  %883 = vmatpush.bf16.msra.mxu0 %v690
  %884 = vmatmul.bf16.gmra.mxu0 %v316
  %v885 = vpop.f32.mrf.mxu0
  %v886 = vadd.f32 %v857, %v885
  %v887 = vpop.f32.mrf.mxu0
  %v888 = vadd.f32 %v859, %v887
  %889 = vmatmul.bf16.gmra.mxu0 %v325
  %v890 = vpop.f32.mrf.mxu0
  %v891 = vadd.f32 %v862, %v890
  %v892 = vpop.f32.mrf.mxu0
  %v893 = vadd.f32 %v864, %v892
  %894 = vmatmul.bf16.gmra.mxu0 %v334
  %v895 = vpop.f32.mrf.mxu0
  %v896 = vadd.f32 %v867, %v895
  %v897 = vpop.f32.mrf.mxu0
  %v898 = vadd.f32 %v869, %v897
  %899 = vmatmul.bf16.gmra.mxu0 %v343
  %v900 = vpop.f32.mrf.mxu0
  %v901 = vadd.f32 %v872, %v900
  %v902 = vpop.f32.mrf.mxu0
  %v903 = vadd.f32 %v874, %v902
  %904 = vdwg.mxu0
  %905 = vmatpush.bf16.msra.mxu0 %v705
  %906 = vmatpush.bf16.msra.mxu0 %v704
  %907 = vmatpush.bf16.msra.mxu0 %v703
  %908 = vmatpush.bf16.msra.mxu0 %v702
  %909 = vmatpush.bf16.msra.mxu0 %v701
  %910 = vmatpush.bf16.msra.mxu0 %v700
  %911 = vmatpush.bf16.msra.mxu0 %v699
  %912 = vmatpush.bf16.msra.mxu0 %v698
  %913 = vmatmul.bf16.gmra.mxu0 %v317
  %v914 = vpop.f32.mrf.mxu0
  %v915 = vadd.f32 %v886, %v914
  %v916 = vpop.f32.mrf.mxu0
  %v917 = vadd.f32 %v888, %v916
  %918 = vmatmul.bf16.gmra.mxu0 %v326
  %v919 = vpop.f32.mrf.mxu0
  %v920 = vadd.f32 %v891, %v919
  %v921 = vpop.f32.mrf.mxu0
  %v922 = vadd.f32 %v893, %v921
  %923 = vmatmul.bf16.gmra.mxu0 %v335
  %v924 = vpop.f32.mrf.mxu0
  %v925 = vadd.f32 %v896, %v924
  %v926 = vpop.f32.mrf.mxu0
  %v927 = vadd.f32 %v898, %v926
  %928 = vmatmul.bf16.gmra.mxu0 %v344
  %v929 = vpop.f32.mrf.mxu0
  %v930 = vadd.f32 %v901, %v929
  %v931 = vpop.f32.mrf.mxu0
  %v932 = vadd.f32 %v903, %v931
  %933 = vdwg.mxu0
  %934 = vmatpush.bf16.msra.mxu0 %v713
  %935 = vmatpush.bf16.msra.mxu0 %v712
  %936 = vmatpush.bf16.msra.mxu0 %v711
  %937 = vmatpush.bf16.msra.mxu0 %v710
  %938 = vmatpush.bf16.msra.mxu0 %v709
  %939 = vmatpush.bf16.msra.mxu0 %v708
  %940 = vmatpush.bf16.msra.mxu0 %v707
  %941 = vmatpush.bf16.msra.mxu0 %v706
  %942 = vmatmul.bf16.gmra.mxu0 %v318
  %v943 = vpop.f32.mrf.mxu0
  %v944 = vadd.f32 %v915, %v943
  %v945 = vpop.f32.mrf.mxu0
  %v946 = vadd.f32 %v917, %v945
  %947 = vmatmul.bf16.gmra.mxu0 %v327
  %v948 = vpop.f32.mrf.mxu0
  %v949 = vadd.f32 %v920, %v948
  %v950 = vpop.f32.mrf.mxu0
  %v951 = vadd.f32 %v922, %v950
  %952 = vmatmul.bf16.gmra.mxu0 %v336
  %v953 = vpop.f32.mrf.mxu0
  %v954 = vadd.f32 %v925, %v953
  %v955 = vpop.f32.mrf.mxu0
  %v956 = vadd.f32 %v927, %v955
  %957 = vmatmul.bf16.gmra.mxu0 %v345
  %v958 = vpop.f32.mrf.mxu0
  %v959 = vadd.f32 %v930, %v958
  %v960 = vpop.f32.mrf.mxu0
  %v961 = vadd.f32 %v932, %v960
  %962 = vdwg.mxu0
  %963 = vmatpush.bf16.msra.mxu0 %v721
  %964 = vmatpush.bf16.msra.mxu0 %v720
  %965 = vmatpush.bf16.msra.mxu0 %v719
  %966 = vmatpush.bf16.msra.mxu0 %v718
  %967 = vmatpush.bf16.msra.mxu0 %v717
  %968 = vmatpush.bf16.msra.mxu0 %v716
  %969 = vmatpush.bf16.msra.mxu0 %v715
  %970 = vmatpush.bf16.msra.mxu0 %v714
  %971 = vmatmul.bf16.gmra.mxu0 %v319
  %v972 = vpop.f32.mrf.mxu0
  %v973 = vadd.f32 %v944, %v972
  %v974 = vpop.f32.mrf.mxu0
  %v975 = vadd.f32 %v946, %v974
  %976 = vmatmul.bf16.gmra.mxu0 %v328
  %v977 = vpop.f32.mrf.mxu0
  %v978 = vadd.f32 %v949, %v977
  %v979 = vpop.f32.mrf.mxu0
  %v980 = vadd.f32 %v951, %v979
  %981 = vmatmul.bf16.gmra.mxu0 %v337
  %v982 = vpop.f32.mrf.mxu0
  %v983 = vadd.f32 %v954, %v982
  %v984 = vpop.f32.mrf.mxu0
  %v985 = vadd.f32 %v956, %v984
  %986 = vmatmul.bf16.gmra.mxu0 %v346
  %v987 = vpop.f32.mrf.mxu0
  %v988 = vadd.f32 %v959, %v987
  %v989 = vpop.f32.mrf.mxu0
  %v990 = vadd.f32 %v961, %v989
  %991 = vdwg.mxu0
  %992 = vmatpush.bf16.msra.mxu0 %v729
  %993 = vmatpush.bf16.msra.mxu0 %v728
  %994 = vmatpush.bf16.msra.mxu0 %v727
  %995 = vmatpush.bf16.msra.mxu0 %v726
  %996 = vmatpush.bf16.msra.mxu0 %v725
  %997 = vmatpush.bf16.msra.mxu0 %v724
  %998 = vmatpush.bf16.msra.mxu0 %v723
  %999 = vmatpush.bf16.msra.mxu0 %v722
  %1000 = vmatmul.bf16.gmra.mxu0 %v320
  %v1001 = vpop.f32.mrf.mxu0
  %v1002 = vadd.f32 %v973, %v1001
  %v1003 = vpop.f32.mrf.mxu0
  %v1004 = vadd.f32 %v975, %v1003
  %1005 = vmatmul.bf16.gmra.mxu0 %v329
  %v1006 = vpop.f32.mrf.mxu0
  %v1007 = vadd.f32 %v978, %v1006
  %v1008 = vpop.f32.mrf.mxu0
  %v1009 = vadd.f32 %v980, %v1008
  %1010 = vmatmul.bf16.gmra.mxu0 %v338
  %v1011 = vpop.f32.mrf.mxu0
  %v1012 = vadd.f32 %v983, %v1011
  %v1013 = vpop.f32.mrf.mxu0
  %v1014 = vadd.f32 %v985, %v1013
  %1015 = vmatmul.bf16.gmra.mxu0 %v347
  %v1016 = vpop.f32.mrf.mxu0
  %v1017 = vadd.f32 %v988, %v1016
  %v1018 = vpop.f32.mrf.mxu0
  %v1019 = vadd.f32 %v990, %v1018
  %1020 = vdwg.mxu0
  %1021 = vmatpush.bf16.msra.mxu0 %v737
  %1022 = vmatpush.bf16.msra.mxu0 %v736
  %1023 = vmatpush.bf16.msra.mxu0 %v735
  %1024 = vmatpush.bf16.msra.mxu0 %v734
  %1025 = vmatpush.bf16.msra.mxu0 %v733
  %1026 = vmatpush.bf16.msra.mxu0 %v732
  %1027 = vmatpush.bf16.msra.mxu0 %v731
  %1028 = vmatpush.bf16.msra.mxu0 %v730
  %1029 = vmatmul.bf16.gmra.mxu0 %v321
  %v1030 = vpop.f32.mrf.mxu0
  %v1031 = vadd.f32 %v1002, %v1030
  %v1032 = vpop.f32.mrf.mxu0
  %v1033 = vadd.f32 %v1004, %v1032
  %1034 = vmatmul.bf16.gmra.mxu0 %v330
  %v1035 = vpop.f32.mrf.mxu0
  %v1036 = vadd.f32 %v1007, %v1035
  %v1037 = vpop.f32.mrf.mxu0
  %v1038 = vadd.f32 %v1009, %v1037
  %1039 = vmatmul.bf16.gmra.mxu0 %v339
  %v1040 = vpop.f32.mrf.mxu0
  %v1041 = vadd.f32 %v1012, %v1040
  %v1042 = vpop.f32.mrf.mxu0
  %v1043 = vadd.f32 %v1014, %v1042
  %1044 = vmatmul.bf16.gmra.mxu0 %v348
  %v1045 = vpop.f32.mrf.mxu0
  %v1046 = vadd.f32 %v1017, %v1045
  %v1047 = vpop.f32.mrf.mxu0
  %v1048 = vadd.f32 %v1019, %v1047
  %1049 = vdwg.mxu0
  %1050 = vmatpush.bf16.msra.mxu0 %v745
  %1051 = vmatpush.bf16.msra.mxu0 %v744
  %1052 = vmatpush.bf16.msra.mxu0 %v743
  %1053 = vmatpush.bf16.msra.mxu0 %v742
  %1054 = vmatpush.bf16.msra.mxu0 %v741
  %1055 = vmatpush.bf16.msra.mxu0 %v740
  %1056 = vmatpush.bf16.msra.mxu0 %v739
  %1057 = vmatpush.bf16.msra.mxu0 %v738
  %1058 = vmatmul.bf16.gmra.mxu0 %v322
  %v1059 = vpop.f32.mrf.mxu0
  %v1060 = vadd.f32 %v1031, %v1059
  %v1061 = vpop.f32.mrf.mxu0
  %v1062 = vadd.f32 %v1033, %v1061
  %1063 = vmatmul.bf16.gmra.mxu0 %v331
  %v1064 = vpop.f32.mrf.mxu0
  %v1065 = vadd.f32 %v1036, %v1064
  %v1066 = vpop.f32.mrf.mxu0
  %v1067 = vadd.f32 %v1038, %v1066
  %1068 = vmatmul.bf16.gmra.mxu0 %v340
  %v1069 = vpop.f32.mrf.mxu0
  %v1070 = vadd.f32 %v1041, %v1069
  %v1071 = vpop.f32.mrf.mxu0
  %v1072 = vadd.f32 %v1043, %v1071
  %1073 = vmatmul.bf16.gmra.mxu0 %v349
  %v1074 = vpop.f32.mrf.mxu0
  %v1075 = vadd.f32 %v1046, %v1074
  %v1076 = vpop.f32.mrf.mxu0
  %v1077 = vadd.f32 %v1048, %v1076
  %1078 = vdwg.mxu0
  %v1079 = vmax.f32 %v1060, 0.0
  %v1080 = vmax.f32 %v1062, 0.0
  %v1081 = vmax.f32 %v1065, 0.0
  %v1082 = vmax.f32 %v1067, 0.0
  %v1083 = vmax.f32 %v1070, 0.0
  %v1084 = vmax.f32 %v1072, 0.0
  %v1085 = vmax.f32 %v1075, 0.0
  %v1086 = vmax.f32 %v1077, 0.0
  %v1087 = vpack.c.bf16 %v1079, %v1079
  %v1088 = vpack.c.bf16 %v1080, %v1080
  %v1089 = vpack.c.bf16 %v1081, %v1081
  %v1090 = vpack.c.bf16 %v1082, %v1082
  %v1091 = vpack.c.bf16 %v1083, %v1083
  %v1092 = vpack.c.bf16 %v1084, %v1084
  %v1093 = vpack.c.bf16 %v1085, %v1085
  %v1094 = vpack.c.bf16 %v1086, %v1086
  %1095 = vst [vmem:[%s3] sm:$0xf] %v1087
  %1096 = vst [vmem:[%s3 + $0x4] sm:$0xf] %v1088
  %1097 = vst [vmem:[%s3 + $0x8] sm:$0xf] %v1089
  %1098 = vst [vmem:[%s3 + $0xc] sm:$0xf] %v1090
  %1099 = vst [vmem:[%s3 + $0x10] sm:$0xf] %v1091
  %1100 = vst [vmem:[%s3 + $0x14] sm:$0xf] %v1092
  %1101 = vst [vmem:[%s3 + $0x18] sm:$0xf] %v1093
  %1102 = vst [vmem:[%s3 + $0x1c] sm:$0xf] %v1094
  // Predicated region
  $region14: #{forward.19} parent=0 // pred_check
    _
  $region15: #{forward.19} parent=0 // pred_check_branch
    %1104 = sbr.rel (0) target = $region17
  $region16: #{forward.19} parent=0 // pred_region
    _
  $region17: #{forward.19} parent=0 // pred_fallthru
    _
  // Predicated region
  $region18: #{forward.19} parent=0 // pred_check
    _
  $region19: #{forward.19} parent=0 // pred_check_branch
    %1106 = sbr.rel (0) target = $region21
  $region20: #{forward.19} parent=0 // pred_region
    _
  $region21: #{forward.19} parent=0 // pred_fallthru
    _

// kernel: forward.24
$region0: #{forward.24}
  #allocation0 [shape = 'u32[]', space=smem, size = 0x4, offset = 0x4, fixed_abs, tag = 'smem constant byte address 0x4 - core index']
  #allocation1 [shape = 'u32[72,128]{1,0:T(1,128)}', space=vmem, size = 0x9000, scoped, tag = 'internal scratch']
  %s0 = inlined_call_operand.vmem [shape: bf16[16,128], index: 0, kind: input, shape index: {}]
  %s1 = inlined_call_operand.vmem [shape: bf16[128,128], index: 1, kind: input, shape index: {}]
  %s2 = inlined_call_operand.vmem [shape: f32[1,128], index: 2, kind: input, shape index: {}]
  %s3 = inlined_call_operand.vmem [shape: bf16[16,128], index: 3, kind: output, shape index: {}]
  %s4 = sld [smem:[#allocation0]]
  $region22: #{forward.24} parent=0
    _
  %s6 = ssub.s32 1, %s4
  %s7 = scalar_select 0, %s6, %s4
  // Predicated region
  $region2: #{forward.24} parent=0 // pred_check
    _
  $region3: #{forward.24} parent=0 // pred_check_branch
    %9 = sbr.rel (0) target = $region5
  $region4: #{forward.24} parent=0 // pred_region
    _
  $region5: #{forward.24} parent=0 // pred_fallthru
    _
  // Predicated region
  $region6: #{forward.24} parent=0 // pred_check
    _
  $region7: #{forward.24} parent=0 // pred_check_branch
    %11 = sbr.rel (0) target = $region9
  $region8: #{forward.24} parent=0 // pred_region
    _
  $region9: #{forward.24} parent=0 // pred_fallthru
    _
  // Predicated region
  $region10: #{forward.24} parent=0 // pred_check
    _
  $region11: #{forward.24} parent=0 // pred_check_branch
    %13 = sbr.rel (0) target = $region13
  $region12: #{forward.24} parent=0 // pred_region
    _
  $region13: #{forward.24} parent=0 // pred_fallthru
    _
  %v14 = vld [vmem:[%s0] sm:$0xf]
  %v15 = vld [vmem:[%s0 + $0x4] sm:$0xf]
  %v16 = vld [vmem:[%s1] sm:$0xf]
  %v17 = vld [vmem:[%s1 + $0x4] sm:$0xf]
  %v18 = vld [vmem:[%s1 + $0x8] sm:$0xf]
  %v19 = vld [vmem:[%s1 + $0xc] sm:$0xf]
  %v20 = vld [vmem:[%s1 + $0x10] sm:$0xf]
  %v21 = vld [vmem:[%s1 + $0x14] sm:$0xf]
  %v22 = vld [vmem:[%s1 + $0x18] sm:$0xf]
  %v23 = vld [vmem:[%s1 + $0x1c] sm:$0xf]
  %v24 = vld [vmem:[%s1 + $0x20] sm:$0xf]
  %v25 = vld [vmem:[%s1 + $0x24] sm:$0xf]
  %v26 = vld [vmem:[%s1 + $0x28] sm:$0xf]
  %v27 = vld [vmem:[%s1 + $0x2c] sm:$0xf]
  %v28 = vld [vmem:[%s1 + $0x30] sm:$0xf]
  %v29 = vld [vmem:[%s1 + $0x34] sm:$0xf]
  %v30 = vld [vmem:[%s1 + $0x38] sm:$0xf]
  %v31 = vld [vmem:[%s1 + $0x3c] sm:$0xf]
  %v32 = vld [vmem:[%s2] sm:$0x1]
  %v34 = vperm.slane %v32, 0
  %v38 = vunpack.c.l.b16 %v14
  %v39 = vunpack.c.l.b16 %v15
  %v40 = vpack.c.b16 %v39, %v38
  %v58 = vunpack.c.l.b16 %v16
  %v59 = vunpack.c.l.b16 %v17
  %v60 = vunpack.c.l.b16 %v18
  %v61 = vunpack.c.l.b16 %v19
  %v62 = vunpack.c.l.b16 %v20
  %v63 = vunpack.c.l.b16 %v21
  %v64 = vunpack.c.l.b16 %v22
  %v65 = vunpack.c.l.b16 %v23
  %v66 = vunpack.c.l.b16 %v24
  %v67 = vunpack.c.l.b16 %v25
  %v68 = vunpack.c.l.b16 %v26
  %v69 = vunpack.c.l.b16 %v27
  %v70 = vunpack.c.l.b16 %v28
  %v71 = vunpack.c.l.b16 %v29
  %v72 = vunpack.c.l.b16 %v30
  %v73 = vunpack.c.l.b16 %v31
  %v74 = vpack.c.b16 %v59, %v58
  %v75 = vpack.c.b16 %v61, %v60
  %v76 = vpack.c.b16 %v63, %v62
  %v77 = vpack.c.b16 %v65, %v64
  %v78 = vpack.c.b16 %v67, %v66
  %v79 = vpack.c.b16 %v69, %v68
  %v80 = vpack.c.b16 %v71, %v70
  %v81 = vpack.c.b16 %v73, %v72
  %90 = vmatpush.bf16.msra.mxu0 %v81
  %91 = vmatpush.bf16.msra.mxu0 %v80
  %92 = vmatpush.bf16.msra.mxu0 %v79
  %93 = vmatpush.bf16.msra.mxu0 %v78
  %94 = vmatpush.bf16.msra.mxu0 %v77
  %95 = vmatpush.bf16.msra.mxu0 %v76
  %96 = vmatpush.bf16.msra.mxu0 %v75
  %97 = vmatpush.bf16.msra.mxu0 %v74
  %98 = vmatmul.bf16.gmra.mxu0 %v40
  %v99 = vpop.f32.mrf.mxu0
  %v100 = vadd.f32 %v34, %v99
  %v101 = vpop.f32.mrf.mxu0
  %v102 = vadd.f32 %v34, %v101
  %103 = vdwg.mxu0
  %v104 = vmax.f32 %v100, 0.0
  %v105 = vmax.f32 %v102, 0.0
  %v106 = vpack.c.bf16 %v104, %v104
  %v107 = vpack.c.bf16 %v105, %v105
  %108 = vst [vmem:[%s3] sm:$0xf] %v106
  %109 = vst [vmem:[%s3 + $0x4] sm:$0xf] %v107
  // Predicated region
  $region14: #{forward.24} parent=0 // pred_check
    _
  $region15: #{forward.24} parent=0 // pred_check_branch
    %111 = sbr.rel (0) target = $region17
  $region16: #{forward.24} parent=0 // pred_region
    _
  $region17: #{forward.24} parent=0 // pred_fallthru
    _
  // Predicated region
  $region18: #{forward.24} parent=0 // pred_check
    _
  $region19: #{forward.24} parent=0 // pred_check_branch
    %113 = sbr.rel (0) target = $region21
  $region20: #{forward.24} parent=0 // pred_region
    _
  $region21: #{forward.24} parent=0 // pred_fallthru
    _

// kernel: forward.23
$region0: #{forward.23}
  #allocation0 [shape = 'u32[]', space=smem, size = 0x4, offset = 0x4, fixed_abs, tag = 'smem constant byte address 0x4 - core index']
  #allocation1 [shape = 'u32[72,128]{1,0:T(1,128)}', space=vmem, size = 0x9000, scoped, tag = 'internal scratch']
  %s0 = inlined_call_operand.vmem [shape: bf16[16,128], index: 0, kind: input, shape index: {}]
  %s1 = inlined_call_operand.vmem [shape: bf16[128,128], index: 1, kind: input, shape index: {}]
  %s2 = inlined_call_operand.vmem [shape: f32[1,128], index: 2, kind: input, shape index: {}]
  %s3 = inlined_call_operand.vmem [shape: bf16[16,128], index: 3, kind: input, shape index: {}]
  %s4 = inlined_call_operand.vmem [shape: bf16[128,128], index: 4, kind: input, shape index: {}]
  %s5 = inlined_call_operand.vmem [shape: f32[1,128], index: 5, kind: input, shape index: {}]
  %s6 = inlined_call_operand.vmem [shape: bf16[16,128], index: 6, kind: output, shape index: {}]
  %s7 = sld [smem:[#allocation0]]
  $region34: #{forward.23} parent=0
    _
  %s9 = ssub.s32 1, %s7
  %s10 = scalar_select 0, %s9, %s7
  // Predicated region
  $region2: #{forward.23} parent=0 // pred_check
    _
  $region3: #{forward.23} parent=0 // pred_check_branch
    %12 = sbr.rel (0) target = $region5
  $region4: #{forward.23} parent=0 // pred_region
    _
  $region5: #{forward.23} parent=0 // pred_fallthru
    _
  // Predicated region
  $region6: #{forward.23} parent=0 // pred_check
    _
  $region7: #{forward.23} parent=0 // pred_check_branch
    %14 = sbr.rel (0) target = $region9
  $region8: #{forward.23} parent=0 // pred_region
    _
  $region9: #{forward.23} parent=0 // pred_fallthru
    _
  // Predicated region
  $region10: #{forward.23} parent=0 // pred_check
    _
  $region11: #{forward.23} parent=0 // pred_check_branch
    %16 = sbr.rel (0) target = $region13
  $region12: #{forward.23} parent=0 // pred_region
    _
  $region13: #{forward.23} parent=0 // pred_fallthru
    _
  // Predicated region
  $region14: #{forward.23} parent=0 // pred_check
    _
  $region15: #{forward.23} parent=0 // pred_check_branch
    %18 = sbr.rel (0) target = $region17
  $region16: #{forward.23} parent=0 // pred_region
    _
  $region17: #{forward.23} parent=0 // pred_fallthru
    _
  // Predicated region
  $region18: #{forward.23} parent=0 // pred_check
    _
  $region19: #{forward.23} parent=0 // pred_check_branch
    %20 = sbr.rel (0) target = $region21
  $region20: #{forward.23} parent=0 // pred_region
    _
  $region21: #{forward.23} parent=0 // pred_fallthru
    _
  // Predicated region
  $region22: #{forward.23} parent=0 // pred_check
    _
  $region23: #{forward.23} parent=0 // pred_check_branch
    %22 = sbr.rel (0) target = $region25
  $region24: #{forward.23} parent=0 // pred_region
    _
  $region25: #{forward.23} parent=0 // pred_fallthru
    _
  %v23 = vld [vmem:[%s0] sm:$0xf]
  %v24 = vld [vmem:[%s0 + $0x4] sm:$0xf]
  %v25 = vld [vmem:[%s1] sm:$0xf]
  %v26 = vld [vmem:[%s1 + $0x4] sm:$0xf]
  %v27 = vld [vmem:[%s1 + $0x8] sm:$0xf]
  %v28 = vld [vmem:[%s1 + $0xc] sm:$0xf]
  %v29 = vld [vmem:[%s1 + $0x10] sm:$0xf]
  %v30 = vld [vmem:[%s1 + $0x14] sm:$0xf]
  %v31 = vld [vmem:[%s1 + $0x18] sm:$0xf]
  %v32 = vld [vmem:[%s1 + $0x1c] sm:$0xf]
  %v33 = vld [vmem:[%s1 + $0x20] sm:$0xf]
  %v34 = vld [vmem:[%s1 + $0x24] sm:$0xf]
  %v35 = vld [vmem:[%s1 + $0x28] sm:$0xf]
  %v36 = vld [vmem:[%s1 + $0x2c] sm:$0xf]
  %v37 = vld [vmem:[%s1 + $0x30] sm:$0xf]
  %v38 = vld [vmem:[%s1 + $0x34] sm:$0xf]
  %v39 = vld [vmem:[%s1 + $0x38] sm:$0xf]
  %v40 = vld [vmem:[%s1 + $0x3c] sm:$0xf]
  %v41 = vld [vmem:[%s2] sm:$0x1]
  %v43 = vperm.slane %v41, 0
  %v47 = vunpack.c.l.b16 %v23
  %v48 = vunpack.c.l.b16 %v24
  %v49 = vpack.c.b16 %v48, %v47
  %v67 = vunpack.c.l.b16 %v25
  %v68 = vunpack.c.l.b16 %v26
  %v69 = vunpack.c.l.b16 %v27
  %v70 = vunpack.c.l.b16 %v28
  %v71 = vunpack.c.l.b16 %v29
  %v72 = vunpack.c.l.b16 %v30
  %v73 = vunpack.c.l.b16 %v31
  %v74 = vunpack.c.l.b16 %v32
  %v75 = vunpack.c.l.b16 %v33
  %v76 = vunpack.c.l.b16 %v34
  %v77 = vunpack.c.l.b16 %v35
  %v78 = vunpack.c.l.b16 %v36
  %v79 = vunpack.c.l.b16 %v37
  %v80 = vunpack.c.l.b16 %v38
  %v81 = vunpack.c.l.b16 %v39
  %v82 = vunpack.c.l.b16 %v40
  %v83 = vpack.c.b16 %v68, %v67
  %v84 = vpack.c.b16 %v70, %v69
  %v85 = vpack.c.b16 %v72, %v71
  %v86 = vpack.c.b16 %v74, %v73
  %v87 = vpack.c.b16 %v76, %v75
  %v88 = vpack.c.b16 %v78, %v77
  %v89 = vpack.c.b16 %v80, %v79
  %v90 = vpack.c.b16 %v82, %v81
  %99 = vmatpush.bf16.msra.mxu0 %v90
  %100 = vmatpush.bf16.msra.mxu0 %v89
  %101 = vmatpush.bf16.msra.mxu0 %v88
  %102 = vmatpush.bf16.msra.mxu0 %v87
  %103 = vmatpush.bf16.msra.mxu0 %v86
  %104 = vmatpush.bf16.msra.mxu0 %v85
  %105 = vmatpush.bf16.msra.mxu0 %v84
  %106 = vmatpush.bf16.msra.mxu0 %v83
  %107 = vmatmul.bf16.gmra.mxu0 %v49
  %v108 = vpop.f32.mrf.mxu0
  %v109 = vadd.f32 %v43, %v108
  %v110 = vpop.f32.mrf.mxu0
  %v111 = vadd.f32 %v43, %v110
  %112 = vdwg.mxu0
  %v113 = vld [vmem:[%s3] sm:$0xf]
  %v114 = vld [vmem:[%s3 + $0x4] sm:$0xf]
  %v115 = vld [vmem:[%s4] sm:$0xf]
  %v116 = vld [vmem:[%s4 + $0x4] sm:$0xf]
  %v117 = vld [vmem:[%s4 + $0x8] sm:$0xf]
  %v118 = vld [vmem:[%s4 + $0xc] sm:$0xf]
  %v119 = vld [vmem:[%s4 + $0x10] sm:$0xf]
  %v120 = vld [vmem:[%s4 + $0x14] sm:$0xf]
  %v121 = vld [vmem:[%s4 + $0x18] sm:$0xf]
  %v122 = vld [vmem:[%s4 + $0x1c] sm:$0xf]
  %v123 = vld [vmem:[%s4 + $0x20] sm:$0xf]
  %v124 = vld [vmem:[%s4 + $0x24] sm:$0xf]
  %v125 = vld [vmem:[%s4 + $0x28] sm:$0xf]
  %v126 = vld [vmem:[%s4 + $0x2c] sm:$0xf]
  %v127 = vld [vmem:[%s4 + $0x30] sm:$0xf]
  %v128 = vld [vmem:[%s4 + $0x34] sm:$0xf]
  %v129 = vld [vmem:[%s4 + $0x38] sm:$0xf]
  %v130 = vld [vmem:[%s4 + $0x3c] sm:$0xf]
  %v133 = vunpack.c.l.b16 %v113
  %v134 = vunpack.c.l.b16 %v114
  %v135 = vpack.c.b16 %v134, %v133
  %v153 = vunpack.c.l.b16 %v115
  %v154 = vunpack.c.l.b16 %v116
  %v155 = vunpack.c.l.b16 %v117
  %v156 = vunpack.c.l.b16 %v118
  %v157 = vunpack.c.l.b16 %v119
  %v158 = vunpack.c.l.b16 %v120
  %v159 = vunpack.c.l.b16 %v121
  %v160 = vunpack.c.l.b16 %v122
  %v161 = vunpack.c.l.b16 %v123
  %v162 = vunpack.c.l.b16 %v124
  %v163 = vunpack.c.l.b16 %v125
  %v164 = vunpack.c.l.b16 %v126
  %v165 = vunpack.c.l.b16 %v127
  %v166 = vunpack.c.l.b16 %v128
  %v167 = vunpack.c.l.b16 %v129
  %v168 = vunpack.c.l.b16 %v130
  %v169 = vpack.c.b16 %v154, %v153
  %v170 = vpack.c.b16 %v156, %v155
  %v171 = vpack.c.b16 %v158, %v157
  %v172 = vpack.c.b16 %v160, %v159
  %v173 = vpack.c.b16 %v162, %v161
  %v174 = vpack.c.b16 %v164, %v163
  %v175 = vpack.c.b16 %v166, %v165
  %v176 = vpack.c.b16 %v168, %v167
  %185 = vmatpush.bf16.msra.mxu0 %v176
  %186 = vmatpush.bf16.msra.mxu0 %v175
  %187 = vmatpush.bf16.msra.mxu0 %v174
  %188 = vmatpush.bf16.msra.mxu0 %v173
  %189 = vmatpush.bf16.msra.mxu0 %v172
  %190 = vmatpush.bf16.msra.mxu0 %v171
  %191 = vmatpush.bf16.msra.mxu0 %v170
  %192 = vmatpush.bf16.msra.mxu0 %v169
  %193 = vmatmul.bf16.gmra.mxu0 %v135
  %v194 = vpop.f32.mrf.mxu0
  %v195 = vadd.f32 0.0, %v194
  %v196 = vpop.f32.mrf.mxu0
  %v197 = vadd.f32 0.0, %v196
  %198 = vdwg.mxu0
  %v199 = vadd.f32 %v109, %v195
  %v200 = vadd.f32 %v111, %v197
  %v201 = vld [vmem:[%s5] sm:$0x1]
  %v203 = vperm.slane %v201, 0
  %v205 = vadd.f32 %v199, %v203
  %v206 = vadd.f32 %v200, %v203
  %v207 = vmax.f32 %v205, 0.0
  %v208 = vmax.f32 %v206, 0.0
  %v209 = vpack.c.bf16 %v207, %v207
  %v210 = vpack.c.bf16 %v208, %v208
  %211 = vst [vmem:[%s6] sm:$0xf] %v209
  %212 = vst [vmem:[%s6 + $0x4] sm:$0xf] %v210
  // Predicated region
  $region26: #{forward.23} parent=0 // pred_check
    _
  $region27: #{forward.23} parent=0 // pred_check_branch
    %214 = sbr.rel (0) target = $region29
  $region28: #{forward.23} parent=0 // pred_region
    _
  $region29: #{forward.23} parent=0 // pred_fallthru
    _
  // Predicated region
  $region30: #{forward.23} parent=0 // pred_check
    _
  $region31: #{forward.23} parent=0 // pred_check_branch
    %216 = sbr.rel (0) target = $region33
  $region32: #{forward.23} parent=0 // pred_region
    _
  $region33: #{forward.23} parent=0 // pred_fallthru
    _

// kernel: forward.22
$region0: #{forward.22}
  #allocation0 [shape = 'u32[]', space=smem, size = 0x4, offset = 0x4, fixed_abs, tag = 'smem constant byte address 0x4 - core index']
  #allocation1 [shape = 'u32[72,128]{1,0:T(1,128)}', space=vmem, size = 0x9000, scoped, tag = 'internal scratch']
  %s0 = inlined_call_operand.vmem [shape: bf16[16,1152], index: 0, kind: input, shape index: {}]
  %s1 = inlined_call_operand.vmem [shape: bf16[1152,128], index: 1, kind: input, shape index: {}]
  %s2 = inlined_call_operand.vmem [shape: f32[1,128], index: 2, kind: input, shape index: {}]
  %s3 = inlined_call_operand.vmem [shape: bf16[16,128], index: 3, kind: output, shape index: {}]
  %s4 = sld [smem:[#allocation0]]
  $region22: #{forward.22} parent=0
    _
  %s6 = ssub.s32 1, %s4
  %s7 = scalar_select 0, %s6, %s4
  // Predicated region
  $region2: #{forward.22} parent=0 // pred_check
    _
  $region3: #{forward.22} parent=0 // pred_check_branch
    %9 = sbr.rel (0) target = $region5
  $region4: #{forward.22} parent=0 // pred_region
    _
  $region5: #{forward.22} parent=0 // pred_fallthru
    _
  // Predicated region
  $region6: #{forward.22} parent=0 // pred_check
    _
  $region7: #{forward.22} parent=0 // pred_check_branch
    %11 = sbr.rel (0) target = $region9
  $region8: #{forward.22} parent=0 // pred_region
    _
  $region9: #{forward.22} parent=0 // pred_fallthru
    _
  // Predicated region
  $region10: #{forward.22} parent=0 // pred_check
    _
  $region11: #{forward.22} parent=0 // pred_check_branch
    %13 = sbr.rel (0) target = $region13
  $region12: #{forward.22} parent=0 // pred_region
    _
  $region13: #{forward.22} parent=0 // pred_fallthru
    _
  %v14 = vld [vmem:[%s0] sm:$0xff]
  %v15 = vld [vmem:[%s0 + $0x8] sm:$0xff]
  %v16 = vld [vmem:[%s0 + $0x10] sm:$0xff]
  %v17 = vld [vmem:[%s0 + $0x18] sm:$0xff]
  %v18 = vld [vmem:[%s0 + $0x20] sm:$0xf]
  %v19 = vld [vmem:[%s0 + $0x24] sm:$0xff]
  %v20 = vld [vmem:[%s0 + $0x2c] sm:$0xff]
  %v21 = vld [vmem:[%s0 + $0x34] sm:$0xff]
  %v22 = vld [vmem:[%s0 + $0x3c] sm:$0xff]
  %v23 = vld [vmem:[%s0 + $0x44] sm:$0xf]
  %v24 = vld [vmem:[%s1] sm:$0xf]
  %v25 = vld [vmem:[%s1 + $0x4] sm:$0xf]
  %v26 = vld [vmem:[%s1 + $0x8] sm:$0xf]
  %v27 = vld [vmem:[%s1 + $0xc] sm:$0xf]
  %v28 = vld [vmem:[%s1 + $0x10] sm:$0xf]
  %v29 = vld [vmem:[%s1 + $0x14] sm:$0xf]
  %v30 = vld [vmem:[%s1 + $0x18] sm:$0xf]
  %v31 = vld [vmem:[%s1 + $0x1c] sm:$0xf]
  %v32 = vld [vmem:[%s1 + $0x20] sm:$0xf]
  %v33 = vld [vmem:[%s1 + $0x24] sm:$0xf]
  %v34 = vld [vmem:[%s1 + $0x28] sm:$0xf]
  %v35 = vld [vmem:[%s1 + $0x2c] sm:$0xf]
  %v36 = vld [vmem:[%s1 + $0x30] sm:$0xf]
  %v37 = vld [vmem:[%s1 + $0x34] sm:$0xf]
  %v38 = vld [vmem:[%s1 + $0x38] sm:$0xf]
  %v39 = vld [vmem:[%s1 + $0x3c] sm:$0xf]
  %v40 = vld [vmem:[%s1 + $0x40] sm:$0xf]
  %v41 = vld [vmem:[%s1 + $0x44] sm:$0xf]
  %v42 = vld [vmem:[%s1 + $0x48] sm:$0xf]
  %v43 = vld [vmem:[%s1 + $0x4c] sm:$0xf]
  %v44 = vld [vmem:[%s1 + $0x50] sm:$0xf]
  %v45 = vld [vmem:[%s1 + $0x54] sm:$0xf]
  %v46 = vld [vmem:[%s1 + $0x58] sm:$0xf]
  %v47 = vld [vmem:[%s1 + $0x5c] sm:$0xf]
  %v48 = vld [vmem:[%s1 + $0x60] sm:$0xf]
  %v49 = vld [vmem:[%s1 + $0x64] sm:$0xf]
  %v50 = vld [vmem:[%s1 + $0x68] sm:$0xf]
  %v51 = vld [vmem:[%s1 + $0x6c] sm:$0xf]
  %v52 = vld [vmem:[%s1 + $0x70] sm:$0xf]
  %v53 = vld [vmem:[%s1 + $0x74] sm:$0xf]
  %v54 = vld [vmem:[%s1 + $0x78] sm:$0xf]
  %v55 = vld [vmem:[%s1 + $0x7c] sm:$0xf]
  %v56 = vld [vmem:[%s1 + $0x80] sm:$0xf]
  %v57 = vld [vmem:[%s1 + $0x84] sm:$0xf]
  %v58 = vld [vmem:[%s1 + $0x88] sm:$0xf]
  %v59 = vld [vmem:[%s1 + $0x8c] sm:$0xf]
  %v60 = vld [vmem:[%s1 + $0x90] sm:$0xf]
  %v61 = vld [vmem:[%s1 + $0x94] sm:$0xf]
  %v62 = vld [vmem:[%s1 + $0x98] sm:$0xf]
  %v63 = vld [vmem:[%s1 + $0x9c] sm:$0xf]
  %v64 = vld [vmem:[%s1 + $0xa0] sm:$0xf]
  %v65 = vld [vmem:[%s1 + $0xa4] sm:$0xf]
  %v66 = vld [vmem:[%s1 + $0xa8] sm:$0xf]
  %v67 = vld [vmem:[%s1 + $0xac] sm:$0xf]
  %v68 = vld [vmem:[%s1 + $0xb0] sm:$0xf]
  %v69 = vld [vmem:[%s1 + $0xb4] sm:$0xf]
  %v70 = vld [vmem:[%s1 + $0xb8] sm:$0xf]
  %v71 = vld [vmem:[%s1 + $0xbc] sm:$0xf]
  %v72 = vld [vmem:[%s1 + $0xc0] sm:$0xf]
  %v73 = vld [vmem:[%s1 + $0xc4] sm:$0xf]
  %v74 = vld [vmem:[%s1 + $0xc8] sm:$0xf]
  %v75 = vld [vmem:[%s1 + $0xcc] sm:$0xf]
  %v76 = vld [vmem:[%s1 + $0xd0] sm:$0xf]
  %v77 = vld [vmem:[%s1 + $0xd4] sm:$0xf]
  %v78 = vld [vmem:[%s1 + $0xd8] sm:$0xf]
  %v79 = vld [vmem:[%s1 + $0xdc] sm:$0xf]
  %v80 = vld [vmem:[%s1 + $0xe0] sm:$0xf]
  %v81 = vld [vmem:[%s1 + $0xe4] sm:$0xf]
  %v82 = vld [vmem:[%s1 + $0xe8] sm:$0xf]
  %v83 = vld [vmem:[%s1 + $0xec] sm:$0xf]
  %v84 = vld [vmem:[%s1 + $0xf0] sm:$0xf]
  %v85 = vld [vmem:[%s1 + $0xf4] sm:$0xf]
  %v86 = vld [vmem:[%s1 + $0xf8] sm:$0xf]
  %v87 = vld [vmem:[%s1 + $0xfc] sm:$0xf]
  %v88 = vld [vmem:[%s1 + $0x100] sm:$0xf]
  %v89 = vld [vmem:[%s1 + $0x104] sm:$0xf]
  %v90 = vld [vmem:[%s1 + $0x108] sm:$0xf]
  %v91 = vld [vmem:[%s1 + $0x10c] sm:$0xf]
  %v92 = vld [vmem:[%s1 + $0x110] sm:$0xf]
  %v93 = vld [vmem:[%s1 + $0x114] sm:$0xf]
  %v94 = vld [vmem:[%s1 + $0x118] sm:$0xf]
  %v95 = vld [vmem:[%s1 + $0x11c] sm:$0xf]
  %v96 = vld [vmem:[%s1 + $0x120] sm:$0xf]
  %v97 = vld [vmem:[%s1 + $0x124] sm:$0xf]
  %v98 = vld [vmem:[%s1 + $0x128] sm:$0xf]
  %v99 = vld [vmem:[%s1 + $0x12c] sm:$0xf]
  %v100 = vld [vmem:[%s1 + $0x130] sm:$0xf]
  %v101 = vld [vmem:[%s1 + $0x134] sm:$0xf]
  %v102 = vld [vmem:[%s1 + $0x138] sm:$0xf]
  %v103 = vld [vmem:[%s1 + $0x13c] sm:$0xf]
  %v104 = vld [vmem:[%s1 + $0x140] sm:$0xf]
  %v105 = vld [vmem:[%s1 + $0x144] sm:$0xf]
  %v106 = vld [vmem:[%s1 + $0x148] sm:$0xf]
  %v107 = vld [vmem:[%s1 + $0x14c] sm:$0xf]
  %v108 = vld [vmem:[%s1 + $0x150] sm:$0xf]
  %v109 = vld [vmem:[%s1 + $0x154] sm:$0xf]
  %v110 = vld [vmem:[%s1 + $0x158] sm:$0xf]
  %v111 = vld [vmem:[%s1 + $0x15c] sm:$0xf]
  %v112 = vld [vmem:[%s1 + $0x160] sm:$0xf]
  %v113 = vld [vmem:[%s1 + $0x164] sm:$0xf]
  %v114 = vld [vmem:[%s1 + $0x168] sm:$0xf]
  %v115 = vld [vmem:[%s1 + $0x16c] sm:$0xf]
  %v116 = vld [vmem:[%s1 + $0x170] sm:$0xf]
  %v117 = vld [vmem:[%s1 + $0x174] sm:$0xf]
  %v118 = vld [vmem:[%s1 + $0x178] sm:$0xf]
  %v119 = vld [vmem:[%s1 + $0x17c] sm:$0xf]
  %v120 = vld [vmem:[%s1 + $0x180] sm:$0xf]
  %v121 = vld [vmem:[%s1 + $0x184] sm:$0xf]
  %v122 = vld [vmem:[%s1 + $0x188] sm:$0xf]
  %v123 = vld [vmem:[%s1 + $0x18c] sm:$0xf]
  %v124 = vld [vmem:[%s1 + $0x190] sm:$0xf]
  %v125 = vld [vmem:[%s1 + $0x194] sm:$0xf]
  %v126 = vld [vmem:[%s1 + $0x198] sm:$0xf]
  %v127 = vld [vmem:[%s1 + $0x19c] sm:$0xf]
  %v128 = vld [vmem:[%s1 + $0x1a0] sm:$0xf]
  %v129 = vld [vmem:[%s1 + $0x1a4] sm:$0xf]
  %v130 = vld [vmem:[%s1 + $0x1a8] sm:$0xf]
  %v131 = vld [vmem:[%s1 + $0x1ac] sm:$0xf]
  %v132 = vld [vmem:[%s1 + $0x1b0] sm:$0xf]
  %v133 = vld [vmem:[%s1 + $0x1b4] sm:$0xf]
  %v134 = vld [vmem:[%s1 + $0x1b8] sm:$0xf]
  %v135 = vld [vmem:[%s1 + $0x1bc] sm:$0xf]
  %v136 = vld [vmem:[%s1 + $0x1c0] sm:$0xf]
  %v137 = vld [vmem:[%s1 + $0x1c4] sm:$0xf]
  %v138 = vld [vmem:[%s1 + $0x1c8] sm:$0xf]
  %v139 = vld [vmem:[%s1 + $0x1cc] sm:$0xf]
  %v140 = vld [vmem:[%s1 + $0x1d0] sm:$0xf]
  %v141 = vld [vmem:[%s1 + $0x1d4] sm:$0xf]
  %v142 = vld [vmem:[%s1 + $0x1d8] sm:$0xf]
  %v143 = vld [vmem:[%s1 + $0x1dc] sm:$0xf]
  %v144 = vld [vmem:[%s1 + $0x1e0] sm:$0xf]
  %v145 = vld [vmem:[%s1 + $0x1e4] sm:$0xf]
  %v146 = vld [vmem:[%s1 + $0x1e8] sm:$0xf]
  %v147 = vld [vmem:[%s1 + $0x1ec] sm:$0xf]
  %v148 = vld [vmem:[%s1 + $0x1f0] sm:$0xf]
  %v149 = vld [vmem:[%s1 + $0x1f4] sm:$0xf]
  %v150 = vld [vmem:[%s1 + $0x1f8] sm:$0xf]
  %v151 = vld [vmem:[%s1 + $0x1fc] sm:$0xf]
  %v152 = vld [vmem:[%s1 + $0x200] sm:$0xf]
  %v153 = vld [vmem:[%s1 + $0x204] sm:$0xf]
  %v154 = vld [vmem:[%s1 + $0x208] sm:$0xf]
  %v155 = vld [vmem:[%s1 + $0x20c] sm:$0xf]
  %v156 = vld [vmem:[%s1 + $0x210] sm:$0xf]
  %v157 = vld [vmem:[%s1 + $0x214] sm:$0xf]
  %v158 = vld [vmem:[%s1 + $0x218] sm:$0xf]
  %v159 = vld [vmem:[%s1 + $0x21c] sm:$0xf]
  %v160 = vld [vmem:[%s1 + $0x220] sm:$0xf]
  %v161 = vld [vmem:[%s1 + $0x224] sm:$0xf]
  %v162 = vld [vmem:[%s1 + $0x228] sm:$0xf]
  %v163 = vld [vmem:[%s1 + $0x22c] sm:$0xf]
  %v164 = vld [vmem:[%s1 + $0x230] sm:$0xf]
  %v165 = vld [vmem:[%s1 + $0x234] sm:$0xf]
  %v166 = vld [vmem:[%s1 + $0x238] sm:$0xf]
  %v167 = vld [vmem:[%s1 + $0x23c] sm:$0xf]
  %v168 = vld [vmem:[%s2] sm:$0x1]
  %v170 = vperm.slane %v168, 0
  %v182 = vunpack.c.l.b16 %v14
  %v183 = vunpack.c.h.b16 %v14
  %v184 = vunpack.c.l.b16 %v15
  %v185 = vunpack.c.h.b16 %v15
  %v186 = vunpack.c.l.b16 %v16
  %v187 = vunpack.c.h.b16 %v16
  %v188 = vunpack.c.l.b16 %v17
  %v189 = vunpack.c.h.b16 %v17
  %v190 = vunpack.c.l.b16 %v18
  %v191 = vunpack.c.l.b16 %v19
  %v192 = vunpack.c.h.b16 %v19
  %v193 = vunpack.c.l.b16 %v20
  %v194 = vunpack.c.h.b16 %v20
  %v195 = vunpack.c.l.b16 %v21
  %v196 = vunpack.c.h.b16 %v21
  %v197 = vunpack.c.l.b16 %v22
  %v198 = vunpack.c.h.b16 %v22
  %v199 = vunpack.c.l.b16 %v23
  %v200 = vpack.c.b16 %v191, %v182
  %v201 = vpack.c.b16 %v192, %v183
  %v202 = vpack.c.b16 %v193, %v184
  %v203 = vpack.c.b16 %v194, %v185
  %v204 = vpack.c.b16 %v195, %v186
  %v205 = vpack.c.b16 %v196, %v187
  %v206 = vpack.c.b16 %v197, %v188
  %v207 = vpack.c.b16 %v198, %v189
  %v208 = vpack.c.b16 %v199, %v190
  %v362 = vunpack.c.l.b16 %v24
  %v363 = vunpack.c.l.b16 %v25
  %v364 = vunpack.c.l.b16 %v26
  %v365 = vunpack.c.l.b16 %v27
  %v366 = vunpack.c.l.b16 %v28
  %v367 = vunpack.c.l.b16 %v29
  %v368 = vunpack.c.l.b16 %v30
  %v369 = vunpack.c.l.b16 %v31
  %v370 = vunpack.c.l.b16 %v32
  %v371 = vunpack.c.l.b16 %v33
  %v372 = vunpack.c.l.b16 %v34
  %v373 = vunpack.c.l.b16 %v35
  %v374 = vunpack.c.l.b16 %v36
  %v375 = vunpack.c.l.b16 %v37
  %v376 = vunpack.c.l.b16 %v38
  %v377 = vunpack.c.l.b16 %v39
  %v378 = vunpack.c.l.b16 %v40
  %v379 = vunpack.c.l.b16 %v41
  %v380 = vunpack.c.l.b16 %v42
  %v381 = vunpack.c.l.b16 %v43
  %v382 = vunpack.c.l.b16 %v44
  %v383 = vunpack.c.l.b16 %v45
  %v384 = vunpack.c.l.b16 %v46
  %v385 = vunpack.c.l.b16 %v47
  %v386 = vunpack.c.l.b16 %v48
  %v387 = vunpack.c.l.b16 %v49
  %v388 = vunpack.c.l.b16 %v50
  %v389 = vunpack.c.l.b16 %v51
  %v390 = vunpack.c.l.b16 %v52
  %v391 = vunpack.c.l.b16 %v53
  %v392 = vunpack.c.l.b16 %v54
  %v393 = vunpack.c.l.b16 %v55
  %v394 = vunpack.c.l.b16 %v56
  %v395 = vunpack.c.l.b16 %v57
  %v396 = vunpack.c.l.b16 %v58
  %v397 = vunpack.c.l.b16 %v59
  %v398 = vunpack.c.l.b16 %v60
  %v399 = vunpack.c.l.b16 %v61
  %v400 = vunpack.c.l.b16 %v62
  %v401 = vunpack.c.l.b16 %v63
  %v402 = vunpack.c.l.b16 %v64
  %v403 = vunpack.c.l.b16 %v65
  %v404 = vunpack.c.l.b16 %v66
  %v405 = vunpack.c.l.b16 %v67
  %v406 = vunpack.c.l.b16 %v68
  %v407 = vunpack.c.l.b16 %v69
  %v408 = vunpack.c.l.b16 %v70
  %v409 = vunpack.c.l.b16 %v71
  %v410 = vunpack.c.l.b16 %v72
  %v411 = vunpack.c.l.b16 %v73
  %v412 = vunpack.c.l.b16 %v74
  %v413 = vunpack.c.l.b16 %v75
  %v414 = vunpack.c.l.b16 %v76
  %v415 = vunpack.c.l.b16 %v77
  %v416 = vunpack.c.l.b16 %v78
  %v417 = vunpack.c.l.b16 %v79
  %v418 = vunpack.c.l.b16 %v80
  %v419 = vunpack.c.l.b16 %v81
  %v420 = vunpack.c.l.b16 %v82
  %v421 = vunpack.c.l.b16 %v83
  %v422 = vunpack.c.l.b16 %v84
  %v423 = vunpack.c.l.b16 %v85
  %v424 = vunpack.c.l.b16 %v86
  %v425 = vunpack.c.l.b16 %v87
  %v426 = vunpack.c.l.b16 %v88
  %v427 = vunpack.c.l.b16 %v89
  %v428 = vunpack.c.l.b16 %v90
  %v429 = vunpack.c.l.b16 %v91
  %v430 = vunpack.c.l.b16 %v92
  %v431 = vunpack.c.l.b16 %v93
  %v432 = vunpack.c.l.b16 %v94
  %v433 = vunpack.c.l.b16 %v95
  %v434 = vunpack.c.l.b16 %v96
  %v435 = vunpack.c.l.b16 %v97
  %v436 = vunpack.c.l.b16 %v98
  %v437 = vunpack.c.l.b16 %v99
  %v438 = vunpack.c.l.b16 %v100
  %v439 = vunpack.c.l.b16 %v101
  %v440 = vunpack.c.l.b16 %v102
  %v441 = vunpack.c.l.b16 %v103
  %v442 = vunpack.c.l.b16 %v104
  %v443 = vunpack.c.l.b16 %v105
  %v444 = vunpack.c.l.b16 %v106
  %v445 = vunpack.c.l.b16 %v107
  %v446 = vunpack.c.l.b16 %v108
  %v447 = vunpack.c.l.b16 %v109
  %v448 = vunpack.c.l.b16 %v110
  %v449 = vunpack.c.l.b16 %v111
  %v450 = vunpack.c.l.b16 %v112
  %v451 = vunpack.c.l.b16 %v113
  %v452 = vunpack.c.l.b16 %v114
  %v453 = vunpack.c.l.b16 %v115
  %v454 = vunpack.c.l.b16 %v116
  %v455 = vunpack.c.l.b16 %v117
  %v456 = vunpack.c.l.b16 %v118
  %v457 = vunpack.c.l.b16 %v119
  %v458 = vunpack.c.l.b16 %v120
  %v459 = vunpack.c.l.b16 %v121
  %v460 = vunpack.c.l.b16 %v122
  %v461 = vunpack.c.l.b16 %v123
  %v462 = vunpack.c.l.b16 %v124
  %v463 = vunpack.c.l.b16 %v125
  %v464 = vunpack.c.l.b16 %v126
  %v465 = vunpack.c.l.b16 %v127
  %v466 = vunpack.c.l.b16 %v128
  %v467 = vunpack.c.l.b16 %v129
  %v468 = vunpack.c.l.b16 %v130
  %v469 = vunpack.c.l.b16 %v131
  %v470 = vunpack.c.l.b16 %v132
  %v471 = vunpack.c.l.b16 %v133
  %v472 = vunpack.c.l.b16 %v134
  %v473 = vunpack.c.l.b16 %v135
  %v474 = vunpack.c.l.b16 %v136
  %v475 = vunpack.c.l.b16 %v137
  %v476 = vunpack.c.l.b16 %v138
  %v477 = vunpack.c.l.b16 %v139
  %v478 = vunpack.c.l.b16 %v140
  %v479 = vunpack.c.l.b16 %v141
  %v480 = vunpack.c.l.b16 %v142
  %v481 = vunpack.c.l.b16 %v143
  %v482 = vunpack.c.l.b16 %v144
  %v483 = vunpack.c.l.b16 %v145
  %v484 = vunpack.c.l.b16 %v146
  %v485 = vunpack.c.l.b16 %v147
  %v486 = vunpack.c.l.b16 %v148
  %v487 = vunpack.c.l.b16 %v149
  %v488 = vunpack.c.l.b16 %v150
  %v489 = vunpack.c.l.b16 %v151
  %v490 = vunpack.c.l.b16 %v152
  %v491 = vunpack.c.l.b16 %v153
  %v492 = vunpack.c.l.b16 %v154
  %v493 = vunpack.c.l.b16 %v155
  %v494 = vunpack.c.l.b16 %v156
  %v495 = vunpack.c.l.b16 %v157
  %v496 = vunpack.c.l.b16 %v158
  %v497 = vunpack.c.l.b16 %v159
  %v498 = vunpack.c.l.b16 %v160
  %v499 = vunpack.c.l.b16 %v161
  %v500 = vunpack.c.l.b16 %v162
  %v501 = vunpack.c.l.b16 %v163
  %v502 = vunpack.c.l.b16 %v164
  %v503 = vunpack.c.l.b16 %v165
  %v504 = vunpack.c.l.b16 %v166
  %v505 = vunpack.c.l.b16 %v167
  %v506 = vpack.c.b16 %v363, %v362
  %v507 = vpack.c.b16 %v365, %v364
  %v508 = vpack.c.b16 %v367, %v366
  %v509 = vpack.c.b16 %v369, %v368
  %v510 = vpack.c.b16 %v371, %v370
  %v511 = vpack.c.b16 %v373, %v372
  %v512 = vpack.c.b16 %v375, %v374
  %v513 = vpack.c.b16 %v377, %v376
  %v514 = vpack.c.b16 %v379, %v378
  %v515 = vpack.c.b16 %v381, %v380
  %v516 = vpack.c.b16 %v383, %v382
  %v517 = vpack.c.b16 %v385, %v384
  %v518 = vpack.c.b16 %v387, %v386
  %v519 = vpack.c.b16 %v389, %v388
  %v520 = vpack.c.b16 %v391, %v390
  %v521 = vpack.c.b16 %v393, %v392
  %v522 = vpack.c.b16 %v395, %v394
  %v523 = vpack.c.b16 %v397, %v396
  %v524 = vpack.c.b16 %v399, %v398
  %v525 = vpack.c.b16 %v401, %v400
  %v526 = vpack.c.b16 %v403, %v402
  %v527 = vpack.c.b16 %v405, %v404
  %v528 = vpack.c.b16 %v407, %v406
  %v529 = vpack.c.b16 %v409, %v408
  %v530 = vpack.c.b16 %v411, %v410
  %v531 = vpack.c.b16 %v413, %v412
  %v532 = vpack.c.b16 %v415, %v414
  %v533 = vpack.c.b16 %v417, %v416
  %v534 = vpack.c.b16 %v419, %v418
  %v535 = vpack.c.b16 %v421, %v420
  %v536 = vpack.c.b16 %v423, %v422
  %v537 = vpack.c.b16 %v425, %v424
  %v538 = vpack.c.b16 %v427, %v426
  %v539 = vpack.c.b16 %v429, %v428
  %v540 = vpack.c.b16 %v431, %v430
  %v541 = vpack.c.b16 %v433, %v432
  %v542 = vpack.c.b16 %v435, %v434
  %v543 = vpack.c.b16 %v437, %v436
  %v544 = vpack.c.b16 %v439, %v438
  %v545 = vpack.c.b16 %v441, %v440
  %v546 = vpack.c.b16 %v443, %v442
  %v547 = vpack.c.b16 %v445, %v444
  %v548 = vpack.c.b16 %v447, %v446
  %v549 = vpack.c.b16 %v449, %v448
  %v550 = vpack.c.b16 %v451, %v450
  %v551 = vpack.c.b16 %v453, %v452
  %v552 = vpack.c.b16 %v455, %v454
  %v553 = vpack.c.b16 %v457, %v456
  %v554 = vpack.c.b16 %v459, %v458
  %v555 = vpack.c.b16 %v461, %v460
  %v556 = vpack.c.b16 %v463, %v462
  %v557 = vpack.c.b16 %v465, %v464
  %v558 = vpack.c.b16 %v467, %v466
  %v559 = vpack.c.b16 %v469, %v468
  %v560 = vpack.c.b16 %v471, %v470
  %v561 = vpack.c.b16 %v473, %v472
  %v562 = vpack.c.b16 %v475, %v474
  %v563 = vpack.c.b16 %v477, %v476
  %v564 = vpack.c.b16 %v479, %v478
  %v565 = vpack.c.b16 %v481, %v480
  %v566 = vpack.c.b16 %v483, %v482
  %v567 = vpack.c.b16 %v485, %v484
  %v568 = vpack.c.b16 %v487, %v486
  %v569 = vpack.c.b16 %v489, %v488
  %v570 = vpack.c.b16 %v491, %v490
  %v571 = vpack.c.b16 %v493, %v492
  %v572 = vpack.c.b16 %v495, %v494
  %v573 = vpack.c.b16 %v497, %v496
  %v574 = vpack.c.b16 %v499, %v498
  %v575 = vpack.c.b16 %v501, %v500
  %v576 = vpack.c.b16 %v503, %v502
  %v577 = vpack.c.b16 %v505, %v504
  %650 = vmatpush.bf16.msra.mxu0 %v513
  %651 = vmatpush.bf16.msra.mxu0 %v512
  %652 = vmatpush.bf16.msra.mxu0 %v511
  %653 = vmatpush.bf16.msra.mxu0 %v510
  %654 = vmatpush.bf16.msra.mxu0 %v509
  %655 = vmatpush.bf16.msra.mxu0 %v508
  %656 = vmatpush.bf16.msra.mxu0 %v507
  %657 = vmatpush.bf16.msra.mxu0 %v506
  %658 = vmatmul.bf16.gmra.mxu0 %v200
  %v659 = vpop.f32.mrf.mxu0
  %v660 = vadd.f32 %v170, %v659
  %v661 = vpop.f32.mrf.mxu0
  %v662 = vadd.f32 %v170, %v661
  %663 = vdwg.mxu0
  %664 = vmatpush.bf16.msra.mxu0 %v521
  %665 = vmatpush.bf16.msra.mxu0 %v520
  %666 = vmatpush.bf16.msra.mxu0 %v519
  %667 = vmatpush.bf16.msra.mxu0 %v518
  %668 = vmatpush.bf16.msra.mxu0 %v517
  %669 = vmatpush.bf16.msra.mxu0 %v516
  %670 = vmatpush.bf16.msra.mxu0 %v515
  %671 = vmatpush.bf16.msra.mxu0 %v514
  %672 = vmatmul.bf16.gmra.mxu0 %v201
  %v673 = vpop.f32.mrf.mxu0
  %v674 = vadd.f32 %v660, %v673
  %v675 = vpop.f32.mrf.mxu0
  %v676 = vadd.f32 %v662, %v675
  %677 = vdwg.mxu0
  %678 = vmatpush.bf16.msra.mxu0 %v529
  %679 = vmatpush.bf16.msra.mxu0 %v528
  %680 = vmatpush.bf16.msra.mxu0 %v527
  %681 = vmatpush.bf16.msra.mxu0 %v526
  %682 = vmatpush.bf16.msra.mxu0 %v525
  %683 = vmatpush.bf16.msra.mxu0 %v524
  %684 = vmatpush.bf16.msra.mxu0 %v523
  %685 = vmatpush.bf16.msra.mxu0 %v522
  %686 = vmatmul.bf16.gmra.mxu0 %v202
  %v687 = vpop.f32.mrf.mxu0
  %v688 = vadd.f32 %v674, %v687
  %v689 = vpop.f32.mrf.mxu0
  %v690 = vadd.f32 %v676, %v689
  %691 = vdwg.mxu0
  %692 = vmatpush.bf16.msra.mxu0 %v537
  %693 = vmatpush.bf16.msra.mxu0 %v536
  %694 = vmatpush.bf16.msra.mxu0 %v535
  %695 = vmatpush.bf16.msra.mxu0 %v534
  %696 = vmatpush.bf16.msra.mxu0 %v533
  %697 = vmatpush.bf16.msra.mxu0 %v532
  %698 = vmatpush.bf16.msra.mxu0 %v531
  %699 = vmatpush.bf16.msra.mxu0 %v530
  %700 = vmatmul.bf16.gmra.mxu0 %v203
  %v701 = vpop.f32.mrf.mxu0
  %v702 = vadd.f32 %v688, %v701
  %v703 = vpop.f32.mrf.mxu0
  %v704 = vadd.f32 %v690, %v703
  %705 = vdwg.mxu0
  %706 = vmatpush.bf16.msra.mxu0 %v545
  %707 = vmatpush.bf16.msra.mxu0 %v544
  %708 = vmatpush.bf16.msra.mxu0 %v543
  %709 = vmatpush.bf16.msra.mxu0 %v542
  %710 = vmatpush.bf16.msra.mxu0 %v541
  %711 = vmatpush.bf16.msra.mxu0 %v540
  %712 = vmatpush.bf16.msra.mxu0 %v539
  %713 = vmatpush.bf16.msra.mxu0 %v538
  %714 = vmatmul.bf16.gmra.mxu0 %v204
  %v715 = vpop.f32.mrf.mxu0
  %v716 = vadd.f32 %v702, %v715
  %v717 = vpop.f32.mrf.mxu0
  %v718 = vadd.f32 %v704, %v717
  %719 = vdwg.mxu0
  %720 = vmatpush.bf16.msra.mxu0 %v553
  %721 = vmatpush.bf16.msra.mxu0 %v552
  %722 = vmatpush.bf16.msra.mxu0 %v551
  %723 = vmatpush.bf16.msra.mxu0 %v550
  %724 = vmatpush.bf16.msra.mxu0 %v549
  %725 = vmatpush.bf16.msra.mxu0 %v548
  %726 = vmatpush.bf16.msra.mxu0 %v547
  %727 = vmatpush.bf16.msra.mxu0 %v546
  %728 = vmatmul.bf16.gmra.mxu0 %v205
  %v729 = vpop.f32.mrf.mxu0
  %v730 = vadd.f32 %v716, %v729
  %v731 = vpop.f32.mrf.mxu0
  %v732 = vadd.f32 %v718, %v731
  %733 = vdwg.mxu0
  %734 = vmatpush.bf16.msra.mxu0 %v561
  %735 = vmatpush.bf16.msra.mxu0 %v560
  %736 = vmatpush.bf16.msra.mxu0 %v559
  %737 = vmatpush.bf16.msra.mxu0 %v558
  %738 = vmatpush.bf16.msra.mxu0 %v557
  %739 = vmatpush.bf16.msra.mxu0 %v556
  %740 = vmatpush.bf16.msra.mxu0 %v555
  %741 = vmatpush.bf16.msra.mxu0 %v554
  %742 = vmatmul.bf16.gmra.mxu0 %v206
  %v743 = vpop.f32.mrf.mxu0
  %v744 = vadd.f32 %v730, %v743
  %v745 = vpop.f32.mrf.mxu0
  %v746 = vadd.f32 %v732, %v745
  %747 = vdwg.mxu0
  %748 = vmatpush.bf16.msra.mxu0 %v569
  %749 = vmatpush.bf16.msra.mxu0 %v568
  %750 = vmatpush.bf16.msra.mxu0 %v567
  %751 = vmatpush.bf16.msra.mxu0 %v566
  %752 = vmatpush.bf16.msra.mxu0 %v565
  %753 = vmatpush.bf16.msra.mxu0 %v564
  %754 = vmatpush.bf16.msra.mxu0 %v563
  %755 = vmatpush.bf16.msra.mxu0 %v562
  %756 = vmatmul.bf16.gmra.mxu0 %v207
  %v757 = vpop.f32.mrf.mxu0
  %v758 = vadd.f32 %v744, %v757
  %v759 = vpop.f32.mrf.mxu0
  %v760 = vadd.f32 %v746, %v759
  %761 = vdwg.mxu0
  %762 = vmatpush.bf16.msra.mxu0 %v577
  %763 = vmatpush.bf16.msra.mxu0 %v576
  %764 = vmatpush.bf16.msra.mxu0 %v575
  %765 = vmatpush.bf16.msra.mxu0 %v574
  %766 = vmatpush.bf16.msra.mxu0 %v573
  %767 = vmatpush.bf16.msra.mxu0 %v572
  %768 = vmatpush.bf16.msra.mxu0 %v571
  %769 = vmatpush.bf16.msra.mxu0 %v570
  %770 = vmatmul.bf16.gmra.mxu0 %v208
  %v771 = vpop.f32.mrf.mxu0
  %v772 = vadd.f32 %v758, %v771
  %v773 = vpop.f32.mrf.mxu0
  %v774 = vadd.f32 %v760, %v773
  %775 = vdwg.mxu0
  %v776 = vmax.f32 %v772, 0.0
  %v777 = vmax.f32 %v774, 0.0
  %v778 = vpack.c.bf16 %v776, %v776
  %v779 = vpack.c.bf16 %v777, %v777
  %780 = vst [vmem:[%s3] sm:$0xf] %v778
  %781 = vst [vmem:[%s3 + $0x4] sm:$0xf] %v779
  // Predicated region
  $region14: #{forward.22} parent=0 // pred_check
    _
  $region15: #{forward.22} parent=0 // pred_check_branch
    %783 = sbr.rel (0) target = $region17
  $region16: #{forward.22} parent=0 // pred_region
    _
  $region17: #{forward.22} parent=0 // pred_fallthru
    _
  // Predicated region
  $region18: #{forward.22} parent=0 // pred_check
    _
  $region19: #{forward.22} parent=0 // pred_check_branch
    %785 = sbr.rel (0) target = $region21
  $region20: #{forward.22} parent=0 // pred_region
    _
  $region21: #{forward.22} parent=0 // pred_fallthru
    _

// kernel: forward.26
$region0: #{forward.26}
  #allocation0 [shape = 'u32[]', space=smem, size = 0x4, offset = 0x4, fixed_abs, tag = 'smem constant byte address 0x4 - core index']
  #allocation1 [shape = 'u32[72,128]{1,0:T(1,128)}', space=vmem, size = 0x9000, scoped, tag = 'internal scratch']
  %s0 = inlined_call_operand.vmem [shape: bf16[4,128], index: 0, kind: input, shape index: {}]
  %s1 = inlined_call_operand.vmem [shape: bf16[128,256], index: 1, kind: input, shape index: {}]
  %s2 = inlined_call_operand.vmem [shape: f32[1,256], index: 2, kind: input, shape index: {}]
  %s3 = inlined_call_operand.vmem [shape: bf16[4,128], index: 3, kind: input, shape index: {}]
  %s4 = inlined_call_operand.vmem [shape: bf16[128,256], index: 4, kind: input, shape index: {}]
  %s5 = inlined_call_operand.vmem [shape: f32[1,256], index: 5, kind: input, shape index: {}]
  %s6 = inlined_call_operand.vmem [shape: bf16[4,256], index: 6, kind: output, shape index: {}]
  %s7 = sld [smem:[#allocation0]]
  $region34: #{forward.26} parent=0
    _
  %s9 = ssub.s32 1, %s7
  %s10 = scalar_select 0, %s9, %s7
  // Predicated region
  $region2: #{forward.26} parent=0 // pred_check
    _
  $region3: #{forward.26} parent=0 // pred_check_branch
    %12 = sbr.rel (0) target = $region5
  $region4: #{forward.26} parent=0 // pred_region
    _
  $region5: #{forward.26} parent=0 // pred_fallthru
    _
  // Predicated region
  $region6: #{forward.26} parent=0 // pred_check
    _
  $region7: #{forward.26} parent=0 // pred_check_branch
    %14 = sbr.rel (0) target = $region9
  $region8: #{forward.26} parent=0 // pred_region
    _
  $region9: #{forward.26} parent=0 // pred_fallthru
    _
  // Predicated region
  $region10: #{forward.26} parent=0 // pred_check
    _
  $region11: #{forward.26} parent=0 // pred_check_branch
    %16 = sbr.rel (0) target = $region13
  $region12: #{forward.26} parent=0 // pred_region
    _
  $region13: #{forward.26} parent=0 // pred_fallthru
    _
  // Predicated region
  $region14: #{forward.26} parent=0 // pred_check
    _
  $region15: #{forward.26} parent=0 // pred_check_branch
    %18 = sbr.rel (0) target = $region17
  $region16: #{forward.26} parent=0 // pred_region
    _
  $region17: #{forward.26} parent=0 // pred_fallthru
    _
  // Predicated region
  $region18: #{forward.26} parent=0 // pred_check
    _
  $region19: #{forward.26} parent=0 // pred_check_branch
    %20 = sbr.rel (0) target = $region21
  $region20: #{forward.26} parent=0 // pred_region
    _
  $region21: #{forward.26} parent=0 // pred_fallthru
    _
  // Predicated region
  $region22: #{forward.26} parent=0 // pred_check
    _
  $region23: #{forward.26} parent=0 // pred_check_branch
    %22 = sbr.rel (0) target = $region25
  $region24: #{forward.26} parent=0 // pred_region
    _
  $region25: #{forward.26} parent=0 // pred_fallthru
    _
  %v23 = vld [vmem:[%s0] sm:$0x3]
  %v24 = vld [vmem:[%s1] sm:$0xff]
  %v25 = vld [vmem:[%s1 + $0x8] sm:$0xff]
  %v26 = vld [vmem:[%s1 + $0x10] sm:$0xff]
  %v27 = vld [vmem:[%s1 + $0x18] sm:$0xff]
  %v28 = vld [vmem:[%s1 + $0x20] sm:$0xff]
  %v29 = vld [vmem:[%s1 + $0x28] sm:$0xff]
  %v30 = vld [vmem:[%s1 + $0x30] sm:$0xff]
  %v31 = vld [vmem:[%s1 + $0x38] sm:$0xff]
  %v32 = vld [vmem:[%s1 + $0x40] sm:$0xff]
  %v33 = vld [vmem:[%s1 + $0x48] sm:$0xff]
  %v34 = vld [vmem:[%s1 + $0x50] sm:$0xff]
  %v35 = vld [vmem:[%s1 + $0x58] sm:$0xff]
  %v36 = vld [vmem:[%s1 + $0x60] sm:$0xff]
  %v37 = vld [vmem:[%s1 + $0x68] sm:$0xff]
  %v38 = vld [vmem:[%s1 + $0x70] sm:$0xff]
  %v39 = vld [vmem:[%s1 + $0x78] sm:$0xff]
  %v40 = vld [vmem:[%s2] sm:$0x3]
  %v42 = vperm.slane %v40, 0
  %v43 = vperm.slane %v40, 1
  %v62 = vunpack.c.l.b16 %v24
  %v63 = vunpack.c.h.b16 %v24
  %v64 = vunpack.c.l.b16 %v25
  %v65 = vunpack.c.h.b16 %v25
  %v66 = vunpack.c.l.b16 %v26
  %v67 = vunpack.c.h.b16 %v26
  %v68 = vunpack.c.l.b16 %v27
  %v69 = vunpack.c.h.b16 %v27
  %v70 = vunpack.c.l.b16 %v28
  %v71 = vunpack.c.h.b16 %v28
  %v72 = vunpack.c.l.b16 %v29
  %v73 = vunpack.c.h.b16 %v29
  %v74 = vunpack.c.l.b16 %v30
  %v75 = vunpack.c.h.b16 %v30
  %v76 = vunpack.c.l.b16 %v31
  %v77 = vunpack.c.h.b16 %v31
  %v78 = vunpack.c.l.b16 %v32
  %v79 = vunpack.c.h.b16 %v32
  %v80 = vunpack.c.l.b16 %v33
  %v81 = vunpack.c.h.b16 %v33
  %v82 = vunpack.c.l.b16 %v34
  %v83 = vunpack.c.h.b16 %v34
  %v84 = vunpack.c.l.b16 %v35
  %v85 = vunpack.c.h.b16 %v35
  %v86 = vunpack.c.l.b16 %v36
  %v87 = vunpack.c.h.b16 %v36
  %v88 = vunpack.c.l.b16 %v37
  %v89 = vunpack.c.h.b16 %v37
  %v90 = vunpack.c.l.b16 %v38
  %v91 = vunpack.c.h.b16 %v38
  %v92 = vunpack.c.l.b16 %v39
  %v93 = vunpack.c.h.b16 %v39
  %v94 = vpack.c.b16 %v64, %v62
  %v95 = vpack.c.b16 %v65, %v63
  %v96 = vpack.c.b16 %v68, %v66
  %v97 = vpack.c.b16 %v69, %v67
  %v98 = vpack.c.b16 %v72, %v70
  %v99 = vpack.c.b16 %v73, %v71
  %v100 = vpack.c.b16 %v76, %v74
  %v101 = vpack.c.b16 %v77, %v75
  %v102 = vpack.c.b16 %v80, %v78
  %v103 = vpack.c.b16 %v81, %v79
  %v104 = vpack.c.b16 %v84, %v82
  %v105 = vpack.c.b16 %v85, %v83
  %v106 = vpack.c.b16 %v88, %v86
  %v107 = vpack.c.b16 %v89, %v87
  %v108 = vpack.c.b16 %v92, %v90
  %v109 = vpack.c.b16 %v93, %v91
  %126 = vmatpush.bf16.msra.mxu0 %v108
  %127 = vmatpush.bf16.msra.mxu0 %v106
  %128 = vmatpush.bf16.msra.mxu0 %v104
  %129 = vmatpush.bf16.msra.mxu0 %v102
  %130 = vmatpush.bf16.msra.mxu0 %v100
  %131 = vmatpush.bf16.msra.mxu0 %v98
  %132 = vmatpush.bf16.msra.mxu0 %v96
  %133 = vmatpush.bf16.msra.mxu0 %v94
  %134 = vmatmul.bf16.gmra.mxu0 %v23
  %v135 = vpop.f32.mrf.mxu0
  %v136 = vadd.f32 %v42, %v135
  %v137 = vpop.f32.mrf.mxu0
  %138 = vdwg.mxu0
  %139 = vmatpush.bf16.msra.mxu0 %v109
  %140 = vmatpush.bf16.msra.mxu0 %v107
  %141 = vmatpush.bf16.msra.mxu0 %v105
  %142 = vmatpush.bf16.msra.mxu0 %v103
  %143 = vmatpush.bf16.msra.mxu0 %v101
  %144 = vmatpush.bf16.msra.mxu0 %v99
  %145 = vmatpush.bf16.msra.mxu0 %v97
  %146 = vmatpush.bf16.msra.mxu0 %v95
  %147 = vmatmul.bf16.gmra.mxu0 %v23
  %v148 = vpop.f32.mrf.mxu0
  %v149 = vadd.f32 %v43, %v148
  %v150 = vpop.f32.mrf.mxu0
  %151 = vdwg.mxu0
  %v152 = vld [vmem:[%s3] sm:$0x3]
  %v153 = vld [vmem:[%s4] sm:$0xff]
  %v154 = vld [vmem:[%s4 + $0x8] sm:$0xff]
  %v155 = vld [vmem:[%s4 + $0x10] sm:$0xff]
  %v156 = vld [vmem:[%s4 + $0x18] sm:$0xff]
  %v157 = vld [vmem:[%s4 + $0x20] sm:$0xff]
  %v158 = vld [vmem:[%s4 + $0x28] sm:$0xff]
  %v159 = vld [vmem:[%s4 + $0x30] sm:$0xff]
  %v160 = vld [vmem:[%s4 + $0x38] sm:$0xff]
  %v161 = vld [vmem:[%s4 + $0x40] sm:$0xff]
  %v162 = vld [vmem:[%s4 + $0x48] sm:$0xff]
  %v163 = vld [vmem:[%s4 + $0x50] sm:$0xff]
  %v164 = vld [vmem:[%s4 + $0x58] sm:$0xff]
  %v165 = vld [vmem:[%s4 + $0x60] sm:$0xff]
  %v166 = vld [vmem:[%s4 + $0x68] sm:$0xff]
  %v167 = vld [vmem:[%s4 + $0x70] sm:$0xff]
  %v168 = vld [vmem:[%s4 + $0x78] sm:$0xff]
  %v185 = vunpack.c.l.b16 %v153
  %v186 = vunpack.c.h.b16 %v153
  %v187 = vunpack.c.l.b16 %v154
  %v188 = vunpack.c.h.b16 %v154
  %v189 = vunpack.c.l.b16 %v155
  %v190 = vunpack.c.h.b16 %v155
  %v191 = vunpack.c.l.b16 %v156
  %v192 = vunpack.c.h.b16 %v156
  %v193 = vunpack.c.l.b16 %v157
  %v194 = vunpack.c.h.b16 %v157
  %v195 = vunpack.c.l.b16 %v158
  %v196 = vunpack.c.h.b16 %v158
  %v197 = vunpack.c.l.b16 %v159
  %v198 = vunpack.c.h.b16 %v159
  %v199 = vunpack.c.l.b16 %v160
  %v200 = vunpack.c.h.b16 %v160
  %v201 = vunpack.c.l.b16 %v161
  %v202 = vunpack.c.h.b16 %v161
  %v203 = vunpack.c.l.b16 %v162
  %v204 = vunpack.c.h.b16 %v162
  %v205 = vunpack.c.l.b16 %v163
  %v206 = vunpack.c.h.b16 %v163
  %v207 = vunpack.c.l.b16 %v164
  %v208 = vunpack.c.h.b16 %v164
  %v209 = vunpack.c.l.b16 %v165
  %v210 = vunpack.c.h.b16 %v165
  %v211 = vunpack.c.l.b16 %v166
  %v212 = vunpack.c.h.b16 %v166
  %v213 = vunpack.c.l.b16 %v167
  %v214 = vunpack.c.h.b16 %v167
  %v215 = vunpack.c.l.b16 %v168
  %v216 = vunpack.c.h.b16 %v168
  %v217 = vpack.c.b16 %v187, %v185
  %v218 = vpack.c.b16 %v188, %v186
  %v219 = vpack.c.b16 %v191, %v189
  %v220 = vpack.c.b16 %v192, %v190
  %v221 = vpack.c.b16 %v195, %v193
  %v222 = vpack.c.b16 %v196, %v194
  %v223 = vpack.c.b16 %v199, %v197
  %v224 = vpack.c.b16 %v200, %v198
  %v225 = vpack.c.b16 %v203, %v201
  %v226 = vpack.c.b16 %v204, %v202
  %v227 = vpack.c.b16 %v207, %v205
  %v228 = vpack.c.b16 %v208, %v206
  %v229 = vpack.c.b16 %v211, %v209
  %v230 = vpack.c.b16 %v212, %v210
  %v231 = vpack.c.b16 %v215, %v213
  %v232 = vpack.c.b16 %v216, %v214
  %249 = vmatpush.bf16.msra.mxu0 %v231
  %250 = vmatpush.bf16.msra.mxu0 %v229
  %251 = vmatpush.bf16.msra.mxu0 %v227
  %252 = vmatpush.bf16.msra.mxu0 %v225
  %253 = vmatpush.bf16.msra.mxu0 %v223
  %254 = vmatpush.bf16.msra.mxu0 %v221
  %255 = vmatpush.bf16.msra.mxu0 %v219
  %256 = vmatpush.bf16.msra.mxu0 %v217
  %257 = vmatmul.bf16.gmra.mxu0 %v152
  %v258 = vpop.f32.mrf.mxu0
  %v259 = vadd.f32 0.0, %v258
  %v260 = vpop.f32.mrf.mxu0
  %261 = vdwg.mxu0
  %262 = vmatpush.bf16.msra.mxu0 %v232
  %263 = vmatpush.bf16.msra.mxu0 %v230
  %264 = vmatpush.bf16.msra.mxu0 %v228
  %265 = vmatpush.bf16.msra.mxu0 %v226
  %266 = vmatpush.bf16.msra.mxu0 %v224
  %267 = vmatpush.bf16.msra.mxu0 %v222
  %268 = vmatpush.bf16.msra.mxu0 %v220
  %269 = vmatpush.bf16.msra.mxu0 %v218
  %270 = vmatmul.bf16.gmra.mxu0 %v152
  %v271 = vpop.f32.mrf.mxu0
  %v272 = vadd.f32 0.0, %v271
  %v273 = vpop.f32.mrf.mxu0
  %274 = vdwg.mxu0
  %v275 = vadd.f32 %v136, %v259
  %v276 = vadd.f32 %v149, %v272
  %v277 = vld [vmem:[%s5] sm:$0x3]
  %v279 = vperm.slane %v277, 0
  %v280 = vperm.slane %v277, 1
  %v283 = vadd.f32 %v275, %v279
  %v284 = vadd.f32 %v276, %v280
  %v285 = vmax.f32 %v283, 0.0
  %v286 = vmax.f32 %v284, 0.0
  %v287 = vpack.c.bf16 %v286, %v285
  %v289 = vrot.slane %v287, 2
  %vm290 = vcmask 1041408
  %v293 = vsel %vm290, %v287, %v289
  %295 = vst [vmem:[%s6] sm:$0xf] %v293
  // Predicated region
  $region26: #{forward.26} parent=0 // pred_check
    _
  $region27: #{forward.26} parent=0 // pred_check_branch
    %297 = sbr.rel (0) target = $region29
  $region28: #{forward.26} parent=0 // pred_region
    _
  $region29: #{forward.26} parent=0 // pred_fallthru
    _
  // Predicated region
  $region30: #{forward.26} parent=0 // pred_check
    _
  $region31: #{forward.26} parent=0 // pred_check_branch
    %299 = sbr.rel (0) target = $region33
  $region32: #{forward.26} parent=0 // pred_region
    _
  $region33: #{forward.26} parent=0 // pred_fallthru
    _

// kernel: forward.25
$region0: #{forward.25}
  #allocation0 [shape = 'u32[]', space=smem, size = 0x4, offset = 0x4, fixed_abs, tag = 'smem constant byte address 0x4 - core index']
  #allocation1 [shape = 'u32[72,128]{1,0:T(1,128)}', space=vmem, size = 0x9000, scoped, tag = 'internal scratch']
  %s0 = inlined_call_operand.vmem [shape: bf16[4,1152], index: 0, kind: input, shape index: {}]
  %s1 = inlined_call_operand.vmem [shape: bf16[1152,128], index: 1, kind: input, shape index: {}]
  %s2 = inlined_call_operand.hbm [shape: f32[1,128], index: 2, kind: input, shape index: {}]
  %s3 = inlined_call_operand.vmem [shape: bf16[4,128], index: 3, kind: output, shape index: {}]
  %s4 = sld [smem:[#allocation0]]
  $region26: #{forward.25} parent=0
    _
  %s6 = ssub.s32 1, %s4
  %s7 = scalar_select 0, %s6, %s4
  $region1: #{forward.25} parent=0
    #allocation2 [shape = 'u8[512]{0}', space=vmem, size = 0x400, scoped, tag = 'input window, operand 2, single buffered']
    #allocation3 [shape = 's32[1]{0}', space=sflag, size = 0x4, scoped, tag = 'scoped memory for forward.25']
    %8 = vsyncpa [#allocation3], 0
    // Predicated region
    $region2: #{forward.25} parent=1 // pred_check
      _
    $region3: #{forward.25} parent=1 // pred_check_branch
      %10 = sbr.rel (0) target = $region5
    $region4: #{forward.25} parent=1 // pred_region
      _
    $region5: #{forward.25} parent=1 // pred_fallthru
      _
    // Predicated region
    $region6: #{forward.25} parent=1 // pred_check
      _
    $region7: #{forward.25} parent=1 // pred_check_branch
      %12 = sbr.rel (0) target = $region9
    $region8: #{forward.25} parent=1 // pred_region
      _
    $region9: #{forward.25} parent=1 // pred_fallthru
      _
    // Predicated region
    $region10: #{forward.25} parent=1 // pred_check
      _
    $region11: #{forward.25} parent=1 // pred_check_branch
      %14 = sbr.rel (0) target = $region13
    $region12: #{forward.25} parent=1 // pred_region
      %16 = vsyncadd [#allocation3], 0
      %s18 = sshll.u32 %s2, 4
      %s19 = int_to_ptr.hbm [resolvable:$true] %s18
      %s20 = sshll.u32 [#allocation2], 4
      %s21 = int_to_ptr.vmem [resolvable:$true] %s20
      %23 = dma.hbm_to_vmem [thread:$0]  %s19, 16, %s21, [#allocation3]
    $region13: #{forward.25} parent=1 // pred_fallthru
      _
    // Predicated region
    $region14: #{forward.25} parent=1 // pred_check
      _
    $region15: #{forward.25} parent=1 // pred_check_branch
      %25 = sbr.rel (0) target = $region17
    $region16: #{forward.25} parent=1 // pred_region
      %27 = dma.done [#allocation3], 16
    $region17: #{forward.25} parent=1 // pred_fallthru
      _
    %v28 = vld [vmem:[%s0] sm:$0xff]
    %v29 = vld [vmem:[%s0 + $0x8] sm:$0xff]
    %v30 = vld [vmem:[%s0 + $0x10] sm:$0x3]
    %v31 = vld [vmem:[%s1] sm:$0xf]
    %v32 = vld [vmem:[%s1 + $0x4] sm:$0xf]
    %v33 = vld [vmem:[%s1 + $0x8] sm:$0xf]
    %v34 = vld [vmem:[%s1 + $0xc] sm:$0xf]
    %v35 = vld [vmem:[%s1 + $0x10] sm:$0xf]
    %v36 = vld [vmem:[%s1 + $0x14] sm:$0xf]
    %v37 = vld [vmem:[%s1 + $0x18] sm:$0xf]
    %v38 = vld [vmem:[%s1 + $0x1c] sm:$0xf]
    %v39 = vld [vmem:[%s1 + $0x20] sm:$0xf]
    %v40 = vld [vmem:[%s1 + $0x24] sm:$0xf]
    %v41 = vld [vmem:[%s1 + $0x28] sm:$0xf]
    %v42 = vld [vmem:[%s1 + $0x2c] sm:$0xf]
    %v43 = vld [vmem:[%s1 + $0x30] sm:$0xf]
    %v44 = vld [vmem:[%s1 + $0x34] sm:$0xf]
    %v45 = vld [vmem:[%s1 + $0x38] sm:$0xf]
    %v46 = vld [vmem:[%s1 + $0x3c] sm:$0xf]
    %v47 = vld [vmem:[%s1 + $0x40] sm:$0xf]
    %v48 = vld [vmem:[%s1 + $0x44] sm:$0xf]
    %v49 = vld [vmem:[%s1 + $0x48] sm:$0xf]
    %v50 = vld [vmem:[%s1 + $0x4c] sm:$0xf]
    %v51 = vld [vmem:[%s1 + $0x50] sm:$0xf]
    %v52 = vld [vmem:[%s1 + $0x54] sm:$0xf]
    %v53 = vld [vmem:[%s1 + $0x58] sm:$0xf]
    %v54 = vld [vmem:[%s1 + $0x5c] sm:$0xf]
    %v55 = vld [vmem:[%s1 + $0x60] sm:$0xf]
    %v56 = vld [vmem:[%s1 + $0x64] sm:$0xf]
    %v57 = vld [vmem:[%s1 + $0x68] sm:$0xf]
    %v58 = vld [vmem:[%s1 + $0x6c] sm:$0xf]
    %v59 = vld [vmem:[%s1 + $0x70] sm:$0xf]
    %v60 = vld [vmem:[%s1 + $0x74] sm:$0xf]
    %v61 = vld [vmem:[%s1 + $0x78] sm:$0xf]
    %v62 = vld [vmem:[%s1 + $0x7c] sm:$0xf]
    %v63 = vld [vmem:[%s1 + $0x80] sm:$0xf]
    %v64 = vld [vmem:[%s1 + $0x84] sm:$0xf]
    %v65 = vld [vmem:[%s1 + $0x88] sm:$0xf]
    %v66 = vld [vmem:[%s1 + $0x8c] sm:$0xf]
    %v67 = vld [vmem:[%s1 + $0x90] sm:$0xf]
    %v68 = vld [vmem:[%s1 + $0x94] sm:$0xf]
    %v69 = vld [vmem:[%s1 + $0x98] sm:$0xf]
    %v70 = vld [vmem:[%s1 + $0x9c] sm:$0xf]
    %v71 = vld [vmem:[%s1 + $0xa0] sm:$0xf]
    %v72 = vld [vmem:[%s1 + $0xa4] sm:$0xf]
    %v73 = vld [vmem:[%s1 + $0xa8] sm:$0xf]
    %v74 = vld [vmem:[%s1 + $0xac] sm:$0xf]
    %v75 = vld [vmem:[%s1 + $0xb0] sm:$0xf]
    %v76 = vld [vmem:[%s1 + $0xb4] sm:$0xf]
    %v77 = vld [vmem:[%s1 + $0xb8] sm:$0xf]
    %v78 = vld [vmem:[%s1 + $0xbc] sm:$0xf]
    %v79 = vld [vmem:[%s1 + $0xc0] sm:$0xf]
    %v80 = vld [vmem:[%s1 + $0xc4] sm:$0xf]
    %v81 = vld [vmem:[%s1 + $0xc8] sm:$0xf]
    %v82 = vld [vmem:[%s1 + $0xcc] sm:$0xf]
    %v83 = vld [vmem:[%s1 + $0xd0] sm:$0xf]
    %v84 = vld [vmem:[%s1 + $0xd4] sm:$0xf]
    %v85 = vld [vmem:[%s1 + $0xd8] sm:$0xf]
    %v86 = vld [vmem:[%s1 + $0xdc] sm:$0xf]
    %v87 = vld [vmem:[%s1 + $0xe0] sm:$0xf]
    %v88 = vld [vmem:[%s1 + $0xe4] sm:$0xf]
    %v89 = vld [vmem:[%s1 + $0xe8] sm:$0xf]
    %v90 = vld [vmem:[%s1 + $0xec] sm:$0xf]
    %v91 = vld [vmem:[%s1 + $0xf0] sm:$0xf]
    %v92 = vld [vmem:[%s1 + $0xf4] sm:$0xf]
    %v93 = vld [vmem:[%s1 + $0xf8] sm:$0xf]
    %v94 = vld [vmem:[%s1 + $0xfc] sm:$0xf]
    %v95 = vld [vmem:[%s1 + $0x100] sm:$0xf]
    %v96 = vld [vmem:[%s1 + $0x104] sm:$0xf]
    %v97 = vld [vmem:[%s1 + $0x108] sm:$0xf]
    %v98 = vld [vmem:[%s1 + $0x10c] sm:$0xf]
    %v99 = vld [vmem:[%s1 + $0x110] sm:$0xf]
    %v100 = vld [vmem:[%s1 + $0x114] sm:$0xf]
    %v101 = vld [vmem:[%s1 + $0x118] sm:$0xf]
    %v102 = vld [vmem:[%s1 + $0x11c] sm:$0xf]
    %v103 = vld [vmem:[%s1 + $0x120] sm:$0xf]
    %v104 = vld [vmem:[%s1 + $0x124] sm:$0xf]
    %v105 = vld [vmem:[%s1 + $0x128] sm:$0xf]
    %v106 = vld [vmem:[%s1 + $0x12c] sm:$0xf]
    %v107 = vld [vmem:[%s1 + $0x130] sm:$0xf]
    %v108 = vld [vmem:[%s1 + $0x134] sm:$0xf]
    %v109 = vld [vmem:[%s1 + $0x138] sm:$0xf]
    %v110 = vld [vmem:[%s1 + $0x13c] sm:$0xf]
    %v111 = vld [vmem:[%s1 + $0x140] sm:$0xf]
    %v112 = vld [vmem:[%s1 + $0x144] sm:$0xf]
    %v113 = vld [vmem:[%s1 + $0x148] sm:$0xf]
    %v114 = vld [vmem:[%s1 + $0x14c] sm:$0xf]
    %v115 = vld [vmem:[%s1 + $0x150] sm:$0xf]
    %v116 = vld [vmem:[%s1 + $0x154] sm:$0xf]
    %v117 = vld [vmem:[%s1 + $0x158] sm:$0xf]
    %v118 = vld [vmem:[%s1 + $0x15c] sm:$0xf]
    %v119 = vld [vmem:[%s1 + $0x160] sm:$0xf]
    %v120 = vld [vmem:[%s1 + $0x164] sm:$0xf]
    %v121 = vld [vmem:[%s1 + $0x168] sm:$0xf]
    %v122 = vld [vmem:[%s1 + $0x16c] sm:$0xf]
    %v123 = vld [vmem:[%s1 + $0x170] sm:$0xf]
    %v124 = vld [vmem:[%s1 + $0x174] sm:$0xf]
    %v125 = vld [vmem:[%s1 + $0x178] sm:$0xf]
    %v126 = vld [vmem:[%s1 + $0x17c] sm:$0xf]
    %v127 = vld [vmem:[%s1 + $0x180] sm:$0xf]
    %v128 = vld [vmem:[%s1 + $0x184] sm:$0xf]
    %v129 = vld [vmem:[%s1 + $0x188] sm:$0xf]
    %v130 = vld [vmem:[%s1 + $0x18c] sm:$0xf]
    %v131 = vld [vmem:[%s1 + $0x190] sm:$0xf]
    %v132 = vld [vmem:[%s1 + $0x194] sm:$0xf]
    %v133 = vld [vmem:[%s1 + $0x198] sm:$0xf]
    %v134 = vld [vmem:[%s1 + $0x19c] sm:$0xf]
    %v135 = vld [vmem:[%s1 + $0x1a0] sm:$0xf]
    %v136 = vld [vmem:[%s1 + $0x1a4] sm:$0xf]
    %v137 = vld [vmem:[%s1 + $0x1a8] sm:$0xf]
    %v138 = vld [vmem:[%s1 + $0x1ac] sm:$0xf]
    %v139 = vld [vmem:[%s1 + $0x1b0] sm:$0xf]
    %v140 = vld [vmem:[%s1 + $0x1b4] sm:$0xf]
    %v141 = vld [vmem:[%s1 + $0x1b8] sm:$0xf]
    %v142 = vld [vmem:[%s1 + $0x1bc] sm:$0xf]
    %v143 = vld [vmem:[%s1 + $0x1c0] sm:$0xf]
    %v144 = vld [vmem:[%s1 + $0x1c4] sm:$0xf]
    %v145 = vld [vmem:[%s1 + $0x1c8] sm:$0xf]
    %v146 = vld [vmem:[%s1 + $0x1cc] sm:$0xf]
    %v147 = vld [vmem:[%s1 + $0x1d0] sm:$0xf]
    %v148 = vld [vmem:[%s1 + $0x1d4] sm:$0xf]
    %v149 = vld [vmem:[%s1 + $0x1d8] sm:$0xf]
    %v150 = vld [vmem:[%s1 + $0x1dc] sm:$0xf]
    %v151 = vld [vmem:[%s1 + $0x1e0] sm:$0xf]
    %v152 = vld [vmem:[%s1 + $0x1e4] sm:$0xf]
    %v153 = vld [vmem:[%s1 + $0x1e8] sm:$0xf]
    %v154 = vld [vmem:[%s1 + $0x1ec] sm:$0xf]
    %v155 = vld [vmem:[%s1 + $0x1f0] sm:$0xf]
    %v156 = vld [vmem:[%s1 + $0x1f4] sm:$0xf]
    %v157 = vld [vmem:[%s1 + $0x1f8] sm:$0xf]
    %v158 = vld [vmem:[%s1 + $0x1fc] sm:$0xf]
    %v159 = vld [vmem:[%s1 + $0x200] sm:$0xf]
    %v160 = vld [vmem:[%s1 + $0x204] sm:$0xf]
    %v161 = vld [vmem:[%s1 + $0x208] sm:$0xf]
    %v162 = vld [vmem:[%s1 + $0x20c] sm:$0xf]
    %v163 = vld [vmem:[%s1 + $0x210] sm:$0xf]
    %v164 = vld [vmem:[%s1 + $0x214] sm:$0xf]
    %v165 = vld [vmem:[%s1 + $0x218] sm:$0xf]
    %v166 = vld [vmem:[%s1 + $0x21c] sm:$0xf]
    %v167 = vld [vmem:[%s1 + $0x220] sm:$0xf]
    %v168 = vld [vmem:[%s1 + $0x224] sm:$0xf]
    %v169 = vld [vmem:[%s1 + $0x228] sm:$0xf]
    %v170 = vld [vmem:[%s1 + $0x22c] sm:$0xf]
    %v171 = vld [vmem:[%s1 + $0x230] sm:$0xf]
    %v172 = vld [vmem:[%s1 + $0x234] sm:$0xf]
    %v173 = vld [vmem:[%s1 + $0x238] sm:$0xf]
    %v174 = vld [vmem:[%s1 + $0x23c] sm:$0xf]
    %v175 = vld [vmem:[#allocation2] sm:$0x1]
    %v177 = vperm.slane %v175, 0
    %180 = vst [vmem:[#allocation1] ss:$4 sm:$0xff] %v28
    %s182 = scalar_lea.vmem [#allocation1], 32
    %183 = vst [vmem:[%s182] ss:$4 sm:$0xff] %v29
    %v184 = vld.sshfl [vmem:[#allocation1] sm:$0xff pattern:$0x73625140]
    %v185 = vld.sshfl [vmem:[#allocation1 + $0x8] sm:$0xff pattern:$0x73625140]
    %v186 = vld.sshfl [vmem:[#allocation1 + $0x10] sm:$0xff pattern:$0x73625140]
    %v187 = vld.sshfl [vmem:[#allocation1 + $0x18] sm:$0xff pattern:$0x73625140]
    %v188 = vld.sshfl [vmem:[#allocation1 + $0x20] sm:$0xff pattern:$0x73625140]
    %v189 = vld.sshfl [vmem:[#allocation1 + $0x28] sm:$0xff pattern:$0x73625140]
    %v190 = vld.sshfl [vmem:[#allocation1 + $0x30] sm:$0xff pattern:$0x73625140]
    %v191 = vld.sshfl [vmem:[#allocation1 + $0x38] sm:$0xff pattern:$0x73625140]
    %193 = vst [vmem:[#allocation1] ss:$4 sm:$0xff] %v30
    %v194 = vld.sshfl [vmem:[#allocation1] sm:$0xff pattern:$0x73625140]
    %v348 = vunpack.c.l.b16 %v31
    %v349 = vunpack.c.l.b16 %v32
    %v350 = vunpack.c.l.b16 %v33
    %v351 = vunpack.c.l.b16 %v34
    %v352 = vunpack.c.l.b16 %v35
    %v353 = vunpack.c.l.b16 %v36
    %v354 = vunpack.c.l.b16 %v37
    %v355 = vunpack.c.l.b16 %v38
    %v356 = vunpack.c.l.b16 %v39
    %v357 = vunpack.c.l.b16 %v40
    %v358 = vunpack.c.l.b16 %v41
    %v359 = vunpack.c.l.b16 %v42
    %v360 = vunpack.c.l.b16 %v43
    %v361 = vunpack.c.l.b16 %v44
    %v362 = vunpack.c.l.b16 %v45
    %v363 = vunpack.c.l.b16 %v46
    %v364 = vunpack.c.l.b16 %v47
    %v365 = vunpack.c.l.b16 %v48
    %v366 = vunpack.c.l.b16 %v49
    %v367 = vunpack.c.l.b16 %v50
    %v368 = vunpack.c.l.b16 %v51
    %v369 = vunpack.c.l.b16 %v52
    %v370 = vunpack.c.l.b16 %v53
    %v371 = vunpack.c.l.b16 %v54
    %v372 = vunpack.c.l.b16 %v55
    %v373 = vunpack.c.l.b16 %v56
    %v374 = vunpack.c.l.b16 %v57
    %v375 = vunpack.c.l.b16 %v58
    %v376 = vunpack.c.l.b16 %v59
    %v377 = vunpack.c.l.b16 %v60
    %v378 = vunpack.c.l.b16 %v61
    %v379 = vunpack.c.l.b16 %v62
    %v380 = vunpack.c.l.b16 %v63
    %v381 = vunpack.c.l.b16 %v64
    %v382 = vunpack.c.l.b16 %v65
    %v383 = vunpack.c.l.b16 %v66
    %v384 = vunpack.c.l.b16 %v67
    %v385 = vunpack.c.l.b16 %v68
    %v386 = vunpack.c.l.b16 %v69
    %v387 = vunpack.c.l.b16 %v70
    %v388 = vunpack.c.l.b16 %v71
    %v389 = vunpack.c.l.b16 %v72
    %v390 = vunpack.c.l.b16 %v73
    %v391 = vunpack.c.l.b16 %v74
    %v392 = vunpack.c.l.b16 %v75
    %v393 = vunpack.c.l.b16 %v76
    %v394 = vunpack.c.l.b16 %v77
    %v395 = vunpack.c.l.b16 %v78
    %v396 = vunpack.c.l.b16 %v79
    %v397 = vunpack.c.l.b16 %v80
    %v398 = vunpack.c.l.b16 %v81
    %v399 = vunpack.c.l.b16 %v82
    %v400 = vunpack.c.l.b16 %v83
    %v401 = vunpack.c.l.b16 %v84
    %v402 = vunpack.c.l.b16 %v85
    %v403 = vunpack.c.l.b16 %v86
    %v404 = vunpack.c.l.b16 %v87
    %v405 = vunpack.c.l.b16 %v88
    %v406 = vunpack.c.l.b16 %v89
    %v407 = vunpack.c.l.b16 %v90
    %v408 = vunpack.c.l.b16 %v91
    %v409 = vunpack.c.l.b16 %v92
    %v410 = vunpack.c.l.b16 %v93
    %v411 = vunpack.c.l.b16 %v94
    %v412 = vunpack.c.l.b16 %v95
    %v413 = vunpack.c.l.b16 %v96
    %v414 = vunpack.c.l.b16 %v97
    %v415 = vunpack.c.l.b16 %v98
    %v416 = vunpack.c.l.b16 %v99
    %v417 = vunpack.c.l.b16 %v100
    %v418 = vunpack.c.l.b16 %v101
    %v419 = vunpack.c.l.b16 %v102
    %v420 = vunpack.c.l.b16 %v103
    %v421 = vunpack.c.l.b16 %v104
    %v422 = vunpack.c.l.b16 %v105
    %v423 = vunpack.c.l.b16 %v106
    %v424 = vunpack.c.l.b16 %v107
    %v425 = vunpack.c.l.b16 %v108
    %v426 = vunpack.c.l.b16 %v109
    %v427 = vunpack.c.l.b16 %v110
    %v428 = vunpack.c.l.b16 %v111
    %v429 = vunpack.c.l.b16 %v112
    %v430 = vunpack.c.l.b16 %v113
    %v431 = vunpack.c.l.b16 %v114
    %v432 = vunpack.c.l.b16 %v115
    %v433 = vunpack.c.l.b16 %v116
    %v434 = vunpack.c.l.b16 %v117
    %v435 = vunpack.c.l.b16 %v118
    %v436 = vunpack.c.l.b16 %v119
    %v437 = vunpack.c.l.b16 %v120
    %v438 = vunpack.c.l.b16 %v121
    %v439 = vunpack.c.l.b16 %v122
    %v440 = vunpack.c.l.b16 %v123
    %v441 = vunpack.c.l.b16 %v124
    %v442 = vunpack.c.l.b16 %v125
    %v443 = vunpack.c.l.b16 %v126
    %v444 = vunpack.c.l.b16 %v127
    %v445 = vunpack.c.l.b16 %v128
    %v446 = vunpack.c.l.b16 %v129
    %v447 = vunpack.c.l.b16 %v130
    %v448 = vunpack.c.l.b16 %v131
    %v449 = vunpack.c.l.b16 %v132
    %v450 = vunpack.c.l.b16 %v133
    %v451 = vunpack.c.l.b16 %v134
    %v452 = vunpack.c.l.b16 %v135
    %v453 = vunpack.c.l.b16 %v136
    %v454 = vunpack.c.l.b16 %v137
    %v455 = vunpack.c.l.b16 %v138
    %v456 = vunpack.c.l.b16 %v139
    %v457 = vunpack.c.l.b16 %v140
    %v458 = vunpack.c.l.b16 %v141
    %v459 = vunpack.c.l.b16 %v142
    %v460 = vunpack.c.l.b16 %v143
    %v461 = vunpack.c.l.b16 %v144
    %v462 = vunpack.c.l.b16 %v145
    %v463 = vunpack.c.l.b16 %v146
    %v464 = vunpack.c.l.b16 %v147
    %v465 = vunpack.c.l.b16 %v148
    %v466 = vunpack.c.l.b16 %v149
    %v467 = vunpack.c.l.b16 %v150
    %v468 = vunpack.c.l.b16 %v151
    %v469 = vunpack.c.l.b16 %v152
    %v470 = vunpack.c.l.b16 %v153
    %v471 = vunpack.c.l.b16 %v154
    %v472 = vunpack.c.l.b16 %v155
    %v473 = vunpack.c.l.b16 %v156
    %v474 = vunpack.c.l.b16 %v157
    %v475 = vunpack.c.l.b16 %v158
    %v476 = vunpack.c.l.b16 %v159
    %v477 = vunpack.c.l.b16 %v160
    %v478 = vunpack.c.l.b16 %v161
    %v479 = vunpack.c.l.b16 %v162
    %v480 = vunpack.c.l.b16 %v163
    %v481 = vunpack.c.l.b16 %v164
    %v482 = vunpack.c.l.b16 %v165
    %v483 = vunpack.c.l.b16 %v166
    %v484 = vunpack.c.l.b16 %v167
    %v485 = vunpack.c.l.b16 %v168
    %v486 = vunpack.c.l.b16 %v169
    %v487 = vunpack.c.l.b16 %v170
    %v488 = vunpack.c.l.b16 %v171
    %v489 = vunpack.c.l.b16 %v172
    %v490 = vunpack.c.l.b16 %v173
    %v491 = vunpack.c.l.b16 %v174
    %v492 = vpack.c.b16 %v349, %v348
    %v493 = vpack.c.b16 %v351, %v350
    %v494 = vpack.c.b16 %v353, %v352
    %v495 = vpack.c.b16 %v355, %v354
    %v496 = vpack.c.b16 %v357, %v356
    %v497 = vpack.c.b16 %v359, %v358
    %v498 = vpack.c.b16 %v361, %v360
    %v499 = vpack.c.b16 %v363, %v362
    %v500 = vpack.c.b16 %v365, %v364
    %v501 = vpack.c.b16 %v367, %v366
    %v502 = vpack.c.b16 %v369, %v368
    %v503 = vpack.c.b16 %v371, %v370
    %v504 = vpack.c.b16 %v373, %v372
    %v505 = vpack.c.b16 %v375, %v374
    %v506 = vpack.c.b16 %v377, %v376
    %v507 = vpack.c.b16 %v379, %v378
    %v508 = vpack.c.b16 %v381, %v380
    %v509 = vpack.c.b16 %v383, %v382
    %v510 = vpack.c.b16 %v385, %v384
    %v511 = vpack.c.b16 %v387, %v386
    %v512 = vpack.c.b16 %v389, %v388
    %v513 = vpack.c.b16 %v391, %v390
    %v514 = vpack.c.b16 %v393, %v392
    %v515 = vpack.c.b16 %v395, %v394
    %v516 = vpack.c.b16 %v397, %v396
    %v517 = vpack.c.b16 %v399, %v398
    %v518 = vpack.c.b16 %v401, %v400
    %v519 = vpack.c.b16 %v403, %v402
    %v520 = vpack.c.b16 %v405, %v404
    %v521 = vpack.c.b16 %v407, %v406
    %v522 = vpack.c.b16 %v409, %v408
    %v523 = vpack.c.b16 %v411, %v410
    %v524 = vpack.c.b16 %v413, %v412
    %v525 = vpack.c.b16 %v415, %v414
    %v526 = vpack.c.b16 %v417, %v416
    %v527 = vpack.c.b16 %v419, %v418
    %v528 = vpack.c.b16 %v421, %v420
    %v529 = vpack.c.b16 %v423, %v422
    %v530 = vpack.c.b16 %v425, %v424
    %v531 = vpack.c.b16 %v427, %v426
    %v532 = vpack.c.b16 %v429, %v428
    %v533 = vpack.c.b16 %v431, %v430
    %v534 = vpack.c.b16 %v433, %v432
    %v535 = vpack.c.b16 %v435, %v434
    %v536 = vpack.c.b16 %v437, %v436
    %v537 = vpack.c.b16 %v439, %v438
    %v538 = vpack.c.b16 %v441, %v440
    %v539 = vpack.c.b16 %v443, %v442
    %v540 = vpack.c.b16 %v445, %v444
    %v541 = vpack.c.b16 %v447, %v446
    %v542 = vpack.c.b16 %v449, %v448
    %v543 = vpack.c.b16 %v451, %v450
    %v544 = vpack.c.b16 %v453, %v452
    %v545 = vpack.c.b16 %v455, %v454
    %v546 = vpack.c.b16 %v457, %v456
    %v547 = vpack.c.b16 %v459, %v458
    %v548 = vpack.c.b16 %v461, %v460
    %v549 = vpack.c.b16 %v463, %v462
    %v550 = vpack.c.b16 %v465, %v464
    %v551 = vpack.c.b16 %v467, %v466
    %v552 = vpack.c.b16 %v469, %v468
    %v553 = vpack.c.b16 %v471, %v470
    %v554 = vpack.c.b16 %v473, %v472
    %v555 = vpack.c.b16 %v475, %v474
    %v556 = vpack.c.b16 %v477, %v476
    %v557 = vpack.c.b16 %v479, %v478
    %v558 = vpack.c.b16 %v481, %v480
    %v559 = vpack.c.b16 %v483, %v482
    %v560 = vpack.c.b16 %v485, %v484
    %v561 = vpack.c.b16 %v487, %v486
    %v562 = vpack.c.b16 %v489, %v488
    %v563 = vpack.c.b16 %v491, %v490
    %636 = vmatpush.bf16.msra.mxu0 %v499
    %637 = vmatpush.bf16.msra.mxu0 %v498
    %638 = vmatpush.bf16.msra.mxu0 %v497
    %639 = vmatpush.bf16.msra.mxu0 %v496
    %640 = vmatpush.bf16.msra.mxu0 %v495
    %641 = vmatpush.bf16.msra.mxu0 %v494
    %642 = vmatpush.bf16.msra.mxu0 %v493
    %643 = vmatpush.bf16.msra.mxu0 %v492
    %644 = vmatmul.bf16.gmra.mxu0 %v184
    %v645 = vpop.f32.mrf.mxu0
    %v646 = vadd.f32 %v177, %v645
    %v647 = vpop.f32.mrf.mxu0
    %648 = vdwg.mxu0
    %649 = vmatpush.bf16.msra.mxu0 %v507
    %650 = vmatpush.bf16.msra.mxu0 %v506
    %651 = vmatpush.bf16.msra.mxu0 %v505
    %652 = vmatpush.bf16.msra.mxu0 %v504
    %653 = vmatpush.bf16.msra.mxu0 %v503
    %654 = vmatpush.bf16.msra.mxu0 %v502
    %655 = vmatpush.bf16.msra.mxu0 %v501
    %656 = vmatpush.bf16.msra.mxu0 %v500
    %657 = vmatmul.bf16.gmra.mxu0 %v185
    %v658 = vpop.f32.mrf.mxu0
    %v659 = vadd.f32 %v646, %v658
    %v660 = vpop.f32.mrf.mxu0
    %661 = vdwg.mxu0
    %662 = vmatpush.bf16.msra.mxu0 %v515
    %663 = vmatpush.bf16.msra.mxu0 %v514
    %664 = vmatpush.bf16.msra.mxu0 %v513
    %665 = vmatpush.bf16.msra.mxu0 %v512
    %666 = vmatpush.bf16.msra.mxu0 %v511
    %667 = vmatpush.bf16.msra.mxu0 %v510
    %668 = vmatpush.bf16.msra.mxu0 %v509
    %669 = vmatpush.bf16.msra.mxu0 %v508
    %670 = vmatmul.bf16.gmra.mxu0 %v186
    %v671 = vpop.f32.mrf.mxu0
    %v672 = vadd.f32 %v659, %v671
    %v673 = vpop.f32.mrf.mxu0
    %674 = vdwg.mxu0
    %675 = vmatpush.bf16.msra.mxu0 %v523
    %676 = vmatpush.bf16.msra.mxu0 %v522
    %677 = vmatpush.bf16.msra.mxu0 %v521
    %678 = vmatpush.bf16.msra.mxu0 %v520
    %679 = vmatpush.bf16.msra.mxu0 %v519
    %680 = vmatpush.bf16.msra.mxu0 %v518
    %681 = vmatpush.bf16.msra.mxu0 %v517
    %682 = vmatpush.bf16.msra.mxu0 %v516
    %683 = vmatmul.bf16.gmra.mxu0 %v187
    %v684 = vpop.f32.mrf.mxu0
    %v685 = vadd.f32 %v672, %v684
    %v686 = vpop.f32.mrf.mxu0
    %687 = vdwg.mxu0
    %688 = vmatpush.bf16.msra.mxu0 %v531
    %689 = vmatpush.bf16.msra.mxu0 %v530
    %690 = vmatpush.bf16.msra.mxu0 %v529
    %691 = vmatpush.bf16.msra.mxu0 %v528
    %692 = vmatpush.bf16.msra.mxu0 %v527
    %693 = vmatpush.bf16.msra.mxu0 %v526
    %694 = vmatpush.bf16.msra.mxu0 %v525
    %695 = vmatpush.bf16.msra.mxu0 %v524
    %696 = vmatmul.bf16.gmra.mxu0 %v188
    %v697 = vpop.f32.mrf.mxu0
    %v698 = vadd.f32 %v685, %v697
    %v699 = vpop.f32.mrf.mxu0
    %700 = vdwg.mxu0
    %701 = vmatpush.bf16.msra.mxu0 %v539
    %702 = vmatpush.bf16.msra.mxu0 %v538
    %703 = vmatpush.bf16.msra.mxu0 %v537
    %704 = vmatpush.bf16.msra.mxu0 %v536
    %705 = vmatpush.bf16.msra.mxu0 %v535
    %706 = vmatpush.bf16.msra.mxu0 %v534
    %707 = vmatpush.bf16.msra.mxu0 %v533
    %708 = vmatpush.bf16.msra.mxu0 %v532
    %709 = vmatmul.bf16.gmra.mxu0 %v189
    %v710 = vpop.f32.mrf.mxu0
    %v711 = vadd.f32 %v698, %v710
    %v712 = vpop.f32.mrf.mxu0
    %713 = vdwg.mxu0
    %714 = vmatpush.bf16.msra.mxu0 %v547
    %715 = vmatpush.bf16.msra.mxu0 %v546
    %716 = vmatpush.bf16.msra.mxu0 %v545
    %717 = vmatpush.bf16.msra.mxu0 %v544
    %718 = vmatpush.bf16.msra.mxu0 %v543
    %719 = vmatpush.bf16.msra.mxu0 %v542
    %720 = vmatpush.bf16.msra.mxu0 %v541
    %721 = vmatpush.bf16.msra.mxu0 %v540
    %722 = vmatmul.bf16.gmra.mxu0 %v190
    %v723 = vpop.f32.mrf.mxu0
    %v724 = vadd.f32 %v711, %v723
    %v725 = vpop.f32.mrf.mxu0
    %726 = vdwg.mxu0
    %727 = vmatpush.bf16.msra.mxu0 %v555
    %728 = vmatpush.bf16.msra.mxu0 %v554
    %729 = vmatpush.bf16.msra.mxu0 %v553
    %730 = vmatpush.bf16.msra.mxu0 %v552
    %731 = vmatpush.bf16.msra.mxu0 %v551
    %732 = vmatpush.bf16.msra.mxu0 %v550
    %733 = vmatpush.bf16.msra.mxu0 %v549
    %734 = vmatpush.bf16.msra.mxu0 %v548
    %735 = vmatmul.bf16.gmra.mxu0 %v191
    %v736 = vpop.f32.mrf.mxu0
    %v737 = vadd.f32 %v724, %v736
    %v738 = vpop.f32.mrf.mxu0
    %739 = vdwg.mxu0
    %740 = vmatpush.bf16.msra.mxu0 %v563
    %741 = vmatpush.bf16.msra.mxu0 %v562
    %742 = vmatpush.bf16.msra.mxu0 %v561
    %743 = vmatpush.bf16.msra.mxu0 %v560
    %744 = vmatpush.bf16.msra.mxu0 %v559
    %745 = vmatpush.bf16.msra.mxu0 %v558
    %746 = vmatpush.bf16.msra.mxu0 %v557
    %747 = vmatpush.bf16.msra.mxu0 %v556
    %748 = vmatmul.bf16.gmra.mxu0 %v194
    %v749 = vpop.f32.mrf.mxu0
    %v750 = vadd.f32 %v737, %v749
    %v751 = vpop.f32.mrf.mxu0
    %752 = vdwg.mxu0
    %v753 = vmax.f32 %v750, 0.0
    %v754 = vpack.c.bf16 %v753, %v753
    %755 = vst [vmem:[%s3] sm:$0x3] %v754
    // Predicated region
    $region18: #{forward.25} parent=1 // pred_check
      _
    $region19: #{forward.25} parent=1 // pred_check_branch
      %757 = sbr.rel (0) target = $region21
    $region20: #{forward.25} parent=1 // pred_region
      _
    $region21: #{forward.25} parent=1 // pred_fallthru
      _
    // Predicated region
    $region22: #{forward.25} parent=1 // pred_check
      _
    $region23: #{forward.25} parent=1 // pred_check_branch
      %759 = sbr.rel (0) target = $region25
    $region24: #{forward.25} parent=1 // pred_region
      _
    $region25: #{forward.25} parent=1 // pred_fallthru
      _
    %760 = vsyncpa [#allocation3], 1

// kernel: forward.27
$region0: #{forward.27}
  #allocation0 [shape = 'u32[]', space=smem, size = 0x4, offset = 0x4, fixed_abs, tag = 'smem constant byte address 0x4 - core index']
  #allocation1 [shape = 'u32[72,128]{1,0:T(1,128)}', space=vmem, size = 0x9000, scoped, tag = 'internal scratch']
  %s0 = inlined_call_operand.vmem [shape: bf16[2,256], index: 0, kind: input, shape index: {}]
  %s1 = inlined_call_operand.vmem [shape: bf16[2,256], index: 1, kind: input, shape index: {}]
  %s2 = inlined_call_operand.vmem [shape: bf16[256,32], index: 2, kind: input, shape index: {}]
  %s3 = inlined_call_operand.hbm [shape: f32[1,32], index: 3, kind: input, shape index: {}]
  %s4 = inlined_call_operand.vmem [shape: bf16[256,32], index: 4, kind: input, shape index: {}]
  %s5 = inlined_call_operand.hbm [shape: f32[1,32], index: 5, kind: input, shape index: {}]
  %s6 = inlined_call_operand.vmem [shape: bf16[32,10], index: 6, kind: input, shape index: {}]
  %s7 = inlined_call_operand.hbm [shape: f32[1,10], index: 7, kind: input, shape index: {}]
  %s8 = inlined_call_operand.vmem [shape: bf16[32,10], index: 8, kind: input, shape index: {}]
  %s9 = inlined_call_operand.hbm [shape: f32[1,10], index: 9, kind: input, shape index: {}]
  %s10 = inlined_call_operand.vmem [shape: bf16[256,10], index: 10, kind: input, shape index: {}]
  %s11 = inlined_call_operand.hbm [shape: f32[1,10], index: 11, kind: input, shape index: {}]
  %s12 = inlined_call_operand.vmem [shape: bf16[256,10], index: 12, kind: input, shape index: {}]
  %s13 = inlined_call_operand.hbm [shape: f32[1,10], index: 13, kind: input, shape index: {}]
  %s14 = inlined_call_operand.vmem [shape: bf16[32,50], index: 14, kind: input, shape index: {}]
  %s15 = inlined_call_operand.hbm [shape: f32[2,10], index: 15, kind: output, shape index: {0}]
  %s16 = inlined_call_operand.hbm [shape: f32[2,32], index: 16, kind: output, shape index: {1}]
  %s17 = inlined_call_operand.hbm [shape: f32[2,32], index: 17, kind: output, shape index: {2}]
  %s18 = inlined_call_operand.hbm [shape: f32[2,50], index: 18, kind: output, shape index: {3}]
  %s19 = inlined_call_operand.hbm [shape: f32[2,50], index: 19, kind: output, shape index: {4}]
  %20 = xla_tuple %s15, %s16, %s17, %s18, %s19
  %s21 = sld [smem:[#allocation0]]
  $region126: #{forward.27} parent=0
    _
  %s23 = ssub.s32 1, %s21
  %s24 = scalar_select 0, %s23, %s21
  $region1: #{forward.27} parent=0
    #allocation2 [shape = 'u8[512]{0}', space=vmem, size = 0x400, scoped, tag = 'input window, operand 3, single buffered']
    #allocation3 [shape = 's32[1]{0}', space=sflag, size = 0x4, scoped, tag = 'scoped memory for forward.27']
    #allocation4 [shape = 's32[1]{0}', space=sflag, size = 0x4, scoped, tag = 'scoped memory for forward.27']
    #allocation5 [shape = 'u8[512]{0}', space=vmem, size = 0x400, scoped, tag = 'input window, operand 5, single buffered']
    #allocation6 [shape = 's32[1]{0}', space=sflag, size = 0x4, scoped, tag = 'scoped memory for forward.27']
    #allocation7 [shape = 'u8[512]{0}', space=vmem, size = 0x400, scoped, tag = 'input window, operand 7, single buffered']
    #allocation8 [shape = 'u8[512]{0}', space=vmem, size = 0x400, scoped, tag = 'input window, operand 9, single buffered']
    #allocation9 [shape = 's32[1]{0}', space=sflag, size = 0x4, scoped, tag = 'scoped memory for forward.27']
    #allocation10 [shape = 'u8[512]{0}', space=vmem, size = 0x400, scoped, tag = 'input window, operand 11, single buffered']
    #allocation11 [shape = 'u8[512]{0}', space=vmem, size = 0x400, scoped, tag = 'input window, operand 13, single buffered']
    #allocation12 [shape = 's32[1]{0}', space=sflag, size = 0x4, scoped, tag = 'scoped memory for forward.27']
    #allocation13 [shape = 'u8[1024]{0}', space=vmem, size = 0x400, scoped, tag = 'output window, operand 0, single buffered']
    #allocation14 [shape = 'u8[1024]{0}', space=vmem, size = 0x400, scoped, tag = 'output window, operand 1, single buffered']
    #allocation15 [shape = 's32[1]{0}', space=sflag, size = 0x4, scoped, tag = 'scoped memory for forward.27']
    #allocation16 [shape = 'u8[1024]{0}', space=vmem, size = 0x400, scoped, tag = 'output window, operand 2, single buffered']
    #allocation17 [shape = 'u8[1024]{0}', space=vmem, size = 0x400, scoped, tag = 'output window, operand 3, single buffered']
    #allocation18 [shape = 's32[1]{0}', space=sflag, size = 0x4, scoped, tag = 'scoped memory for forward.27']
    #allocation19 [shape = 'u8[1024]{0}', space=vmem, size = 0x400, scoped, tag = 'output window, operand 4, single buffered']
    %25 = vsyncpa [#allocation3], 0
    %26 = vsyncpa [#allocation6], 0
    %27 = vsyncpa [#allocation9], 0
    %28 = vsyncpa [#allocation12], 0
    %29 = vsyncpa [#allocation4], 0
    %30 = vsyncpa [#allocation15], 0
    %31 = vsyncpa [#allocation18], 0
    // Predicated region
    $region2: #{forward.27} parent=1 // pred_check
      _
    $region3: #{forward.27} parent=1 // pred_check_branch
      %33 = sbr.rel (0) target = $region5
    $region4: #{forward.27} parent=1 // pred_region
      _
    $region5: #{forward.27} parent=1 // pred_fallthru
      _
    // Predicated region
    $region6: #{forward.27} parent=1 // pred_check
      _
    $region7: #{forward.27} parent=1 // pred_check_branch
      %35 = sbr.rel (0) target = $region9
    $region8: #{forward.27} parent=1 // pred_region
      _
    $region9: #{forward.27} parent=1 // pred_fallthru
      _
    // Predicated region
    $region10: #{forward.27} parent=1 // pred_check
      _
    $region11: #{forward.27} parent=1 // pred_check_branch
      %37 = sbr.rel (0) target = $region13
    $region12: #{forward.27} parent=1 // pred_region
      _
    $region13: #{forward.27} parent=1 // pred_fallthru
      _
    // Predicated region
    $region14: #{forward.27} parent=1 // pred_check
      _
    $region15: #{forward.27} parent=1 // pred_check_branch
      %39 = sbr.rel (0) target = $region17
    $region16: #{forward.27} parent=1 // pred_region
      %41 = vsyncadd [#allocation3], 0
      %s43 = sshll.u32 %s3, 4
      %s44 = int_to_ptr.hbm [resolvable:$true] %s43
      %s45 = sshll.u32 [#allocation2], 4
      %s46 = int_to_ptr.vmem [resolvable:$true] %s45
      %48 = dma.hbm_to_vmem [thread:$0]  %s44, 16, %s46, [#allocation3]
    $region17: #{forward.27} parent=1 // pred_fallthru
      _
    // Predicated region
    $region18: #{forward.27} parent=1 // pred_check
      _
    $region19: #{forward.27} parent=1 // pred_check_branch
      %50 = sbr.rel (0) target = $region21
    $region20: #{forward.27} parent=1 // pred_region
      _
    $region21: #{forward.27} parent=1 // pred_fallthru
      _
    // Predicated region
    $region22: #{forward.27} parent=1 // pred_check
      _
    $region23: #{forward.27} parent=1 // pred_check_branch
      %52 = sbr.rel (0) target = $region25
    $region24: #{forward.27} parent=1 // pred_region
      %54 = vsyncadd [#allocation6], 0
      %s56 = sshll.u32 %s5, 4
      %s57 = int_to_ptr.hbm [resolvable:$true] %s56
      %s58 = sshll.u32 [#allocation5], 4
      %s59 = int_to_ptr.vmem [resolvable:$true] %s58
      %61 = dma.hbm_to_vmem [thread:$0]  %s57, 16, %s59, [#allocation6]
    $region25: #{forward.27} parent=1 // pred_fallthru
      _
    // Predicated region
    $region26: #{forward.27} parent=1 // pred_check
      _
    $region27: #{forward.27} parent=1 // pred_check_branch
      %63 = sbr.rel (0) target = $region29
    $region28: #{forward.27} parent=1 // pred_region
      _
    $region29: #{forward.27} parent=1 // pred_fallthru
      _
    // Predicated region
    $region30: #{forward.27} parent=1 // pred_check
      _
    $region31: #{forward.27} parent=1 // pred_check_branch
      %65 = sbr.rel (0) target = $region33
    $region32: #{forward.27} parent=1 // pred_region
      %67 = vsyncadd [#allocation6], 0
      %s69 = sshll.u32 %s7, 4
      %s70 = int_to_ptr.hbm [resolvable:$true] %s69
      %s71 = sshll.u32 [#allocation7], 4
      %s72 = int_to_ptr.vmem [resolvable:$true] %s71
      %74 = dma.hbm_to_vmem [thread:$0]  %s70, 16, %s72, [#allocation6]
    $region33: #{forward.27} parent=1 // pred_fallthru
      _
    // Predicated region
    $region34: #{forward.27} parent=1 // pred_check
      _
    $region35: #{forward.27} parent=1 // pred_check_branch
      %76 = sbr.rel (0) target = $region37
    $region36: #{forward.27} parent=1 // pred_region
      _
    $region37: #{forward.27} parent=1 // pred_fallthru
      _
    // Predicated region
    $region38: #{forward.27} parent=1 // pred_check
      _
    $region39: #{forward.27} parent=1 // pred_check_branch
      %78 = sbr.rel (0) target = $region41
    $region40: #{forward.27} parent=1 // pred_region
      %80 = vsyncadd [#allocation9], 0
      %s82 = sshll.u32 %s9, 4
      %s83 = int_to_ptr.hbm [resolvable:$true] %s82
      %s84 = sshll.u32 [#allocation8], 4
      %s85 = int_to_ptr.vmem [resolvable:$true] %s84
      %87 = dma.hbm_to_vmem [thread:$0]  %s83, 16, %s85, [#allocation9]
    $region41: #{forward.27} parent=1 // pred_fallthru
      _
    // Predicated region
    $region42: #{forward.27} parent=1 // pred_check
      _
    $region43: #{forward.27} parent=1 // pred_check_branch
      %89 = sbr.rel (0) target = $region45
    $region44: #{forward.27} parent=1 // pred_region
      _
    $region45: #{forward.27} parent=1 // pred_fallthru
      _
    // Predicated region
    $region46: #{forward.27} parent=1 // pred_check
      _
    $region47: #{forward.27} parent=1 // pred_check_branch
      %91 = sbr.rel (0) target = $region49
    $region48: #{forward.27} parent=1 // pred_region
      %93 = vsyncadd [#allocation9], 0
      %s95 = sshll.u32 %s11, 4
      %s96 = int_to_ptr.hbm [resolvable:$true] %s95
      %s97 = sshll.u32 [#allocation10], 4
      %s98 = int_to_ptr.vmem [resolvable:$true] %s97
      %100 = dma.hbm_to_vmem [thread:$0]  %s96, 16, %s98, [#allocation9]
    $region49: #{forward.27} parent=1 // pred_fallthru
      _
    // Predicated region
    $region50: #{forward.27} parent=1 // pred_check
      _
    $region51: #{forward.27} parent=1 // pred_check_branch
      %102 = sbr.rel (0) target = $region53
    $region52: #{forward.27} parent=1 // pred_region
      _
    $region53: #{forward.27} parent=1 // pred_fallthru
      _
    // Predicated region
    $region54: #{forward.27} parent=1 // pred_check
      _
    $region55: #{forward.27} parent=1 // pred_check_branch
      %104 = sbr.rel (0) target = $region57
    $region56: #{forward.27} parent=1 // pred_region
      %106 = vsyncadd [#allocation12], 0
      %s108 = sshll.u32 %s13, 4
      %s109 = int_to_ptr.hbm [resolvable:$true] %s108
      %s110 = sshll.u32 [#allocation11], 4
      %s111 = int_to_ptr.vmem [resolvable:$true] %s110
      %113 = dma.hbm_to_vmem [thread:$0]  %s109, 16, %s111, [#allocation12]
    $region57: #{forward.27} parent=1 // pred_fallthru
      _
    // Predicated region
    $region58: #{forward.27} parent=1 // pred_check
      _
    $region59: #{forward.27} parent=1 // pred_check_branch
      %115 = sbr.rel (0) target = $region61
    $region60: #{forward.27} parent=1 // pred_region
      _
    $region61: #{forward.27} parent=1 // pred_fallthru
      _
    // Predicated region
    $region62: #{forward.27} parent=1 // pred_check
      _
    $region63: #{forward.27} parent=1 // pred_check_branch
      %117 = sbr.rel (0) target = $region65
    $region64: #{forward.27} parent=1 // pred_region
      %119 = dma.done [#allocation3], 16
    $region65: #{forward.27} parent=1 // pred_fallthru
      _
    // Predicated region
    $region66: #{forward.27} parent=1 // pred_check
      _
    $region67: #{forward.27} parent=1 // pred_check_branch
      %121 = sbr.rel (0) target = $region69
    $region68: #{forward.27} parent=1 // pred_region
      %123 = dma.done [#allocation6], 16
    $region69: #{forward.27} parent=1 // pred_fallthru
      _
    // Predicated region
    $region70: #{forward.27} parent=1 // pred_check
      _
    $region71: #{forward.27} parent=1 // pred_check_branch
      %125 = sbr.rel (0) target = $region73
    $region72: #{forward.27} parent=1 // pred_region
      %127 = dma.done [#allocation6], 16
    $region73: #{forward.27} parent=1 // pred_fallthru
      _
    // Predicated region
    $region74: #{forward.27} parent=1 // pred_check
      _
    $region75: #{forward.27} parent=1 // pred_check_branch
      %129 = sbr.rel (0) target = $region77
    $region76: #{forward.27} parent=1 // pred_region
      %131 = dma.done [#allocation9], 16
    $region77: #{forward.27} parent=1 // pred_fallthru
      _
    // Predicated region
    $region78: #{forward.27} parent=1 // pred_check
      _
    $region79: #{forward.27} parent=1 // pred_check_branch
      %133 = sbr.rel (0) target = $region81
    $region80: #{forward.27} parent=1 // pred_region
      %135 = dma.done [#allocation9], 16
    $region81: #{forward.27} parent=1 // pred_fallthru
      _
    // Predicated region
    $region82: #{forward.27} parent=1 // pred_check
      _
    $region83: #{forward.27} parent=1 // pred_check_branch
      %137 = sbr.rel (0) target = $region85
    $region84: #{forward.27} parent=1 // pred_region
      %139 = dma.done [#allocation12], 16
    $region85: #{forward.27} parent=1 // pred_fallthru
      _
    %v141 = vld [vmem:[%s0] sm:$0x3]
    %v142 = vld [vmem:[%s1] sm:$0x3]
    %v143 = vld [vmem:[%s2] sm:$0xf]
    %v144 = vld [vmem:[%s2 + $0x4] sm:$0xf]
    %v145 = vld [vmem:[%s2 + $0x8] sm:$0xf]
    %v146 = vld [vmem:[%s2 + $0xc] sm:$0xf]
    %v147 = vld [vmem:[%s2 + $0x10] sm:$0xf]
    %v148 = vld [vmem:[%s2 + $0x14] sm:$0xf]
    %v149 = vld [vmem:[%s2 + $0x18] sm:$0xf]
    %v150 = vld [vmem:[%s2 + $0x1c] sm:$0xf]
    %v151 = vld [vmem:[%s2 + $0x20] sm:$0xf]
    %v152 = vld [vmem:[%s2 + $0x24] sm:$0xf]
    %v153 = vld [vmem:[%s2 + $0x28] sm:$0xf]
    %v154 = vld [vmem:[%s2 + $0x2c] sm:$0xf]
    %v155 = vld [vmem:[%s2 + $0x30] sm:$0xf]
    %v156 = vld [vmem:[%s2 + $0x34] sm:$0xf]
    %v157 = vld [vmem:[%s2 + $0x38] sm:$0xf]
    %v158 = vld [vmem:[%s2 + $0x3c] sm:$0xf]
    %v159 = vld [vmem:[%s2 + $0x40] sm:$0xf]
    %v160 = vld [vmem:[%s2 + $0x44] sm:$0xf]
    %v161 = vld [vmem:[%s2 + $0x48] sm:$0xf]
    %v162 = vld [vmem:[%s2 + $0x4c] sm:$0xf]
    %v163 = vld [vmem:[%s2 + $0x50] sm:$0xf]
    %v164 = vld [vmem:[%s2 + $0x54] sm:$0xf]
    %v165 = vld [vmem:[%s2 + $0x58] sm:$0xf]
    %v166 = vld [vmem:[%s2 + $0x5c] sm:$0xf]
    %v167 = vld [vmem:[%s2 + $0x60] sm:$0xf]
    %v168 = vld [vmem:[%s2 + $0x64] sm:$0xf]
    %v169 = vld [vmem:[%s2 + $0x68] sm:$0xf]
    %v170 = vld [vmem:[%s2 + $0x6c] sm:$0xf]
    %v171 = vld [vmem:[%s2 + $0x70] sm:$0xf]
    %v172 = vld [vmem:[%s2 + $0x74] sm:$0xf]
    %v173 = vld [vmem:[%s2 + $0x78] sm:$0xf]
    %v174 = vld [vmem:[%s2 + $0x7c] sm:$0xf]
    %v175 = vld [vmem:[#allocation2] sm:$0x1]
    %v177 = vperm.slane %v175, 0
    %180 = vst [vmem:[#allocation1] ss:$9 sm:$0xff] %v141
    %v181 = vld [vmem:[#allocation1] sm:$0xff]
    %v182 = vld [vmem:[#allocation1 + $0x9] sm:$0xff]
    %v217 = vunpack.c.l.b16 %v143
    %v218 = vunpack.c.l.b16 %v144
    %v219 = vunpack.c.l.b16 %v145
    %v220 = vunpack.c.l.b16 %v146
    %v221 = vunpack.c.l.b16 %v147
    %v222 = vunpack.c.l.b16 %v148
    %v223 = vunpack.c.l.b16 %v149
    %v224 = vunpack.c.l.b16 %v150
    %v225 = vunpack.c.l.b16 %v151
    %v226 = vunpack.c.l.b16 %v152
    %v227 = vunpack.c.l.b16 %v153
    %v228 = vunpack.c.l.b16 %v154
    %v229 = vunpack.c.l.b16 %v155
    %v230 = vunpack.c.l.b16 %v156
    %v231 = vunpack.c.l.b16 %v157
    %v232 = vunpack.c.l.b16 %v158
    %v233 = vunpack.c.l.b16 %v159
    %v234 = vunpack.c.l.b16 %v160
    %v235 = vunpack.c.l.b16 %v161
    %v236 = vunpack.c.l.b16 %v162
    %v237 = vunpack.c.l.b16 %v163
    %v238 = vunpack.c.l.b16 %v164
    %v239 = vunpack.c.l.b16 %v165
    %v240 = vunpack.c.l.b16 %v166
    %v241 = vunpack.c.l.b16 %v167
    %v242 = vunpack.c.l.b16 %v168
    %v243 = vunpack.c.l.b16 %v169
    %v244 = vunpack.c.l.b16 %v170
    %v245 = vunpack.c.l.b16 %v171
    %v246 = vunpack.c.l.b16 %v172
    %v247 = vunpack.c.l.b16 %v173
    %v248 = vunpack.c.l.b16 %v174
    %v249 = vpack.c.b16 %v218, %v217
    %v250 = vpack.c.b16 %v220, %v219
    %v251 = vpack.c.b16 %v222, %v221
    %v252 = vpack.c.b16 %v224, %v223
    %v253 = vpack.c.b16 %v226, %v225
    %v254 = vpack.c.b16 %v228, %v227
    %v255 = vpack.c.b16 %v230, %v229
    %v256 = vpack.c.b16 %v232, %v231
    %v257 = vpack.c.b16 %v234, %v233
    %v258 = vpack.c.b16 %v236, %v235
    %v259 = vpack.c.b16 %v238, %v237
    %v260 = vpack.c.b16 %v240, %v239
    %v261 = vpack.c.b16 %v242, %v241
    %v262 = vpack.c.b16 %v244, %v243
    %v263 = vpack.c.b16 %v246, %v245
    %v264 = vpack.c.b16 %v248, %v247
    %281 = vmatpush.bf16.msra.mxu0 %v256
    %282 = vmatpush.bf16.msra.mxu0 %v255
    %283 = vmatpush.bf16.msra.mxu0 %v254
    %284 = vmatpush.bf16.msra.mxu0 %v253
    %285 = vmatpush.bf16.msra.mxu0 %v252
    %286 = vmatpush.bf16.msra.mxu0 %v251
    %287 = vmatpush.bf16.msra.mxu0 %v250
    %288 = vmatpush.bf16.msra.mxu0 %v249
    %289 = vmatmul.bf16.gmra.mxu0 %v181
    %v290 = vpop.f32.mrf.mxu0
    %v291 = vadd.f32 %v177, %v290
    %v292 = vpop.f32.mrf.mxu0
    %293 = vdwg.mxu0
    %294 = vmatpush.bf16.msra.mxu0 %v264
    %295 = vmatpush.bf16.msra.mxu0 %v263
    %296 = vmatpush.bf16.msra.mxu0 %v262
    %297 = vmatpush.bf16.msra.mxu0 %v261
    %298 = vmatpush.bf16.msra.mxu0 %v260
    %299 = vmatpush.bf16.msra.mxu0 %v259
    %300 = vmatpush.bf16.msra.mxu0 %v258
    %301 = vmatpush.bf16.msra.mxu0 %v257
    %302 = vmatmul.bf16.gmra.mxu0 %v182
    %v303 = vpop.f32.mrf.mxu0
    %v304 = vadd.f32 %v291, %v303
    %v305 = vpop.f32.mrf.mxu0
    %306 = vdwg.mxu0
    %v307 = vld [vmem:[%s4] sm:$0xf]
    %v308 = vld [vmem:[%s4 + $0x4] sm:$0xf]
    %v309 = vld [vmem:[%s4 + $0x8] sm:$0xf]
    %v310 = vld [vmem:[%s4 + $0xc] sm:$0xf]
    %v311 = vld [vmem:[%s4 + $0x10] sm:$0xf]
    %v312 = vld [vmem:[%s4 + $0x14] sm:$0xf]
    %v313 = vld [vmem:[%s4 + $0x18] sm:$0xf]
    %v314 = vld [vmem:[%s4 + $0x1c] sm:$0xf]
    %v315 = vld [vmem:[%s4 + $0x20] sm:$0xf]
    %v316 = vld [vmem:[%s4 + $0x24] sm:$0xf]
    %v317 = vld [vmem:[%s4 + $0x28] sm:$0xf]
    %v318 = vld [vmem:[%s4 + $0x2c] sm:$0xf]
    %v319 = vld [vmem:[%s4 + $0x30] sm:$0xf]
    %v320 = vld [vmem:[%s4 + $0x34] sm:$0xf]
    %v321 = vld [vmem:[%s4 + $0x38] sm:$0xf]
    %v322 = vld [vmem:[%s4 + $0x3c] sm:$0xf]
    %v323 = vld [vmem:[%s4 + $0x40] sm:$0xf]
    %v324 = vld [vmem:[%s4 + $0x44] sm:$0xf]
    %v325 = vld [vmem:[%s4 + $0x48] sm:$0xf]
    %v326 = vld [vmem:[%s4 + $0x4c] sm:$0xf]
    %v327 = vld [vmem:[%s4 + $0x50] sm:$0xf]
    %v328 = vld [vmem:[%s4 + $0x54] sm:$0xf]
    %v329 = vld [vmem:[%s4 + $0x58] sm:$0xf]
    %v330 = vld [vmem:[%s4 + $0x5c] sm:$0xf]
    %v331 = vld [vmem:[%s4 + $0x60] sm:$0xf]
    %v332 = vld [vmem:[%s4 + $0x64] sm:$0xf]
    %v333 = vld [vmem:[%s4 + $0x68] sm:$0xf]
    %v334 = vld [vmem:[%s4 + $0x6c] sm:$0xf]
    %v335 = vld [vmem:[%s4 + $0x70] sm:$0xf]
    %v336 = vld [vmem:[%s4 + $0x74] sm:$0xf]
    %v337 = vld [vmem:[%s4 + $0x78] sm:$0xf]
    %v338 = vld [vmem:[%s4 + $0x7c] sm:$0xf]
    %v339 = vld [vmem:[#allocation5] sm:$0x1]
    %v341 = vperm.slane %v339, 0
    %344 = vst [vmem:[#allocation1] ss:$9 sm:$0xff] %v142
    %v345 = vld [vmem:[#allocation1] sm:$0xff]
    %v346 = vld [vmem:[#allocation1 + $0x9] sm:$0xff]
    %v381 = vunpack.c.l.b16 %v307
    %v382 = vunpack.c.l.b16 %v308
    %v383 = vunpack.c.l.b16 %v309
    %v384 = vunpack.c.l.b16 %v310
    %v385 = vunpack.c.l.b16 %v311
    %v386 = vunpack.c.l.b16 %v312
    %v387 = vunpack.c.l.b16 %v313
    %v388 = vunpack.c.l.b16 %v314
    %v389 = vunpack.c.l.b16 %v315
    %v390 = vunpack.c.l.b16 %v316
    %v391 = vunpack.c.l.b16 %v317
    %v392 = vunpack.c.l.b16 %v318
    %v393 = vunpack.c.l.b16 %v319
    %v394 = vunpack.c.l.b16 %v320
    %v395 = vunpack.c.l.b16 %v321
    %v396 = vunpack.c.l.b16 %v322
    %v397 = vunpack.c.l.b16 %v323
    %v398 = vunpack.c.l.b16 %v324
    %v399 = vunpack.c.l.b16 %v325
    %v400 = vunpack.c.l.b16 %v326
    %v401 = vunpack.c.l.b16 %v327
    %v402 = vunpack.c.l.b16 %v328
    %v403 = vunpack.c.l.b16 %v329
    %v404 = vunpack.c.l.b16 %v330
    %v405 = vunpack.c.l.b16 %v331
    %v406 = vunpack.c.l.b16 %v332
    %v407 = vunpack.c.l.b16 %v333
    %v408 = vunpack.c.l.b16 %v334
    %v409 = vunpack.c.l.b16 %v335
    %v410 = vunpack.c.l.b16 %v336
    %v411 = vunpack.c.l.b16 %v337
    %v412 = vunpack.c.l.b16 %v338
    %v413 = vpack.c.b16 %v382, %v381
    %v414 = vpack.c.b16 %v384, %v383
    %v415 = vpack.c.b16 %v386, %v385
    %v416 = vpack.c.b16 %v388, %v387
    %v417 = vpack.c.b16 %v390, %v389
    %v418 = vpack.c.b16 %v392, %v391
    %v419 = vpack.c.b16 %v394, %v393
    %v420 = vpack.c.b16 %v396, %v395
    %v421 = vpack.c.b16 %v398, %v397
    %v422 = vpack.c.b16 %v400, %v399
    %v423 = vpack.c.b16 %v402, %v401
    %v424 = vpack.c.b16 %v404, %v403
    %v425 = vpack.c.b16 %v406, %v405
    %v426 = vpack.c.b16 %v408, %v407
    %v427 = vpack.c.b16 %v410, %v409
    %v428 = vpack.c.b16 %v412, %v411
    %445 = vmatpush.bf16.msra.mxu0 %v420
    %446 = vmatpush.bf16.msra.mxu0 %v419
    %447 = vmatpush.bf16.msra.mxu0 %v418
    %448 = vmatpush.bf16.msra.mxu0 %v417
    %449 = vmatpush.bf16.msra.mxu0 %v416
    %450 = vmatpush.bf16.msra.mxu0 %v415
    %451 = vmatpush.bf16.msra.mxu0 %v414
    %452 = vmatpush.bf16.msra.mxu0 %v413
    %453 = vmatmul.bf16.gmra.mxu0 %v345
    %v454 = vpop.f32.mrf.mxu0
    %v455 = vadd.f32 %v341, %v454
    %v456 = vpop.f32.mrf.mxu0
    %457 = vdwg.mxu0
    %458 = vmatpush.bf16.msra.mxu0 %v428
    %459 = vmatpush.bf16.msra.mxu0 %v427
    %460 = vmatpush.bf16.msra.mxu0 %v426
    %461 = vmatpush.bf16.msra.mxu0 %v425
    %462 = vmatpush.bf16.msra.mxu0 %v424
    %463 = vmatpush.bf16.msra.mxu0 %v423
    %464 = vmatpush.bf16.msra.mxu0 %v422
    %465 = vmatpush.bf16.msra.mxu0 %v421
    %466 = vmatmul.bf16.gmra.mxu0 %v346
    %v467 = vpop.f32.mrf.mxu0
    %v468 = vadd.f32 %v455, %v467
    %v469 = vpop.f32.mrf.mxu0
    %470 = vdwg.mxu0
    %v471 = vpack.c.bf16 %v304, %v304
    %v472 = vpack.c.bf16 %v468, %v468
    %v473 = vld [vmem:[%s10] sm:$0xf]
    %v474 = vld [vmem:[%s10 + $0x4] sm:$0xf]
    %v475 = vld [vmem:[%s10 + $0x8] sm:$0xf]
    %v476 = vld [vmem:[%s10 + $0xc] sm:$0xf]
    %v477 = vld [vmem:[%s10 + $0x10] sm:$0xf]
    %v478 = vld [vmem:[%s10 + $0x14] sm:$0xf]
    %v479 = vld [vmem:[%s10 + $0x18] sm:$0xf]
    %v480 = vld [vmem:[%s10 + $0x1c] sm:$0xf]
    %v481 = vld [vmem:[%s10 + $0x20] sm:$0xf]
    %v482 = vld [vmem:[%s10 + $0x24] sm:$0xf]
    %v483 = vld [vmem:[%s10 + $0x28] sm:$0xf]
    %v484 = vld [vmem:[%s10 + $0x2c] sm:$0xf]
    %v485 = vld [vmem:[%s10 + $0x30] sm:$0xf]
    %v486 = vld [vmem:[%s10 + $0x34] sm:$0xf]
    %v487 = vld [vmem:[%s10 + $0x38] sm:$0xf]
    %v488 = vld [vmem:[%s10 + $0x3c] sm:$0xf]
    %v489 = vld [vmem:[%s10 + $0x40] sm:$0xf]
    %v490 = vld [vmem:[%s10 + $0x44] sm:$0xf]
    %v491 = vld [vmem:[%s10 + $0x48] sm:$0xf]
    %v492 = vld [vmem:[%s10 + $0x4c] sm:$0xf]
    %v493 = vld [vmem:[%s10 + $0x50] sm:$0xf]
    %v494 = vld [vmem:[%s10 + $0x54] sm:$0xf]
    %v495 = vld [vmem:[%s10 + $0x58] sm:$0xf]
    %v496 = vld [vmem:[%s10 + $0x5c] sm:$0xf]
    %v497 = vld [vmem:[%s10 + $0x60] sm:$0xf]
    %v498 = vld [vmem:[%s10 + $0x64] sm:$0xf]
    %v499 = vld [vmem:[%s10 + $0x68] sm:$0xf]
    %v500 = vld [vmem:[%s10 + $0x6c] sm:$0xf]
    %v501 = vld [vmem:[%s10 + $0x70] sm:$0xf]
    %v502 = vld [vmem:[%s10 + $0x74] sm:$0xf]
    %v503 = vld [vmem:[%s10 + $0x78] sm:$0xf]
    %v504 = vld [vmem:[%s10 + $0x7c] sm:$0xf]
    %v505 = vld [vmem:[#allocation10] sm:$0x1]
    %v507 = vperm.slane %v505, 0
    %509 = vst [vmem:[#allocation1] ss:$9 sm:$0xff] %v141
    %v510 = vld [vmem:[#allocation1] sm:$0xff]
    %v511 = vld [vmem:[#allocation1 + $0x9] sm:$0xff]
    %v546 = vunpack.c.l.b16 %v473
    %v547 = vunpack.c.l.b16 %v474
    %v548 = vunpack.c.l.b16 %v475
    %v549 = vunpack.c.l.b16 %v476
    %v550 = vunpack.c.l.b16 %v477
    %v551 = vunpack.c.l.b16 %v478
    %v552 = vunpack.c.l.b16 %v479
    %v553 = vunpack.c.l.b16 %v480
    %v554 = vunpack.c.l.b16 %v481
    %v555 = vunpack.c.l.b16 %v482
    %v556 = vunpack.c.l.b16 %v483
    %v557 = vunpack.c.l.b16 %v484
    %v558 = vunpack.c.l.b16 %v485
    %v559 = vunpack.c.l.b16 %v486
    %v560 = vunpack.c.l.b16 %v487
    %v561 = vunpack.c.l.b16 %v488
    %v562 = vunpack.c.l.b16 %v489
    %v563 = vunpack.c.l.b16 %v490
    %v564 = vunpack.c.l.b16 %v491
    %v565 = vunpack.c.l.b16 %v492
    %v566 = vunpack.c.l.b16 %v493
    %v567 = vunpack.c.l.b16 %v494
    %v568 = vunpack.c.l.b16 %v495
    %v569 = vunpack.c.l.b16 %v496
    %v570 = vunpack.c.l.b16 %v497
    %v571 = vunpack.c.l.b16 %v498
    %v572 = vunpack.c.l.b16 %v499
    %v573 = vunpack.c.l.b16 %v500
    %v574 = vunpack.c.l.b16 %v501
    %v575 = vunpack.c.l.b16 %v502
    %v576 = vunpack.c.l.b16 %v503
    %v577 = vunpack.c.l.b16 %v504
    %v578 = vpack.c.b16 %v547, %v546
    %v579 = vpack.c.b16 %v549, %v548
    %v580 = vpack.c.b16 %v551, %v550
    %v581 = vpack.c.b16 %v553, %v552
    %v582 = vpack.c.b16 %v555, %v554
    %v583 = vpack.c.b16 %v557, %v556
    %v584 = vpack.c.b16 %v559, %v558
    %v585 = vpack.c.b16 %v561, %v560
    %v586 = vpack.c.b16 %v563, %v562
    %v587 = vpack.c.b16 %v565, %v564
    %v588 = vpack.c.b16 %v567, %v566
    %v589 = vpack.c.b16 %v569, %v568
    %v590 = vpack.c.b16 %v571, %v570
    %v591 = vpack.c.b16 %v573, %v572
    %v592 = vpack.c.b16 %v575, %v574
    %v593 = vpack.c.b16 %v577, %v576
    %610 = vmatpush.bf16.msra.mxu0 %v585
    %611 = vmatpush.bf16.msra.mxu0 %v584
    %612 = vmatpush.bf16.msra.mxu0 %v583
    %613 = vmatpush.bf16.msra.mxu0 %v582
    %614 = vmatpush.bf16.msra.mxu0 %v581
    %615 = vmatpush.bf16.msra.mxu0 %v580
    %616 = vmatpush.bf16.msra.mxu0 %v579
    %617 = vmatpush.bf16.msra.mxu0 %v578
    %618 = vmatmul.bf16.gmra.mxu0 %v510
    %v619 = vpop.f32.mrf.mxu0
    %v620 = vadd.f32 %v507, %v619
    %v621 = vpop.f32.mrf.mxu0
    %622 = vdwg.mxu0
    %623 = vmatpush.bf16.msra.mxu0 %v593
    %624 = vmatpush.bf16.msra.mxu0 %v592
    %625 = vmatpush.bf16.msra.mxu0 %v591
    %626 = vmatpush.bf16.msra.mxu0 %v590
    %627 = vmatpush.bf16.msra.mxu0 %v589
    %628 = vmatpush.bf16.msra.mxu0 %v588
    %629 = vmatpush.bf16.msra.mxu0 %v587
    %630 = vmatpush.bf16.msra.mxu0 %v586
    %631 = vmatmul.bf16.gmra.mxu0 %v511
    %v632 = vpop.f32.mrf.mxu0
    %v633 = vadd.f32 %v620, %v632
    %v634 = vpop.f32.mrf.mxu0
    %635 = vdwg.mxu0
    %v636 = vld [vmem:[%s6] sm:$0xf]
    %v637 = vld [vmem:[%s6 + $0x4] sm:$0xf]
    %v638 = vld [vmem:[%s6 + $0x8] sm:$0xf]
    %v639 = vld [vmem:[%s6 + $0xc] sm:$0xf]
    %v644 = vunpack.c.l.b16 %v636
    %v645 = vunpack.c.l.b16 %v637
    %v646 = vunpack.c.l.b16 %v638
    %v647 = vunpack.c.l.b16 %v639
    %v648 = vpack.c.b16 %v645, %v644
    %v649 = vpack.c.b16 %v647, %v646
    %vm652 = vcmask 261120
    %v654 = vsel %vm652, %v471, 0
    %656 = vmatpush.bf16.msra.mxu0 0
    %657 = vmatpush.bf16.msra.mxu0 0
    %658 = vmatpush.bf16.msra.mxu0 0
    %659 = vmatpush.bf16.msra.mxu0 0
    %660 = vmatpush.bf16.msra.mxu0 0
    %661 = vmatpush.bf16.msra.mxu0 0
    %662 = vmatpush.bf16.msra.mxu0 %v649
    %663 = vmatpush.bf16.msra.mxu0 %v648
    %664 = vmatmul.bf16.gmra.mxu0 %v654
    %v665 = vpop.f32.mrf.mxu0
    %v666 = vadd.f32 0.0, %v665
    %v667 = vpop.f32.mrf.mxu0
    %668 = vdwg.mxu0
    %v669 = vadd.f32 %v633, %v666
    %v670 = vld [vmem:[#allocation7] sm:$0x1]
    %v672 = vperm.slane %v670, 0
    %v674 = vadd.f32 %v669, %v672
    %v675 = vmul.f32 %v674, 0.5
    %v676 = vld [vmem:[%s12] sm:$0xf]
    %v677 = vld [vmem:[%s12 + $0x4] sm:$0xf]
    %v678 = vld [vmem:[%s12 + $0x8] sm:$0xf]
    %v679 = vld [vmem:[%s12 + $0xc] sm:$0xf]
    %v680 = vld [vmem:[%s12 + $0x10] sm:$0xf]
    %v681 = vld [vmem:[%s12 + $0x14] sm:$0xf]
    %v682 = vld [vmem:[%s12 + $0x18] sm:$0xf]
    %v683 = vld [vmem:[%s12 + $0x1c] sm:$0xf]
    %v684 = vld [vmem:[%s12 + $0x20] sm:$0xf]
    %v685 = vld [vmem:[%s12 + $0x24] sm:$0xf]
    %v686 = vld [vmem:[%s12 + $0x28] sm:$0xf]
    %v687 = vld [vmem:[%s12 + $0x2c] sm:$0xf]
    %v688 = vld [vmem:[%s12 + $0x30] sm:$0xf]
    %v689 = vld [vmem:[%s12 + $0x34] sm:$0xf]
    %v690 = vld [vmem:[%s12 + $0x38] sm:$0xf]
    %v691 = vld [vmem:[%s12 + $0x3c] sm:$0xf]
    %v692 = vld [vmem:[%s12 + $0x40] sm:$0xf]
    %v693 = vld [vmem:[%s12 + $0x44] sm:$0xf]
    %v694 = vld [vmem:[%s12 + $0x48] sm:$0xf]
    %v695 = vld [vmem:[%s12 + $0x4c] sm:$0xf]
    %v696 = vld [vmem:[%s12 + $0x50] sm:$0xf]
    %v697 = vld [vmem:[%s12 + $0x54] sm:$0xf]
    %v698 = vld [vmem:[%s12 + $0x58] sm:$0xf]
    %v699 = vld [vmem:[%s12 + $0x5c] sm:$0xf]
    %v700 = vld [vmem:[%s12 + $0x60] sm:$0xf]
    %v701 = vld [vmem:[%s12 + $0x64] sm:$0xf]
    %v702 = vld [vmem:[%s12 + $0x68] sm:$0xf]
    %v703 = vld [vmem:[%s12 + $0x6c] sm:$0xf]
    %v704 = vld [vmem:[%s12 + $0x70] sm:$0xf]
    %v705 = vld [vmem:[%s12 + $0x74] sm:$0xf]
    %v706 = vld [vmem:[%s12 + $0x78] sm:$0xf]
    %v707 = vld [vmem:[%s12 + $0x7c] sm:$0xf]
    %v708 = vld [vmem:[#allocation11] sm:$0x1]
    %v710 = vperm.slane %v708, 0
    %712 = vst [vmem:[#allocation1] ss:$9 sm:$0xff] %v142
    %v713 = vld [vmem:[#allocation1] sm:$0xff]
    %v714 = vld [vmem:[#allocation1 + $0x9] sm:$0xff]
    %v749 = vunpack.c.l.b16 %v676
    %v750 = vunpack.c.l.b16 %v677
    %v751 = vunpack.c.l.b16 %v678
    %v752 = vunpack.c.l.b16 %v679
    %v753 = vunpack.c.l.b16 %v680
    %v754 = vunpack.c.l.b16 %v681
    %v755 = vunpack.c.l.b16 %v682
    %v756 = vunpack.c.l.b16 %v683
    %v757 = vunpack.c.l.b16 %v684
    %v758 = vunpack.c.l.b16 %v685
    %v759 = vunpack.c.l.b16 %v686
    %v760 = vunpack.c.l.b16 %v687
    %v761 = vunpack.c.l.b16 %v688
    %v762 = vunpack.c.l.b16 %v689
    %v763 = vunpack.c.l.b16 %v690
    %v764 = vunpack.c.l.b16 %v691
    %v765 = vunpack.c.l.b16 %v692
    %v766 = vunpack.c.l.b16 %v693
    %v767 = vunpack.c.l.b16 %v694
    %v768 = vunpack.c.l.b16 %v695
    %v769 = vunpack.c.l.b16 %v696
    %v770 = vunpack.c.l.b16 %v697
    %v771 = vunpack.c.l.b16 %v698
    %v772 = vunpack.c.l.b16 %v699
    %v773 = vunpack.c.l.b16 %v700
    %v774 = vunpack.c.l.b16 %v701
    %v775 = vunpack.c.l.b16 %v702
    %v776 = vunpack.c.l.b16 %v703
    %v777 = vunpack.c.l.b16 %v704
    %v778 = vunpack.c.l.b16 %v705
    %v779 = vunpack.c.l.b16 %v706
    %v780 = vunpack.c.l.b16 %v707
    %v781 = vpack.c.b16 %v750, %v749
    %v782 = vpack.c.b16 %v752, %v751
    %v783 = vpack.c.b16 %v754, %v753
    %v784 = vpack.c.b16 %v756, %v755
    %v785 = vpack.c.b16 %v758, %v757
    %v786 = vpack.c.b16 %v760, %v759
    %v787 = vpack.c.b16 %v762, %v761
    %v788 = vpack.c.b16 %v764, %v763
    %v789 = vpack.c.b16 %v766, %v765
    %v790 = vpack.c.b16 %v768, %v767
    %v791 = vpack.c.b16 %v770, %v769
    %v792 = vpack.c.b16 %v772, %v771
    %v793 = vpack.c.b16 %v774, %v773
    %v794 = vpack.c.b16 %v776, %v775
    %v795 = vpack.c.b16 %v778, %v777
    %v796 = vpack.c.b16 %v780, %v779
    %813 = vmatpush.bf16.msra.mxu0 %v788
    %814 = vmatpush.bf16.msra.mxu0 %v787
    %815 = vmatpush.bf16.msra.mxu0 %v786
    %816 = vmatpush.bf16.msra.mxu0 %v785
    %817 = vmatpush.bf16.msra.mxu0 %v784
    %818 = vmatpush.bf16.msra.mxu0 %v783
    %819 = vmatpush.bf16.msra.mxu0 %v782
    %820 = vmatpush.bf16.msra.mxu0 %v781
    %821 = vmatmul.bf16.gmra.mxu0 %v713
    %v822 = vpop.f32.mrf.mxu0
    %v823 = vadd.f32 %v710, %v822
    %v824 = vpop.f32.mrf.mxu0
    %825 = vdwg.mxu0
    %826 = vmatpush.bf16.msra.mxu0 %v796
    %827 = vmatpush.bf16.msra.mxu0 %v795
    %828 = vmatpush.bf16.msra.mxu0 %v794
    %829 = vmatpush.bf16.msra.mxu0 %v793
    %830 = vmatpush.bf16.msra.mxu0 %v792
    %831 = vmatpush.bf16.msra.mxu0 %v791
    %832 = vmatpush.bf16.msra.mxu0 %v790
    %833 = vmatpush.bf16.msra.mxu0 %v789
    %834 = vmatmul.bf16.gmra.mxu0 %v714
    %v835 = vpop.f32.mrf.mxu0
    %v836 = vadd.f32 %v823, %v835
    %v837 = vpop.f32.mrf.mxu0
    %838 = vdwg.mxu0
    %v839 = vld [vmem:[%s8] sm:$0xf]
    %v840 = vld [vmem:[%s8 + $0x4] sm:$0xf]
    %v841 = vld [vmem:[%s8 + $0x8] sm:$0xf]
    %v842 = vld [vmem:[%s8 + $0xc] sm:$0xf]
    %v847 = vunpack.c.l.b16 %v839
    %v848 = vunpack.c.l.b16 %v840
    %v849 = vunpack.c.l.b16 %v841
    %v850 = vunpack.c.l.b16 %v842
    %v851 = vpack.c.b16 %v848, %v847
    %v852 = vpack.c.b16 %v850, %v849
    %v856 = vsel %vm652, %v472, 0
    %858 = vmatpush.bf16.msra.mxu0 0
    %859 = vmatpush.bf16.msra.mxu0 0
    %860 = vmatpush.bf16.msra.mxu0 0
    %861 = vmatpush.bf16.msra.mxu0 0
    %862 = vmatpush.bf16.msra.mxu0 0
    %863 = vmatpush.bf16.msra.mxu0 0
    %864 = vmatpush.bf16.msra.mxu0 %v852
    %865 = vmatpush.bf16.msra.mxu0 %v851
    %866 = vmatmul.bf16.gmra.mxu0 %v856
    %v867 = vpop.f32.mrf.mxu0
    %v868 = vadd.f32 0.0, %v867
    %v869 = vpop.f32.mrf.mxu0
    %870 = vdwg.mxu0
    %v871 = vadd.f32 %v836, %v868
    %v872 = vld [vmem:[#allocation8] sm:$0x1]
    %v874 = vperm.slane %v872, 0
    %v876 = vadd.f32 %v871, %v874
    %v877 = vmul.f32 %v876, 0.5
    %v878 = vadd.f32 %v675, %v877
    %v879 = vmul.f32 %v878, 0.5
    %vm880 = vcmask 74752
    %881 = vst.msk [vmem:[#allocation13] sm:$0x3] %vm880, %v879
    %vm882 = vcmask 254976
    %883 = vst.msk [vmem:[#allocation14] sm:$0x3] %vm882, %v304
    %884 = vst.msk [vmem:[#allocation16] sm:$0x3] %vm882, %v468
    %v885 = vld [vmem:[%s14] sm:$0xf]
    %v886 = vld [vmem:[%s14 + $0x4] sm:$0xf]
    %v887 = vld [vmem:[%s14 + $0x8] sm:$0xf]
    %v888 = vld [vmem:[%s14 + $0xc] sm:$0xf]
    %v893 = vunpack.c.l.b16 %v885
    %v894 = vunpack.c.l.b16 %v886
    %v895 = vunpack.c.l.b16 %v887
    %v896 = vunpack.c.l.b16 %v888
    %v897 = vpack.c.b16 %v894, %v893
    %v898 = vpack.c.b16 %v896, %v895
    %901 = vmatpush.bf16.msra.mxu0 0
    %902 = vmatpush.bf16.msra.mxu0 0
    %903 = vmatpush.bf16.msra.mxu0 0
    %904 = vmatpush.bf16.msra.mxu0 0
    %905 = vmatpush.bf16.msra.mxu0 0
    %906 = vmatpush.bf16.msra.mxu0 0
    %907 = vmatpush.bf16.msra.mxu0 %v898
    %908 = vmatpush.bf16.msra.mxu0 %v897
    %909 = vmatmul.bf16.gmra.mxu0 %v654
    %v910 = vpop.f32.mrf.mxu0
    %v911 = vadd.f32 0.0, %v910
    %v912 = vpop.f32.mrf.mxu0
    %913 = vdwg.mxu0
    %vm914 = vcmask 402432
    %915 = vst.msk [vmem:[#allocation17] sm:$0x3] %vm914, %v911
    %v916 = vld [vmem:[%s14] sm:$0xf]
    %v917 = vld [vmem:[%s14 + $0x4] sm:$0xf]
    %v918 = vld [vmem:[%s14 + $0x8] sm:$0xf]
    %v919 = vld [vmem:[%s14 + $0xc] sm:$0xf]
    %v924 = vunpack.c.l.b16 %v916
    %v925 = vunpack.c.l.b16 %v917
    %v926 = vunpack.c.l.b16 %v918
    %v927 = vunpack.c.l.b16 %v919
    %v928 = vpack.c.b16 %v925, %v924
    %v929 = vpack.c.b16 %v927, %v926
    %932 = vmatpush.bf16.msra.mxu0 0
    %933 = vmatpush.bf16.msra.mxu0 0
    %934 = vmatpush.bf16.msra.mxu0 0
    %935 = vmatpush.bf16.msra.mxu0 0
    %936 = vmatpush.bf16.msra.mxu0 0
    %937 = vmatpush.bf16.msra.mxu0 0
    %938 = vmatpush.bf16.msra.mxu0 %v929
    %939 = vmatpush.bf16.msra.mxu0 %v928
    %940 = vmatmul.bf16.gmra.mxu0 %v856
    %v941 = vpop.f32.mrf.mxu0
    %v942 = vadd.f32 0.0, %v941
    %v943 = vpop.f32.mrf.mxu0
    %944 = vdwg.mxu0
    %945 = vst.msk [vmem:[#allocation19] sm:$0x3] %vm914, %v942
    // Predicated region
    $region86: #{forward.27} parent=1 // pred_check
      _
    $region87: #{forward.27} parent=1 // pred_check_branch
      %947 = sbr.rel (0) target = $region89
    $region88: #{forward.27} parent=1 // pred_region
      %949 = vsyncadd [#allocation4], 0
      %s951 = sshll.u32 [#allocation13], 4
      %s952 = int_to_ptr.vmem [resolvable:$true] %s951
      %s953 = sshll.u32 %s15, 4
      %s954 = int_to_ptr.hbm [resolvable:$true] %s953
      %956 = dma.vmem_to_hbm [thread:$0]  %s952, 32, %s954, [#allocation4]
    $region89: #{forward.27} parent=1 // pred_fallthru
      _
    // Predicated region
    $region90: #{forward.27} parent=1 // pred_check
      _
    $region91: #{forward.27} parent=1 // pred_check_branch
      %958 = sbr.rel (0) target = $region93
    $region92: #{forward.27} parent=1 // pred_region
      %960 = vsyncadd [#allocation15], 0
      %s962 = sshll.u32 [#allocation14], 4
      %s963 = int_to_ptr.vmem [resolvable:$true] %s962
      %s964 = sshll.u32 %s16, 4
      %s965 = int_to_ptr.hbm [resolvable:$true] %s964
      %967 = dma.vmem_to_hbm [thread:$0]  %s963, 32, %s965, [#allocation15]
    $region93: #{forward.27} parent=1 // pred_fallthru
      _
    // Predicated region
    $region94: #{forward.27} parent=1 // pred_check
      _
    $region95: #{forward.27} parent=1 // pred_check_branch
      %969 = sbr.rel (0) target = $region97
    $region96: #{forward.27} parent=1 // pred_region
      %971 = vsyncadd [#allocation15], 0
      %s973 = sshll.u32 [#allocation16], 4
      %s974 = int_to_ptr.vmem [resolvable:$true] %s973
      %s975 = sshll.u32 %s17, 4
      %s976 = int_to_ptr.hbm [resolvable:$true] %s975
      %978 = dma.vmem_to_hbm [thread:$0]  %s974, 32, %s976, [#allocation15]
    $region97: #{forward.27} parent=1 // pred_fallthru
      _
    // Predicated region
    $region98: #{forward.27} parent=1 // pred_check
      _
    $region99: #{forward.27} parent=1 // pred_check_branch
      %980 = sbr.rel (0) target = $region101
    $region100: #{forward.27} parent=1 // pred_region
      %982 = vsyncadd [#allocation18], 0
      %s984 = sshll.u32 [#allocation17], 4
      %s985 = int_to_ptr.vmem [resolvable:$true] %s984
      %s986 = sshll.u32 %s18, 4
      %s987 = int_to_ptr.hbm [resolvable:$true] %s986
      %989 = dma.vmem_to_hbm [thread:$0]  %s985, 32, %s987, [#allocation18]
    $region101: #{forward.27} parent=1 // pred_fallthru
      _
    // Predicated region
    $region102: #{forward.27} parent=1 // pred_check
      _
    $region103: #{forward.27} parent=1 // pred_check_branch
      %991 = sbr.rel (0) target = $region105
    $region104: #{forward.27} parent=1 // pred_region
      %993 = vsyncadd [#allocation18], 0
      %s995 = sshll.u32 [#allocation19], 4
      %s996 = int_to_ptr.vmem [resolvable:$true] %s995
      %s997 = sshll.u32 %s19, 4
      %s998 = int_to_ptr.hbm [resolvable:$true] %s997
      %1000 = dma.vmem_to_hbm [thread:$0]  %s996, 32, %s998, [#allocation18]
    $region105: #{forward.27} parent=1 // pred_fallthru
      _
    // Predicated region
    $region106: #{forward.27} parent=1 // pred_check
      _
    $region107: #{forward.27} parent=1 // pred_check_branch
      %1002 = sbr.rel (0) target = $region109
    $region108: #{forward.27} parent=1 // pred_region
      %1004 = dma.done [#allocation4], 32
    $region109: #{forward.27} parent=1 // pred_fallthru
      _
    // Predicated region
    $region110: #{forward.27} parent=1 // pred_check
      _
    $region111: #{forward.27} parent=1 // pred_check_branch
      %1006 = sbr.rel (0) target = $region113
    $region112: #{forward.27} parent=1 // pred_region
      %1008 = dma.done [#allocation15], 32
    $region113: #{forward.27} parent=1 // pred_fallthru
      _
    // Predicated region
    $region114: #{forward.27} parent=1 // pred_check
      _
    $region115: #{forward.27} parent=1 // pred_check_branch
      %1010 = sbr.rel (0) target = $region117
    $region116: #{forward.27} parent=1 // pred_region
      %1012 = dma.done [#allocation15], 32
    $region117: #{forward.27} parent=1 // pred_fallthru
      _
    // Predicated region
    $region118: #{forward.27} parent=1 // pred_check
      _
    $region119: #{forward.27} parent=1 // pred_check_branch
      %1014 = sbr.rel (0) target = $region121
    $region120: #{forward.27} parent=1 // pred_region
      %1016 = dma.done [#allocation18], 32
    $region121: #{forward.27} parent=1 // pred_fallthru
      _
    // Predicated region
    $region122: #{forward.27} parent=1 // pred_check
      _
    $region123: #{forward.27} parent=1 // pred_check_branch
      %1018 = sbr.rel (0) target = $region125
    $region124: #{forward.27} parent=1 // pred_region
      %1020 = dma.done [#allocation18], 32
    $region125: #{forward.27} parent=1 // pred_fallthru
      _
    %1021 = vsyncpa [#allocation3], 1
    %1022 = vsyncpa [#allocation6], 1
    %1023 = vsyncpa [#allocation9], 1
    %1024 = vsyncpa [#allocation12], 1
    %1025 = vsyncpa [#allocation4], 1
    %1026 = vsyncpa [#allocation15], 1
    %1027 = vsyncpa [#allocation18], 1

</llo_original>
